<compile_context>
chip_gen: v7x
topology: tpu7x:2x2x1
jax: 0.10.0
libtpu: 0.0.40
codegen_flags: <defaults>
</compile_context>

<pallas_src>
import functools

import jax
import jax.numpy as jnp
from jax import lax
from jax.experimental import pallas as pl
from jax.experimental.pallas import tpu as pltpu


ENC_KEYS = ('wrx', 'wrh', 'br', 'wux', 'wuh', 'bu', 'wnx', 'wnh', 'bn')
DEC_KEYS = ('wrx', 'wrh', 'wrs', 'br', 'wux', 'wuh', 'wus', 'bu',
            'wnx', 'wnh', 'wns', 'bn')


def _sigmoid(z):
    return 1.0 / (1.0 + jnp.exp(-z))


def _dot(a, b):
    return jnp.dot(a, b, preferred_element_type=jnp.float32)


def _const_spec(shape):
    """BlockSpec for an operand that is loaded once and stays resident (constant index map)."""
    zeros = (0,) * len(shape)
    return pl.BlockSpec(shape, lambda t, _z=zeros: _z)


# --------------------------------------------------------------------------
# Fused encoder: all GRU layers over the whole sequence + linear_summary +
# linear_hidden in a single pallas_call (grid over time steps).
# --------------------------------------------------------------------------
def encoder_forward(x_emb, params):
    S, B, E = x_emb.shape
    layers = params['enc_gru']
    L = len(layers)
    H = params['sum_w'].shape[0]

    weights = []
    for lp in layers:
        weights += [lp[k] for k in ENC_KEYS]
    weights += [params['sum_w'], params['sum_b'], params['hid_w'], params['hid_b']]
    n_lw = len(ENC_KEYS)

    def kernel(*refs):
        x_ref = refs[0]
        off = 1
        layer_refs = []
        for _ in range(L):
            layer_refs.append(refs[off:off + n_lw])
            off += n_lw
        sum_w, sum_b, hid_w, hid_b = refs[off:off + 4]
        off += 4
        summary_ref = refs[off]
        hidden0_ref = refs[off + 1]
        h_scr = refs[off + 2]

        t = pl.program_id(0)

        @pl.when(t == 0)
        def _init():
            h_scr[...] = jnp.zeros_like(h_scr)

        layer_in = x_ref[0]                                  # [B, E]
        for l in range(L):
            wrx, wrh, br, wux, wuh, bu, wnx, wnh, bn = layer_refs[l]
            h = h_scr[l]                                     # [B, H]
            r = _sigmoid(_dot(layer_in, wrx[...]) + _dot(h, wrh[...]) + br[...])
            u = _sigmoid(_dot(layer_in, wux[...]) + _dot(h, wuh[...]) + bu[...])
            n = jnp.tanh(_dot(layer_in, wnx[...]) + _dot(r * h, wnh[...]) + bn[...])
            h_new = u * h + (1.0 - u) * n
            h_scr[l] = h_new
            layer_in = h_new

        # Fused linear_summary / linear_hidden at the last time step.
        @pl.when(t == S - 1)
        def _finalize():
            for l in range(L):
                s_l = jnp.tanh(_dot(h_scr[l], sum_w[...]) + sum_b[...])
                summary_ref[l] = s_l
                hidden0_ref[l] = jnp.tanh(_dot(s_l, hid_w[...]) + hid_b[...])

    in_specs = [pl.BlockSpec((1, B, E), lambda t: (t, 0, 0))]
    in_specs += [_const_spec(w.shape) for w in weights]

    summary, hidden0 = pl.pallas_call(
        kernel,
        grid=(S,),
        in_specs=in_specs,
        out_specs=(_const_spec((L, B, H)), _const_spec((L, B, H))),
        out_shape=(jax.ShapeDtypeStruct((L, B, H), jnp.float32),
                   jax.ShapeDtypeStruct((L, B, H), jnp.float32)),
        scratch_shapes=[pltpu.VMEM((L, B, H), jnp.float32)],
        compiler_params=pltpu.CompilerParams(
            dimension_semantics=("arbitrary",),
            vmem_limit_bytes=16 * 1024 * 1024),
    )(x_emb, *weights)
    return summary, hidden0


# --------------------------------------------------------------------------
# Fused greedy decoder loop: embedding feedback, both GRU layers, maxout head
# and argmax all inside one pallas_call (grid over decode steps).
# Returns lane-padded logits [max_len-1, B, OP].
# --------------------------------------------------------------------------
def decoder_forward(hidden0, summary, emb0, params, max_len):
    L, B, H = hidden0.shape
    E = emb0.shape[1]
    O = params['dec_emb'].shape[0]            # real output vocab
    OP = params['out_w_p'].shape[1]           # lane-padded output vocab (multiple of 128)
    M = params['out_w_p'].shape[0]            # padded num_maxouts (multiple of 128)
    T = max_len - 1

    layers = params['dec_gru']
    weights = []
    for lp in layers:
        weights += [lp[k] for k in DEC_KEYS]
    head = [params['mo_we_h'], params['mo_we_e'], params['mo_we_s'], params['mo_be'],
            params['mo_wo_h'], params['mo_wo_e'], params['mo_wo_s'], params['mo_bo'],
            params['out_w_p'], params['out_b_p']]
    n_lw = len(DEC_KEYS)

    def kernel(*refs):
        hidden0_ref, summary_ref, emb0_ref, emb_tab = refs[0:4]
        off = 4
        layer_refs = []
        for _ in range(L):
            layer_refs.append(refs[off:off + n_lw])
            off += n_lw
        (mo_we_h, mo_we_e, mo_we_s, mo_be,
         mo_wo_h, mo_wo_e, mo_wo_s, mo_bo,
         out_w, out_b) = refs[off:off + 10]
        off += 10
        out_ref = refs[off]
        (h_scr, emb_scr, rc_scr, uc_scr, sme_scr, smo_scr) = refs[off + 1:off + 7]

        t = pl.program_id(0)

        @pl.when(t == 0)
        def _init():
            h_scr[...] = hidden0_ref[...]
            emb_scr[...] = emb0_ref[...]
            # Hoisted summary-dependent gate constants: s@W_rs + b_r, s@W_us + b_u.
            for l in range(L):
                (wrx, wrh, wrs, br, wux, wuh, wus, bu,
                 wnx, wnh, wns, bn) = layer_refs[l]
                s_l = summary_ref[l]
                rc_scr[l] = _dot(s_l, wrs[...]) + br[...]
                uc_scr[l] = _dot(s_l, wus[...]) + bu[...]
            # Hoisted summary-row block of the maxout head (constant across steps).
            s_top = summary_ref[L - 1]
            sme_scr[...] = _dot(s_top, mo_we_s[...]) + mo_be[...]
            smo_scr[...] = _dot(s_top, mo_wo_s[...]) + mo_bo[...]

        emb = emb_scr[...]                                # [B, E] current token embedding
        layer_in = emb
        for l in range(L):
            (wrx, wrh, wrs, br, wux, wuh, wus, bu,
             wnx, wnh, wns, bn) = layer_refs[l]
            h = h_scr[l]
            s = summary_ref[l]
            r = _sigmoid(_dot(layer_in, wrx[...]) + _dot(h, wrh[...]) + rc_scr[l])
            u = _sigmoid(_dot(layer_in, wux[...]) + _dot(h, wuh[...]) + uc_scr[l])
            n = jnp.tanh(_dot(layer_in, wnx[...]) + _dot(r * h, wnh[...])
                         + _dot(r * s, wns[...]) + bn[...])
            h_new = u * h + (1.0 - u) * n
            h_scr[l] = h_new
            layer_in = h_new

        # Maxout head on combined = concat(hidden[-1], emb, summary[-1]); the concat
        # is realized as row-split partial matmuls (exact; no lane concatenation).
        h_top = layer_in
        a = _dot(h_top, mo_we_h[...]) + _dot(emb, mo_we_e[...]) + sme_scr[...]
        b = _dot(h_top, mo_wo_h[...]) + _dot(emb, mo_wo_e[...]) + smo_scr[...]
        m = jnp.maximum(a, b)                      # == max_pool1d(linear_maxout(c), 2, 2)
        logits = _dot(m, out_w[...]) + out_b[...]  # [B, OP]; lanes >= O are zero padding
        out_ref[0] = logits

        # Greedy argmax feedback (mask padded lanes) + embedding via one-hot matmul.
        lane = lax.broadcasted_iota(jnp.int32, (B, OP), 1).astype(jnp.float32)
        masked = jnp.where(lane < float(O), logits, jnp.float32(-1e30))
        mx = jnp.max(masked, axis=-1, keepdims=True)
        idx = jnp.min(jnp.where(masked == mx, lane, jnp.float32(OP)),
                      axis=-1, keepdims=True)     # first max index (matches argmax)
        onehot = (lane == idx).astype(jnp.float32)            # [B, OP]
        emb_scr[...] = _dot(onehot, emb_tab[...])              # next step's embedding

    in_specs = [_const_spec(hidden0.shape), _const_spec(summary.shape),
                _const_spec(emb0.shape), _const_spec(params['dec_emb_p'].shape)]
    in_specs += [_const_spec(w.shape) for w in weights + head]

    return pl.pallas_call(
        kernel,
        grid=(T,),
        in_specs=in_specs,
        out_specs=pl.BlockSpec((1, B, OP), lambda t: (t, 0, 0)),
        out_shape=jax.ShapeDtypeStruct((T, B, OP), jnp.float32),
        scratch_shapes=[pltpu.VMEM((L, B, H), jnp.float32),   # hidden state
                        pltpu.VMEM((B, E), jnp.float32),      # current embedding
                        pltpu.VMEM((L, B, H), jnp.float32),   # hoisted r-gate const
                        pltpu.VMEM((L, B, H), jnp.float32),   # hoisted u-gate const
                        pltpu.VMEM((B, M), jnp.float32),      # hoisted maxout-even const
                        pltpu.VMEM((B, M), jnp.float32)],     # hoisted maxout-odd const
        compiler_params=pltpu.CompilerParams(
            dimension_semantics=("arbitrary",),
            vmem_limit_bytes=16 * 1024 * 1024),
    )(hidden0, summary, emb0, params['dec_emb_p'], *weights, *head)


# --------------------------------------------------------------------------
# Full Seq2SeqNetwork forward (eval-mode semantics).
# --------------------------------------------------------------------------
def seq2seq_forward(params, src, trg, max_len):
    B = src.shape[1]
    O = params['dec_emb'].shape[0]

    # TODO(synk): embedding-table gathers stay in plain JAX (one-shot XLA gathers,
    # not per-step); the per-step decoder embedding IS done in-kernel (one-hot matmul).
    x_emb = jnp.take(params['enc_emb'], src, axis=0)                       # [S, B, E]
    summary, hidden0 = encoder_forward(x_emb, params)                      # [L, B, H] x2
    emb0 = jnp.take(params['dec_emb'], trg[0].astype(jnp.int32), axis=0)   # [B, E]

    logits_pad = decoder_forward(hidden0, summary, emb0, params, max_len)  # [T, B, OP]
    logits = logits_pad[:, :, :O]
    # outputs[0] stays zero, as in the PyTorch module.
    return jnp.concatenate([jnp.zeros((1, B, O), jnp.float32), logits], axis=0)


# --------------------------------------------------------------------------
# Deterministic parameter init (synthetic; mirrors the module's shapes, with
# lane-padded / pre-split head weights baked in).
# --------------------------------------------------------------------------
def init_params(key, v_in, v_out, embed, hidden, num_layers, pad_idx):
    num_maxouts, pool = 500, 2
    H, E = hidden, embed
    OP = ((v_out + 127) // 128) * 128          # lane-padded output vocab
    MP = ((num_maxouts + 127) // 128) * 128    # lane-padded num_maxouts
    state = {'key': key}

    def U(shape, scale=0.1):
        state['key'], sub = jax.random.split(state['key'])
        return jax.random.uniform(sub, shape, jnp.float32, -scale, scale)

    enc_emb = U((v_in, E)).at[pad_idx].set(0.0)
    dec_emb = U((v_out, E)).at[pad_idx].set(0.0)
    dec_emb_p = jnp.zeros((OP, E), jnp.float32).at[:v_out].set(dec_emb)

    def enc_layer(in_size):
        return dict(wrx=U((in_size, H)), wrh=U((H, H)), br=U((1, H)),
                    wux=U((in_size, H)), wuh=U((H, H)), bu=U((1, H)),
                    wnx=U((in_size, H)), wnh=U((H, H)), bn=U((1, H)))

    def dec_layer(in_size):
        return dict(wrx=U((in_size, H)), wrh=U((H, H)), wrs=U((H, H)), br=U((1, H)),
                    wux=U((in_size, H)), wuh=U((H, H)), wus=U((H, H)), bu=U((1, H)),
                    wnx=U((in_size, H)), wnh=U((H, H)), wns=U((H, H)), bn=U((1, H)))

    enc_gru = [enc_layer(E)] + [enc_layer(H) for _ in range(num_layers - 1)]
    dec_gru = [dec_layer(E)] + [dec_layer(H) for _ in range(num_layers - 1)]

    # linear_maxout: [comb, 1000] with rows ordered as concat(hidden, emb, summary).
    comb = H + E + H
    wm = U((comb, num_maxouts * pool))
    bm = U((1, num_maxouts * pool))
    we, wo = wm[:, 0::2], wm[:, 1::2]      # max_pool1d(k=2,s=2) pairs -> even/odd split
    be, bo = bm[:, 0::2], bm[:, 1::2]

    def pad_cols(a, n):
        return jnp.zeros((a.shape[0], n), jnp.float32).at[:, :a.shape[1]].set(a)

    we_p, wo_p = pad_cols(we, MP), pad_cols(wo, MP)
    mo_be, mo_bo = pad_cols(be, MP), pad_cols(bo, MP)

    out_w = U((num_maxouts, v_out))
    out_b = U((1, v_out))
    out_w_p = jnp.zeros((MP, OP), jnp.float32).at[:num_maxouts, :v_out].set(out_w)
    out_b_p = pad_cols(out_b, OP)

    params = dict(
        enc_emb=enc_emb, dec_emb=dec_emb, dec_emb_p=dec_emb_p,
        enc_gru=enc_gru, dec_gru=dec_gru,
        sum_w=U((H, H)), sum_b=U((1, H)),
        hid_w=U((H, H)), hid_b=U((1, H)),
        mo_we_h=we_p[:H], mo_we_e=we_p[H:H + E], mo_we_s=we_p[H + E:],
        mo_wo_h=wo_p[:H], mo_wo_e=wo_p[H:H + E], mo_wo_s=wo_p[H + E:],
        mo_be=mo_be, mo_bo=mo_bo,
        out_w_p=out_w_p, out_b_p=out_b_p)
    return params, state['key']


if __name__ == "__main__":
    V_IN, V_OUT = 20, 24        # src / trg vocab sizes
    E, H, L = 16, 32, 2         # embed, hidden, num_rnn_layers
    PAD = 0
    B, SRC_LEN, TRG_LEN, MAX_LEN = 2, 8, 8, 8

    key = jax.random.PRNGKey(0)
    params, key = init_params(key, V_IN, V_OUT, E, H, L, PAD)
    ksrc, ktrg = jax.random.split(key)
    src = jax.random.randint(ksrc, (SRC_LEN, B), 0, V_IN, dtype=jnp.int32)
    trg = jax.random.randint(ktrg, (TRG_LEN, B), 0, V_OUT, dtype=jnp.int32)

    fwd = jax.jit(functools.partial(seq2seq_forward, max_len=MAX_LEN))
    out = fwd(params, src, trg)
    jax.block_until_ready(out)
    assert out.shape == (MAX_LEN, B, V_OUT), out.shape
    assert out.dtype == jnp.float32
    print("KERNEL_OK")
</pallas_src>

<mosaic_0001>
module attributes {stable_mosaic.version = 11 : i64} {
  func.func @kernel(%arg0: i32, %arg1: memref<1x2x16xf32, #tpu.memory_space<vmem>>, %arg2: memref<16x32xf32, #tpu.memory_space<vmem>>, %arg3: memref<32x32xf32, #tpu.memory_space<vmem>>, %arg4: memref<1x32xf32, #tpu.memory_space<vmem>>, %arg5: memref<16x32xf32, #tpu.memory_space<vmem>>, %arg6: memref<32x32xf32, #tpu.memory_space<vmem>>, %arg7: memref<1x32xf32, #tpu.memory_space<vmem>>, %arg8: memref<16x32xf32, #tpu.memory_space<vmem>>, %arg9: memref<32x32xf32, #tpu.memory_space<vmem>>, %arg10: memref<1x32xf32, #tpu.memory_space<vmem>>, %arg11: memref<32x32xf32, #tpu.memory_space<vmem>>, %arg12: memref<32x32xf32, #tpu.memory_space<vmem>>, %arg13: memref<1x32xf32, #tpu.memory_space<vmem>>, %arg14: memref<32x32xf32, #tpu.memory_space<vmem>>, %arg15: memref<32x32xf32, #tpu.memory_space<vmem>>, %arg16: memref<1x32xf32, #tpu.memory_space<vmem>>, %arg17: memref<32x32xf32, #tpu.memory_space<vmem>>, %arg18: memref<32x32xf32, #tpu.memory_space<vmem>>, %arg19: memref<1x32xf32, #tpu.memory_space<vmem>>, %arg20: memref<32x32xf32, #tpu.memory_space<vmem>>, %arg21: memref<1x32xf32, #tpu.memory_space<vmem>>, %arg22: memref<32x32xf32, #tpu.memory_space<vmem>>, %arg23: memref<1x32xf32, #tpu.memory_space<vmem>>, %arg24: memref<2x2x32xf32, #tpu.memory_space<vmem>>, %arg25: memref<2x2x32xf32, #tpu.memory_space<vmem>>, %arg26: memref<2x2x32xf32, #tpu.memory_space<vmem>>) attributes {dimension_semantics = [#tpu.dimension_semantics<arbitrary>], iteration_bounds = array<i64: 8>, scalar_prefetch = 0 : i64, scratch_operands = 1 : i64, tpu.core_type = #tpu.core_type<tc>, window_params = [{transform_indices = @transform_0, window_bounds = array<i64: 1, 2, 16>}, {pipeline_mode = #tpu.pipeline_mode<synchronous>, transform_indices = @transform_1, window_bounds = array<i64: 16, 32>}, {pipeline_mode = #tpu.pipeline_mode<synchronous>, transform_indices = @transform_2, window_bounds = array<i64: 32, 32>}, {pipeline_mode = #tpu.pipeline_mode<synchronous>, transform_indices = @transform_3, window_bounds = array<i64: 1, 32>}, {pipeline_mode = #tpu.pipeline_mode<synchronous>, transform_indices = @transform_4, window_bounds = array<i64: 16, 32>}, {pipeline_mode = #tpu.pipeline_mode<synchronous>, transform_indices = @transform_5, window_bounds = array<i64: 32, 32>}, {pipeline_mode = #tpu.pipeline_mode<synchronous>, transform_indices = @transform_6, window_bounds = array<i64: 1, 32>}, {pipeline_mode = #tpu.pipeline_mode<synchronous>, transform_indices = @transform_7, window_bounds = array<i64: 16, 32>}, {pipeline_mode = #tpu.pipeline_mode<synchronous>, transform_indices = @transform_8, window_bounds = array<i64: 32, 32>}, {pipeline_mode = #tpu.pipeline_mode<synchronous>, transform_indices = @transform_9, window_bounds = array<i64: 1, 32>}, {pipeline_mode = #tpu.pipeline_mode<synchronous>, transform_indices = @transform_10, window_bounds = array<i64: 32, 32>}, {pipeline_mode = #tpu.pipeline_mode<synchronous>, transform_indices = @transform_11, window_bounds = array<i64: 32, 32>}, {pipeline_mode = #tpu.pipeline_mode<synchronous>, transform_indices = @transform_12, window_bounds = array<i64: 1, 32>}, {pipeline_mode = #tpu.pipeline_mode<synchronous>, transform_indices = @transform_13, window_bounds = array<i64: 32, 32>}, {pipeline_mode = #tpu.pipeline_mode<synchronous>, transform_indices = @transform_14, window_bounds = array<i64: 32, 32>}, {pipeline_mode = #tpu.pipeline_mode<synchronous>, transform_indices = @transform_15, window_bounds = array<i64: 1, 32>}, {pipeline_mode = #tpu.pipeline_mode<synchronous>, transform_indices = @transform_16, window_bounds = array<i64: 32, 32>}, {pipeline_mode = #tpu.pipeline_mode<synchronous>, transform_indices = @transform_17, window_bounds = array<i64: 32, 32>}, {pipeline_mode = #tpu.pipeline_mode<synchronous>, transform_indices = @transform_18, window_bounds = array<i64: 1, 32>}, {pipeline_mode = #tpu.pipeline_mode<synchronous>, transform_indices = @transform_19, window_bounds = array<i64: 32, 32>}, {pipeline_mode = #tpu.pipeline_mode<synchronous>, transform_indices = @transform_20, window_bounds = array<i64: 1, 32>}, {pipeline_mode = #tpu.pipeline_mode<synchronous>, transform_indices = @transform_21, window_bounds = array<i64: 32, 32>}, {pipeline_mode = #tpu.pipeline_mode<synchronous>, transform_indices = @transform_22, window_bounds = array<i64: 1, 32>}, {pipeline_mode = #tpu.pipeline_mode<synchronous>, transform_indices = @transform_23, window_bounds = array<i64: 2, 2, 32>}, {pipeline_mode = #tpu.pipeline_mode<synchronous>, transform_indices = @transform_24, window_bounds = array<i64: 2, 2, 32>}]} {
    %c0_i32 = arith.constant 0 : i32
    %0 = arith.cmpi eq, %arg0, %c0_i32 : i32
    %1 = arith.extui %0 : i1 to i32
    %c0_i32_0 = arith.constant 0 : i32
    %2 = arith.cmpi ne, %1, %c0_i32_0 : i32
    scf.if %2 {
      %cst_76 = arith.constant 0.000000e+00 : f32
      %108 = vector.broadcast %cst_76 : f32 to vector<2x2x32xf32>
      %c0_77 = arith.constant 0 : index
      %c0_78 = arith.constant 0 : index
      %c0_79 = arith.constant 0 : index
      %109 = vector.load %arg26[%c0_77, %c0_78, %c0_79] : memref<2x2x32xf32, #tpu.memory_space<vmem>>, vector<2x2x32xf32>
      tpu.vector_store %arg26[%c0_77, %c0_78, %c0_79], %108 {strides = array<i32>} : memref<2x2x32xf32, #tpu.memory_space<vmem>>, vector<2x2x32xf32>,
    } else {
    }
    %c0 = arith.constant 0 : index
    %c0_1 = arith.constant 0 : index
    %c0_2 = arith.constant 0 : index
    %3 = vector.load %arg1[%c0, %c0_1, %c0_2] : memref<1x2x16xf32, #tpu.memory_space<vmem>>, vector<1x2x16xf32>
    %4 = vector.shape_cast %3 : vector<1x2x16xf32> to vector<2x16xf32>
    %c0_3 = arith.constant 0 : index
    %c0_4 = arith.constant 0 : index
    %c0_5 = arith.constant 0 : index
    %5 = vector.load %arg26[%c0_3, %c0_4, %c0_5] : memref<2x2x32xf32, #tpu.memory_space<vmem>>, vector<1x2x32xf32>
    %6 = vector.shape_cast %5 : vector<1x2x32xf32> to vector<2x32xf32>
    %c0_6 = arith.constant 0 : index
    %c0_7 = arith.constant 0 : index
    %7 = vector.load %arg2[%c0_6, %c0_7] : memref<16x32xf32, #tpu.memory_space<vmem>>, vector<16x32xf32>
    %cst = arith.constant dense<0.000000e+00> : vector<2x32xf32>
    %8 = tpu.matmul %4, %7, %cst {dimension_numbers = #tpu.dot_dimension_numbers<[1], [0], [0], [1], [0, 0, 1, 1], [], []>} : vector<2x16xf32>, vector<16x32xf32>, vector<2x32xf32> -> vector<2x32xf32>
    %c0_8 = arith.constant 0 : index
    %c0_9 = arith.constant 0 : index
    %9 = vector.load %arg3[%c0_8, %c0_9] : memref<32x32xf32, #tpu.memory_space<vmem>>, vector<32x32xf32>
    %cst_10 = arith.constant dense<0.000000e+00> : vector<2x32xf32>
    %10 = tpu.matmul %6, %9, %cst_10 {dimension_numbers = #tpu.dot_dimension_numbers<[1], [0], [0], [1], [0, 0, 1, 1], [], []>} : vector<2x32xf32>, vector<32x32xf32>, vector<2x32xf32> -> vector<2x32xf32>
    %11 = arith.addf %8, %10 : vector<2x32xf32>
    %c0_11 = arith.constant 0 : index
    %c0_12 = arith.constant 0 : index
    %12 = vector.load %arg4[%c0_11, %c0_12] : memref<1x32xf32, #tpu.memory_space<vmem>>, vector<1x32xf32>
    %13 = vector.broadcast %12 : vector<1x32xf32> to vector<2x32xf32>
    %14 = arith.addf %11, %13 : vector<2x32xf32>
    %cst_13 = arith.constant 0.000000e+00 : f32
    %15 = vector.broadcast %cst_13 : f32 to vector<2x32xf32>
    %16 = arith.subf %15, %14 : vector<2x32xf32>
    %17 = math.exp %16 : vector<2x32xf32>
    %cst_14 = arith.constant 1.000000e+00 : f32
    %18 = vector.broadcast %cst_14 : f32 to vector<2x32xf32>
    %19 = arith.addf %18, %17 : vector<2x32xf32>
    %cst_15 = arith.constant 1.000000e+00 : f32
    %20 = vector.broadcast %cst_15 : f32 to vector<2x32xf32>
    %21 = arith.divf %20, %19 : vector<2x32xf32>
    %c0_16 = arith.constant 0 : index
    %c0_17 = arith.constant 0 : index
    %22 = vector.load %arg5[%c0_16, %c0_17] : memref<16x32xf32, #tpu.memory_space<vmem>>, vector<16x32xf32>
    %cst_18 = arith.constant dense<0.000000e+00> : vector<2x32xf32>
    %23 = tpu.matmul %4, %22, %cst_18 {dimension_numbers = #tpu.dot_dimension_numbers<[1], [0], [0], [1], [0, 0, 1, 1], [], []>} : vector<2x16xf32>, vector<16x32xf32>, vector<2x32xf32> -> vector<2x32xf32>
    %c0_19 = arith.constant 0 : index
    %c0_20 = arith.constant 0 : index
    %24 = vector.load %arg6[%c0_19, %c0_20] : memref<32x32xf32, #tpu.memory_space<vmem>>, vector<32x32xf32>
    %cst_21 = arith.constant dense<0.000000e+00> : vector<2x32xf32>
    %25 = tpu.matmul %6, %24, %cst_21 {dimension_numbers = #tpu.dot_dimension_numbers<[1], [0], [0], [1], [0, 0, 1, 1], [], []>} : vector<2x32xf32>, vector<32x32xf32>, vector<2x32xf32> -> vector<2x32xf32>
    %26 = arith.addf %23, %25 : vector<2x32xf32>
    %c0_22 = arith.constant 0 : index
    %c0_23 = arith.constant 0 : index
    %27 = vector.load %arg7[%c0_22, %c0_23] : memref<1x32xf32, #tpu.memory_space<vmem>>, vector<1x32xf32>
    %28 = vector.broadcast %27 : vector<1x32xf32> to vector<2x32xf32>
    %29 = arith.addf %26, %28 : vector<2x32xf32>
    %cst_24 = arith.constant 0.000000e+00 : f32
    %30 = vector.broadcast %cst_24 : f32 to vector<2x32xf32>
    %31 = arith.subf %30, %29 : vector<2x32xf32>
    %32 = math.exp %31 : vector<2x32xf32>
    %cst_25 = arith.constant 1.000000e+00 : f32
    %33 = vector.broadcast %cst_25 : f32 to vector<2x32xf32>
    %34 = arith.addf %33, %32 : vector<2x32xf32>
    %cst_26 = arith.constant 1.000000e+00 : f32
    %35 = vector.broadcast %cst_26 : f32 to vector<2x32xf32>
    %36 = arith.divf %35, %34 : vector<2x32xf32>
    %c0_27 = arith.constant 0 : index
    %c0_28 = arith.constant 0 : index
    %37 = vector.load %arg8[%c0_27, %c0_28] : memref<16x32xf32, #tpu.memory_space<vmem>>, vector<16x32xf32>
    %cst_29 = arith.constant dense<0.000000e+00> : vector<2x32xf32>
    %38 = tpu.matmul %4, %37, %cst_29 {dimension_numbers = #tpu.dot_dimension_numbers<[1], [0], [0], [1], [0, 0, 1, 1], [], []>} : vector<2x16xf32>, vector<16x32xf32>, vector<2x32xf32> -> vector<2x32xf32>
    %39 = arith.mulf %21, %6 : vector<2x32xf32>
    %c0_30 = arith.constant 0 : index
    %c0_31 = arith.constant 0 : index
    %40 = vector.load %arg9[%c0_30, %c0_31] : memref<32x32xf32, #tpu.memory_space<vmem>>, vector<32x32xf32>
    %cst_32 = arith.constant dense<0.000000e+00> : vector<2x32xf32>
    %41 = tpu.matmul %39, %40, %cst_32 {dimension_numbers = #tpu.dot_dimension_numbers<[1], [0], [0], [1], [0, 0, 1, 1], [], []>} : vector<2x32xf32>, vector<32x32xf32>, vector<2x32xf32> -> vector<2x32xf32>
    %42 = arith.addf %38, %41 : vector<2x32xf32>
    %c0_33 = arith.constant 0 : index
    %c0_34 = arith.constant 0 : index
    %43 = vector.load %arg10[%c0_33, %c0_34] : memref<1x32xf32, #tpu.memory_space<vmem>>, vector<1x32xf32>
    %44 = vector.broadcast %43 : vector<1x32xf32> to vector<2x32xf32>
    %45 = arith.addf %42, %44 : vector<2x32xf32>
    %46 = math.tanh %45 : vector<2x32xf32>
    %47 = arith.mulf %36, %6 : vector<2x32xf32>
    %cst_35 = arith.constant 1.000000e+00 : f32
    %48 = vector.broadcast %cst_35 : f32 to vector<2x32xf32>
    %49 = arith.subf %48, %36 : vector<2x32xf32>
    %50 = arith.mulf %49, %46 : vector<2x32xf32>
    %51 = arith.addf %47, %50 : vector<2x32xf32>
    %c0_36 = arith.constant 0 : index
    %c0_37 = arith.constant 0 : index
    %c0_38 = arith.constant 0 : index
    %52 = vector.load %arg26[%c0_36, %c0_37, %c0_38] : memref<2x2x32xf32, #tpu.memory_space<vmem>>, vector<1x2x32xf32>
    %53 = vector.shape_cast %52 : vector<1x2x32xf32> to vector<2x32xf32>
    %54 = vector.shape_cast %51 : vector<2x32xf32> to vector<1x2x32xf32>
    tpu.vector_store %arg26[%c0_36, %c0_37, %c0_38], %54 {strides = array<i32>} : memref<2x2x32xf32, #tpu.memory_space<vmem>>, vector<1x2x32xf32>,
    %c1 = arith.constant 1 : index
    %c0_39 = arith.constant 0 : index
    %c0_40 = arith.constant 0 : index
    %55 = vector.load %arg26[%c1, %c0_39, %c0_40] : memref<2x2x32xf32, #tpu.memory_space<vmem>>, vector<1x2x32xf32>
    %56 = vector.shape_cast %55 : vector<1x2x32xf32> to vector<2x32xf32>
    %c0_41 = arith.constant 0 : index
    %c0_42 = arith.constant 0 : index
    %57 = vector.load %arg11[%c0_41, %c0_42] : memref<32x32xf32, #tpu.memory_space<vmem>>, vector<32x32xf32>
    %cst_43 = arith.constant dense<0.000000e+00> : vector<2x32xf32>
    %58 = tpu.matmul %51, %57, %cst_43 {dimension_numbers = #tpu.dot_dimension_numbers<[1], [0], [0], [1], [0, 0, 1, 1], [], []>} : vector<2x32xf32>, vector<32x32xf32>, vector<2x32xf32> -> vector<2x32xf32>
    %c0_44 = arith.constant 0 : index
    %c0_45 = arith.constant 0 : index
    %59 = vector.load %arg12[%c0_44, %c0_45] : memref<32x32xf32, #tpu.memory_space<vmem>>, vector<32x32xf32>
    %cst_46 = arith.constant dense<0.000000e+00> : vector<2x32xf32>
    %60 = tpu.matmul %56, %59, %cst_46 {dimension_numbers = #tpu.dot_dimension_numbers<[1], [0], [0], [1], [0, 0, 1, 1], [], []>} : vector<2x32xf32>, vector<32x32xf32>, vector<2x32xf32> -> vector<2x32xf32>
    %61 = arith.addf %58, %60 : vector<2x32xf32>
    %c0_47 = arith.constant 0 : index
    %c0_48 = arith.constant 0 : index
    %62 = vector.load %arg13[%c0_47, %c0_48] : memref<1x32xf32, #tpu.memory_space<vmem>>, vector<1x32xf32>
    %63 = vector.broadcast %62 : vector<1x32xf32> to vector<2x32xf32>
    %64 = arith.addf %61, %63 : vector<2x32xf32>
    %cst_49 = arith.constant 0.000000e+00 : f32
    %65 = vector.broadcast %cst_49 : f32 to vector<2x32xf32>
    %66 = arith.subf %65, %64 : vector<2x32xf32>
    %67 = math.exp %66 : vector<2x32xf32>
    %cst_50 = arith.constant 1.000000e+00 : f32
    %68 = vector.broadcast %cst_50 : f32 to vector<2x32xf32>
    %69 = arith.addf %68, %67 : vector<2x32xf32>
    %cst_51 = arith.constant 1.000000e+00 : f32
    %70 = vector.broadcast %cst_51 : f32 to vector<2x32xf32>
    %71 = arith.divf %70, %69 : vector<2x32xf32>
    %c0_52 = arith.constant 0 : index
    %c0_53 = arith.constant 0 : index
    %72 = vector.load %arg14[%c0_52, %c0_53] : memref<32x32xf32, #tpu.memory_space<vmem>>, vector<32x32xf32>
    %cst_54 = arith.constant dense<0.000000e+00> : vector<2x32xf32>
    %73 = tpu.matmul %51, %72, %cst_54 {dimension_numbers = #tpu.dot_dimension_numbers<[1], [0], [0], [1], [0, 0, 1, 1], [], []>} : vector<2x32xf32>, vector<32x32xf32>, vector<2x32xf32> -> vector<2x32xf32>
    %c0_55 = arith.constant 0 : index
    %c0_56 = arith.constant 0 : index
    %74 = vector.load %arg15[%c0_55, %c0_56] : memref<32x32xf32, #tpu.memory_space<vmem>>, vector<32x32xf32>
    %cst_57 = arith.constant dense<0.000000e+00> : vector<2x32xf32>
    %75 = tpu.matmul %56, %74, %cst_57 {dimension_numbers = #tpu.dot_dimension_numbers<[1], [0], [0], [1], [0, 0, 1, 1], [], []>} : vector<2x32xf32>, vector<32x32xf32>, vector<2x32xf32> -> vector<2x32xf32>
    %76 = arith.addf %73, %75 : vector<2x32xf32>
    %c0_58 = arith.constant 0 : index
    %c0_59 = arith.constant 0 : index
    %77 = vector.load %arg16[%c0_58, %c0_59] : memref<1x32xf32, #tpu.memory_space<vmem>>, vector<1x32xf32>
    %78 = vector.broadcast %77 : vector<1x32xf32> to vector<2x32xf32>
    %79 = arith.addf %76, %78 : vector<2x32xf32>
    %cst_60 = arith.constant 0.000000e+00 : f32
    %80 = vector.broadcast %cst_60 : f32 to vector<2x32xf32>
    %81 = arith.subf %80, %79 : vector<2x32xf32>
    %82 = math.exp %81 : vector<2x32xf32>
    %cst_61 = arith.constant 1.000000e+00 : f32
    %83 = vector.broadcast %cst_61 : f32 to vector<2x32xf32>
    %84 = arith.addf %83, %82 : vector<2x32xf32>
    %cst_62 = arith.constant 1.000000e+00 : f32
    %85 = vector.broadcast %cst_62 : f32 to vector<2x32xf32>
    %86 = arith.divf %85, %84 : vector<2x32xf32>
    %c0_63 = arith.constant 0 : index
    %c0_64 = arith.constant 0 : index
    %87 = vector.load %arg17[%c0_63, %c0_64] : memref<32x32xf32, #tpu.memory_space<vmem>>, vector<32x32xf32>
    %cst_65 = arith.constant dense<0.000000e+00> : vector<2x32xf32>
    %88 = tpu.matmul %51, %87, %cst_65 {dimension_numbers = #tpu.dot_dimension_numbers<[1], [0], [0], [1], [0, 0, 1, 1], [], []>} : vector<2x32xf32>, vector<32x32xf32>, vector<2x32xf32> -> vector<2x32xf32>
    %89 = arith.mulf %71, %56 : vector<2x32xf32>
    %c0_66 = arith.constant 0 : index
    %c0_67 = arith.constant 0 : index
    %90 = vector.load %arg18[%c0_66, %c0_67] : memref<32x32xf32, #tpu.memory_space<vmem>>, vector<32x32xf32>
    %cst_68 = arith.constant dense<0.000000e+00> : vector<2x32xf32>
    %91 = tpu.matmul %89, %90, %cst_68 {dimension_numbers = #tpu.dot_dimension_numbers<[1], [0], [0], [1], [0, 0, 1, 1], [], []>} : vector<2x32xf32>, vector<32x32xf32>, vector<2x32xf32> -> vector<2x32xf32>
    %92 = arith.addf %88, %91 : vector<2x32xf32>
    %c0_69 = arith.constant 0 : index
    %c0_70 = arith.constant 0 : index
    %93 = vector.load %arg19[%c0_69, %c0_70] : memref<1x32xf32, #tpu.memory_space<vmem>>, vector<1x32xf32>
    %94 = vector.broadcast %93 : vector<1x32xf32> to vector<2x32xf32>
    %95 = arith.addf %92, %94 : vector<2x32xf32>
    %96 = math.tanh %95 : vector<2x32xf32>
    %97 = arith.mulf %86, %56 : vector<2x32xf32>
    %cst_71 = arith.constant 1.000000e+00 : f32
    %98 = vector.broadcast %cst_71 : f32 to vector<2x32xf32>
    %99 = arith.subf %98, %86 : vector<2x32xf32>
    %100 = arith.mulf %99, %96 : vector<2x32xf32>
    %101 = arith.addf %97, %100 : vector<2x32xf32>
    %c1_72 = arith.constant 1 : index
    %c0_73 = arith.constant 0 : index
    %c0_74 = arith.constant 0 : index
    %102 = vector.load %arg26[%c1_72, %c0_73, %c0_74] : memref<2x2x32xf32, #tpu.memory_space<vmem>>, vector<1x2x32xf32>
    %103 = vector.shape_cast %102 : vector<1x2x32xf32> to vector<2x32xf32>
    %104 = vector.shape_cast %101 : vector<2x32xf32> to vector<1x2x32xf32>
    tpu.vector_store %arg26[%c1_72, %c0_73, %c0_74], %104 {strides = array<i32>} : memref<2x2x32xf32, #tpu.memory_space<vmem>>, vector<1x2x32xf32>,
    %c7_i32 = arith.constant 7 : i32
    %105 = arith.cmpi eq, %arg0, %c7_i32 : i32
    %106 = arith.extui %105 : i1 to i32
    %c0_i32_75 = arith.constant 0 : i32
    %107 = arith.cmpi ne, %106, %c0_i32_75 : i32
    scf.if %107 {
      %c0_76 = arith.constant 0 : index
      %c0_77 = arith.constant 0 : index
      %c0_78 = arith.constant 0 : index
      %108 = vector.load %arg26[%c0_76, %c0_77, %c0_78] : memref<2x2x32xf32, #tpu.memory_space<vmem>>, vector<1x2x32xf32>
      %109 = vector.shape_cast %108 : vector<1x2x32xf32> to vector<2x32xf32>
      %c0_79 = arith.constant 0 : index
      %c0_80 = arith.constant 0 : index
      %110 = vector.load %arg20[%c0_79, %c0_80] : memref<32x32xf32, #tpu.memory_space<vmem>>, vector<32x32xf32>
      %cst_81 = arith.constant dense<0.000000e+00> : vector<2x32xf32>
      %111 = tpu.matmul %109, %110, %cst_81 {dimension_numbers = #tpu.dot_dimension_numbers<[1], [0], [0], [1], [0, 0, 1, 1], [], []>} : vector<2x32xf32>, vector<32x32xf32>, vector<2x32xf32> -> vector<2x32xf32>
      %c0_82 = arith.constant 0 : index
      %c0_83 = arith.constant 0 : index
      %112 = vector.load %arg21[%c0_82, %c0_83] : memref<1x32xf32, #tpu.memory_space<vmem>>, vector<1x32xf32>
      %113 = vector.broadcast %112 : vector<1x32xf32> to vector<2x32xf32>
      %114 = arith.addf %111, %113 : vector<2x32xf32>
      %115 = math.tanh %114 : vector<2x32xf32>
      %c0_84 = arith.constant 0 : index
      %c0_85 = arith.constant 0 : index
      %c0_86 = arith.constant 0 : index
      %116 = vector.load %arg24[%c0_84, %c0_85, %c0_86] : memref<2x2x32xf32, #tpu.memory_space<vmem>>, vector<1x2x32xf32>
      %117 = vector.shape_cast %116 : vector<1x2x32xf32> to vector<2x32xf32>
      %118 = vector.shape_cast %115 : vector<2x32xf32> to vector<1x2x32xf32>
      tpu.vector_store %arg24[%c0_84, %c0_85, %c0_86], %118 {strides = array<i32>} : memref<2x2x32xf32, #tpu.memory_space<vmem>>, vector<1x2x32xf32>,
      %c0_87 = arith.constant 0 : index
      %c0_88 = arith.constant 0 : index
      %119 = vector.load %arg22[%c0_87, %c0_88] : memref<32x32xf32, #tpu.memory_space<vmem>>, vector<32x32xf32>
      %cst_89 = arith.constant dense<0.000000e+00> : vector<2x32xf32>
      %120 = tpu.matmul %115, %119, %cst_89 {dimension_numbers = #tpu.dot_dimension_numbers<[1], [0], [0], [1], [0, 0, 1, 1], [], []>} : vector<2x32xf32>, vector<32x32xf32>, vector<2x32xf32> -> vector<2x32xf32>
      %c0_90 = arith.constant 0 : index
      %c0_91 = arith.constant 0 : index
      %121 = vector.load %arg23[%c0_90, %c0_91] : memref<1x32xf32, #tpu.memory_space<vmem>>, vector<1x32xf32>
      %122 = vector.broadcast %121 : vector<1x32xf32> to vector<2x32xf32>
      %123 = arith.addf %120, %122 : vector<2x32xf32>
      %124 = math.tanh %123 : vector<2x32xf32>
      %c0_92 = arith.constant 0 : index
      %c0_93 = arith.constant 0 : index
      %c0_94 = arith.constant 0 : index
      %125 = vector.load %arg25[%c0_92, %c0_93, %c0_94] : memref<2x2x32xf32, #tpu.memory_space<vmem>>, vector<1x2x32xf32>
      %126 = vector.shape_cast %125 : vector<1x2x32xf32> to vector<2x32xf32>
      %127 = vector.shape_cast %124 : vector<2x32xf32> to vector<1x2x32xf32>
      tpu.vector_store %arg25[%c0_92, %c0_93, %c0_94], %127 {strides = array<i32>} : memref<2x2x32xf32, #tpu.memory_space<vmem>>, vector<1x2x32xf32>,
      %c1_95 = arith.constant 1 : index
      %c0_96 = arith.constant 0 : index
      %c0_97 = arith.constant 0 : index
      %128 = vector.load %arg26[%c1_95, %c0_96, %c0_97] : memref<2x2x32xf32, #tpu.memory_space<vmem>>, vector<1x2x32xf32>
      %129 = vector.shape_cast %128 : vector<1x2x32xf32> to vector<2x32xf32>
      %c0_98 = arith.constant 0 : index
      %c0_99 = arith.constant 0 : index
      %130 = vector.load %arg20[%c0_98, %c0_99] : memref<32x32xf32, #tpu.memory_space<vmem>>, vector<32x32xf32>
      %cst_100 = arith.constant dense<0.000000e+00> : vector<2x32xf32>
      %131 = tpu.matmul %129, %130, %cst_100 {dimension_numbers = #tpu.dot_dimension_numbers<[1], [0], [0], [1], [0, 0, 1, 1], [], []>} : vector<2x32xf32>, vector<32x32xf32>, vector<2x32xf32> -> vector<2x32xf32>
      %c0_101 = arith.constant 0 : index
      %c0_102 = arith.constant 0 : index
      %132 = vector.load %arg21[%c0_101, %c0_102] : memref<1x32xf32, #tpu.memory_space<vmem>>, vector<1x32xf32>
      %133 = vector.broadcast %132 : vector<1x32xf32> to vector<2x32xf32>
      %134 = arith.addf %131, %133 : vector<2x32xf32>
      %135 = math.tanh %134 : vector<2x32xf32>
      %c1_103 = arith.constant 1 : index
      %c0_104 = arith.constant 0 : index
      %c0_105 = arith.constant 0 : index
      %136 = vector.load %arg24[%c1_103, %c0_104, %c0_105] : memref<2x2x32xf32, #tpu.memory_space<vmem>>, vector<1x2x32xf32>
      %137 = vector.shape_cast %136 : vector<1x2x32xf32> to vector<2x32xf32>
      %138 = vector.shape_cast %135 : vector<2x32xf32> to vector<1x2x32xf32>
      tpu.vector_store %arg24[%c1_103, %c0_104, %c0_105], %138 {strides = array<i32>} : memref<2x2x32xf32, #tpu.memory_space<vmem>>, vector<1x2x32xf32>,
      %c0_106 = arith.constant 0 : index
      %c0_107 = arith.constant 0 : index
      %139 = vector.load %arg22[%c0_106, %c0_107] : memref<32x32xf32, #tpu.memory_space<vmem>>, vector<32x32xf32>
      %cst_108 = arith.constant dense<0.000000e+00> : vector<2x32xf32>
      %140 = tpu.matmul %135, %139, %cst_108 {dimension_numbers = #tpu.dot_dimension_numbers<[1], [0], [0], [1], [0, 0, 1, 1], [], []>} : vector<2x32xf32>, vector<32x32xf32>, vector<2x32xf32> -> vector<2x32xf32>
      %c0_109 = arith.constant 0 : index
      %c0_110 = arith.constant 0 : index
      %141 = vector.load %arg23[%c0_109, %c0_110] : memref<1x32xf32, #tpu.memory_space<vmem>>, vector<1x32xf32>
      %142 = vector.broadcast %141 : vector<1x32xf32> to vector<2x32xf32>
      %143 = arith.addf %140, %142 : vector<2x32xf32>
      %144 = math.tanh %143 : vector<2x32xf32>
      %c1_111 = arith.constant 1 : index
      %c0_112 = arith.constant 0 : index
      %c0_113 = arith.constant 0 : index
      %145 = vector.load %arg25[%c1_111, %c0_112, %c0_113] : memref<2x2x32xf32, #tpu.memory_space<vmem>>, vector<1x2x32xf32>
      %146 = vector.shape_cast %145 : vector<1x2x32xf32> to vector<2x32xf32>
      %147 = vector.shape_cast %144 : vector<2x32xf32> to vector<1x2x32xf32>
      tpu.vector_store %arg25[%c1_111, %c0_112, %c0_113], %147 {strides = array<i32>} : memref<2x2x32xf32, #tpu.memory_space<vmem>>, vector<1x2x32xf32>,
    } else {
    }
    return
  }
  func.func @transform_0(%arg0: i32) -> (i32, i32, i32) {
    %c0_i32 = arith.constant 0 : i32
    %c0_i32_0 = arith.constant 0 : i32
    %c0_i32_1 = arith.constant 0 : i32
    return %arg0, %c0_i32, %c0_i32_0 : i32, i32, i32
  }
  func.func @transform_1(%arg0: i32) -> (i32, i32) {
    %c0_i32 = arith.constant 0 : i32
    %c0_i32_0 = arith.constant 0 : i32
    %c0_i32_1 = arith.constant 0 : i32
    return %c0_i32, %c0_i32_0 : i32, i32
  }
  func.func @transform_2(%arg0: i32) -> (i32, i32) {
    %c0_i32 = arith.constant 0 : i32
    %c0_i32_0 = arith.constant 0 : i32
    %c0_i32_1 = arith.constant 0 : i32
    return %c0_i32, %c0_i32_0 : i32, i32
  }
  func.func @transform_3(%arg0: i32) -> (i32, i32) {
    %c0_i32 = arith.constant 0 : i32
    %c0_i32_0 = arith.constant 0 : i32
    %c0_i32_1 = arith.constant 0 : i32
    return %c0_i32, %c0_i32_0 : i32, i32
  }
  func.func @transform_4(%arg0: i32) -> (i32, i32) {
    %c0_i32 = arith.constant 0 : i32
    %c0_i32_0 = arith.constant 0 : i32
    %c0_i32_1 = arith.constant 0 : i32
    return %c0_i32, %c0_i32_0 : i32, i32
  }
  func.func @transform_5(%arg0: i32) -> (i32, i32) {
    %c0_i32 = arith.constant 0 : i32
    %c0_i32_0 = arith.constant 0 : i32
    %c0_i32_1 = arith.constant 0 : i32
    return %c0_i32, %c0_i32_0 : i32, i32
  }
  func.func @transform_6(%arg0: i32) -> (i32, i32) {
    %c0_i32 = arith.constant 0 : i32
    %c0_i32_0 = arith.constant 0 : i32
    %c0_i32_1 = arith.constant 0 : i32
    return %c0_i32, %c0_i32_0 : i32, i32
  }
  func.func @transform_7(%arg0: i32) -> (i32, i32) {
    %c0_i32 = arith.constant 0 : i32
    %c0_i32_0 = arith.constant 0 : i32
    %c0_i32_1 = arith.constant 0 : i32
    return %c0_i32, %c0_i32_0 : i32, i32
  }
  func.func @transform_8(%arg0: i32) -> (i32, i32) {
    %c0_i32 = arith.constant 0 : i32
    %c0_i32_0 = arith.constant 0 : i32
    %c0_i32_1 = arith.constant 0 : i32
    return %c0_i32, %c0_i32_0 : i32, i32
  }
  func.func @transform_9(%arg0: i32) -> (i32, i32) {
    %c0_i32 = arith.constant 0 : i32
    %c0_i32_0 = arith.constant 0 : i32
    %c0_i32_1 = arith.constant 0 : i32
    return %c0_i32, %c0_i32_0 : i32, i32
  }
  func.func @transform_10(%arg0: i32) -> (i32, i32) {
    %c0_i32 = arith.constant 0 : i32
    %c0_i32_0 = arith.constant 0 : i32
    %c0_i32_1 = arith.constant 0 : i32
    return %c0_i32, %c0_i32_0 : i32, i32
  }
  func.func @transform_11(%arg0: i32) -> (i32, i32) {
    %c0_i32 = arith.constant 0 : i32
    %c0_i32_0 = arith.constant 0 : i32
    %c0_i32_1 = arith.constant 0 : i32
    return %c0_i32, %c0_i32_0 : i32, i32
  }
  func.func @transform_12(%arg0: i32) -> (i32, i32) {
    %c0_i32 = arith.constant 0 : i32
    %c0_i32_0 = arith.constant 0 : i32
    %c0_i32_1 = arith.constant 0 : i32
    return %c0_i32, %c0_i32_0 : i32, i32
  }
  func.func @transform_13(%arg0: i32) -> (i32, i32) {
    %c0_i32 = arith.constant 0 : i32
    %c0_i32_0 = arith.constant 0 : i32
    %c0_i32_1 = arith.constant 0 : i32
    return %c0_i32, %c0_i32_0 : i32, i32
  }
  func.func @transform_14(%arg0: i32) -> (i32, i32) {
    %c0_i32 = arith.constant 0 : i32
    %c0_i32_0 = arith.constant 0 : i32
    %c0_i32_1 = arith.constant 0 : i32
    return %c0_i32, %c0_i32_0 : i32, i32
  }
  func.func @transform_15(%arg0: i32) -> (i32, i32) {
    %c0_i32 = arith.constant 0 : i32
    %c0_i32_0 = arith.constant 0 : i32
    %c0_i32_1 = arith.constant 0 : i32
    return %c0_i32, %c0_i32_0 : i32, i32
  }
  func.func @transform_16(%arg0: i32) -> (i32, i32) {
    %c0_i32 = arith.constant 0 : i32
    %c0_i32_0 = arith.constant 0 : i32
    %c0_i32_1 = arith.constant 0 : i32
    return %c0_i32, %c0_i32_0 : i32, i32
  }
  func.func @transform_17(%arg0: i32) -> (i32, i32) {
    %c0_i32 = arith.constant 0 : i32
    %c0_i32_0 = arith.constant 0 : i32
    %c0_i32_1 = arith.constant 0 : i32
    return %c0_i32, %c0_i32_0 : i32, i32
  }
  func.func @transform_18(%arg0: i32) -> (i32, i32) {
    %c0_i32 = arith.constant 0 : i32
    %c0_i32_0 = arith.constant 0 : i32
    %c0_i32_1 = arith.constant 0 : i32
    return %c0_i32, %c0_i32_0 : i32, i32
  }
  func.func @transform_19(%arg0: i32) -> (i32, i32) {
    %c0_i32 = arith.constant 0 : i32
    %c0_i32_0 = arith.constant 0 : i32
    %c0_i32_1 = arith.constant 0 : i32
    return %c0_i32, %c0_i32_0 : i32, i32
  }
  func.func @transform_20(%arg0: i32) -> (i32, i32) {
    %c0_i32 = arith.constant 0 : i32
    %c0_i32_0 = arith.constant 0 : i32
    %c0_i32_1 = arith.constant 0 : i32
    return %c0_i32, %c0_i32_0 : i32, i32
  }
  func.func @transform_21(%arg0: i32) -> (i32, i32) {
    %c0_i32 = arith.constant 0 : i32
    %c0_i32_0 = arith.constant 0 : i32
    %c0_i32_1 = arith.constant 0 : i32
    return %c0_i32, %c0_i32_0 : i32, i32
  }
  func.func @transform_22(%arg0: i32) -> (i32, i32) {
    %c0_i32 = arith.constant 0 : i32
    %c0_i32_0 = arith.constant 0 : i32
    %c0_i32_1 = arith.constant 0 : i32
    return %c0_i32, %c0_i32_0 : i32, i32
  }
  func.func @transform_23(%arg0: i32) -> (i32, i32, i32) {
    %c0_i32 = arith.constant 0 : i32
    %c0_i32_0 = arith.constant 0 : i32
    %c0_i32_1 = arith.constant 0 : i32
    %c0_i32_2 = arith.constant 0 : i32
    return %c0_i32, %c0_i32_0, %c0_i32_1 : i32, i32, i32
  }
  func.func @transform_24(%arg0: i32) -> (i32, i32, i32) {
    %c0_i32 = arith.constant 0 : i32
    %c0_i32_0 = arith.constant 0 : i32
    %c0_i32_1 = arith.constant 0 : i32
    %c0_i32_2 = arith.constant 0 : i32
    return %c0_i32, %c0_i32_0, %c0_i32_1 : i32, i32, i32
  }
}

module attributes {stable_mosaic.version = 11 : i64} {
  func.func @kernel(%arg0: i32, %arg1: memref<2x2x32xf32, #tpu.memory_space<vmem>>, %arg2: memref<2x2x32xf32, #tpu.memory_space<vmem>>, %arg3: memref<2x16xf32, #tpu.memory_space<vmem>>, %arg4: memref<128x16xf32, #tpu.memory_space<vmem>>, %arg5: memref<16x32xf32, #tpu.memory_space<vmem>>, %arg6: memref<32x32xf32, #tpu.memory_space<vmem>>, %arg7: memref<32x32xf32, #tpu.memory_space<vmem>>, %arg8: memref<1x32xf32, #tpu.memory_space<vmem>>, %arg9: memref<16x32xf32, #tpu.memory_space<vmem>>, %arg10: memref<32x32xf32, #tpu.memory_space<vmem>>, %arg11: memref<32x32xf32, #tpu.memory_space<vmem>>, %arg12: memref<1x32xf32, #tpu.memory_space<vmem>>, %arg13: memref<16x32xf32, #tpu.memory_space<vmem>>, %arg14: memref<32x32xf32, #tpu.memory_space<vmem>>, %arg15: memref<32x32xf32, #tpu.memory_space<vmem>>, %arg16: memref<1x32xf32, #tpu.memory_space<vmem>>, %arg17: memref<32x32xf32, #tpu.memory_space<vmem>>, %arg18: memref<32x32xf32, #tpu.memory_space<vmem>>, %arg19: memref<32x32xf32, #tpu.memory_space<vmem>>, %arg20: memref<1x32xf32, #tpu.memory_space<vmem>>, %arg21: memref<32x32xf32, #tpu.memory_space<vmem>>, %arg22: memref<32x32xf32, #tpu.memory_space<vmem>>, %arg23: memref<32x32xf32, #tpu.memory_space<vmem>>, %arg24: memref<1x32xf32, #tpu.memory_space<vmem>>, %arg25: memref<32x32xf32, #tpu.memory_space<vmem>>, %arg26: memref<32x32xf32, #tpu.memory_space<vmem>>, %arg27: memref<32x32xf32, #tpu.memory_space<vmem>>, %arg28: memref<1x32xf32, #tpu.memory_space<vmem>>, %arg29: memref<32x512xf32, #tpu.memory_space<vmem>>, %arg30: memref<16x512xf32, #tpu.memory_space<vmem>>, %arg31: memref<32x512xf32, #tpu.memory_space<vmem>>, %arg32: memref<1x512xf32, #tpu.memory_space<vmem>>, %arg33: memref<32x512xf32, #tpu.memory_space<vmem>>, %arg34: memref<16x512xf32, #tpu.memory_space<vmem>>, %arg35: memref<32x512xf32, #tpu.memory_space<vmem>>, %arg36: memref<1x512xf32, #tpu.memory_space<vmem>>, %arg37: memref<512x128xf32, #tpu.memory_space<vmem>>, %arg38: memref<1x128xf32, #tpu.memory_space<vmem>>, %arg39: memref<1x2x128xf32, #tpu.memory_space<vmem>>, %arg40: memref<2x2x32xf32, #tpu.memory_space<vmem>>, %arg41: memref<2x16xf32, #tpu.memory_space<vmem>>, %arg42: memref<2x2x32xf32, #tpu.memory_space<vmem>>, %arg43: memref<2x2x32xf32, #tpu.memory_space<vmem>>, %arg44: memref<2x512xf32, #tpu.memory_space<vmem>>, %arg45: memref<2x512xf32, #tpu.memory_space<vmem>>) attributes {dimension_semantics = [#tpu.dimension_semantics<arbitrary>], iteration_bounds = array<i64: 7>, scalar_prefetch = 0 : i64, scratch_operands = 6 : i64, tpu.core_type = #tpu.core_type<tc>, window_params = [{pipeline_mode = #tpu.pipeline_mode<synchronous>, transform_indices = @transform_0, window_bounds = array<i64: 2, 2, 32>}, {pipeline_mode = #tpu.pipeline_mode<synchronous>, transform_indices = @transform_1, window_bounds = array<i64: 2, 2, 32>}, {pipeline_mode = #tpu.pipeline_mode<synchronous>, transform_indices = @transform_2, window_bounds = array<i64: 2, 16>}, {pipeline_mode = #tpu.pipeline_mode<synchronous>, transform_indices = @transform_3, window_bounds = array<i64: 128, 16>}, {pipeline_mode = #tpu.pipeline_mode<synchronous>, transform_indices = @transform_4, window_bounds = array<i64: 16, 32>}, {pipeline_mode = #tpu.pipeline_mode<synchronous>, transform_indices = @transform_5, window_bounds = array<i64: 32, 32>}, {pipeline_mode = #tpu.pipeline_mode<synchronous>, transform_indices = @transform_6, window_bounds = array<i64: 32, 32>}, {pipeline_mode = #tpu.pipeline_mode<synchronous>, transform_indices = @transform_7, window_bounds = array<i64: 1, 32>}, {pipeline_mode = #tpu.pipeline_mode<synchronous>, transform_indices = @transform_8, window_bounds = array<i64: 16, 32>}, {pipeline_mode = #tpu.pipeline_mode<synchronous>, transform_indices = @transform_9, window_bounds = array<i64: 32, 32>}, {pipeline_mode = #tpu.pipeline_mode<synchronous>, transform_indices = @transform_10, window_bounds = array<i64: 32, 32>}, {pipeline_mode = #tpu.pipeline_mode<synchronous>, transform_indices = @transform_11, window_bounds = array<i64: 1, 32>}, {pipeline_mode = #tpu.pipeline_mode<synchronous>, transform_indices = @transform_12, window_bounds = array<i64: 16, 32>}, {pipeline_mode = #tpu.pipeline_mode<synchronous>, transform_indices = @transform_13, window_bounds = array<i64: 32, 32>}, {pipeline_mode = #tpu.pipeline_mode<synchronous>, transform_indices = @transform_14, window_bounds = array<i64: 32, 32>}, {pipeline_mode = #tpu.pipeline_mode<synchronous>, transform_indices = @transform_15, window_bounds = array<i64: 1, 32>}, {pipeline_mode = #tpu.pipeline_mode<synchronous>, transform_indices = @transform_16, window_bounds = array<i64: 32, 32>}, {pipeline_mode = #tpu.pipeline_mode<synchronous>, transform_indices = @transform_17, window_bounds = array<i64: 32, 32>}, {pipeline_mode = #tpu.pipeline_mode<synchronous>, transform_indices = @transform_18, window_bounds = array<i64: 32, 32>}, {pipeline_mode = #tpu.pipeline_mode<synchronous>, transform_indices = @transform_19, window_bounds = array<i64: 1, 32>}, {pipeline_mode = #tpu.pipeline_mode<synchronous>, transform_indices = @transform_20, window_bounds = array<i64: 32, 32>}, {pipeline_mode = #tpu.pipeline_mode<synchronous>, transform_indices = @transform_21, window_bounds = array<i64: 32, 32>}, {pipeline_mode = #tpu.pipeline_mode<synchronous>, transform_indices = @transform_22, window_bounds = array<i64: 32, 32>}, {pipeline_mode = #tpu.pipeline_mode<synchronous>, transform_indices = @transform_23, window_bounds = array<i64: 1, 32>}, {pipeline_mode = #tpu.pipeline_mode<synchronous>, transform_indices = @transform_24, window_bounds = array<i64: 32, 32>}, {pipeline_mode = #tpu.pipeline_mode<synchronous>, transform_indices = @transform_25, window_bounds = array<i64: 32, 32>}, {pipeline_mode = #tpu.pipeline_mode<synchronous>, transform_indices = @transform_26, window_bounds = array<i64: 32, 32>}, {pipeline_mode = #tpu.pipeline_mode<synchronous>, transform_indices = @transform_27, window_bounds = array<i64: 1, 32>}, {pipeline_mode = #tpu.pipeline_mode<synchronous>, transform_indices = @transform_28, window_bounds = array<i64: 32, 512>}, {pipeline_mode = #tpu.pipeline_mode<synchronous>, transform_indices = @transform_29, window_bounds = array<i64: 16, 512>}, {pipeline_mode = #tpu.pipeline_mode<synchronous>, transform_indices = @transform_30, window_bounds = array<i64: 32, 512>}, {pipeline_mode = #tpu.pipeline_mode<synchronous>, transform_indices = @transform_31, window_bounds = array<i64: 1, 512>}, {pipeline_mode = #tpu.pipeline_mode<synchronous>, transform_indices = @transform_32, window_bounds = array<i64: 32, 512>}, {pipeline_mode = #tpu.pipeline_mode<synchronous>, transform_indices = @transform_33, window_bounds = array<i64: 16, 512>}, {pipeline_mode = #tpu.pipeline_mode<synchronous>, transform_indices = @transform_34, window_bounds = array<i64: 32, 512>}, {pipeline_mode = #tpu.pipeline_mode<synchronous>, transform_indices = @transform_35, window_bounds = array<i64: 1, 512>}, {pipeline_mode = #tpu.pipeline_mode<synchronous>, transform_indices = @transform_36, window_bounds = array<i64: 512, 128>}, {pipeline_mode = #tpu.pipeline_mode<synchronous>, transform_indices = @transform_37, window_bounds = array<i64: 1, 128>}, {transform_indices = @transform_38, window_bounds = array<i64: 1, 2, 128>}]} {
    %c0_i32 = arith.constant 0 : i32
    %0 = arith.cmpi eq, %arg0, %c0_i32 : i32
    %1 = arith.extui %0 : i1 to i32
    %c0_i32_0 = arith.constant 0 : i32
    %2 = arith.cmpi ne, %1, %c0_i32_0 : i32
    scf.if %2 {
      %c0_124 = arith.constant 0 : index
      %c0_125 = arith.constant 0 : index
      %c0_126 = arith.constant 0 : index
      %160 = vector.load %arg1[%c0_124, %c0_125, %c0_126] : memref<2x2x32xf32, #tpu.memory_space<vmem>>, vector<2x2x32xf32>
      %c0_127 = arith.constant 0 : index
      %c0_128 = arith.constant 0 : index
      %c0_129 = arith.constant 0 : index
      %161 = vector.load %arg40[%c0_127, %c0_128, %c0_129] : memref<2x2x32xf32, #tpu.memory_space<vmem>>, vector<2x2x32xf32>
      tpu.vector_store %arg40[%c0_127, %c0_128, %c0_129], %160 {strides = array<i32>} : memref<2x2x32xf32, #tpu.memory_space<vmem>>, vector<2x2x32xf32>,
      %c0_130 = arith.constant 0 : index
      %c0_131 = arith.constant 0 : index
      %162 = vector.load %arg3[%c0_130, %c0_131] : memref<2x16xf32, #tpu.memory_space<vmem>>, vector<2x16xf32>
      %c0_132 = arith.constant 0 : index
      %c0_133 = arith.constant 0 : index
      %163 = vector.load %arg41[%c0_132, %c0_133] : memref<2x16xf32, #tpu.memory_space<vmem>>, vector<2x16xf32>
      tpu.vector_store %arg41[%c0_132, %c0_133], %162 {strides = array<i32>} : memref<2x16xf32, #tpu.memory_space<vmem>>, vector<2x16xf32>,
      %c0_134 = arith.constant 0 : index
      %c0_135 = arith.constant 0 : index
      %c0_136 = arith.constant 0 : index
      %164 = vector.load %arg2[%c0_134, %c0_135, %c0_136] : memref<2x2x32xf32, #tpu.memory_space<vmem>>, vector<1x2x32xf32>
      %165 = vector.shape_cast %164 : vector<1x2x32xf32> to vector<2x32xf32>
      %c0_137 = arith.constant 0 : index
      %c0_138 = arith.constant 0 : index
      %166 = vector.load %arg7[%c0_137, %c0_138] : memref<32x32xf32, #tpu.memory_space<vmem>>, vector<32x32xf32>
      %cst_139 = arith.constant dense<0.000000e+00> : vector<2x32xf32>
      %167 = tpu.matmul %165, %166, %cst_139 {dimension_numbers = #tpu.dot_dimension_numbers<[1], [0], [0], [1], [0, 0, 1, 1], [], []>} : vector<2x32xf32>, vector<32x32xf32>, vector<2x32xf32> -> vector<2x32xf32>
      %c0_140 = arith.constant 0 : index
      %c0_141 = arith.constant 0 : index
      %168 = vector.load %arg8[%c0_140, %c0_141] : memref<1x32xf32, #tpu.memory_space<vmem>>, vector<1x32xf32>
      %169 = vector.broadcast %168 : vector<1x32xf32> to vector<2x32xf32>
      %170 = arith.addf %167, %169 : vector<2x32xf32>
      %c0_142 = arith.constant 0 : index
      %c0_143 = arith.constant 0 : index
      %c0_144 = arith.constant 0 : index
      %171 = vector.load %arg42[%c0_142, %c0_143, %c0_144] : memref<2x2x32xf32, #tpu.memory_space<vmem>>, vector<1x2x32xf32>
      %172 = vector.shape_cast %171 : vector<1x2x32xf32> to vector<2x32xf32>
      %173 = vector.shape_cast %170 : vector<2x32xf32> to vector<1x2x32xf32>
      tpu.vector_store %arg42[%c0_142, %c0_143, %c0_144], %173 {strides = array<i32>} : memref<2x2x32xf32, #tpu.memory_space<vmem>>, vector<1x2x32xf32>,
      %c0_145 = arith.constant 0 : index
      %c0_146 = arith.constant 0 : index
      %174 = vector.load %arg11[%c0_145, %c0_146] : memref<32x32xf32, #tpu.memory_space<vmem>>, vector<32x32xf32>
      %cst_147 = arith.constant dense<0.000000e+00> : vector<2x32xf32>
      %175 = tpu.matmul %165, %174, %cst_147 {dimension_numbers = #tpu.dot_dimension_numbers<[1], [0], [0], [1], [0, 0, 1, 1], [], []>} : vector<2x32xf32>, vector<32x32xf32>, vector<2x32xf32> -> vector<2x32xf32>
      %c0_148 = arith.constant 0 : index
      %c0_149 = arith.constant 0 : index
      %176 = vector.load %arg12[%c0_148, %c0_149] : memref<1x32xf32, #tpu.memory_space<vmem>>, vector<1x32xf32>
      %177 = vector.broadcast %176 : vector<1x32xf32> to vector<2x32xf32>
      %178 = arith.addf %175, %177 : vector<2x32xf32>
      %c0_150 = arith.constant 0 : index
      %c0_151 = arith.constant 0 : index
      %c0_152 = arith.constant 0 : index
      %179 = vector.load %arg43[%c0_150, %c0_151, %c0_152] : memref<2x2x32xf32, #tpu.memory_space<vmem>>, vector<1x2x32xf32>
      %180 = vector.shape_cast %179 : vector<1x2x32xf32> to vector<2x32xf32>
      %181 = vector.shape_cast %178 : vector<2x32xf32> to vector<1x2x32xf32>
      tpu.vector_store %arg43[%c0_150, %c0_151, %c0_152], %181 {strides = array<i32>} : memref<2x2x32xf32, #tpu.memory_space<vmem>>, vector<1x2x32xf32>,
      %c1_153 = arith.constant 1 : index
      %c0_154 = arith.constant 0 : index
      %c0_155 = arith.constant 0 : index
      %182 = vector.load %arg2[%c1_153, %c0_154, %c0_155] : memref<2x2x32xf32, #tpu.memory_space<vmem>>, vector<1x2x32xf32>
      %183 = vector.shape_cast %182 : vector<1x2x32xf32> to vector<2x32xf32>
      %c0_156 = arith.constant 0 : index
      %c0_157 = arith.constant 0 : index
      %184 = vector.load %arg19[%c0_156, %c0_157] : memref<32x32xf32, #tpu.memory_space<vmem>>, vector<32x32xf32>
      %cst_158 = arith.constant dense<0.000000e+00> : vector<2x32xf32>
      %185 = tpu.matmul %183, %184, %cst_158 {dimension_numbers = #tpu.dot_dimension_numbers<[1], [0], [0], [1], [0, 0, 1, 1], [], []>} : vector<2x32xf32>, vector<32x32xf32>, vector<2x32xf32> -> vector<2x32xf32>
      %c0_159 = arith.constant 0 : index
      %c0_160 = arith.constant 0 : index
      %186 = vector.load %arg20[%c0_159, %c0_160] : memref<1x32xf32, #tpu.memory_space<vmem>>, vector<1x32xf32>
      %187 = vector.broadcast %186 : vector<1x32xf32> to vector<2x32xf32>
      %188 = arith.addf %185, %187 : vector<2x32xf32>
      %c1_161 = arith.constant 1 : index
      %c0_162 = arith.constant 0 : index
      %c0_163 = arith.constant 0 : index
      %189 = vector.load %arg42[%c1_161, %c0_162, %c0_163] : memref<2x2x32xf32, #tpu.memory_space<vmem>>, vector<1x2x32xf32>
      %190 = vector.shape_cast %189 : vector<1x2x32xf32> to vector<2x32xf32>
      %191 = vector.shape_cast %188 : vector<2x32xf32> to vector<1x2x32xf32>
      tpu.vector_store %arg42[%c1_161, %c0_162, %c0_163], %191 {strides = array<i32>} : memref<2x2x32xf32, #tpu.memory_space<vmem>>, vector<1x2x32xf32>,
      %c0_164 = arith.constant 0 : index
      %c0_165 = arith.constant 0 : index
      %192 = vector.load %arg23[%c0_164, %c0_165] : memref<32x32xf32, #tpu.memory_space<vmem>>, vector<32x32xf32>
      %cst_166 = arith.constant dense<0.000000e+00> : vector<2x32xf32>
      %193 = tpu.matmul %183, %192, %cst_166 {dimension_numbers = #tpu.dot_dimension_numbers<[1], [0], [0], [1], [0, 0, 1, 1], [], []>} : vector<2x32xf32>, vector<32x32xf32>, vector<2x32xf32> -> vector<2x32xf32>
      %c0_167 = arith.constant 0 : index
      %c0_168 = arith.constant 0 : index
      %194 = vector.load %arg24[%c0_167, %c0_168] : memref<1x32xf32, #tpu.memory_space<vmem>>, vector<1x32xf32>
      %195 = vector.broadcast %194 : vector<1x32xf32> to vector<2x32xf32>
      %196 = arith.addf %193, %195 : vector<2x32xf32>
      %c1_169 = arith.constant 1 : index
      %c0_170 = arith.constant 0 : index
      %c0_171 = arith.constant 0 : index
      %197 = vector.load %arg43[%c1_169, %c0_170, %c0_171] : memref<2x2x32xf32, #tpu.memory_space<vmem>>, vector<1x2x32xf32>
      %198 = vector.shape_cast %197 : vector<1x2x32xf32> to vector<2x32xf32>
      %199 = vector.shape_cast %196 : vector<2x32xf32> to vector<1x2x32xf32>
      tpu.vector_store %arg43[%c1_169, %c0_170, %c0_171], %199 {strides = array<i32>} : memref<2x2x32xf32, #tpu.memory_space<vmem>>, vector<1x2x32xf32>,
      %c1_172 = arith.constant 1 : index
      %c0_173 = arith.constant 0 : index
      %c0_174 = arith.constant 0 : index
      %200 = vector.load %arg2[%c1_172, %c0_173, %c0_174] : memref<2x2x32xf32, #tpu.memory_space<vmem>>, vector<1x2x32xf32>
      %201 = vector.shape_cast %200 : vector<1x2x32xf32> to vector<2x32xf32>
      %c0_175 = arith.constant 0 : index
      %c0_176 = arith.constant 0 : index
      %202 = vector.load %arg31[%c0_175, %c0_176] : memref<32x512xf32, #tpu.memory_space<vmem>>, vector<32x512xf32>
      %cst_177 = arith.constant dense<0.000000e+00> : vector<2x512xf32>
      %203 = tpu.matmul %201, %202, %cst_177 {dimension_numbers = #tpu.dot_dimension_numbers<[1], [0], [0], [1], [0, 0, 1, 1], [], []>} : vector<2x32xf32>, vector<32x512xf32>, vector<2x512xf32> -> vector<2x512xf32>
      %c0_178 = arith.constant 0 : index
      %c0_179 = arith.constant 0 : index
      %204 = vector.load %arg32[%c0_178, %c0_179] : memref<1x512xf32, #tpu.memory_space<vmem>>, vector<1x512xf32>
      %205 = vector.broadcast %204 : vector<1x512xf32> to vector<2x512xf32>
      %206 = arith.addf %203, %205 : vector<2x512xf32>
      %c0_180 = arith.constant 0 : index
      %c0_181 = arith.constant 0 : index
      %207 = vector.load %arg44[%c0_180, %c0_181] : memref<2x512xf32, #tpu.memory_space<vmem>>, vector<2x512xf32>
      tpu.vector_store %arg44[%c0_180, %c0_181], %206 {strides = array<i32>} : memref<2x512xf32, #tpu.memory_space<vmem>>, vector<2x512xf32>,
      %c0_182 = arith.constant 0 : index
      %c0_183 = arith.constant 0 : index
      %208 = vector.load %arg35[%c0_182, %c0_183] : memref<32x512xf32, #tpu.memory_space<vmem>>, vector<32x512xf32>
      %cst_184 = arith.constant dense<0.000000e+00> : vector<2x512xf32>
      %209 = tpu.matmul %201, %208, %cst_184 {dimension_numbers = #tpu.dot_dimension_numbers<[1], [0], [0], [1], [0, 0, 1, 1], [], []>} : vector<2x32xf32>, vector<32x512xf32>, vector<2x512xf32> -> vector<2x512xf32>
      %c0_185 = arith.constant 0 : index
      %c0_186 = arith.constant 0 : index
      %210 = vector.load %arg36[%c0_185, %c0_186] : memref<1x512xf32, #tpu.memory_space<vmem>>, vector<1x512xf32>
      %211 = vector.broadcast %210 : vector<1x512xf32> to vector<2x512xf32>
      %212 = arith.addf %209, %211 : vector<2x512xf32>
      %c0_187 = arith.constant 0 : index
      %c0_188 = arith.constant 0 : index
      %213 = vector.load %arg45[%c0_187, %c0_188] : memref<2x512xf32, #tpu.memory_space<vmem>>, vector<2x512xf32>
      tpu.vector_store %arg45[%c0_187, %c0_188], %212 {strides = array<i32>} : memref<2x512xf32, #tpu.memory_space<vmem>>, vector<2x512xf32>,
    } else {
    }
    %c0 = arith.constant 0 : index
    %c0_1 = arith.constant 0 : index
    %3 = vector.load %arg41[%c0, %c0_1] : memref<2x16xf32, #tpu.memory_space<vmem>>, vector<2x16xf32>
    %c0_2 = arith.constant 0 : index
    %c0_3 = arith.constant 0 : index
    %c0_4 = arith.constant 0 : index
    %4 = vector.load %arg40[%c0_2, %c0_3, %c0_4] : memref<2x2x32xf32, #tpu.memory_space<vmem>>, vector<1x2x32xf32>
    %5 = vector.shape_cast %4 : vector<1x2x32xf32> to vector<2x32xf32>
    %c0_5 = arith.constant 0 : index
    %c0_6 = arith.constant 0 : index
    %c0_7 = arith.constant 0 : index
    %6 = vector.load %arg2[%c0_5, %c0_6, %c0_7] : memref<2x2x32xf32, #tpu.memory_space<vmem>>, vector<1x2x32xf32>
    %7 = vector.shape_cast %6 : vector<1x2x32xf32> to vector<2x32xf32>
    %c0_8 = arith.constant 0 : index
    %c0_9 = arith.constant 0 : index
    %8 = vector.load %arg5[%c0_8, %c0_9] : memref<16x32xf32, #tpu.memory_space<vmem>>, vector<16x32xf32>
    %cst = arith.constant dense<0.000000e+00> : vector<2x32xf32>
    %9 = tpu.matmul %3, %8, %cst {dimension_numbers = #tpu.dot_dimension_numbers<[1], [0], [0], [1], [0, 0, 1, 1], [], []>} : vector<2x16xf32>, vector<16x32xf32>, vector<2x32xf32> -> vector<2x32xf32>
    %c0_10 = arith.constant 0 : index
    %c0_11 = arith.constant 0 : index
    %10 = vector.load %arg6[%c0_10, %c0_11] : memref<32x32xf32, #tpu.memory_space<vmem>>, vector<32x32xf32>
    %cst_12 = arith.constant dense<0.000000e+00> : vector<2x32xf32>
    %11 = tpu.matmul %5, %10, %cst_12 {dimension_numbers = #tpu.dot_dimension_numbers<[1], [0], [0], [1], [0, 0, 1, 1], [], []>} : vector<2x32xf32>, vector<32x32xf32>, vector<2x32xf32> -> vector<2x32xf32>
    %12 = arith.addf %9, %11 : vector<2x32xf32>
    %c0_13 = arith.constant 0 : index
    %c0_14 = arith.constant 0 : index
    %c0_15 = arith.constant 0 : index
    %13 = vector.load %arg42[%c0_13, %c0_14, %c0_15] : memref<2x2x32xf32, #tpu.memory_space<vmem>>, vector<1x2x32xf32>
    %14 = vector.shape_cast %13 : vector<1x2x32xf32> to vector<2x32xf32>
    %15 = arith.addf %12, %14 : vector<2x32xf32>
    %cst_16 = arith.constant 0.000000e+00 : f32
    %16 = vector.broadcast %cst_16 : f32 to vector<2x32xf32>
    %17 = arith.subf %16, %15 : vector<2x32xf32>
    %18 = math.exp %17 : vector<2x32xf32>
    %cst_17 = arith.constant 1.000000e+00 : f32
    %19 = vector.broadcast %cst_17 : f32 to vector<2x32xf32>
    %20 = arith.addf %19, %18 : vector<2x32xf32>
    %cst_18 = arith.constant 1.000000e+00 : f32
    %21 = vector.broadcast %cst_18 : f32 to vector<2x32xf32>
    %22 = arith.divf %21, %20 : vector<2x32xf32>
    %c0_19 = arith.constant 0 : index
    %c0_20 = arith.constant 0 : index
    %23 = vector.load %arg9[%c0_19, %c0_20] : memref<16x32xf32, #tpu.memory_space<vmem>>, vector<16x32xf32>
    %cst_21 = arith.constant dense<0.000000e+00> : vector<2x32xf32>
    %24 = tpu.matmul %3, %23, %cst_21 {dimension_numbers = #tpu.dot_dimension_numbers<[1], [0], [0], [1], [0, 0, 1, 1], [], []>} : vector<2x16xf32>, vector<16x32xf32>, vector<2x32xf32> -> vector<2x32xf32>
    %c0_22 = arith.constant 0 : index
    %c0_23 = arith.constant 0 : index
    %25 = vector.load %arg10[%c0_22, %c0_23] : memref<32x32xf32, #tpu.memory_space<vmem>>, vector<32x32xf32>
    %cst_24 = arith.constant dense<0.000000e+00> : vector<2x32xf32>
    %26 = tpu.matmul %5, %25, %cst_24 {dimension_numbers = #tpu.dot_dimension_numbers<[1], [0], [0], [1], [0, 0, 1, 1], [], []>} : vector<2x32xf32>, vector<32x32xf32>, vector<2x32xf32> -> vector<2x32xf32>
    %27 = arith.addf %24, %26 : vector<2x32xf32>
    %c0_25 = arith.constant 0 : index
    %c0_26 = arith.constant 0 : index
    %c0_27 = arith.constant 0 : index
    %28 = vector.load %arg43[%c0_25, %c0_26, %c0_27] : memref<2x2x32xf32, #tpu.memory_space<vmem>>, vector<1x2x32xf32>
    %29 = vector.shape_cast %28 : vector<1x2x32xf32> to vector<2x32xf32>
    %30 = arith.addf %27, %29 : vector<2x32xf32>
    %cst_28 = arith.constant 0.000000e+00 : f32
    %31 = vector.broadcast %cst_28 : f32 to vector<2x32xf32>
    %32 = arith.subf %31, %30 : vector<2x32xf32>
    %33 = math.exp %32 : vector<2x32xf32>
    %cst_29 = arith.constant 1.000000e+00 : f32
    %34 = vector.broadcast %cst_29 : f32 to vector<2x32xf32>
    %35 = arith.addf %34, %33 : vector<2x32xf32>
    %cst_30 = arith.constant 1.000000e+00 : f32
    %36 = vector.broadcast %cst_30 : f32 to vector<2x32xf32>
    %37 = arith.divf %36, %35 : vector<2x32xf32>
    %c0_31 = arith.constant 0 : index
    %c0_32 = arith.constant 0 : index
    %38 = vector.load %arg13[%c0_31, %c0_32] : memref<16x32xf32, #tpu.memory_space<vmem>>, vector<16x32xf32>
    %cst_33 = arith.constant dense<0.000000e+00> : vector<2x32xf32>
    %39 = tpu.matmul %3, %38, %cst_33 {dimension_numbers = #tpu.dot_dimension_numbers<[1], [0], [0], [1], [0, 0, 1, 1], [], []>} : vector<2x16xf32>, vector<16x32xf32>, vector<2x32xf32> -> vector<2x32xf32>
    %40 = arith.mulf %22, %5 : vector<2x32xf32>
    %c0_34 = arith.constant 0 : index
    %c0_35 = arith.constant 0 : index
    %41 = vector.load %arg14[%c0_34, %c0_35] : memref<32x32xf32, #tpu.memory_space<vmem>>, vector<32x32xf32>
    %cst_36 = arith.constant dense<0.000000e+00> : vector<2x32xf32>
    %42 = tpu.matmul %40, %41, %cst_36 {dimension_numbers = #tpu.dot_dimension_numbers<[1], [0], [0], [1], [0, 0, 1, 1], [], []>} : vector<2x32xf32>, vector<32x32xf32>, vector<2x32xf32> -> vector<2x32xf32>
    %43 = arith.addf %39, %42 : vector<2x32xf32>
    %44 = arith.mulf %22, %7 : vector<2x32xf32>
    %c0_37 = arith.constant 0 : index
    %c0_38 = arith.constant 0 : index
    %45 = vector.load %arg15[%c0_37, %c0_38] : memref<32x32xf32, #tpu.memory_space<vmem>>, vector<32x32xf32>
    %cst_39 = arith.constant dense<0.000000e+00> : vector<2x32xf32>
    %46 = tpu.matmul %44, %45, %cst_39 {dimension_numbers = #tpu.dot_dimension_numbers<[1], [0], [0], [1], [0, 0, 1, 1], [], []>} : vector<2x32xf32>, vector<32x32xf32>, vector<2x32xf32> -> vector<2x32xf32>
    %47 = arith.addf %43, %46 : vector<2x32xf32>
    %c0_40 = arith.constant 0 : index
    %c0_41 = arith.constant 0 : index
    %48 = vector.load %arg16[%c0_40, %c0_41] : memref<1x32xf32, #tpu.memory_space<vmem>>, vector<1x32xf32>
    %49 = vector.broadcast %48 : vector<1x32xf32> to vector<2x32xf32>
    %50 = arith.addf %47, %49 : vector<2x32xf32>
    %51 = math.tanh %50 : vector<2x32xf32>
    %52 = arith.mulf %37, %5 : vector<2x32xf32>
    %cst_42 = arith.constant 1.000000e+00 : f32
    %53 = vector.broadcast %cst_42 : f32 to vector<2x32xf32>
    %54 = arith.subf %53, %37 : vector<2x32xf32>
    %55 = arith.mulf %54, %51 : vector<2x32xf32>
    %56 = arith.addf %52, %55 : vector<2x32xf32>
    %c0_43 = arith.constant 0 : index
    %c0_44 = arith.constant 0 : index
    %c0_45 = arith.constant 0 : index
    %57 = vector.load %arg40[%c0_43, %c0_44, %c0_45] : memref<2x2x32xf32, #tpu.memory_space<vmem>>, vector<1x2x32xf32>
    %58 = vector.shape_cast %57 : vector<1x2x32xf32> to vector<2x32xf32>
    %59 = vector.shape_cast %56 : vector<2x32xf32> to vector<1x2x32xf32>
    tpu.vector_store %arg40[%c0_43, %c0_44, %c0_45], %59 {strides = array<i32>} : memref<2x2x32xf32, #tpu.memory_space<vmem>>, vector<1x2x32xf32>,
    %c1 = arith.constant 1 : index
    %c0_46 = arith.constant 0 : index
    %c0_47 = arith.constant 0 : index
    %60 = vector.load %arg40[%c1, %c0_46, %c0_47] : memref<2x2x32xf32, #tpu.memory_space<vmem>>, vector<1x2x32xf32>
    %61 = vector.shape_cast %60 : vector<1x2x32xf32> to vector<2x32xf32>
    %c1_48 = arith.constant 1 : index
    %c0_49 = arith.constant 0 : index
    %c0_50 = arith.constant 0 : index
    %62 = vector.load %arg2[%c1_48, %c0_49, %c0_50] : memref<2x2x32xf32, #tpu.memory_space<vmem>>, vector<1x2x32xf32>
    %63 = vector.shape_cast %62 : vector<1x2x32xf32> to vector<2x32xf32>
    %c0_51 = arith.constant 0 : index
    %c0_52 = arith.constant 0 : index
    %64 = vector.load %arg17[%c0_51, %c0_52] : memref<32x32xf32, #tpu.memory_space<vmem>>, vector<32x32xf32>
    %cst_53 = arith.constant dense<0.000000e+00> : vector<2x32xf32>
    %65 = tpu.matmul %56, %64, %cst_53 {dimension_numbers = #tpu.dot_dimension_numbers<[1], [0], [0], [1], [0, 0, 1, 1], [], []>} : vector<2x32xf32>, vector<32x32xf32>, vector<2x32xf32> -> vector<2x32xf32>
    %c0_54 = arith.constant 0 : index
    %c0_55 = arith.constant 0 : index
    %66 = vector.load %arg18[%c0_54, %c0_55] : memref<32x32xf32, #tpu.memory_space<vmem>>, vector<32x32xf32>
    %cst_56 = arith.constant dense<0.000000e+00> : vector<2x32xf32>
    %67 = tpu.matmul %61, %66, %cst_56 {dimension_numbers = #tpu.dot_dimension_numbers<[1], [0], [0], [1], [0, 0, 1, 1], [], []>} : vector<2x32xf32>, vector<32x32xf32>, vector<2x32xf32> -> vector<2x32xf32>
    %68 = arith.addf %65, %67 : vector<2x32xf32>
    %c1_57 = arith.constant 1 : index
    %c0_58 = arith.constant 0 : index
    %c0_59 = arith.constant 0 : index
    %69 = vector.load %arg42[%c1_57, %c0_58, %c0_59] : memref<2x2x32xf32, #tpu.memory_space<vmem>>, vector<1x2x32xf32>
    %70 = vector.shape_cast %69 : vector<1x2x32xf32> to vector<2x32xf32>
    %71 = arith.addf %68, %70 : vector<2x32xf32>
    %cst_60 = arith.constant 0.000000e+00 : f32
    %72 = vector.broadcast %cst_60 : f32 to vector<2x32xf32>
    %73 = arith.subf %72, %71 : vector<2x32xf32>
    %74 = math.exp %73 : vector<2x32xf32>
    %cst_61 = arith.constant 1.000000e+00 : f32
    %75 = vector.broadcast %cst_61 : f32 to vector<2x32xf32>
    %76 = arith.addf %75, %74 : vector<2x32xf32>
    %cst_62 = arith.constant 1.000000e+00 : f32
    %77 = vector.broadcast %cst_62 : f32 to vector<2x32xf32>
    %78 = arith.divf %77, %76 : vector<2x32xf32>
    %c0_63 = arith.constant 0 : index
    %c0_64 = arith.constant 0 : index
    %79 = vector.load %arg21[%c0_63, %c0_64] : memref<32x32xf32, #tpu.memory_space<vmem>>, vector<32x32xf32>
    %cst_65 = arith.constant dense<0.000000e+00> : vector<2x32xf32>
    %80 = tpu.matmul %56, %79, %cst_65 {dimension_numbers = #tpu.dot_dimension_numbers<[1], [0], [0], [1], [0, 0, 1, 1], [], []>} : vector<2x32xf32>, vector<32x32xf32>, vector<2x32xf32> -> vector<2x32xf32>
    %c0_66 = arith.constant 0 : index
    %c0_67 = arith.constant 0 : index
    %81 = vector.load %arg22[%c0_66, %c0_67] : memref<32x32xf32, #tpu.memory_space<vmem>>, vector<32x32xf32>
    %cst_68 = arith.constant dense<0.000000e+00> : vector<2x32xf32>
    %82 = tpu.matmul %61, %81, %cst_68 {dimension_numbers = #tpu.dot_dimension_numbers<[1], [0], [0], [1], [0, 0, 1, 1], [], []>} : vector<2x32xf32>, vector<32x32xf32>, vector<2x32xf32> -> vector<2x32xf32>
    %83 = arith.addf %80, %82 : vector<2x32xf32>
    %c1_69 = arith.constant 1 : index
    %c0_70 = arith.constant 0 : index
    %c0_71 = arith.constant 0 : index
    %84 = vector.load %arg43[%c1_69, %c0_70, %c0_71] : memref<2x2x32xf32, #tpu.memory_space<vmem>>, vector<1x2x32xf32>
    %85 = vector.shape_cast %84 : vector<1x2x32xf32> to vector<2x32xf32>
    %86 = arith.addf %83, %85 : vector<2x32xf32>
    %cst_72 = arith.constant 0.000000e+00 : f32
    %87 = vector.broadcast %cst_72 : f32 to vector<2x32xf32>
    %88 = arith.subf %87, %86 : vector<2x32xf32>
    %89 = math.exp %88 : vector<2x32xf32>
    %cst_73 = arith.constant 1.000000e+00 : f32
    %90 = vector.broadcast %cst_73 : f32 to vector<2x32xf32>
    %91 = arith.addf %90, %89 : vector<2x32xf32>
    %cst_74 = arith.constant 1.000000e+00 : f32
    %92 = vector.broadcast %cst_74 : f32 to vector<2x32xf32>
    %93 = arith.divf %92, %91 : vector<2x32xf32>
    %c0_75 = arith.constant 0 : index
    %c0_76 = arith.constant 0 : index
    %94 = vector.load %arg25[%c0_75, %c0_76] : memref<32x32xf32, #tpu.memory_space<vmem>>, vector<32x32xf32>
    %cst_77 = arith.constant dense<0.000000e+00> : vector<2x32xf32>
    %95 = tpu.matmul %56, %94, %cst_77 {dimension_numbers = #tpu.dot_dimension_numbers<[1], [0], [0], [1], [0, 0, 1, 1], [], []>} : vector<2x32xf32>, vector<32x32xf32>, vector<2x32xf32> -> vector<2x32xf32>
    %96 = arith.mulf %78, %61 : vector<2x32xf32>
    %c0_78 = arith.constant 0 : index
    %c0_79 = arith.constant 0 : index
    %97 = vector.load %arg26[%c0_78, %c0_79] : memref<32x32xf32, #tpu.memory_space<vmem>>, vector<32x32xf32>
    %cst_80 = arith.constant dense<0.000000e+00> : vector<2x32xf32>
    %98 = tpu.matmul %96, %97, %cst_80 {dimension_numbers = #tpu.dot_dimension_numbers<[1], [0], [0], [1], [0, 0, 1, 1], [], []>} : vector<2x32xf32>, vector<32x32xf32>, vector<2x32xf32> -> vector<2x32xf32>
    %99 = arith.addf %95, %98 : vector<2x32xf32>
    %100 = arith.mulf %78, %63 : vector<2x32xf32>
    %c0_81 = arith.constant 0 : index
    %c0_82 = arith.constant 0 : index
    %101 = vector.load %arg27[%c0_81, %c0_82] : memref<32x32xf32, #tpu.memory_space<vmem>>, vector<32x32xf32>
    %cst_83 = arith.constant dense<0.000000e+00> : vector<2x32xf32>
    %102 = tpu.matmul %100, %101, %cst_83 {dimension_numbers = #tpu.dot_dimension_numbers<[1], [0], [0], [1], [0, 0, 1, 1], [], []>} : vector<2x32xf32>, vector<32x32xf32>, vector<2x32xf32> -> vector<2x32xf32>
    %103 = arith.addf %99, %102 : vector<2x32xf32>
    %c0_84 = arith.constant 0 : index
    %c0_85 = arith.constant 0 : index
    %104 = vector.load %arg28[%c0_84, %c0_85] : memref<1x32xf32, #tpu.memory_space<vmem>>, vector<1x32xf32>
    %105 = vector.broadcast %104 : vector<1x32xf32> to vector<2x32xf32>
    %106 = arith.addf %103, %105 : vector<2x32xf32>
    %107 = math.tanh %106 : vector<2x32xf32>
    %108 = arith.mulf %93, %61 : vector<2x32xf32>
    %cst_86 = arith.constant 1.000000e+00 : f32
    %109 = vector.broadcast %cst_86 : f32 to vector<2x32xf32>
    %110 = arith.subf %109, %93 : vector<2x32xf32>
    %111 = arith.mulf %110, %107 : vector<2x32xf32>
    %112 = arith.addf %108, %111 : vector<2x32xf32>
    %c1_87 = arith.constant 1 : index
    %c0_88 = arith.constant 0 : index
    %c0_89 = arith.constant 0 : index
    %113 = vector.load %arg40[%c1_87, %c0_88, %c0_89] : memref<2x2x32xf32, #tpu.memory_space<vmem>>, vector<1x2x32xf32>
    %114 = vector.shape_cast %113 : vector<1x2x32xf32> to vector<2x32xf32>
    %115 = vector.shape_cast %112 : vector<2x32xf32> to vector<1x2x32xf32>
    tpu.vector_store %arg40[%c1_87, %c0_88, %c0_89], %115 {strides = array<i32>} : memref<2x2x32xf32, #tpu.memory_space<vmem>>, vector<1x2x32xf32>,
    %c0_90 = arith.constant 0 : index
    %c0_91 = arith.constant 0 : index
    %116 = vector.load %arg29[%c0_90, %c0_91] : memref<32x512xf32, #tpu.memory_space<vmem>>, vector<32x512xf32>
    %cst_92 = arith.constant dense<0.000000e+00> : vector<2x512xf32>
    %117 = tpu.matmul %112, %116, %cst_92 {dimension_numbers = #tpu.dot_dimension_numbers<[1], [0], [0], [1], [0, 0, 1, 1], [], []>} : vector<2x32xf32>, vector<32x512xf32>, vector<2x512xf32> -> vector<2x512xf32>
    %c0_93 = arith.constant 0 : index
    %c0_94 = arith.constant 0 : index
    %118 = vector.load %arg30[%c0_93, %c0_94] : memref<16x512xf32, #tpu.memory_space<vmem>>, vector<16x512xf32>
    %cst_95 = arith.constant dense<0.000000e+00> : vector<2x512xf32>
    %119 = tpu.matmul %3, %118, %cst_95 {dimension_numbers = #tpu.dot_dimension_numbers<[1], [0], [0], [1], [0, 0, 1, 1], [], []>} : vector<2x16xf32>, vector<16x512xf32>, vector<2x512xf32> -> vector<2x512xf32>
    %120 = arith.addf %117, %119 : vector<2x512xf32>
    %c0_96 = arith.constant 0 : index
    %c0_97 = arith.constant 0 : index
    %121 = vector.load %arg44[%c0_96, %c0_97] : memref<2x512xf32, #tpu.memory_space<vmem>>, vector<2x512xf32>
    %122 = arith.addf %120, %121 : vector<2x512xf32>
    %c0_98 = arith.constant 0 : index
    %c0_99 = arith.constant 0 : index
    %123 = vector.load %arg33[%c0_98, %c0_99] : memref<32x512xf32, #tpu.memory_space<vmem>>, vector<32x512xf32>
    %cst_100 = arith.constant dense<0.000000e+00> : vector<2x512xf32>
    %124 = tpu.matmul %112, %123, %cst_100 {dimension_numbers = #tpu.dot_dimension_numbers<[1], [0], [0], [1], [0, 0, 1, 1], [], []>} : vector<2x32xf32>, vector<32x512xf32>, vector<2x512xf32> -> vector<2x512xf32>
    %c0_101 = arith.constant 0 : index
    %c0_102 = arith.constant 0 : index
    %125 = vector.load %arg34[%c0_101, %c0_102] : memref<16x512xf32, #tpu.memory_space<vmem>>, vector<16x512xf32>
    %cst_103 = arith.constant dense<0.000000e+00> : vector<2x512xf32>
    %126 = tpu.matmul %3, %125, %cst_103 {dimension_numbers = #tpu.dot_dimension_numbers<[1], [0], [0], [1], [0, 0, 1, 1], [], []>} : vector<2x16xf32>, vector<16x512xf32>, vector<2x512xf32> -> vector<2x512xf32>
    %127 = arith.addf %124, %126 : vector<2x512xf32>
    %c0_104 = arith.constant 0 : index
    %c0_105 = arith.constant 0 : index
    %128 = vector.load %arg45[%c0_104, %c0_105] : memref<2x512xf32, #tpu.memory_space<vmem>>, vector<2x512xf32>
    %129 = arith.addf %127, %128 : vector<2x512xf32>
    %130 = arith.maximumf %122, %129 : vector<2x512xf32>
    %c0_106 = arith.constant 0 : index
    %c0_107 = arith.constant 0 : index
    %131 = vector.load %arg37[%c0_106, %c0_107] : memref<512x128xf32, #tpu.memory_space<vmem>>, vector<512x128xf32>
    %cst_108 = arith.constant dense<0.000000e+00> : vector<2x128xf32>
    %132 = tpu.matmul %130, %131, %cst_108 {dimension_numbers = #tpu.dot_dimension_numbers<[1], [0], [0], [1], [0, 0, 1, 1], [], []>} : vector<2x512xf32>, vector<512x128xf32>, vector<2x128xf32> -> vector<2x128xf32>
    %c0_109 = arith.constant 0 : index
    %c0_110 = arith.constant 0 : index
    %133 = vector.load %arg38[%c0_109, %c0_110] : memref<1x128xf32, #tpu.memory_space<vmem>>, vector<1x128xf32>
    %134 = vector.broadcast %133 : vector<1x128xf32> to vector<2x128xf32>
    %135 = arith.addf %132, %134 : vector<2x128xf32>
    %c0_111 = arith.constant 0 : index
    %c0_112 = arith.constant 0 : index
    %c0_113 = arith.constant 0 : index
    %136 = vector.load %arg39[%c0_111, %c0_112, %c0_113] : memref<1x2x128xf32, #tpu.memory_space<vmem>>, vector<1x2x128xf32>
    %137 = vector.shape_cast %136 : vector<1x2x128xf32> to vector<2x128xf32>
    %138 = vector.shape_cast %135 : vector<2x128xf32> to vector<1x2x128xf32>
    tpu.vector_store %arg39[%c0_111, %c0_112, %c0_113], %138 {strides = array<i32>} : memref<1x2x128xf32, #tpu.memory_space<vmem>>, vector<1x2x128xf32>,
    %139 = tpu.iota {dimensions = array<i32: 1>} : vector<2x128xi32>
    %140 = arith.sitofp %139 : vector<2x128xi32> to vector<2x128xf32>
    %cst_114 = arith.constant 2.400000e+01 : f32
    %141 = vector.broadcast %cst_114 : f32 to vector<2x128xf32>
    %142 = arith.cmpf olt, %140, %141 : vector<2x128xf32>
    %cst_115 = arith.constant -1.000000e+30 : f32
    %143 = vector.broadcast %cst_115 : f32 to vector<2x128xf32>
    %144 = arith.select %142, %135, %143 : vector<2x128xi1>, vector<2x128xf32>
    %cst_116 = arith.constant dense<0xFF800000> : vector<2xf32>
    %145 = vector.multi_reduction <maximumf>, %144, %cst_116 [1] : vector<2x128xf32> to vector<2xf32>
    %146 = vector.shape_cast %145 : vector<2xf32> to vector<2x1xf32>
    %147 = vector.broadcast %146 : vector<2x1xf32> to vector<2x128xf32>
    %148 = arith.cmpf oeq, %144, %147 : vector<2x128xf32>
    %cst_117 = arith.constant 1.280000e+02 : f32
    %149 = vector.broadcast %cst_117 : f32 to vector<2x128xf32>
    %150 = arith.select %148, %140, %149 : vector<2x128xi1>, vector<2x128xf32>
    %cst_118 = arith.constant dense<0x7F800000> : vector<2xf32>
    %151 = vector.multi_reduction <minimumf>, %150, %cst_118 [1] : vector<2x128xf32> to vector<2xf32>
    %152 = vector.shape_cast %151 : vector<2xf32> to vector<2x1xf32>
    %153 = vector.broadcast %152 : vector<2x1xf32> to vector<2x128xf32>
    %154 = arith.cmpf oeq, %140, %153 : vector<2x128xf32>
    %155 = arith.extui %154 : vector<2x128xi1> to vector<2x128xi32>
    %156 = arith.sitofp %155 : vector<2x128xi32> to vector<2x128xf32>
    %c0_119 = arith.constant 0 : index
    %c0_120 = arith.constant 0 : index
    %157 = vector.load %arg4[%c0_119, %c0_120] : memref<128x16xf32, #tpu.memory_space<vmem>>, vector<128x16xf32>
    %cst_121 = arith.constant dense<0.000000e+00> : vector<2x16xf32>
    %158 = tpu.matmul %156, %157, %cst_121 {dimension_numbers = #tpu.dot_dimension_numbers<[1], [0], [0], [1], [0, 0, 1, 1], [], []>} : vector<2x128xf32>, vector<128x16xf32>, vector<2x16xf32> -> vector<2x16xf32>
    %c0_122 = arith.constant 0 : index
    %c0_123 = arith.constant 0 : index
    %159 = vector.load %arg41[%c0_122, %c0_123] : memref<2x16xf32, #tpu.memory_space<vmem>>, vector<2x16xf32>
    tpu.vector_store %arg41[%c0_122, %c0_123], %158 {strides = array<i32>} : memref<2x16xf32, #tpu.memory_space<vmem>>, vector<2x16xf32>,
    return
  }
  func.func @transform_0(%arg0: i32) -> (i32, i32, i32) {
    %c0_i32 = arith.constant 0 : i32
    %c0_i32_0 = arith.constant 0 : i32
    %c0_i32_1 = arith.constant 0 : i32
    %c0_i32_2 = arith.constant 0 : i32
    return %c0_i32, %c0_i32_0, %c0_i32_1 : i32, i32, i32
  }
  func.func @transform_1(%arg0: i32) -> (i32, i32, i32) {
    %c0_i32 = arith.constant 0 : i32
    %c0_i32_0 = arith.constant 0 : i32
    %c0_i32_1 = arith.constant 0 : i32
    %c0_i32_2 = arith.constant 0 : i32
    return %c0_i32, %c0_i32_0, %c0_i32_1 : i32, i32, i32
  }
  func.func @transform_2(%arg0: i32) -> (i32, i32) {
    %c0_i32 = arith.constant 0 : i32
    %c0_i32_0 = arith.constant 0 : i32
    %c0_i32_1 = arith.constant 0 : i32
    return %c0_i32, %c0_i32_0 : i32, i32
  }
  func.func @transform_3(%arg0: i32) -> (i32, i32) {
    %c0_i32 = arith.constant 0 : i32
    %c0_i32_0 = arith.constant 0 : i32
    %c0_i32_1 = arith.constant 0 : i32
    return %c0_i32, %c0_i32_0 : i32, i32
  }
  func.func @transform_4(%arg0: i32) -> (i32, i32) {
    %c0_i32 = arith.constant 0 : i32
    %c0_i32_0 = arith.constant 0 : i32
    %c0_i32_1 = arith.constant 0 : i32
    return %c0_i32, %c0_i32_0 : i32, i32
  }
  func.func @transform_5(%arg0: i32) -> (i32, i32) {
    %c0_i32 = arith.constant 0 : i32
    %c0_i32_0 = arith.constant 0 : i32
    %c0_i32_1 = arith.constant 0 : i32
    return %c0_i32, %c0_i32_0 : i32, i32
  }
  func.func @transform_6(%arg0: i32) -> (i32, i32) {
    %c0_i32 = arith.constant 0 : i32
    %c0_i32_0 = arith.constant 0 : i32
    %c0_i32_1 = arith.constant 0 : i32
    return %c0_i32, %c0_i32_0 : i32, i32
  }
  func.func @transform_7(%arg0: i32) -> (i32, i32) {
    %c0_i32 = arith.constant 0 : i32
    %c0_i32_0 = arith.constant 0 : i32
    %c0_i32_1 = arith.constant 0 : i32
    return %c0_i32, %c0_i32_0 : i32, i32
  }
  func.func @transform_8(%arg0: i32) -> (i32, i32) {
    %c0_i32 = arith.constant 0 : i32
    %c0_i32_0 = arith.constant 0 : i32
    %c0_i32_1 = arith.constant 0 : i32
    return %c0_i32, %c0_i32_0 : i32, i32
  }
  func.func @transform_9(%arg0: i32) -> (i32, i32) {
    %c0_i32 = arith.constant 0 : i32
    %c0_i32_0 = arith.constant 0 : i32
    %c0_i32_1 = arith.constant 0 : i32
    return %c0_i32, %c0_i32_0 : i32, i32
  }
  func.func @transform_10(%arg0: i32) -> (i32, i32) {
    %c0_i32 = arith.constant 0 : i32
    %c0_i32_0 = arith.constant 0 : i32
    %c0_i32_1 = arith.constant 0 : i32
    return %c0_i32, %c0_i32_0 : i32, i32
  }
  func.func @transform_11(%arg0: i32) -> (i32, i32) {
    %c0_i32 = arith.constant 0 : i32
    %c0_i32_0 = arith.constant 0 : i32
    %c0_i32_1 = arith.constant 0 : i32
    return %c0_i32, %c0_i32_0 : i32, i32
  }
  func.func @transform_12(%arg0: i32) -> (i32, i32) {
    %c0_i32 = arith.constant 0 : i32
    %c0_i32_0 = arith.constant 0 : i32
    %c0_i32_1 = arith.constant 0 : i32
    return %c0_i32, %c0_i32_0 : i32, i32
  }
  func.func @transform_13(%arg0: i32) -> (i32, i32) {
    %c0_i32 = arith.constant 0 : i32
    %c0_i32_0 = arith.constant 0 : i32
    %c0_i32_1 = arith.constant 0 : i32
    return %c0_i32, %c0_i32_0 : i32, i32
  }
  func.func @transform_14(%arg0: i32) -> (i32, i32) {
    %c0_i32 = arith.constant 0 : i32
    %c0_i32_0 = arith.constant 0 : i32
    %c0_i32_1 = arith.constant 0 : i32
    return %c0_i32, %c0_i32_0 : i32, i32
  }
  func.func @transform_15(%arg0: i32) -> (i32, i32) {
    %c0_i32 = arith.constant 0 : i32
    %c0_i32_0 = arith.constant 0 : i32
    %c0_i32_1 = arith.constant 0 : i32
    return %c0_i32, %c0_i32_0 : i32, i32
  }
  func.func @transform_16(%arg0: i32) -> (i32, i32) {
    %c0_i32 = arith.constant 0 : i32
    %c0_i32_0 = arith.constant 0 : i32
    %c0_i32_1 = arith.constant 0 : i32
    return %c0_i32, %c0_i32_0 : i32, i32
  }
  func.func @transform_17(%arg0: i32) -> (i32, i32) {
    %c0_i32 = arith.constant 0 : i32
    %c0_i32_0 = arith.constant 0 : i32
    %c0_i32_1 = arith.constant 0 : i32
    return %c0_i32, %c0_i32_0 : i32, i32
  }
  func.func @transform_18(%arg0: i32) -> (i32, i32) {
    %c0_i32 = arith.constant 0 : i32
    %c0_i32_0 = arith.constant 0 : i32
    %c0_i32_1 = arith.constant 0 : i32
    return %c0_i32, %c0_i32_0 : i32, i32
  }
  func.func @transform_19(%arg0: i32) -> (i32, i32) {
    %c0_i32 = arith.constant 0 : i32
    %c0_i32_0 = arith.constant 0 : i32
    %c0_i32_1 = arith.constant 0 : i32
    return %c0_i32, %c0_i32_0 : i32, i32
  }
  func.func @transform_20(%arg0: i32) -> (i32, i32) {
    %c0_i32 = arith.constant 0 : i32
    %c0_i32_0 = arith.constant 0 : i32
    %c0_i32_1 = arith.constant 0 : i32
    return %c0_i32, %c0_i32_0 : i32, i32
  }
  func.func @transform_21(%arg0: i32) -> (i32, i32) {
    %c0_i32 = arith.constant 0 : i32
    %c0_i32_0 = arith.constant 0 : i32
    %c0_i32_1 = arith.constant 0 : i32
    return %c0_i32, %c0_i32_0 : i32, i32
  }
  func.func @transform_22(%arg0: i32) -> (i32, i32) {
    %c0_i32 = arith.constant 0 : i32
    %c0_i32_0 = arith.constant 0 : i32
    %c0_i32_1 = arith.constant 0 : i32
    return %c0_i32, %c0_i32_0 : i32, i32
  }
  func.func @transform_23(%arg0: i32) -> (i32, i32) {
    %c0_i32 = arith.constant 0 : i32
    %c0_i32_0 = arith.constant 0 : i32
    %c0_i32_1 = arith.constant 0 : i32
    return %c0_i32, %c0_i32_0 : i32, i32
  }
  func.func @transform_24(%arg0: i32) -> (i32, i32) {
    %c0_i32 = arith.constant 0 : i32
    %c0_i32_0 = arith.constant 0 : i32
    %c0_i32_1 = arith.constant 0 : i32
    return %c0_i32, %c0_i32_0 : i32, i32
  }
  func.func @transform_25(%arg0: i32) -> (i32, i32) {
    %c0_i32 = arith.constant 0 : i32
    %c0_i32_0 = arith.constant 0 : i32
    %c0_i32_1 = arith.constant 0 : i32
    return %c0_i32, %c0_i32_0 : i32, i32
  }
  func.func @transform_26(%arg0: i32) -> (i32, i32) {
    %c0_i32 = arith.constant 0 : i32
    %c0_i32_0 = arith.constant 0 : i32
    %c0_i32_1 = arith.constant 0 : i32
    return %c0_i32, %c0_i32_0 : i32, i32
  }
  func.func @transform_27(%arg0: i32) -> (i32, i32) {
    %c0_i32 = arith.constant 0 : i32
    %c0_i32_0 = arith.constant 0 : i32
    %c0_i32_1 = arith.constant 0 : i32
    return %c0_i32, %c0_i32_0 : i32, i32
  }
  func.func @transform_28(%arg0: i32) -> (i32, i32) {
    %c0_i32 = arith.constant 0 : i32
    %c0_i32_0 = arith.constant 0 : i32
    %c0_i32_1 = arith.constant 0 : i32
    return %c0_i32, %c0_i32_0 : i32, i32
  }
  func.func @transform_29(%arg0: i32) -> (i32, i32) {
    %c0_i32 = arith.constant 0 : i32
    %c0_i32_0 = arith.constant 0 : i32
    %c0_i32_1 = arith.constant 0 : i32
    return %c0_i32, %c0_i32_0 : i32, i32
  }
  func.func @transform_30(%arg0: i32) -> (i32, i32) {
    %c0_i32 = arith.constant 0 : i32
    %c0_i32_0 = arith.constant 0 : i32
    %c0_i32_1 = arith.constant 0 : i32
    return %c0_i32, %c0_i32_0 : i32, i32
  }
  func.func @transform_31(%arg0: i32) -> (i32, i32) {
    %c0_i32 = arith.constant 0 : i32
    %c0_i32_0 = arith.constant 0 : i32
    %c0_i32_1 = arith.constant 0 : i32
    return %c0_i32, %c0_i32_0 : i32, i32
  }
  func.func @transform_32(%arg0: i32) -> (i32, i32) {
    %c0_i32 = arith.constant 0 : i32
    %c0_i32_0 = arith.constant 0 : i32
    %c0_i32_1 = arith.constant 0 : i32
    return %c0_i32, %c0_i32_0 : i32, i32
  }
  func.func @transform_33(%arg0: i32) -> (i32, i32) {
    %c0_i32 = arith.constant 0 : i32
    %c0_i32_0 = arith.constant 0 : i32
    %c0_i32_1 = arith.constant 0 : i32
    return %c0_i32, %c0_i32_0 : i32, i32
  }
  func.func @transform_34(%arg0: i32) -> (i32, i32) {
    %c0_i32 = arith.constant 0 : i32
    %c0_i32_0 = arith.constant 0 : i32
    %c0_i32_1 = arith.constant 0 : i32
    return %c0_i32, %c0_i32_0 : i32, i32
  }
  func.func @transform_35(%arg0: i32) -> (i32, i32) {
    %c0_i32 = arith.constant 0 : i32
    %c0_i32_0 = arith.constant 0 : i32
    %c0_i32_1 = arith.constant 0 : i32
    return %c0_i32, %c0_i32_0 : i32, i32
  }
  func.func @transform_36(%arg0: i32) -> (i32, i32) {
    %c0_i32 = arith.constant 0 : i32
    %c0_i32_0 = arith.constant 0 : i32
    %c0_i32_1 = arith.constant 0 : i32
    return %c0_i32, %c0_i32_0 : i32, i32
  }
  func.func @transform_37(%arg0: i32) -> (i32, i32) {
    %c0_i32 = arith.constant 0 : i32
    %c0_i32_0 = arith.constant 0 : i32
    %c0_i32_1 = arith.constant 0 : i32
    return %c0_i32, %c0_i32_0 : i32, i32
  }
  func.func @transform_38(%arg0: i32) -> (i32, i32, i32) {
    %c0_i32 = arith.constant 0 : i32
    %c0_i32_0 = arith.constant 0 : i32
    %c0_i32_1 = arith.constant 0 : i32
    return %arg0, %c0_i32, %c0_i32_0 : i32, i32, i32
  }
}

</mosaic_0001>

<llo_original>
// kernel: seq2seq_forward.2
$region0: #{seq2seq_forward.2}
  #allocation0 [shape = 'u32[]', space=smem, size = 0x4, offset = 0x4, fixed_abs, tag = 'smem constant byte address 0x4 - core index']
  #allocation1 [shape = 'u32[144,128]{1,0:T(1,128)}', space=vmem, size = 0x12000, scoped, tag = 'internal scratch']
  #allocation2 [shape = 'f32[2,2,32]{2,1,0:T(2,128)}', space=vmem, size = 0x800, scoped, tag = 'scratch operand']
  %s0 = inlined_call_operand.vmem [shape: f32[8,2,16], index: 0, kind: input, shape index: {}]
  %s1 = inlined_call_operand.hbm [shape: f32[16,32], index: 1, kind: input, shape index: {}]
  %s2 = inlined_call_operand.hbm [shape: f32[32,32], index: 2, kind: input, shape index: {}]
  %s3 = inlined_call_operand.hbm [shape: f32[1,32], index: 3, kind: input, shape index: {}]
  %s4 = inlined_call_operand.hbm [shape: f32[16,32], index: 4, kind: input, shape index: {}]
  %s5 = inlined_call_operand.hbm [shape: f32[32,32], index: 5, kind: input, shape index: {}]
  %s6 = inlined_call_operand.hbm [shape: f32[1,32], index: 6, kind: input, shape index: {}]
  %s7 = inlined_call_operand.hbm [shape: f32[16,32], index: 7, kind: input, shape index: {}]
  %s8 = inlined_call_operand.hbm [shape: f32[32,32], index: 8, kind: input, shape index: {}]
  %s9 = inlined_call_operand.hbm [shape: f32[1,32], index: 9, kind: input, shape index: {}]
  %s10 = inlined_call_operand.hbm [shape: f32[32,32], index: 10, kind: input, shape index: {}]
  %s11 = inlined_call_operand.hbm [shape: f32[32,32], index: 11, kind: input, shape index: {}]
  %s12 = inlined_call_operand.hbm [shape: f32[1,32], index: 12, kind: input, shape index: {}]
  %s13 = inlined_call_operand.hbm [shape: f32[32,32], index: 13, kind: input, shape index: {}]
  %s14 = inlined_call_operand.hbm [shape: f32[32,32], index: 14, kind: input, shape index: {}]
  %s15 = inlined_call_operand.hbm [shape: f32[1,32], index: 15, kind: input, shape index: {}]
  %s16 = inlined_call_operand.hbm [shape: f32[32,32], index: 16, kind: input, shape index: {}]
  %s17 = inlined_call_operand.hbm [shape: f32[32,32], index: 17, kind: input, shape index: {}]
  %s18 = inlined_call_operand.hbm [shape: f32[1,32], index: 18, kind: input, shape index: {}]
  %s19 = inlined_call_operand.vmem [shape: f32[32,32], index: 19, kind: input, shape index: {}]
  %s20 = inlined_call_operand.vmem [shape: f32[1,32], index: 20, kind: input, shape index: {}]
  %s21 = inlined_call_operand.hbm [shape: f32[32,32], index: 21, kind: input, shape index: {}]
  %s22 = inlined_call_operand.hbm [shape: f32[1,32], index: 22, kind: input, shape index: {}]
  %s23 = inlined_call_operand.vmem [shape: f32[2,2,32], index: 23, kind: output, shape index: {0}]
  %s24 = inlined_call_operand.vmem [shape: f32[2,2,32], index: 24, kind: output, shape index: {1}]
  %25 = xla_tuple %s23, %s24
  %s26 = sld [smem:[#allocation0]]
  $region221: #{seq2seq_forward.2} parent=0
    _
  %s28 = ssub.s32 1, %s26
  %s29 = scalar_select 0, %s28, %s26
  $region1: #{seq2seq_forward.2} parent=0
    #allocation3 [shape = 'u8[8192]{0}', space=vmem, size = 0x2000, scoped, tag = 'input window, operand 1, single buffered']
    #allocation4 [shape = 's32[2]{0}', space=sflag, size = 0x8, scoped, tag = 'scoped memory for seq2seq_forward.2']
    #allocation5 [shape = 'u8[16384]{0}', space=vmem, size = 0x4000, scoped, tag = 'input window, operand 2, single buffered']
    #allocation6 [shape = 's32[1]{0}', space=sflag, size = 0x4, scoped, tag = 'scoped memory for seq2seq_forward.2']
    #allocation7 [shape = 'u8[512]{0}', space=vmem, size = 0x400, scoped, tag = 'input window, operand 3, single buffered']
    #allocation8 [shape = 'u8[8192]{0}', space=vmem, size = 0x2000, scoped, tag = 'input window, operand 4, single buffered']
    #allocation9 [shape = 's32[1]{0}', space=sflag, size = 0x4, scoped, tag = 'scoped memory for seq2seq_forward.2']
    #allocation10 [shape = 'u8[16384]{0}', space=vmem, size = 0x4000, scoped, tag = 'input window, operand 5, single buffered']
    #allocation11 [shape = 'u8[512]{0}', space=vmem, size = 0x400, scoped, tag = 'input window, operand 6, single buffered']
    #allocation12 [shape = 's32[1]{0}', space=sflag, size = 0x4, scoped, tag = 'scoped memory for seq2seq_forward.2']
    #allocation13 [shape = 'u8[8192]{0}', space=vmem, size = 0x2000, scoped, tag = 'input window, operand 7, single buffered']
    #allocation14 [shape = 'u8[16384]{0}', space=vmem, size = 0x4000, scoped, tag = 'input window, operand 8, single buffered']
    #allocation15 [shape = 's32[1]{0}', space=sflag, size = 0x4, scoped, tag = 'scoped memory for seq2seq_forward.2']
    #allocation16 [shape = 'u8[512]{0}', space=vmem, size = 0x400, scoped, tag = 'input window, operand 9, single buffered']
    #allocation17 [shape = 'u8[16384]{0}', space=vmem, size = 0x4000, scoped, tag = 'input window, operand 10, single buffered']
    #allocation18 [shape = 's32[1]{0}', space=sflag, size = 0x4, scoped, tag = 'scoped memory for seq2seq_forward.2']
    #allocation19 [shape = 'u8[16384]{0}', space=vmem, size = 0x4000, scoped, tag = 'input window, operand 11, single buffered']
    #allocation20 [shape = 'u8[512]{0}', space=vmem, size = 0x400, scoped, tag = 'input window, operand 12, single buffered']
    #allocation21 [shape = 's32[1]{0}', space=sflag, size = 0x4, scoped, tag = 'scoped memory for seq2seq_forward.2']
    #allocation22 [shape = 'u8[16384]{0}', space=vmem, size = 0x4000, scoped, tag = 'input window, operand 13, single buffered']
    #allocation23 [shape = 'u8[16384]{0}', space=vmem, size = 0x4000, scoped, tag = 'input window, operand 14, single buffered']
    #allocation24 [shape = 's32[1]{0}', space=sflag, size = 0x4, scoped, tag = 'scoped memory for seq2seq_forward.2']
    #allocation25 [shape = 'u8[512]{0}', space=vmem, size = 0x400, scoped, tag = 'input window, operand 15, single buffered']
    #allocation26 [shape = 'u8[16384]{0}', space=vmem, size = 0x4000, scoped, tag = 'input window, operand 16, single buffered']
    #allocation27 [shape = 's32[1]{0}', space=sflag, size = 0x4, scoped, tag = 'scoped memory for seq2seq_forward.2']
    #allocation28 [shape = 'u8[16384]{0}', space=vmem, size = 0x4000, scoped, tag = 'input window, operand 17, single buffered']
    #allocation29 [shape = 'u8[512]{0}', space=vmem, size = 0x400, scoped, tag = 'input window, operand 18, single buffered']
    #allocation30 [shape = 's32[1]{0}', space=sflag, size = 0x4, scoped, tag = 'scoped memory for seq2seq_forward.2']
    #allocation31 [shape = 'u8[16384]{0}', space=vmem, size = 0x4000, scoped, tag = 'input window, operand 21, single buffered']
    #allocation32 [shape = 'u8[512]{0}', space=vmem, size = 0x400, scoped, tag = 'input window, operand 22, single buffered']
    #allocation33 [shape = 's32[1]{0}', space=sflag, size = 0x4, scoped, tag = 'scoped memory for seq2seq_forward.2']
    %30 = vsyncpa [#allocation4], 0
    %31 = vsyncpa [#allocation6], 0
    %32 = vsyncpa [#allocation9], 0
    %33 = vsyncpa [#allocation12], 0
    %34 = vsyncpa [#allocation15], 0
    %35 = vsyncpa [#allocation18], 0
    %36 = vsyncpa [#allocation21], 0
    %37 = vsyncpa [#allocation24], 0
    %38 = vsyncpa [#allocation27], 0
    %39 = vsyncpa [#allocation30], 0
    %40 = vsyncpa [#allocation33], 0
    loop: start=0, step=1, limit=10
    $region2: #{seq2seq_forward.2} parent=1 // loop_pre_header
      _
    $region3: #{seq2seq_forward.2} parent=1 // loop_header
      %s42 = sphi 0, %s46
      %p43 = scmp.ge.s32.totalorder %s42, 10
      %s52 = sphi 0, %s54
      %s55 = sphi 0, %s52
      %s56 = sphi 0, %s55
      %s72 = sphi 0, %s56
      %s76 = sphi 0, %s76
      %s78 = sphi 0, %s76
      %s79 = sphi 0, %s78
      %s93 = sphi 0, %s79
      %s97 = sphi 0, %s97
      %s99 = sphi 0, %s97
      %s100 = sphi 0, %s99
      %s114 = sphi 0, %s100
      %s118 = sphi 0, %s118
      %s120 = sphi 0, %s118
      %s121 = sphi 0, %s120
      %s135 = sphi 0, %s121
      %s139 = sphi 0, %s139
      %s141 = sphi 0, %s139
      %s142 = sphi 0, %s141
      %s156 = sphi 0, %s142
      %s160 = sphi 0, %s160
      %s162 = sphi 0, %s160
      %s163 = sphi 0, %s162
      %s177 = sphi 0, %s163
      %s181 = sphi 0, %s181
      %s183 = sphi 0, %s181
      %s184 = sphi 0, %s183
      %s198 = sphi 0, %s184
      %s202 = sphi 0, %s202
      %s204 = sphi 0, %s202
      %s205 = sphi 0, %s204
      %s219 = sphi 0, %s205
      %s223 = sphi 0, %s223
      %s225 = sphi 0, %s223
      %s226 = sphi 0, %s225
      %s240 = sphi 0, %s226
      %s244 = sphi 0, %s244
      %s246 = sphi 0, %s244
      %s247 = sphi 0, %s246
      %s261 = sphi 0, %s247
      %s265 = sphi 0, %s265
      %s267 = sphi 0, %s265
      %s268 = sphi 0, %s267
      %s282 = sphi 0, %s268
      %s286 = sphi 0, %s286
      %s288 = sphi 0, %s286
      %s289 = sphi 0, %s288
      %s303 = sphi 0, %s289
      %s307 = sphi 0, %s307
      %s309 = sphi 0, %s307
      %s310 = sphi 0, %s309
      %s324 = sphi 0, %s310
      %s328 = sphi 0, %s328
      %s330 = sphi 0, %s328
      %s331 = sphi 0, %s330
      %s345 = sphi 0, %s331
      %s349 = sphi 0, %s349
      %s351 = sphi 0, %s349
      %s352 = sphi 0, %s351
      %s366 = sphi 0, %s352
      %s370 = sphi 0, %s370
      %s372 = sphi 0, %s370
      %s373 = sphi 0, %s372
      %s387 = sphi 0, %s373
      %s391 = sphi 0, %s391
      %s393 = sphi 0, %s391
      %s394 = sphi 0, %s393
      %s408 = sphi 0, %s394
      %s412 = sphi 0, %s412
      %s414 = sphi 0, %s412
      %s415 = sphi 0, %s414
      %s429 = sphi 0, %s415
      %s433 = sphi 0, %s433
      %s435 = sphi 0, %s433
      %s436 = sphi 0, %s435
      %s450 = sphi 0, %s436
      %s454 = sphi 0, %s454
      %s456 = sphi 0, %s454
      %s457 = sphi 0, %s456
      %s471 = sphi 0, %s457
      %s475 = sphi 0, %s475
      %s477 = sphi 0, %s475
      %s478 = sphi 0, %s477
      %s492 = sphi 0, %s478
      %s496 = sphi 0, %s496
      %s498 = sphi 0, %s496
      %s499 = sphi 0, %s498
      %s513 = sphi 0, %s499
      %s517 = sphi 0, %s517
      %s519 = sphi 0, %s517
      %s520 = sphi 0, %s519
      %s534 = sphi 0, %s520
      %s538 = sphi 0, %s538
      %s540 = sphi 0, %s538
      %s541 = sphi 0, %s540
      %s555 = sphi 0, %s541
      %s559 = sphi 0, %s559
      %s561 = sphi 0, %s559
      %s562 = sphi 0, %s561
      %s576 = sphi 0, %s562
    $region4: #{seq2seq_forward.2} parent=1 // loop_header_branch
      %45 = sbr.rel (%p43) target = $region8
    $region5: #{seq2seq_forward.2} parent=1 // loop_body
      %s47 = ssub.s32 %s42, 1
      %s48 = ssub.s32 %s42, 2
      %s49 = sadd.s32 %s42, 1
      %s50 = ssub.s32 %s42, %s49
      %p51 = scmp.eq.s32.totalorder %s50, 0
      %s53 = sadd.s32 %s52, 1
      %s54 = scalar_select %p51, %s52, %s53
      %p57 = pneg %p51
      %p58 = scmp.eq.s32.totalorder %s42, 7
      %p59 = por %p57, %p58
      %p60 = scmp.ne.s32.totalorder %s52, %s55
      %p61 = scmp.eq.s32.totalorder %s42, 0
      %p62 = por %p60, %p61
      %p63 = scmp.ne.s32.totalorder %s52, %s55
      %p64 = scmp.eq.s32.totalorder %s47, 7
      %p65 = por %p63, %p64
      %p66 = scmp.ne.s32.totalorder %s55, %s56
      %p67 = scmp.eq.s32.totalorder %s47, 0
      %p68 = por %p66, %p67
      %p69 = scmp.ne.s32.totalorder %s55, %s56
      %p70 = scmp.eq.s32.totalorder %s48, 7
      %p71 = por %p69, %p70
      %p73 = scmp.ne.s32.totalorder %s56, %s72
      %p74 = scmp.eq.s32.totalorder %s48, 0
      %p75 = por %p73, %p74
      %s77 = sadd.s32 %s76, 1
      %p80 = scmp.eq.s32.totalorder %s42, 7
      %p81 = scmp.ne.s32.totalorder %s76, %s78
      %p82 = scmp.eq.s32.totalorder %s42, 0
      %p83 = por %p81, %p82
      %p84 = scmp.ne.s32.totalorder %s76, %s78
      %p85 = scmp.eq.s32.totalorder %s47, 7
      %p86 = por %p84, %p85
      %p87 = scmp.ne.s32.totalorder %s78, %s79
      %p88 = scmp.eq.s32.totalorder %s47, 0
      %p89 = por %p87, %p88
      %p90 = scmp.ne.s32.totalorder %s78, %s79
      %p91 = scmp.eq.s32.totalorder %s48, 7
      %p92 = por %p90, %p91
      %p94 = scmp.ne.s32.totalorder %s79, %s93
      %p95 = scmp.eq.s32.totalorder %s48, 0
      %p96 = por %p94, %p95
      %s98 = sadd.s32 %s97, 1
      %p101 = scmp.eq.s32.totalorder %s42, 7
      %p102 = scmp.ne.s32.totalorder %s97, %s99
      %p103 = scmp.eq.s32.totalorder %s42, 0
      %p104 = por %p102, %p103
      %p105 = scmp.ne.s32.totalorder %s97, %s99
      %p106 = scmp.eq.s32.totalorder %s47, 7
      %p107 = por %p105, %p106
      %p108 = scmp.ne.s32.totalorder %s99, %s100
      %p109 = scmp.eq.s32.totalorder %s47, 0
      %p110 = por %p108, %p109
      %p111 = scmp.ne.s32.totalorder %s99, %s100
      %p112 = scmp.eq.s32.totalorder %s48, 7
      %p113 = por %p111, %p112
      %p115 = scmp.ne.s32.totalorder %s100, %s114
      %p116 = scmp.eq.s32.totalorder %s48, 0
      %p117 = por %p115, %p116
      %s119 = sadd.s32 %s118, 1
      %p122 = scmp.eq.s32.totalorder %s42, 7
      %p123 = scmp.ne.s32.totalorder %s118, %s120
      %p124 = scmp.eq.s32.totalorder %s42, 0
      %p125 = por %p123, %p124
      %p126 = scmp.ne.s32.totalorder %s118, %s120
      %p127 = scmp.eq.s32.totalorder %s47, 7
      %p128 = por %p126, %p127
      %p129 = scmp.ne.s32.totalorder %s120, %s121
      %p130 = scmp.eq.s32.totalorder %s47, 0
      %p131 = por %p129, %p130
      %p132 = scmp.ne.s32.totalorder %s120, %s121
      %p133 = scmp.eq.s32.totalorder %s48, 7
      %p134 = por %p132, %p133
      %p136 = scmp.ne.s32.totalorder %s121, %s135
      %p137 = scmp.eq.s32.totalorder %s48, 0
      %p138 = por %p136, %p137
      %s140 = sadd.s32 %s139, 1
      %p143 = scmp.eq.s32.totalorder %s42, 7
      %p144 = scmp.ne.s32.totalorder %s139, %s141
      %p145 = scmp.eq.s32.totalorder %s42, 0
      %p146 = por %p144, %p145
      %p147 = scmp.ne.s32.totalorder %s139, %s141
      %p148 = scmp.eq.s32.totalorder %s47, 7
      %p149 = por %p147, %p148
      %p150 = scmp.ne.s32.totalorder %s141, %s142
      %p151 = scmp.eq.s32.totalorder %s47, 0
      %p152 = por %p150, %p151
      %p153 = scmp.ne.s32.totalorder %s141, %s142
      %p154 = scmp.eq.s32.totalorder %s48, 7
      %p155 = por %p153, %p154
      %p157 = scmp.ne.s32.totalorder %s142, %s156
      %p158 = scmp.eq.s32.totalorder %s48, 0
      %p159 = por %p157, %p158
      %s161 = sadd.s32 %s160, 1
      %p164 = scmp.eq.s32.totalorder %s42, 7
      %p165 = scmp.ne.s32.totalorder %s160, %s162
      %p166 = scmp.eq.s32.totalorder %s42, 0
      %p167 = por %p165, %p166
      %p168 = scmp.ne.s32.totalorder %s160, %s162
      %p169 = scmp.eq.s32.totalorder %s47, 7
      %p170 = por %p168, %p169
      %p171 = scmp.ne.s32.totalorder %s162, %s163
      %p172 = scmp.eq.s32.totalorder %s47, 0
      %p173 = por %p171, %p172
      %p174 = scmp.ne.s32.totalorder %s162, %s163
      %p175 = scmp.eq.s32.totalorder %s48, 7
      %p176 = por %p174, %p175
      %p178 = scmp.ne.s32.totalorder %s163, %s177
      %p179 = scmp.eq.s32.totalorder %s48, 0
      %p180 = por %p178, %p179
      %s182 = sadd.s32 %s181, 1
      %p185 = scmp.eq.s32.totalorder %s42, 7
      %p186 = scmp.ne.s32.totalorder %s181, %s183
      %p187 = scmp.eq.s32.totalorder %s42, 0
      %p188 = por %p186, %p187
      %p189 = scmp.ne.s32.totalorder %s181, %s183
      %p190 = scmp.eq.s32.totalorder %s47, 7
      %p191 = por %p189, %p190
      %p192 = scmp.ne.s32.totalorder %s183, %s184
      %p193 = scmp.eq.s32.totalorder %s47, 0
      %p194 = por %p192, %p193
      %p195 = scmp.ne.s32.totalorder %s183, %s184
      %p196 = scmp.eq.s32.totalorder %s48, 7
      %p197 = por %p195, %p196
      %p199 = scmp.ne.s32.totalorder %s184, %s198
      %p200 = scmp.eq.s32.totalorder %s48, 0
      %p201 = por %p199, %p200
      %s203 = sadd.s32 %s202, 1
      %p206 = scmp.eq.s32.totalorder %s42, 7
      %p207 = scmp.ne.s32.totalorder %s202, %s204
      %p208 = scmp.eq.s32.totalorder %s42, 0
      %p209 = por %p207, %p208
      %p210 = scmp.ne.s32.totalorder %s202, %s204
      %p211 = scmp.eq.s32.totalorder %s47, 7
      %p212 = por %p210, %p211
      %p213 = scmp.ne.s32.totalorder %s204, %s205
      %p214 = scmp.eq.s32.totalorder %s47, 0
      %p215 = por %p213, %p214
      %p216 = scmp.ne.s32.totalorder %s204, %s205
      %p217 = scmp.eq.s32.totalorder %s48, 7
      %p218 = por %p216, %p217
      %p220 = scmp.ne.s32.totalorder %s205, %s219
      %p221 = scmp.eq.s32.totalorder %s48, 0
      %p222 = por %p220, %p221
      %s224 = sadd.s32 %s223, 1
      %p227 = scmp.eq.s32.totalorder %s42, 7
      %p228 = scmp.ne.s32.totalorder %s223, %s225
      %p229 = scmp.eq.s32.totalorder %s42, 0
      %p230 = por %p228, %p229
      %p231 = scmp.ne.s32.totalorder %s223, %s225
      %p232 = scmp.eq.s32.totalorder %s47, 7
      %p233 = por %p231, %p232
      %p234 = scmp.ne.s32.totalorder %s225, %s226
      %p235 = scmp.eq.s32.totalorder %s47, 0
      %p236 = por %p234, %p235
      %p237 = scmp.ne.s32.totalorder %s225, %s226
      %p238 = scmp.eq.s32.totalorder %s48, 7
      %p239 = por %p237, %p238
      %p241 = scmp.ne.s32.totalorder %s226, %s240
      %p242 = scmp.eq.s32.totalorder %s48, 0
      %p243 = por %p241, %p242
      %s245 = sadd.s32 %s244, 1
      %p248 = scmp.eq.s32.totalorder %s42, 7
      %p249 = scmp.ne.s32.totalorder %s244, %s246
      %p250 = scmp.eq.s32.totalorder %s42, 0
      %p251 = por %p249, %p250
      %p252 = scmp.ne.s32.totalorder %s244, %s246
      %p253 = scmp.eq.s32.totalorder %s47, 7
      %p254 = por %p252, %p253
      %p255 = scmp.ne.s32.totalorder %s246, %s247
      %p256 = scmp.eq.s32.totalorder %s47, 0
      %p257 = por %p255, %p256
      %p258 = scmp.ne.s32.totalorder %s246, %s247
      %p259 = scmp.eq.s32.totalorder %s48, 7
      %p260 = por %p258, %p259
      %p262 = scmp.ne.s32.totalorder %s247, %s261
      %p263 = scmp.eq.s32.totalorder %s48, 0
      %p264 = por %p262, %p263
      %s266 = sadd.s32 %s265, 1
      %p269 = scmp.eq.s32.totalorder %s42, 7
      %p270 = scmp.ne.s32.totalorder %s265, %s267
      %p271 = scmp.eq.s32.totalorder %s42, 0
      %p272 = por %p270, %p271
      %p273 = scmp.ne.s32.totalorder %s265, %s267
      %p274 = scmp.eq.s32.totalorder %s47, 7
      %p275 = por %p273, %p274
      %p276 = scmp.ne.s32.totalorder %s267, %s268
      %p277 = scmp.eq.s32.totalorder %s47, 0
      %p278 = por %p276, %p277
      %p279 = scmp.ne.s32.totalorder %s267, %s268
      %p280 = scmp.eq.s32.totalorder %s48, 7
      %p281 = por %p279, %p280
      %p283 = scmp.ne.s32.totalorder %s268, %s282
      %p284 = scmp.eq.s32.totalorder %s48, 0
      %p285 = por %p283, %p284
      %s287 = sadd.s32 %s286, 1
      %p290 = scmp.eq.s32.totalorder %s42, 7
      %p291 = scmp.ne.s32.totalorder %s286, %s288
      %p292 = scmp.eq.s32.totalorder %s42, 0
      %p293 = por %p291, %p292
      %p294 = scmp.ne.s32.totalorder %s286, %s288
      %p295 = scmp.eq.s32.totalorder %s47, 7
      %p296 = por %p294, %p295
      %p297 = scmp.ne.s32.totalorder %s288, %s289
      %p298 = scmp.eq.s32.totalorder %s47, 0
      %p299 = por %p297, %p298
      %p300 = scmp.ne.s32.totalorder %s288, %s289
      %p301 = scmp.eq.s32.totalorder %s48, 7
      %p302 = por %p300, %p301
      %p304 = scmp.ne.s32.totalorder %s289, %s303
      %p305 = scmp.eq.s32.totalorder %s48, 0
      %p306 = por %p304, %p305
      %s308 = sadd.s32 %s307, 1
      %p311 = scmp.eq.s32.totalorder %s42, 7
      %p312 = scmp.ne.s32.totalorder %s307, %s309
      %p313 = scmp.eq.s32.totalorder %s42, 0
      %p314 = por %p312, %p313
      %p315 = scmp.ne.s32.totalorder %s307, %s309
      %p316 = scmp.eq.s32.totalorder %s47, 7
      %p317 = por %p315, %p316
      %p318 = scmp.ne.s32.totalorder %s309, %s310
      %p319 = scmp.eq.s32.totalorder %s47, 0
      %p320 = por %p318, %p319
      %p321 = scmp.ne.s32.totalorder %s309, %s310
      %p322 = scmp.eq.s32.totalorder %s48, 7
      %p323 = por %p321, %p322
      %p325 = scmp.ne.s32.totalorder %s310, %s324
      %p326 = scmp.eq.s32.totalorder %s48, 0
      %p327 = por %p325, %p326
      %s329 = sadd.s32 %s328, 1
      %p332 = scmp.eq.s32.totalorder %s42, 7
      %p333 = scmp.ne.s32.totalorder %s328, %s330
      %p334 = scmp.eq.s32.totalorder %s42, 0
      %p335 = por %p333, %p334
      %p336 = scmp.ne.s32.totalorder %s328, %s330
      %p337 = scmp.eq.s32.totalorder %s47, 7
      %p338 = por %p336, %p337
      %p339 = scmp.ne.s32.totalorder %s330, %s331
      %p340 = scmp.eq.s32.totalorder %s47, 0
      %p341 = por %p339, %p340
      %p342 = scmp.ne.s32.totalorder %s330, %s331
      %p343 = scmp.eq.s32.totalorder %s48, 7
      %p344 = por %p342, %p343
      %p346 = scmp.ne.s32.totalorder %s331, %s345
      %p347 = scmp.eq.s32.totalorder %s48, 0
      %p348 = por %p346, %p347
      %s350 = sadd.s32 %s349, 1
      %p353 = scmp.eq.s32.totalorder %s42, 7
      %p354 = scmp.ne.s32.totalorder %s349, %s351
      %p355 = scmp.eq.s32.totalorder %s42, 0
      %p356 = por %p354, %p355
      %p357 = scmp.ne.s32.totalorder %s349, %s351
      %p358 = scmp.eq.s32.totalorder %s47, 7
      %p359 = por %p357, %p358
      %p360 = scmp.ne.s32.totalorder %s351, %s352
      %p361 = scmp.eq.s32.totalorder %s47, 0
      %p362 = por %p360, %p361
      %p363 = scmp.ne.s32.totalorder %s351, %s352
      %p364 = scmp.eq.s32.totalorder %s48, 7
      %p365 = por %p363, %p364
      %p367 = scmp.ne.s32.totalorder %s352, %s366
      %p368 = scmp.eq.s32.totalorder %s48, 0
      %p369 = por %p367, %p368
      %s371 = sadd.s32 %s370, 1
      %p374 = scmp.eq.s32.totalorder %s42, 7
      %p375 = scmp.ne.s32.totalorder %s370, %s372
      %p376 = scmp.eq.s32.totalorder %s42, 0
      %p377 = por %p375, %p376
      %p378 = scmp.ne.s32.totalorder %s370, %s372
      %p379 = scmp.eq.s32.totalorder %s47, 7
      %p380 = por %p378, %p379
      %p381 = scmp.ne.s32.totalorder %s372, %s373
      %p382 = scmp.eq.s32.totalorder %s47, 0
      %p383 = por %p381, %p382
      %p384 = scmp.ne.s32.totalorder %s372, %s373
      %p385 = scmp.eq.s32.totalorder %s48, 7
      %p386 = por %p384, %p385
      %p388 = scmp.ne.s32.totalorder %s373, %s387
      %p389 = scmp.eq.s32.totalorder %s48, 0
      %p390 = por %p388, %p389
      %s392 = sadd.s32 %s391, 1
      %p395 = scmp.eq.s32.totalorder %s42, 7
      %p396 = scmp.ne.s32.totalorder %s391, %s393
      %p397 = scmp.eq.s32.totalorder %s42, 0
      %p398 = por %p396, %p397
      %p399 = scmp.ne.s32.totalorder %s391, %s393
      %p400 = scmp.eq.s32.totalorder %s47, 7
      %p401 = por %p399, %p400
      %p402 = scmp.ne.s32.totalorder %s393, %s394
      %p403 = scmp.eq.s32.totalorder %s47, 0
      %p404 = por %p402, %p403
      %p405 = scmp.ne.s32.totalorder %s393, %s394
      %p406 = scmp.eq.s32.totalorder %s48, 7
      %p407 = por %p405, %p406
      %p409 = scmp.ne.s32.totalorder %s394, %s408
      %p410 = scmp.eq.s32.totalorder %s48, 0
      %p411 = por %p409, %p410
      %s413 = sadd.s32 %s412, 1
      %p416 = scmp.eq.s32.totalorder %s42, 7
      %p417 = scmp.ne.s32.totalorder %s412, %s414
      %p418 = scmp.eq.s32.totalorder %s42, 0
      %p419 = por %p417, %p418
      %p420 = scmp.ne.s32.totalorder %s412, %s414
      %p421 = scmp.eq.s32.totalorder %s47, 7
      %p422 = por %p420, %p421
      %p423 = scmp.ne.s32.totalorder %s414, %s415
      %p424 = scmp.eq.s32.totalorder %s47, 0
      %p425 = por %p423, %p424
      %p426 = scmp.ne.s32.totalorder %s414, %s415
      %p427 = scmp.eq.s32.totalorder %s48, 7
      %p428 = por %p426, %p427
      %p430 = scmp.ne.s32.totalorder %s415, %s429
      %p431 = scmp.eq.s32.totalorder %s48, 0
      %p432 = por %p430, %p431
      %s434 = sadd.s32 %s433, 1
      %p437 = scmp.eq.s32.totalorder %s42, 7
      %p438 = scmp.ne.s32.totalorder %s433, %s435
      %p439 = scmp.eq.s32.totalorder %s42, 0
      %p440 = por %p438, %p439
      %p441 = scmp.ne.s32.totalorder %s433, %s435
      %p442 = scmp.eq.s32.totalorder %s47, 7
      %p443 = por %p441, %p442
      %p444 = scmp.ne.s32.totalorder %s435, %s436
      %p445 = scmp.eq.s32.totalorder %s47, 0
      %p446 = por %p444, %p445
      %p447 = scmp.ne.s32.totalorder %s435, %s436
      %p448 = scmp.eq.s32.totalorder %s48, 7
      %p449 = por %p447, %p448
      %p451 = scmp.ne.s32.totalorder %s436, %s450
      %p452 = scmp.eq.s32.totalorder %s48, 0
      %p453 = por %p451, %p452
      %s455 = sadd.s32 %s454, 1
      %p458 = scmp.eq.s32.totalorder %s42, 7
      %p459 = scmp.ne.s32.totalorder %s454, %s456
      %p460 = scmp.eq.s32.totalorder %s42, 0
      %p461 = por %p459, %p460
      %p462 = scmp.ne.s32.totalorder %s454, %s456
      %p463 = scmp.eq.s32.totalorder %s47, 7
      %p464 = por %p462, %p463
      %p465 = scmp.ne.s32.totalorder %s456, %s457
      %p466 = scmp.eq.s32.totalorder %s47, 0
      %p467 = por %p465, %p466
      %p468 = scmp.ne.s32.totalorder %s456, %s457
      %p469 = scmp.eq.s32.totalorder %s48, 7
      %p470 = por %p468, %p469
      %p472 = scmp.ne.s32.totalorder %s457, %s471
      %p473 = scmp.eq.s32.totalorder %s48, 0
      %p474 = por %p472, %p473
      %s476 = sadd.s32 %s475, 1
      %p479 = scmp.eq.s32.totalorder %s42, 7
      %p480 = scmp.ne.s32.totalorder %s475, %s477
      %p481 = scmp.eq.s32.totalorder %s42, 0
      %p482 = por %p480, %p481
      %p483 = scmp.ne.s32.totalorder %s475, %s477
      %p484 = scmp.eq.s32.totalorder %s47, 7
      %p485 = por %p483, %p484
      %p486 = scmp.ne.s32.totalorder %s477, %s478
      %p487 = scmp.eq.s32.totalorder %s47, 0
      %p488 = por %p486, %p487
      %p489 = scmp.ne.s32.totalorder %s477, %s478
      %p490 = scmp.eq.s32.totalorder %s48, 7
      %p491 = por %p489, %p490
      %p493 = scmp.ne.s32.totalorder %s478, %s492
      %p494 = scmp.eq.s32.totalorder %s48, 0
      %p495 = por %p493, %p494
      %s497 = sadd.s32 %s496, 1
      %p500 = scmp.eq.s32.totalorder %s42, 7
      %p501 = scmp.ne.s32.totalorder %s496, %s498
      %p502 = scmp.eq.s32.totalorder %s42, 0
      %p503 = por %p501, %p502
      %p504 = scmp.ne.s32.totalorder %s496, %s498
      %p505 = scmp.eq.s32.totalorder %s47, 7
      %p506 = por %p504, %p505
      %p507 = scmp.ne.s32.totalorder %s498, %s499
      %p508 = scmp.eq.s32.totalorder %s47, 0
      %p509 = por %p507, %p508
      %p510 = scmp.ne.s32.totalorder %s498, %s499
      %p511 = scmp.eq.s32.totalorder %s48, 7
      %p512 = por %p510, %p511
      %p514 = scmp.ne.s32.totalorder %s499, %s513
      %p515 = scmp.eq.s32.totalorder %s48, 0
      %p516 = por %p514, %p515
      %s518 = sadd.s32 %s517, 1
      %p521 = scmp.eq.s32.totalorder %s42, 7
      %p522 = scmp.ne.s32.totalorder %s517, %s519
      %p523 = scmp.eq.s32.totalorder %s42, 0
      %p524 = por %p522, %p523
      %p525 = scmp.ne.s32.totalorder %s517, %s519
      %p526 = scmp.eq.s32.totalorder %s47, 7
      %p527 = por %p525, %p526
      %p528 = scmp.ne.s32.totalorder %s519, %s520
      %p529 = scmp.eq.s32.totalorder %s47, 0
      %p530 = por %p528, %p529
      %p531 = scmp.ne.s32.totalorder %s519, %s520
      %p532 = scmp.eq.s32.totalorder %s48, 7
      %p533 = por %p531, %p532
      %p535 = scmp.ne.s32.totalorder %s520, %s534
      %p536 = scmp.eq.s32.totalorder %s48, 0
      %p537 = por %p535, %p536
      %s539 = sadd.s32 %s538, 1
      %p542 = scmp.eq.s32.totalorder %s42, 7
      %p543 = scmp.ne.s32.totalorder %s538, %s540
      %p544 = scmp.eq.s32.totalorder %s42, 0
      %p545 = por %p543, %p544
      %p546 = scmp.ne.s32.totalorder %s538, %s540
      %p547 = scmp.eq.s32.totalorder %s47, 7
      %p548 = por %p546, %p547
      %p549 = scmp.ne.s32.totalorder %s540, %s541
      %p550 = scmp.eq.s32.totalorder %s47, 0
      %p551 = por %p549, %p550
      %p552 = scmp.ne.s32.totalorder %s540, %s541
      %p553 = scmp.eq.s32.totalorder %s48, 7
      %p554 = por %p552, %p553
      %p556 = scmp.ne.s32.totalorder %s541, %s555
      %p557 = scmp.eq.s32.totalorder %s48, 0
      %p558 = por %p556, %p557
      %s560 = sadd.s32 %s559, 1
      %p563 = scmp.eq.s32.totalorder %s42, 7
      %p564 = scmp.ne.s32.totalorder %s559, %s561
      %p565 = scmp.eq.s32.totalorder %s42, 0
      %p566 = por %p564, %p565
      %p567 = scmp.ne.s32.totalorder %s559, %s561
      %p568 = scmp.eq.s32.totalorder %s47, 7
      %p569 = por %p567, %p568
      %p570 = scmp.ne.s32.totalorder %s561, %s562
      %p571 = scmp.eq.s32.totalorder %s47, 0
      %p572 = por %p570, %p571
      %p573 = scmp.ne.s32.totalorder %s561, %s562
      %p574 = scmp.eq.s32.totalorder %s48, 7
      %p575 = por %p573, %p574
      %p577 = scmp.ne.s32.totalorder %s562, %s576
      %p578 = scmp.eq.s32.totalorder %s48, 0
      %p579 = por %p577, %p578
      %p580 = scmp.le.s32.totalorder 1, %s42
      %p581 = scmp.lt.s32.totalorder %s42, 9
      %p582 = pnand %p580, %p581
      %p583 = pneg %p582
      // Predicated region
      $region9: #{seq2seq_forward.2} parent=5 // pred_check
        _
      $region10: #{seq2seq_forward.2} parent=5 // pred_check_branch
        %585 = sbr.rel (%p582) target = $region12
      $region11: #{seq2seq_forward.2} parent=5 // pred_region
        %s586 = ssub.s32 %s42, 1
        // Predicated region
        $region13: #{seq2seq_forward.2} parent=11 // pred_check
          %p587 = pneg %p89
        $region14: #{seq2seq_forward.2} parent=11 // pred_check_branch
          %589 = sbr.rel (%p587) target = $region16
        $region15: #{seq2seq_forward.2} parent=11 // pred_region
          %s591 = ssub.s32 256, 256
          %592 = vsyncadd [#allocation4], %s591
          %s593 = sshll.u32 [#allocation3], 4
          %s594 = int_to_ptr.vmem [resolvable:$true] %s593
          %599 = dma.hbm_to_vmem [thread:$0]  %s1, 256, %s594, [#allocation4], 128, 128, 8
        $region16: #{seq2seq_forward.2} parent=11 // pred_fallthru
          _
        // Predicated region
        $region17: #{seq2seq_forward.2} parent=11 // pred_check
          %p600 = pneg %p110
        $region18: #{seq2seq_forward.2} parent=11 // pred_check_branch
          %602 = sbr.rel (%p600) target = $region20
        $region19: #{seq2seq_forward.2} parent=11 // pred_region
          %s604 = ssub.s32 512, 512
          %605 = vsyncadd [#allocation6], %s604
          %s606 = sshll.u32 [#allocation5], 4
          %s607 = int_to_ptr.vmem [resolvable:$true] %s606
          %612 = dma.hbm_to_vmem [thread:$0]  %s2, 512, %s607, [#allocation6], 128, 128, 8
        $region20: #{seq2seq_forward.2} parent=11 // pred_fallthru
          _
        // Predicated region
        $region21: #{seq2seq_forward.2} parent=11 // pred_check
          %p613 = pneg %p131
        $region22: #{seq2seq_forward.2} parent=11 // pred_check_branch
          %615 = sbr.rel (%p613) target = $region24
        $region23: #{seq2seq_forward.2} parent=11 // pred_region
          %s617 = ssub.s32 16, 16
          %618 = vsyncadd [#allocation6], %s617
          %s620 = sshll.u32 [#allocation7], 4
          %s621 = int_to_ptr.vmem [resolvable:$true] %s620
          %623 = dma.hbm_to_vmem [thread:$0]  %s3, 16, %s621, [#allocation6]
        $region24: #{seq2seq_forward.2} parent=11 // pred_fallthru
          _
        // Predicated region
        $region25: #{seq2seq_forward.2} parent=11 // pred_check
          %p624 = pneg %p152
        $region26: #{seq2seq_forward.2} parent=11 // pred_check_branch
          %626 = sbr.rel (%p624) target = $region28
        $region27: #{seq2seq_forward.2} parent=11 // pred_region
          %s628 = ssub.s32 256, 256
          %629 = vsyncadd [#allocation9], %s628
          %s630 = sshll.u32 [#allocation8], 4
          %s631 = int_to_ptr.vmem [resolvable:$true] %s630
          %636 = dma.hbm_to_vmem [thread:$0]  %s4, 256, %s631, [#allocation9], 128, 128, 8
        $region28: #{seq2seq_forward.2} parent=11 // pred_fallthru
          _
        // Predicated region
        $region29: #{seq2seq_forward.2} parent=11 // pred_check
          %p637 = pneg %p173
        $region30: #{seq2seq_forward.2} parent=11 // pred_check_branch
          %639 = sbr.rel (%p637) target = $region32
        $region31: #{seq2seq_forward.2} parent=11 // pred_region
          %s641 = ssub.s32 512, 512
          %642 = vsyncadd [#allocation9], %s641
          %s643 = sshll.u32 [#allocation10], 4
          %s644 = int_to_ptr.vmem [resolvable:$true] %s643
          %649 = dma.hbm_to_vmem [thread:$0]  %s5, 512, %s644, [#allocation9], 128, 128, 8
        $region32: #{seq2seq_forward.2} parent=11 // pred_fallthru
          _
        // Predicated region
        $region33: #{seq2seq_forward.2} parent=11 // pred_check
          %p650 = pneg %p194
        $region34: #{seq2seq_forward.2} parent=11 // pred_check_branch
          %652 = sbr.rel (%p650) target = $region36
        $region35: #{seq2seq_forward.2} parent=11 // pred_region
          %s654 = ssub.s32 16, 16
          %655 = vsyncadd [#allocation12], %s654
          %s657 = sshll.u32 [#allocation11], 4
          %s658 = int_to_ptr.vmem [resolvable:$true] %s657
          %660 = dma.hbm_to_vmem [thread:$0]  %s6, 16, %s658, [#allocation12]
        $region36: #{seq2seq_forward.2} parent=11 // pred_fallthru
          _
        // Predicated region
        $region37: #{seq2seq_forward.2} parent=11 // pred_check
          %p661 = pneg %p215
        $region38: #{seq2seq_forward.2} parent=11 // pred_check_branch
          %663 = sbr.rel (%p661) target = $region40
        $region39: #{seq2seq_forward.2} parent=11 // pred_region
          %s665 = ssub.s32 256, 256
          %666 = vsyncadd [#allocation12], %s665
          %s667 = sshll.u32 [#allocation13], 4
          %s668 = int_to_ptr.vmem [resolvable:$true] %s667
          %673 = dma.hbm_to_vmem [thread:$0]  %s7, 256, %s668, [#allocation12], 128, 128, 8
        $region40: #{seq2seq_forward.2} parent=11 // pred_fallthru
          _
        // Predicated region
        $region41: #{seq2seq_forward.2} parent=11 // pred_check
          %p674 = pneg %p236
        $region42: #{seq2seq_forward.2} parent=11 // pred_check_branch
          %676 = sbr.rel (%p674) target = $region44
        $region43: #{seq2seq_forward.2} parent=11 // pred_region
          %s678 = ssub.s32 512, 512
          %679 = vsyncadd [#allocation15], %s678
          %s680 = sshll.u32 [#allocation14], 4
          %s681 = int_to_ptr.vmem [resolvable:$true] %s680
          %686 = dma.hbm_to_vmem [thread:$0]  %s8, 512, %s681, [#allocation15], 128, 128, 8
        $region44: #{seq2seq_forward.2} parent=11 // pred_fallthru
          _
        // Predicated region
        $region45: #{seq2seq_forward.2} parent=11 // pred_check
          %p687 = pneg %p257
        $region46: #{seq2seq_forward.2} parent=11 // pred_check_branch
          %689 = sbr.rel (%p687) target = $region48
        $region47: #{seq2seq_forward.2} parent=11 // pred_region
          %s691 = ssub.s32 16, 16
          %692 = vsyncadd [#allocation15], %s691
          %s694 = sshll.u32 [#allocation16], 4
          %s695 = int_to_ptr.vmem [resolvable:$true] %s694
          %697 = dma.hbm_to_vmem [thread:$0]  %s9, 16, %s695, [#allocation15]
        $region48: #{seq2seq_forward.2} parent=11 // pred_fallthru
          _
        // Predicated region
        $region49: #{seq2seq_forward.2} parent=11 // pred_check
          %p698 = pneg %p278
        $region50: #{seq2seq_forward.2} parent=11 // pred_check_branch
          %700 = sbr.rel (%p698) target = $region52
        $region51: #{seq2seq_forward.2} parent=11 // pred_region
          %s702 = ssub.s32 512, 512
          %703 = vsyncadd [#allocation18], %s702
          %s704 = sshll.u32 [#allocation17], 4
          %s705 = int_to_ptr.vmem [resolvable:$true] %s704
          %710 = dma.hbm_to_vmem [thread:$0]  %s10, 512, %s705, [#allocation18], 128, 128, 8
        $region52: #{seq2seq_forward.2} parent=11 // pred_fallthru
          _
        // Predicated region
        $region53: #{seq2seq_forward.2} parent=11 // pred_check
          %p711 = pneg %p299
        $region54: #{seq2seq_forward.2} parent=11 // pred_check_branch
          %713 = sbr.rel (%p711) target = $region56
        $region55: #{seq2seq_forward.2} parent=11 // pred_region
          %s715 = ssub.s32 512, 512
          %716 = vsyncadd [#allocation18], %s715
          %s717 = sshll.u32 [#allocation19], 4
          %s718 = int_to_ptr.vmem [resolvable:$true] %s717
          %723 = dma.hbm_to_vmem [thread:$0]  %s11, 512, %s718, [#allocation18], 128, 128, 8
        $region56: #{seq2seq_forward.2} parent=11 // pred_fallthru
          _
        // Predicated region
        $region57: #{seq2seq_forward.2} parent=11 // pred_check
          %p724 = pneg %p320
        $region58: #{seq2seq_forward.2} parent=11 // pred_check_branch
          %726 = sbr.rel (%p724) target = $region60
        $region59: #{seq2seq_forward.2} parent=11 // pred_region
          %s728 = ssub.s32 16, 16
          %729 = vsyncadd [#allocation21], %s728
          %s731 = sshll.u32 [#allocation20], 4
          %s732 = int_to_ptr.vmem [resolvable:$true] %s731
          %734 = dma.hbm_to_vmem [thread:$0]  %s12, 16, %s732, [#allocation21]
        $region60: #{seq2seq_forward.2} parent=11 // pred_fallthru
          _
        // Predicated region
        $region61: #{seq2seq_forward.2} parent=11 // pred_check
          %p735 = pneg %p341
        $region62: #{seq2seq_forward.2} parent=11 // pred_check_branch
          %737 = sbr.rel (%p735) target = $region64
        $region63: #{seq2seq_forward.2} parent=11 // pred_region
          %s739 = ssub.s32 512, 512
          %740 = vsyncadd [#allocation21], %s739
          %s741 = sshll.u32 [#allocation22], 4
          %s742 = int_to_ptr.vmem [resolvable:$true] %s741
          %747 = dma.hbm_to_vmem [thread:$0]  %s13, 512, %s742, [#allocation21], 128, 128, 8
        $region64: #{seq2seq_forward.2} parent=11 // pred_fallthru
          _
        // Predicated region
        $region65: #{seq2seq_forward.2} parent=11 // pred_check
          %p748 = pneg %p362
        $region66: #{seq2seq_forward.2} parent=11 // pred_check_branch
          %750 = sbr.rel (%p748) target = $region68
        $region67: #{seq2seq_forward.2} parent=11 // pred_region
          %s752 = ssub.s32 512, 512
          %753 = vsyncadd [#allocation24], %s752
          %s754 = sshll.u32 [#allocation23], 4
          %s755 = int_to_ptr.vmem [resolvable:$true] %s754
          %760 = dma.hbm_to_vmem [thread:$0]  %s14, 512, %s755, [#allocation24], 128, 128, 8
        $region68: #{seq2seq_forward.2} parent=11 // pred_fallthru
          _
        // Predicated region
        $region69: #{seq2seq_forward.2} parent=11 // pred_check
          %p761 = pneg %p383
        $region70: #{seq2seq_forward.2} parent=11 // pred_check_branch
          %763 = sbr.rel (%p761) target = $region72
        $region71: #{seq2seq_forward.2} parent=11 // pred_region
          %s765 = ssub.s32 16, 16
          %766 = vsyncadd [#allocation24], %s765
          %s768 = sshll.u32 [#allocation25], 4
          %s769 = int_to_ptr.vmem [resolvable:$true] %s768
          %771 = dma.hbm_to_vmem [thread:$0]  %s15, 16, %s769, [#allocation24]
        $region72: #{seq2seq_forward.2} parent=11 // pred_fallthru
          _
        // Predicated region
        $region73: #{seq2seq_forward.2} parent=11 // pred_check
          %p772 = pneg %p404
        $region74: #{seq2seq_forward.2} parent=11 // pred_check_branch
          %774 = sbr.rel (%p772) target = $region76
        $region75: #{seq2seq_forward.2} parent=11 // pred_region
          %s776 = ssub.s32 512, 512
          %777 = vsyncadd [#allocation27], %s776
          %s778 = sshll.u32 [#allocation26], 4
          %s779 = int_to_ptr.vmem [resolvable:$true] %s778
          %784 = dma.hbm_to_vmem [thread:$0]  %s16, 512, %s779, [#allocation27], 128, 128, 8
        $region76: #{seq2seq_forward.2} parent=11 // pred_fallthru
          _
        // Predicated region
        $region77: #{seq2seq_forward.2} parent=11 // pred_check
          %p785 = pneg %p425
        $region78: #{seq2seq_forward.2} parent=11 // pred_check_branch
          %787 = sbr.rel (%p785) target = $region80
        $region79: #{seq2seq_forward.2} parent=11 // pred_region
          %s789 = ssub.s32 512, 512
          %790 = vsyncadd [#allocation27], %s789
          %s791 = sshll.u32 [#allocation28], 4
          %s792 = int_to_ptr.vmem [resolvable:$true] %s791
          %797 = dma.hbm_to_vmem [thread:$0]  %s17, 512, %s792, [#allocation27], 128, 128, 8
        $region80: #{seq2seq_forward.2} parent=11 // pred_fallthru
          _
        // Predicated region
        $region81: #{seq2seq_forward.2} parent=11 // pred_check
          %p798 = pneg %p446
        $region82: #{seq2seq_forward.2} parent=11 // pred_check_branch
          %800 = sbr.rel (%p798) target = $region84
        $region83: #{seq2seq_forward.2} parent=11 // pred_region
          %s802 = ssub.s32 16, 16
          %803 = vsyncadd [#allocation30], %s802
          %s805 = sshll.u32 [#allocation29], 4
          %s806 = int_to_ptr.vmem [resolvable:$true] %s805
          %808 = dma.hbm_to_vmem [thread:$0]  %s18, 16, %s806, [#allocation30]
        $region84: #{seq2seq_forward.2} parent=11 // pred_fallthru
          _
        // Predicated region
        $region85: #{seq2seq_forward.2} parent=11 // pred_check
          %p809 = pneg %p467
        $region86: #{seq2seq_forward.2} parent=11 // pred_check_branch
          %811 = sbr.rel (%p809) target = $region88
        $region87: #{seq2seq_forward.2} parent=11 // pred_region
          _
        $region88: #{seq2seq_forward.2} parent=11 // pred_fallthru
          _
        // Predicated region
        $region89: #{seq2seq_forward.2} parent=11 // pred_check
          %p812 = pneg %p488
        $region90: #{seq2seq_forward.2} parent=11 // pred_check_branch
          %814 = sbr.rel (%p812) target = $region92
        $region91: #{seq2seq_forward.2} parent=11 // pred_region
          _
        $region92: #{seq2seq_forward.2} parent=11 // pred_fallthru
          _
        // Predicated region
        $region93: #{seq2seq_forward.2} parent=11 // pred_check
          %p815 = pneg %p509
        $region94: #{seq2seq_forward.2} parent=11 // pred_check_branch
          %817 = sbr.rel (%p815) target = $region96
        $region95: #{seq2seq_forward.2} parent=11 // pred_region
          %s819 = ssub.s32 512, 512
          %820 = vsyncadd [#allocation30], %s819
          %s821 = sshll.u32 [#allocation31], 4
          %s822 = int_to_ptr.vmem [resolvable:$true] %s821
          %827 = dma.hbm_to_vmem [thread:$0]  %s21, 512, %s822, [#allocation30], 128, 128, 8
        $region96: #{seq2seq_forward.2} parent=11 // pred_fallthru
          _
        // Predicated region
        $region97: #{seq2seq_forward.2} parent=11 // pred_check
          %p828 = pneg %p530
        $region98: #{seq2seq_forward.2} parent=11 // pred_check_branch
          %830 = sbr.rel (%p828) target = $region100
        $region99: #{seq2seq_forward.2} parent=11 // pred_region
          %s832 = ssub.s32 16, 16
          %833 = vsyncadd [#allocation33], %s832
          %s835 = sshll.u32 [#allocation32], 4
          %s836 = int_to_ptr.vmem [resolvable:$true] %s835
          %838 = dma.hbm_to_vmem [thread:$0]  %s22, 16, %s836, [#allocation33]
        $region100: #{seq2seq_forward.2} parent=11 // pred_fallthru
          _
      $region12: #{seq2seq_forward.2} parent=5 // pred_fallthru
        _
      %p839 = scmp.lt.s32.totalorder %s42, 8
      // Predicated region
      $region101: #{seq2seq_forward.2} parent=5 // pred_check
        %p840 = pneg %p839
      $region102: #{seq2seq_forward.2} parent=5 // pred_check_branch
        %842 = sbr.rel (%p840) target = $region104
      $region103: #{seq2seq_forward.2} parent=5 // pred_region
        // Predicated region
        $region105: #{seq2seq_forward.2} parent=103 // pred_check
          %p843 = pneg %p62
        $region106: #{seq2seq_forward.2} parent=103 // pred_check_branch
          %845 = sbr.rel (%p843) target = $region108
        $region107: #{seq2seq_forward.2} parent=103 // pred_region
          %p846 = scmp.lt.s32.totalorder %s42, 7
          %s847 = scalar_select %p846, %s42, 7
          %s848 = smul.addr %s847, 2
          %s849 = scalar_lea.vmem %s0, %s848
        $region108: #{seq2seq_forward.2} parent=103 // pred_fallthru
          _
      $region104: #{seq2seq_forward.2} parent=5 // pred_fallthru
        _
      %p850 = scmp.le.s32.totalorder 1, %s42
      %p851 = scmp.lt.s32.totalorder %s42, 9
      %p852 = pnand %p850, %p851
      %p853 = pneg %p852
      // Predicated region
      $region109: #{seq2seq_forward.2} parent=5 // pred_check
        _
      $region110: #{seq2seq_forward.2} parent=5 // pred_check_branch
        %855 = sbr.rel (%p852) target = $region112
      $region111: #{seq2seq_forward.2} parent=5 // pred_region
        %s856 = ssub.s32 %s42, 1
        // Predicated region
        $region113: #{seq2seq_forward.2} parent=111 // pred_check
          %p857 = pneg %p89
        $region114: #{seq2seq_forward.2} parent=111 // pred_check_branch
          %859 = sbr.rel (%p857) target = $region116
        $region115: #{seq2seq_forward.2} parent=111 // pred_region
          %860 = dma.done [#allocation4], 256
        $region116: #{seq2seq_forward.2} parent=111 // pred_fallthru
          _
        // Predicated region
        $region117: #{seq2seq_forward.2} parent=111 // pred_check
          %p861 = pneg %p110
        $region118: #{seq2seq_forward.2} parent=111 // pred_check_branch
          %863 = sbr.rel (%p861) target = $region120
        $region119: #{seq2seq_forward.2} parent=111 // pred_region
          %864 = dma.done [#allocation6], 512
        $region120: #{seq2seq_forward.2} parent=111 // pred_fallthru
          _
        // Predicated region
        $region121: #{seq2seq_forward.2} parent=111 // pred_check
          %p865 = pneg %p131
        $region122: #{seq2seq_forward.2} parent=111 // pred_check_branch
          %867 = sbr.rel (%p865) target = $region124
        $region123: #{seq2seq_forward.2} parent=111 // pred_region
          %868 = dma.done [#allocation6], 16
        $region124: #{seq2seq_forward.2} parent=111 // pred_fallthru
          _
        // Predicated region
        $region125: #{seq2seq_forward.2} parent=111 // pred_check
          %p869 = pneg %p152
        $region126: #{seq2seq_forward.2} parent=111 // pred_check_branch
          %871 = sbr.rel (%p869) target = $region128
        $region127: #{seq2seq_forward.2} parent=111 // pred_region
          %872 = dma.done [#allocation9], 256
        $region128: #{seq2seq_forward.2} parent=111 // pred_fallthru
          _
        // Predicated region
        $region129: #{seq2seq_forward.2} parent=111 // pred_check
          %p873 = pneg %p173
        $region130: #{seq2seq_forward.2} parent=111 // pred_check_branch
          %875 = sbr.rel (%p873) target = $region132
        $region131: #{seq2seq_forward.2} parent=111 // pred_region
          %876 = dma.done [#allocation9], 512
        $region132: #{seq2seq_forward.2} parent=111 // pred_fallthru
          _
        // Predicated region
        $region133: #{seq2seq_forward.2} parent=111 // pred_check
          %p877 = pneg %p194
        $region134: #{seq2seq_forward.2} parent=111 // pred_check_branch
          %879 = sbr.rel (%p877) target = $region136
        $region135: #{seq2seq_forward.2} parent=111 // pred_region
          %880 = dma.done [#allocation12], 16
        $region136: #{seq2seq_forward.2} parent=111 // pred_fallthru
          _
        // Predicated region
        $region137: #{seq2seq_forward.2} parent=111 // pred_check
          %p881 = pneg %p215
        $region138: #{seq2seq_forward.2} parent=111 // pred_check_branch
          %883 = sbr.rel (%p881) target = $region140
        $region139: #{seq2seq_forward.2} parent=111 // pred_region
          %884 = dma.done [#allocation12], 256
        $region140: #{seq2seq_forward.2} parent=111 // pred_fallthru
          _
        // Predicated region
        $region141: #{seq2seq_forward.2} parent=111 // pred_check
          %p885 = pneg %p236
        $region142: #{seq2seq_forward.2} parent=111 // pred_check_branch
          %887 = sbr.rel (%p885) target = $region144
        $region143: #{seq2seq_forward.2} parent=111 // pred_region
          %888 = dma.done [#allocation15], 512
        $region144: #{seq2seq_forward.2} parent=111 // pred_fallthru
          _
        // Predicated region
        $region145: #{seq2seq_forward.2} parent=111 // pred_check
          %p889 = pneg %p257
        $region146: #{seq2seq_forward.2} parent=111 // pred_check_branch
          %891 = sbr.rel (%p889) target = $region148
        $region147: #{seq2seq_forward.2} parent=111 // pred_region
          %892 = dma.done [#allocation15], 16
        $region148: #{seq2seq_forward.2} parent=111 // pred_fallthru
          _
        // Predicated region
        $region149: #{seq2seq_forward.2} parent=111 // pred_check
          %p893 = pneg %p278
        $region150: #{seq2seq_forward.2} parent=111 // pred_check_branch
          %895 = sbr.rel (%p893) target = $region152
        $region151: #{seq2seq_forward.2} parent=111 // pred_region
          %896 = dma.done [#allocation18], 512
        $region152: #{seq2seq_forward.2} parent=111 // pred_fallthru
          _
        // Predicated region
        $region153: #{seq2seq_forward.2} parent=111 // pred_check
          %p897 = pneg %p299
        $region154: #{seq2seq_forward.2} parent=111 // pred_check_branch
          %899 = sbr.rel (%p897) target = $region156
        $region155: #{seq2seq_forward.2} parent=111 // pred_region
          %900 = dma.done [#allocation18], 512
        $region156: #{seq2seq_forward.2} parent=111 // pred_fallthru
          _
        // Predicated region
        $region157: #{seq2seq_forward.2} parent=111 // pred_check
          %p901 = pneg %p320
        $region158: #{seq2seq_forward.2} parent=111 // pred_check_branch
          %903 = sbr.rel (%p901) target = $region160
        $region159: #{seq2seq_forward.2} parent=111 // pred_region
          %904 = dma.done [#allocation21], 16
        $region160: #{seq2seq_forward.2} parent=111 // pred_fallthru
          _
        // Predicated region
        $region161: #{seq2seq_forward.2} parent=111 // pred_check
          %p905 = pneg %p341
        $region162: #{seq2seq_forward.2} parent=111 // pred_check_branch
          %907 = sbr.rel (%p905) target = $region164
        $region163: #{seq2seq_forward.2} parent=111 // pred_region
          %908 = dma.done [#allocation21], 512
        $region164: #{seq2seq_forward.2} parent=111 // pred_fallthru
          _
        // Predicated region
        $region165: #{seq2seq_forward.2} parent=111 // pred_check
          %p909 = pneg %p362
        $region166: #{seq2seq_forward.2} parent=111 // pred_check_branch
          %911 = sbr.rel (%p909) target = $region168
        $region167: #{seq2seq_forward.2} parent=111 // pred_region
          %912 = dma.done [#allocation24], 512
        $region168: #{seq2seq_forward.2} parent=111 // pred_fallthru
          _
        // Predicated region
        $region169: #{seq2seq_forward.2} parent=111 // pred_check
          %p913 = pneg %p383
        $region170: #{seq2seq_forward.2} parent=111 // pred_check_branch
          %915 = sbr.rel (%p913) target = $region172
        $region171: #{seq2seq_forward.2} parent=111 // pred_region
          %916 = dma.done [#allocation24], 16
        $region172: #{seq2seq_forward.2} parent=111 // pred_fallthru
          _
        // Predicated region
        $region173: #{seq2seq_forward.2} parent=111 // pred_check
          %p917 = pneg %p404
        $region174: #{seq2seq_forward.2} parent=111 // pred_check_branch
          %919 = sbr.rel (%p917) target = $region176
        $region175: #{seq2seq_forward.2} parent=111 // pred_region
          %920 = dma.done [#allocation27], 512
        $region176: #{seq2seq_forward.2} parent=111 // pred_fallthru
          _
        // Predicated region
        $region177: #{seq2seq_forward.2} parent=111 // pred_check
          %p921 = pneg %p425
        $region178: #{seq2seq_forward.2} parent=111 // pred_check_branch
          %923 = sbr.rel (%p921) target = $region180
        $region179: #{seq2seq_forward.2} parent=111 // pred_region
          %924 = dma.done [#allocation27], 512
        $region180: #{seq2seq_forward.2} parent=111 // pred_fallthru
          _
        // Predicated region
        $region181: #{seq2seq_forward.2} parent=111 // pred_check
          %p925 = pneg %p446
        $region182: #{seq2seq_forward.2} parent=111 // pred_check_branch
          %927 = sbr.rel (%p925) target = $region184
        $region183: #{seq2seq_forward.2} parent=111 // pred_region
          %928 = dma.done [#allocation30], 16
        $region184: #{seq2seq_forward.2} parent=111 // pred_fallthru
          _
        // Predicated region
        $region185: #{seq2seq_forward.2} parent=111 // pred_check
          %p929 = pneg %p509
        $region186: #{seq2seq_forward.2} parent=111 // pred_check_branch
          %931 = sbr.rel (%p929) target = $region188
        $region187: #{seq2seq_forward.2} parent=111 // pred_region
          %932 = dma.done [#allocation30], 512
        $region188: #{seq2seq_forward.2} parent=111 // pred_fallthru
          _
        // Predicated region
        $region189: #{seq2seq_forward.2} parent=111 // pred_check
          %p933 = pneg %p530
        $region190: #{seq2seq_forward.2} parent=111 // pred_check_branch
          %935 = sbr.rel (%p933) target = $region192
        $region191: #{seq2seq_forward.2} parent=111 // pred_region
          %936 = dma.done [#allocation33], 16
        $region192: #{seq2seq_forward.2} parent=111 // pred_fallthru
          _
        %p937 = scmp.lt.s32.totalorder %s47, 7
        %s938 = scalar_select %p937, %s47, 7
        %s939 = smul.addr %s938, 2
        %s940 = scalar_lea.vmem %s0, %s939
        %p941 = pneg %p68
        %p942 = pneg %p65
        %p943 = pneg %p89
        %p944 = pneg %p86
        %p945 = pneg %p110
        %p946 = pneg %p107
        %p947 = pneg %p131
        %p948 = pneg %p128
        %p949 = pneg %p152
        %p950 = pneg %p149
        %p951 = pneg %p173
        %p952 = pneg %p170
        %p953 = pneg %p194
        %p954 = pneg %p191
        %p955 = pneg %p215
        %p956 = pneg %p212
        %p957 = pneg %p236
        %p958 = pneg %p233
        %p959 = pneg %p257
        %p960 = pneg %p254
        %p961 = pneg %p278
        %p962 = pneg %p275
        %p963 = pneg %p299
        %p964 = pneg %p296
        %p965 = pneg %p320
        %p966 = pneg %p317
        %p967 = pneg %p341
        %p968 = pneg %p338
        %p969 = pneg %p362
        %p970 = pneg %p359
        %p971 = pneg %p383
        %p972 = pneg %p380
        %p973 = pneg %p404
        %p974 = pneg %p401
        %p975 = pneg %p425
        %p976 = pneg %p422
        %p977 = pneg %p446
        %p978 = pneg %p443
        %p979 = pneg %p467
        %p980 = pneg %p464
        %p981 = pneg %p488
        %p982 = pneg %p485
        %p983 = pneg %p509
        %p984 = pneg %p506
        %p985 = pneg %p530
        %p986 = pneg %p527
        %p987 = pneg %p551
        %p988 = pneg %p548
        %p989 = pneg %p572
        %p990 = pneg %p569
        %p991 = scmp.lt.s32.totalorder %s47, 7
        %s992 = scalar_select %p991, %s47, 7
        %s993 = smul.addr %s992, 2
        %s994 = scalar_lea.vmem %s0, %s993
        %p995 = scmp.eq.s32.totalorder %s47, 0
        // Predicated region
        $region193: #{seq2seq_forward.2} parent=111 // pred_check
          %p996 = pneg %p995
        $region194: #{seq2seq_forward.2} parent=111 // pred_check_branch
          %998 = sbr.rel (%p996) target = $region196
        $region195: #{seq2seq_forward.2} parent=111 // pred_region
          %vm999 = vcmask 254976
          %1000 = vst.msk [vmem:[#allocation2] sm:$0x3] %vm999, 0.0
          %1001 = vst.msk [vmem:[#allocation2 + $0x2] sm:$0x3] %vm999, 0.0
        $region196: #{seq2seq_forward.2} parent=111 // pred_fallthru
          _
        %v1002 = vld [vmem:[%s994] sm:$0x3]
        %v1003 = vld [vmem:[#allocation2] sm:$0x3]
        %v1004 = vld [vmem:[#allocation3] sm:$0xff]
        %v1005 = vld [vmem:[#allocation3 + $0x8] sm:$0xff]
        %v1006 = vld [vmem:[#allocation5] sm:$0xff]
        %v1007 = vld [vmem:[#allocation5 + $0x8] sm:$0xff]
        %v1008 = vld [vmem:[#allocation5 + $0x10] sm:$0xff]
        %v1009 = vld [vmem:[#allocation5 + $0x18] sm:$0xff]
        %vm1010 = vcmask 261120
        %v1012 = vsel %vm1010, %v1003, 0
        %1014 = vmatprep.subr.mxu0 0.0
        %1015 = vmatpush1.msra.mxu0 %v1006
        %1016 = vmatprep.subr.mxu0 0.0
        %1017 = vmatpush1.msra.mxu0 %v1007
        %1018 = vmatprep.subr.mxu0 0.0
        %1019 = vmatpush1.msra.mxu0 %v1008
        %1020 = vmatprep.subr.mxu0 0.0
        %1021 = vmatpush1.msra.mxu0 %v1009
        %1022 = vmatprep.subr.mxu0 0.0
        %1023 = vmatpush1.msra.mxu0 0.0
        %1024 = vmatprep.subr.mxu0 0.0
        %1025 = vmatpush1.msra.mxu0 0.0
        %1026 = vmatprep.subr.mxu0 0.0
        %1027 = vmatpush1.msra.mxu0 0.0
        %1028 = vmatprep.subr.mxu0 0.0
        %1029 = vmatpush1.msra.mxu0 0.0
        %1030 = vmatprep.subr.mxu0 0.0
        %1031 = vmatpush1.msra.mxu0 0.0
        %1032 = vmatprep.subr.mxu0 0.0
        %1033 = vmatpush1.msra.mxu0 0.0
        %1034 = vmatprep.subr.mxu0 0.0
        %1035 = vmatpush1.msra.mxu0 0.0
        %1036 = vmatprep.subr.mxu0 0.0
        %1037 = vmatpush1.msra.mxu0 0.0
        %1038 = vmatprep.subr.mxu0 0.0
        %1039 = vmatpush1.msra.mxu0 0.0
        %1040 = vmatprep.subr.mxu0 0.0
        %1041 = vmatpush1.msra.mxu0 0.0
        %1042 = vmatprep.subr.mxu0 0.0
        %1043 = vmatpush1.msra.mxu0 0.0
        %1044 = vmatprep.subr.mxu0 0.0
        %1045 = vmatpush1.msra.mxu0 0.0
        %1046 = vmatprep.subr.mxu0 0.0
        %1047 = vmatpush1.msra.mxu0 0.0
        %1048 = vmatprep.subr.mxu0 0.0
        %1049 = vmatpush1.msra.mxu0 0.0
        %1050 = vmatprep.subr.mxu0 0.0
        %1051 = vmatpush1.msra.mxu0 0.0
        %1052 = vmatprep.subr.mxu0 0.0
        %1053 = vmatpush1.msra.mxu0 0.0
        %1054 = vmatprep.subr.mxu0 0.0
        %1055 = vmatpush1.msra.mxu0 0.0
        %1056 = vmatprep.subr.mxu0 0.0
        %1057 = vmatpush1.msra.mxu0 0.0
        %1058 = vmatprep.subr.mxu0 0.0
        %1059 = vmatpush1.msra.mxu0 0.0
        %1060 = vmatprep.subr.mxu0 0.0
        %1061 = vmatpush1.msra.mxu0 0.0
        %1062 = vmatprep.subr.mxu0 0.0
        %1063 = vmatpush1.msra.mxu0 0.0
        %1064 = vmatprep.subr.mxu0 0.0
        %1065 = vmatpush1.msra.mxu0 0.0
        %1066 = vmatprep.subr.mxu0 0.0
        %1067 = vmatpush1.msra.mxu0 0.0
        %1068 = vmatprep.subr.mxu0 0.0
        %1069 = vmatpush1.msra.mxu0 0.0
        %1070 = vmatprep.subr.mxu0 0.0
        %1071 = vmatpush1.msra.mxu0 0.0
        %1072 = vmatprep.subr.mxu0 0.0
        %1073 = vmatpush1.msra.mxu0 0.0
        %1074 = vmatprep.subr.mxu0 0.0
        %1075 = vmatpush1.msra.mxu0 0.0
        %1076 = vmatprep.subr.mxu0 0.0
        %1077 = vmatpush1.msra.mxu0 0.0
        %1078 = vmatprep.mubr.f32.mxu0 0.0
        %1079 = vmatmul.mubr.f32.gmra.mrb[0].mxu0 %v1012
        %v1080 = vpop.f32.mrb[0].mxu0
        %v1081 = vadd.f32 0.0, %v1080
        %v1082 = vpop.f32.mrb[0].mxu0
        %1083 = vdwg.mxu0
        %vm1084 = vcmask 130048
        %v1086 = vsel %vm1084, %v1002, 0
        %1088 = vmatprep.subr.mxu0 0.0
        %1089 = vmatpush1.msra.mxu0 %v1004
        %1090 = vmatprep.subr.mxu0 0.0
        %1091 = vmatpush1.msra.mxu0 %v1005
        %1092 = vmatprep.subr.mxu0 0.0
        %1093 = vmatpush1.msra.mxu0 0.0
        %1094 = vmatprep.subr.mxu0 0.0
        %1095 = vmatpush1.msra.mxu0 0.0
        %1096 = vmatprep.subr.mxu0 0.0
        %1097 = vmatpush1.msra.mxu0 0.0
        %1098 = vmatprep.subr.mxu0 0.0
        %1099 = vmatpush1.msra.mxu0 0.0
        %1100 = vmatprep.subr.mxu0 0.0
        %1101 = vmatpush1.msra.mxu0 0.0
        %1102 = vmatprep.subr.mxu0 0.0
        %1103 = vmatpush1.msra.mxu0 0.0
        %1104 = vmatprep.subr.mxu0 0.0
        %1105 = vmatpush1.msra.mxu0 0.0
        %1106 = vmatprep.subr.mxu0 0.0
        %1107 = vmatpush1.msra.mxu0 0.0
        %1108 = vmatprep.subr.mxu0 0.0
        %1109 = vmatpush1.msra.mxu0 0.0
        %1110 = vmatprep.subr.mxu0 0.0
        %1111 = vmatpush1.msra.mxu0 0.0
        %1112 = vmatprep.subr.mxu0 0.0
        %1113 = vmatpush1.msra.mxu0 0.0
        %1114 = vmatprep.subr.mxu0 0.0
        %1115 = vmatpush1.msra.mxu0 0.0
        %1116 = vmatprep.subr.mxu0 0.0
        %1117 = vmatpush1.msra.mxu0 0.0
        %1118 = vmatprep.subr.mxu0 0.0
        %1119 = vmatpush1.msra.mxu0 0.0
        %1120 = vmatprep.subr.mxu0 0.0
        %1121 = vmatpush1.msra.mxu0 0.0
        %1122 = vmatprep.subr.mxu0 0.0
        %1123 = vmatpush1.msra.mxu0 0.0
        %1124 = vmatprep.subr.mxu0 0.0
        %1125 = vmatpush1.msra.mxu0 0.0
        %1126 = vmatprep.subr.mxu0 0.0
        %1127 = vmatpush1.msra.mxu0 0.0
        %1128 = vmatprep.subr.mxu0 0.0
        %1129 = vmatpush1.msra.mxu0 0.0
        %1130 = vmatprep.subr.mxu0 0.0
        %1131 = vmatpush1.msra.mxu0 0.0
        %1132 = vmatprep.subr.mxu0 0.0
        %1133 = vmatpush1.msra.mxu0 0.0
        %1134 = vmatprep.subr.mxu0 0.0
        %1135 = vmatpush1.msra.mxu0 0.0
        %1136 = vmatprep.subr.mxu0 0.0
        %1137 = vmatpush1.msra.mxu0 0.0
        %1138 = vmatprep.subr.mxu0 0.0
        %1139 = vmatpush1.msra.mxu0 0.0
        %1140 = vmatprep.subr.mxu0 0.0
        %1141 = vmatpush1.msra.mxu0 0.0
        %1142 = vmatprep.subr.mxu0 0.0
        %1143 = vmatpush1.msra.mxu0 0.0
        %1144 = vmatprep.subr.mxu0 0.0
        %1145 = vmatpush1.msra.mxu0 0.0
        %1146 = vmatprep.subr.mxu0 0.0
        %1147 = vmatpush1.msra.mxu0 0.0
        %1148 = vmatprep.subr.mxu0 0.0
        %1149 = vmatpush1.msra.mxu0 0.0
        %1150 = vmatprep.subr.mxu0 0.0
        %1151 = vmatpush1.msra.mxu0 0.0
        %1152 = vmatprep.mubr.f32.mxu0 0.0
        %1153 = vmatmul.mubr.f32.gmra.mrb[0].mxu0 %v1086
        %v1154 = vpop.f32.mrb[0].mxu0
        %v1155 = vadd.f32 %v1081, %v1154
        %v1156 = vpop.f32.mrb[0].mxu0
        %1157 = vdwg.mxu0
        %v1158 = vld [vmem:[#allocation7] sm:$0x1]
        %v1160 = vlaneseq
        %v1161 = vshrl.u32 %v1160, 7
        %v1162 = vsub.s32 0, %v1161
        %v1163 = vrot.slane %v1158, %v1162
        %v1165 = vadd.f32 %v1155, %v1163
        %v1166 = vsub.f32 0.0, %v1165
        %v1167 = vmul.f32 %v1166, 1.442695
        %v1168 = vpow.pop %v1167
        %v1169 = vadd.f32 %v1168, 1.0
        %v1170 = vrcp.pop %v1169
        %v1171 = vmul.f32 1.0, %v1170
        %v1172 = vld [vmem:[#allocation8] sm:$0xff]
        %v1173 = vld [vmem:[#allocation8 + $0x8] sm:$0xff]
        %v1174 = vld [vmem:[#allocation10] sm:$0xff]
        %v1175 = vld [vmem:[#allocation10 + $0x8] sm:$0xff]
        %v1176 = vld [vmem:[#allocation10 + $0x10] sm:$0xff]
        %v1177 = vld [vmem:[#allocation10 + $0x18] sm:$0xff]
        %1178 = vmatprep.subr.mxu0 0.0
        %1179 = vmatpush1.msra.mxu0 %v1174
        %1180 = vmatprep.subr.mxu0 0.0
        %1181 = vmatpush1.msra.mxu0 %v1175
        %1182 = vmatprep.subr.mxu0 0.0
        %1183 = vmatpush1.msra.mxu0 %v1176
        %1184 = vmatprep.subr.mxu0 0.0
        %1185 = vmatpush1.msra.mxu0 %v1177
        %1186 = vmatprep.subr.mxu0 0.0
        %1187 = vmatpush1.msra.mxu0 0.0
        %1188 = vmatprep.subr.mxu0 0.0
        %1189 = vmatpush1.msra.mxu0 0.0
        %1190 = vmatprep.subr.mxu0 0.0
        %1191 = vmatpush1.msra.mxu0 0.0
        %1192 = vmatprep.subr.mxu0 0.0
        %1193 = vmatpush1.msra.mxu0 0.0
        %1194 = vmatprep.subr.mxu0 0.0
        %1195 = vmatpush1.msra.mxu0 0.0
        %1196 = vmatprep.subr.mxu0 0.0
        %1197 = vmatpush1.msra.mxu0 0.0
        %1198 = vmatprep.subr.mxu0 0.0
        %1199 = vmatpush1.msra.mxu0 0.0
        %1200 = vmatprep.subr.mxu0 0.0
        %1201 = vmatpush1.msra.mxu0 0.0
        %1202 = vmatprep.subr.mxu0 0.0
        %1203 = vmatpush1.msra.mxu0 0.0
        %1204 = vmatprep.subr.mxu0 0.0
        %1205 = vmatpush1.msra.mxu0 0.0
        %1206 = vmatprep.subr.mxu0 0.0
        %1207 = vmatpush1.msra.mxu0 0.0
        %1208 = vmatprep.subr.mxu0 0.0
        %1209 = vmatpush1.msra.mxu0 0.0
        %1210 = vmatprep.subr.mxu0 0.0
        %1211 = vmatpush1.msra.mxu0 0.0
        %1212 = vmatprep.subr.mxu0 0.0
        %1213 = vmatpush1.msra.mxu0 0.0
        %1214 = vmatprep.subr.mxu0 0.0
        %1215 = vmatpush1.msra.mxu0 0.0
        %1216 = vmatprep.subr.mxu0 0.0
        %1217 = vmatpush1.msra.mxu0 0.0
        %1218 = vmatprep.subr.mxu0 0.0
        %1219 = vmatpush1.msra.mxu0 0.0
        %1220 = vmatprep.subr.mxu0 0.0
        %1221 = vmatpush1.msra.mxu0 0.0
        %1222 = vmatprep.subr.mxu0 0.0
        %1223 = vmatpush1.msra.mxu0 0.0
        %1224 = vmatprep.subr.mxu0 0.0
        %1225 = vmatpush1.msra.mxu0 0.0
        %1226 = vmatprep.subr.mxu0 0.0
        %1227 = vmatpush1.msra.mxu0 0.0
        %1228 = vmatprep.subr.mxu0 0.0
        %1229 = vmatpush1.msra.mxu0 0.0
        %1230 = vmatprep.subr.mxu0 0.0
        %1231 = vmatpush1.msra.mxu0 0.0
        %1232 = vmatprep.subr.mxu0 0.0
        %1233 = vmatpush1.msra.mxu0 0.0
        %1234 = vmatprep.subr.mxu0 0.0
        %1235 = vmatpush1.msra.mxu0 0.0
        %1236 = vmatprep.subr.mxu0 0.0
        %1237 = vmatpush1.msra.mxu0 0.0
        %1238 = vmatprep.subr.mxu0 0.0
        %1239 = vmatpush1.msra.mxu0 0.0
        %1240 = vmatprep.subr.mxu0 0.0
        %1241 = vmatpush1.msra.mxu0 0.0
        %1242 = vmatprep.mubr.f32.mxu0 0.0
        %1243 = vmatmul.mubr.f32.gmra.mrb[0].mxu0 %v1012
        %v1244 = vpop.f32.mrb[0].mxu0
        %v1245 = vadd.f32 0.0, %v1244
        %v1246 = vpop.f32.mrb[0].mxu0
        %1247 = vdwg.mxu0
        %1248 = vmatprep.subr.mxu0 0.0
        %1249 = vmatpush1.msra.mxu0 %v1172
        %1250 = vmatprep.subr.mxu0 0.0
        %1251 = vmatpush1.msra.mxu0 %v1173
        %1252 = vmatprep.subr.mxu0 0.0
        %1253 = vmatpush1.msra.mxu0 0.0
        %1254 = vmatprep.subr.mxu0 0.0
        %1255 = vmatpush1.msra.mxu0 0.0
        %1256 = vmatprep.subr.mxu0 0.0
        %1257 = vmatpush1.msra.mxu0 0.0
        %1258 = vmatprep.subr.mxu0 0.0
        %1259 = vmatpush1.msra.mxu0 0.0
        %1260 = vmatprep.subr.mxu0 0.0
        %1261 = vmatpush1.msra.mxu0 0.0
        %1262 = vmatprep.subr.mxu0 0.0
        %1263 = vmatpush1.msra.mxu0 0.0
        %1264 = vmatprep.subr.mxu0 0.0
        %1265 = vmatpush1.msra.mxu0 0.0
        %1266 = vmatprep.subr.mxu0 0.0
        %1267 = vmatpush1.msra.mxu0 0.0
        %1268 = vmatprep.subr.mxu0 0.0
        %1269 = vmatpush1.msra.mxu0 0.0
        %1270 = vmatprep.subr.mxu0 0.0
        %1271 = vmatpush1.msra.mxu0 0.0
        %1272 = vmatprep.subr.mxu0 0.0
        %1273 = vmatpush1.msra.mxu0 0.0
        %1274 = vmatprep.subr.mxu0 0.0
        %1275 = vmatpush1.msra.mxu0 0.0
        %1276 = vmatprep.subr.mxu0 0.0
        %1277 = vmatpush1.msra.mxu0 0.0
        %1278 = vmatprep.subr.mxu0 0.0
        %1279 = vmatpush1.msra.mxu0 0.0
        %1280 = vmatprep.subr.mxu0 0.0
        %1281 = vmatpush1.msra.mxu0 0.0
        %1282 = vmatprep.subr.mxu0 0.0
        %1283 = vmatpush1.msra.mxu0 0.0
        %1284 = vmatprep.subr.mxu0 0.0
        %1285 = vmatpush1.msra.mxu0 0.0
        %1286 = vmatprep.subr.mxu0 0.0
        %1287 = vmatpush1.msra.mxu0 0.0
        %1288 = vmatprep.subr.mxu0 0.0
        %1289 = vmatpush1.msra.mxu0 0.0
        %1290 = vmatprep.subr.mxu0 0.0
        %1291 = vmatpush1.msra.mxu0 0.0
        %1292 = vmatprep.subr.mxu0 0.0
        %1293 = vmatpush1.msra.mxu0 0.0
        %1294 = vmatprep.subr.mxu0 0.0
        %1295 = vmatpush1.msra.mxu0 0.0
        %1296 = vmatprep.subr.mxu0 0.0
        %1297 = vmatpush1.msra.mxu0 0.0
        %1298 = vmatprep.subr.mxu0 0.0
        %1299 = vmatpush1.msra.mxu0 0.0
        %1300 = vmatprep.subr.mxu0 0.0
        %1301 = vmatpush1.msra.mxu0 0.0
        %1302 = vmatprep.subr.mxu0 0.0
        %1303 = vmatpush1.msra.mxu0 0.0
        %1304 = vmatprep.subr.mxu0 0.0
        %1305 = vmatpush1.msra.mxu0 0.0
        %1306 = vmatprep.subr.mxu0 0.0
        %1307 = vmatpush1.msra.mxu0 0.0
        %1308 = vmatprep.subr.mxu0 0.0
        %1309 = vmatpush1.msra.mxu0 0.0
        %1310 = vmatprep.subr.mxu0 0.0
        %1311 = vmatpush1.msra.mxu0 0.0
        %1312 = vmatprep.mubr.f32.mxu0 0.0
        %1313 = vmatmul.mubr.f32.gmra.mrb[0].mxu0 %v1086
        %v1314 = vpop.f32.mrb[0].mxu0
        %v1315 = vadd.f32 %v1245, %v1314
        %v1316 = vpop.f32.mrb[0].mxu0
        %1317 = vdwg.mxu0
        %v1318 = vld [vmem:[#allocation11] sm:$0x1]
        %v1320 = vlaneseq
        %v1321 = vshrl.u32 %v1320, 7
        %v1322 = vsub.s32 0, %v1321
        %v1323 = vrot.slane %v1318, %v1322
        %v1325 = vadd.f32 %v1315, %v1323
        %v1326 = vsub.f32 0.0, %v1325
        %v1327 = vmul.f32 %v1326, 1.442695
        %v1328 = vpow.pop %v1327
        %v1329 = vadd.f32 %v1328, 1.0
        %v1330 = vrcp.pop %v1329
        %v1331 = vmul.f32 1.0, %v1330
        %v1332 = vld [vmem:[#allocation13] sm:$0xff]
        %v1333 = vld [vmem:[#allocation13 + $0x8] sm:$0xff]
        %v1334 = vmul.f32 %v1171, %v1003
        %v1335 = vld [vmem:[#allocation14] sm:$0xff]
        %v1336 = vld [vmem:[#allocation14 + $0x8] sm:$0xff]
        %v1337 = vld [vmem:[#allocation14 + $0x10] sm:$0xff]
        %v1338 = vld [vmem:[#allocation14 + $0x18] sm:$0xff]
        %v1340 = vsel %vm1010, %v1334, 0
        %1342 = vmatprep.subr.mxu0 0.0
        %1343 = vmatpush1.msra.mxu0 %v1335
        %1344 = vmatprep.subr.mxu0 0.0
        %1345 = vmatpush1.msra.mxu0 %v1336
        %1346 = vmatprep.subr.mxu0 0.0
        %1347 = vmatpush1.msra.mxu0 %v1337
        %1348 = vmatprep.subr.mxu0 0.0
        %1349 = vmatpush1.msra.mxu0 %v1338
        %1350 = vmatprep.subr.mxu0 0.0
        %1351 = vmatpush1.msra.mxu0 0.0
        %1352 = vmatprep.subr.mxu0 0.0
        %1353 = vmatpush1.msra.mxu0 0.0
        %1354 = vmatprep.subr.mxu0 0.0
        %1355 = vmatpush1.msra.mxu0 0.0
        %1356 = vmatprep.subr.mxu0 0.0
        %1357 = vmatpush1.msra.mxu0 0.0
        %1358 = vmatprep.subr.mxu0 0.0
        %1359 = vmatpush1.msra.mxu0 0.0
        %1360 = vmatprep.subr.mxu0 0.0
        %1361 = vmatpush1.msra.mxu0 0.0
        %1362 = vmatprep.subr.mxu0 0.0
        %1363 = vmatpush1.msra.mxu0 0.0
        %1364 = vmatprep.subr.mxu0 0.0
        %1365 = vmatpush1.msra.mxu0 0.0
        %1366 = vmatprep.subr.mxu0 0.0
        %1367 = vmatpush1.msra.mxu0 0.0
        %1368 = vmatprep.subr.mxu0 0.0
        %1369 = vmatpush1.msra.mxu0 0.0
        %1370 = vmatprep.subr.mxu0 0.0
        %1371 = vmatpush1.msra.mxu0 0.0
        %1372 = vmatprep.subr.mxu0 0.0
        %1373 = vmatpush1.msra.mxu0 0.0
        %1374 = vmatprep.subr.mxu0 0.0
        %1375 = vmatpush1.msra.mxu0 0.0
        %1376 = vmatprep.subr.mxu0 0.0
        %1377 = vmatpush1.msra.mxu0 0.0
        %1378 = vmatprep.subr.mxu0 0.0
        %1379 = vmatpush1.msra.mxu0 0.0
        %1380 = vmatprep.subr.mxu0 0.0
        %1381 = vmatpush1.msra.mxu0 0.0
        %1382 = vmatprep.subr.mxu0 0.0
        %1383 = vmatpush1.msra.mxu0 0.0
        %1384 = vmatprep.subr.mxu0 0.0
        %1385 = vmatpush1.msra.mxu0 0.0
        %1386 = vmatprep.subr.mxu0 0.0
        %1387 = vmatpush1.msra.mxu0 0.0
        %1388 = vmatprep.subr.mxu0 0.0
        %1389 = vmatpush1.msra.mxu0 0.0
        %1390 = vmatprep.subr.mxu0 0.0
        %1391 = vmatpush1.msra.mxu0 0.0
        %1392 = vmatprep.subr.mxu0 0.0
        %1393 = vmatpush1.msra.mxu0 0.0
        %1394 = vmatprep.subr.mxu0 0.0
        %1395 = vmatpush1.msra.mxu0 0.0
        %1396 = vmatprep.subr.mxu0 0.0
        %1397 = vmatpush1.msra.mxu0 0.0
        %1398 = vmatprep.subr.mxu0 0.0
        %1399 = vmatpush1.msra.mxu0 0.0
        %1400 = vmatprep.subr.mxu0 0.0
        %1401 = vmatpush1.msra.mxu0 0.0
        %1402 = vmatprep.subr.mxu0 0.0
        %1403 = vmatpush1.msra.mxu0 0.0
        %1404 = vmatprep.subr.mxu0 0.0
        %1405 = vmatpush1.msra.mxu0 0.0
        %1406 = vmatprep.mubr.f32.mxu0 0.0
        %1407 = vmatmul.mubr.f32.gmra.mrb[0].mxu0 %v1340
        %v1408 = vpop.f32.mrb[0].mxu0
        %v1409 = vadd.f32 0.0, %v1408
        %v1410 = vpop.f32.mrb[0].mxu0
        %1411 = vdwg.mxu0
        %1412 = vmatprep.subr.mxu0 0.0
        %1413 = vmatpush1.msra.mxu0 %v1332
        %1414 = vmatprep.subr.mxu0 0.0
        %1415 = vmatpush1.msra.mxu0 %v1333
        %1416 = vmatprep.subr.mxu0 0.0
        %1417 = vmatpush1.msra.mxu0 0.0
        %1418 = vmatprep.subr.mxu0 0.0
        %1419 = vmatpush1.msra.mxu0 0.0
        %1420 = vmatprep.subr.mxu0 0.0
        %1421 = vmatpush1.msra.mxu0 0.0
        %1422 = vmatprep.subr.mxu0 0.0
        %1423 = vmatpush1.msra.mxu0 0.0
        %1424 = vmatprep.subr.mxu0 0.0
        %1425 = vmatpush1.msra.mxu0 0.0
        %1426 = vmatprep.subr.mxu0 0.0
        %1427 = vmatpush1.msra.mxu0 0.0
        %1428 = vmatprep.subr.mxu0 0.0
        %1429 = vmatpush1.msra.mxu0 0.0
        %1430 = vmatprep.subr.mxu0 0.0
        %1431 = vmatpush1.msra.mxu0 0.0
        %1432 = vmatprep.subr.mxu0 0.0
        %1433 = vmatpush1.msra.mxu0 0.0
        %1434 = vmatprep.subr.mxu0 0.0
        %1435 = vmatpush1.msra.mxu0 0.0
        %1436 = vmatprep.subr.mxu0 0.0
        %1437 = vmatpush1.msra.mxu0 0.0
        %1438 = vmatprep.subr.mxu0 0.0
        %1439 = vmatpush1.msra.mxu0 0.0
        %1440 = vmatprep.subr.mxu0 0.0
        %1441 = vmatpush1.msra.mxu0 0.0
        %1442 = vmatprep.subr.mxu0 0.0
        %1443 = vmatpush1.msra.mxu0 0.0
        %1444 = vmatprep.subr.mxu0 0.0
        %1445 = vmatpush1.msra.mxu0 0.0
        %1446 = vmatprep.subr.mxu0 0.0
        %1447 = vmatpush1.msra.mxu0 0.0
        %1448 = vmatprep.subr.mxu0 0.0
        %1449 = vmatpush1.msra.mxu0 0.0
        %1450 = vmatprep.subr.mxu0 0.0
        %1451 = vmatpush1.msra.mxu0 0.0
        %1452 = vmatprep.subr.mxu0 0.0
        %1453 = vmatpush1.msra.mxu0 0.0
        %1454 = vmatprep.subr.mxu0 0.0
        %1455 = vmatpush1.msra.mxu0 0.0
        %1456 = vmatprep.subr.mxu0 0.0
        %1457 = vmatpush1.msra.mxu0 0.0
        %1458 = vmatprep.subr.mxu0 0.0
        %1459 = vmatpush1.msra.mxu0 0.0
        %1460 = vmatprep.subr.mxu0 0.0
        %1461 = vmatpush1.msra.mxu0 0.0
        %1462 = vmatprep.subr.mxu0 0.0
        %1463 = vmatpush1.msra.mxu0 0.0
        %1464 = vmatprep.subr.mxu0 0.0
        %1465 = vmatpush1.msra.mxu0 0.0
        %1466 = vmatprep.subr.mxu0 0.0
        %1467 = vmatpush1.msra.mxu0 0.0
        %1468 = vmatprep.subr.mxu0 0.0
        %1469 = vmatpush1.msra.mxu0 0.0
        %1470 = vmatprep.subr.mxu0 0.0
        %1471 = vmatpush1.msra.mxu0 0.0
        %1472 = vmatprep.subr.mxu0 0.0
        %1473 = vmatpush1.msra.mxu0 0.0
        %1474 = vmatprep.subr.mxu0 0.0
        %1475 = vmatpush1.msra.mxu0 0.0
        %1476 = vmatprep.mubr.f32.mxu0 0.0
        %1477 = vmatmul.mubr.f32.gmra.mrb[0].mxu0 %v1086
        %v1478 = vpop.f32.mrb[0].mxu0
        %v1479 = vadd.f32 %v1409, %v1478
        %v1480 = vpop.f32.mrb[0].mxu0
        %1481 = vdwg.mxu0
        %v1482 = vld [vmem:[#allocation16] sm:$0x1]
        %v1484 = vlaneseq
        %v1485 = vshrl.u32 %v1484, 7
        %v1486 = vsub.s32 0, %v1485
        %v1487 = vrot.slane %v1482, %v1486
        %v1489 = vadd.f32 %v1479, %v1487
        %v1490 = vtanh.pop %v1489
        %v1491 = vmul.f32 %v1331, %v1003
        %v1492 = vsub.f32 1.0, %v1331
        %v1493 = vmul.f32 %v1492, %v1490
        %v1494 = vadd.f32 %v1491, %v1493
        %vm1495 = vcmask 254976
        %1496 = vst.msk [vmem:[#allocation2] sm:$0x3] %vm1495, %v1494
        %s1497 = scalar_lea.vmem [#allocation2], 2
        %v1498 = vld [vmem:[%s1497] sm:$0x3]
        %v1499 = vld [vmem:[#allocation17] sm:$0xff]
        %v1500 = vld [vmem:[#allocation17 + $0x8] sm:$0xff]
        %v1501 = vld [vmem:[#allocation17 + $0x10] sm:$0xff]
        %v1502 = vld [vmem:[#allocation17 + $0x18] sm:$0xff]
        %v1503 = vld [vmem:[#allocation19] sm:$0xff]
        %v1504 = vld [vmem:[#allocation19 + $0x8] sm:$0xff]
        %v1505 = vld [vmem:[#allocation19 + $0x10] sm:$0xff]
        %v1506 = vld [vmem:[#allocation19 + $0x18] sm:$0xff]
        %v1508 = vsel %vm1010, %v1498, 0
        %1510 = vmatprep.subr.mxu0 0.0
        %1511 = vmatpush1.msra.mxu0 %v1503
        %1512 = vmatprep.subr.mxu0 0.0
        %1513 = vmatpush1.msra.mxu0 %v1504
        %1514 = vmatprep.subr.mxu0 0.0
        %1515 = vmatpush1.msra.mxu0 %v1505
        %1516 = vmatprep.subr.mxu0 0.0
        %1517 = vmatpush1.msra.mxu0 %v1506
        %1518 = vmatprep.subr.mxu0 0.0
        %1519 = vmatpush1.msra.mxu0 0.0
        %1520 = vmatprep.subr.mxu0 0.0
        %1521 = vmatpush1.msra.mxu0 0.0
        %1522 = vmatprep.subr.mxu0 0.0
        %1523 = vmatpush1.msra.mxu0 0.0
        %1524 = vmatprep.subr.mxu0 0.0
        %1525 = vmatpush1.msra.mxu0 0.0
        %1526 = vmatprep.subr.mxu0 0.0
        %1527 = vmatpush1.msra.mxu0 0.0
        %1528 = vmatprep.subr.mxu0 0.0
        %1529 = vmatpush1.msra.mxu0 0.0
        %1530 = vmatprep.subr.mxu0 0.0
        %1531 = vmatpush1.msra.mxu0 0.0
        %1532 = vmatprep.subr.mxu0 0.0
        %1533 = vmatpush1.msra.mxu0 0.0
        %1534 = vmatprep.subr.mxu0 0.0
        %1535 = vmatpush1.msra.mxu0 0.0
        %1536 = vmatprep.subr.mxu0 0.0
        %1537 = vmatpush1.msra.mxu0 0.0
        %1538 = vmatprep.subr.mxu0 0.0
        %1539 = vmatpush1.msra.mxu0 0.0
        %1540 = vmatprep.subr.mxu0 0.0
        %1541 = vmatpush1.msra.mxu0 0.0
        %1542 = vmatprep.subr.mxu0 0.0
        %1543 = vmatpush1.msra.mxu0 0.0
        %1544 = vmatprep.subr.mxu0 0.0
        %1545 = vmatpush1.msra.mxu0 0.0
        %1546 = vmatprep.subr.mxu0 0.0
        %1547 = vmatpush1.msra.mxu0 0.0
        %1548 = vmatprep.subr.mxu0 0.0
        %1549 = vmatpush1.msra.mxu0 0.0
        %1550 = vmatprep.subr.mxu0 0.0
        %1551 = vmatpush1.msra.mxu0 0.0
        %1552 = vmatprep.subr.mxu0 0.0
        %1553 = vmatpush1.msra.mxu0 0.0
        %1554 = vmatprep.subr.mxu0 0.0
        %1555 = vmatpush1.msra.mxu0 0.0
        %1556 = vmatprep.subr.mxu0 0.0
        %1557 = vmatpush1.msra.mxu0 0.0
        %1558 = vmatprep.subr.mxu0 0.0
        %1559 = vmatpush1.msra.mxu0 0.0
        %1560 = vmatprep.subr.mxu0 0.0
        %1561 = vmatpush1.msra.mxu0 0.0
        %1562 = vmatprep.subr.mxu0 0.0
        %1563 = vmatpush1.msra.mxu0 0.0
        %1564 = vmatprep.subr.mxu0 0.0
        %1565 = vmatpush1.msra.mxu0 0.0
        %1566 = vmatprep.subr.mxu0 0.0
        %1567 = vmatpush1.msra.mxu0 0.0
        %1568 = vmatprep.subr.mxu0 0.0
        %1569 = vmatpush1.msra.mxu0 0.0
        %1570 = vmatprep.subr.mxu0 0.0
        %1571 = vmatpush1.msra.mxu0 0.0
        %1572 = vmatprep.subr.mxu0 0.0
        %1573 = vmatpush1.msra.mxu0 0.0
        %1574 = vmatprep.mubr.f32.mxu0 0.0
        %1575 = vmatmul.mubr.f32.gmra.mrb[0].mxu0 %v1508
        %v1576 = vpop.f32.mrb[0].mxu0
        %v1577 = vadd.f32 0.0, %v1576
        %v1578 = vpop.f32.mrb[0].mxu0
        %1579 = vdwg.mxu0
        %v1581 = vsel %vm1010, %v1494, 0
        %1583 = vmatprep.subr.mxu0 0.0
        %1584 = vmatpush1.msra.mxu0 %v1499
        %1585 = vmatprep.subr.mxu0 0.0
        %1586 = vmatpush1.msra.mxu0 %v1500
        %1587 = vmatprep.subr.mxu0 0.0
        %1588 = vmatpush1.msra.mxu0 %v1501
        %1589 = vmatprep.subr.mxu0 0.0
        %1590 = vmatpush1.msra.mxu0 %v1502
        %1591 = vmatprep.subr.mxu0 0.0
        %1592 = vmatpush1.msra.mxu0 0.0
        %1593 = vmatprep.subr.mxu0 0.0
        %1594 = vmatpush1.msra.mxu0 0.0
        %1595 = vmatprep.subr.mxu0 0.0
        %1596 = vmatpush1.msra.mxu0 0.0
        %1597 = vmatprep.subr.mxu0 0.0
        %1598 = vmatpush1.msra.mxu0 0.0
        %1599 = vmatprep.subr.mxu0 0.0
        %1600 = vmatpush1.msra.mxu0 0.0
        %1601 = vmatprep.subr.mxu0 0.0
        %1602 = vmatpush1.msra.mxu0 0.0
        %1603 = vmatprep.subr.mxu0 0.0
        %1604 = vmatpush1.msra.mxu0 0.0
        %1605 = vmatprep.subr.mxu0 0.0
        %1606 = vmatpush1.msra.mxu0 0.0
        %1607 = vmatprep.subr.mxu0 0.0
        %1608 = vmatpush1.msra.mxu0 0.0
        %1609 = vmatprep.subr.mxu0 0.0
        %1610 = vmatpush1.msra.mxu0 0.0
        %1611 = vmatprep.subr.mxu0 0.0
        %1612 = vmatpush1.msra.mxu0 0.0
        %1613 = vmatprep.subr.mxu0 0.0
        %1614 = vmatpush1.msra.mxu0 0.0
        %1615 = vmatprep.subr.mxu0 0.0
        %1616 = vmatpush1.msra.mxu0 0.0
        %1617 = vmatprep.subr.mxu0 0.0
        %1618 = vmatpush1.msra.mxu0 0.0
        %1619 = vmatprep.subr.mxu0 0.0
        %1620 = vmatpush1.msra.mxu0 0.0
        %1621 = vmatprep.subr.mxu0 0.0
        %1622 = vmatpush1.msra.mxu0 0.0
        %1623 = vmatprep.subr.mxu0 0.0
        %1624 = vmatpush1.msra.mxu0 0.0
        %1625 = vmatprep.subr.mxu0 0.0
        %1626 = vmatpush1.msra.mxu0 0.0
        %1627 = vmatprep.subr.mxu0 0.0
        %1628 = vmatpush1.msra.mxu0 0.0
        %1629 = vmatprep.subr.mxu0 0.0
        %1630 = vmatpush1.msra.mxu0 0.0
        %1631 = vmatprep.subr.mxu0 0.0
        %1632 = vmatpush1.msra.mxu0 0.0
        %1633 = vmatprep.subr.mxu0 0.0
        %1634 = vmatpush1.msra.mxu0 0.0
        %1635 = vmatprep.subr.mxu0 0.0
        %1636 = vmatpush1.msra.mxu0 0.0
        %1637 = vmatprep.subr.mxu0 0.0
        %1638 = vmatpush1.msra.mxu0 0.0
        %1639 = vmatprep.subr.mxu0 0.0
        %1640 = vmatpush1.msra.mxu0 0.0
        %1641 = vmatprep.subr.mxu0 0.0
        %1642 = vmatpush1.msra.mxu0 0.0
        %1643 = vmatprep.subr.mxu0 0.0
        %1644 = vmatpush1.msra.mxu0 0.0
        %1645 = vmatprep.subr.mxu0 0.0
        %1646 = vmatpush1.msra.mxu0 0.0
        %1647 = vmatprep.mubr.f32.mxu0 0.0
        %1648 = vmatmul.mubr.f32.gmra.mrb[0].mxu0 %v1581
        %v1649 = vpop.f32.mrb[0].mxu0
        %v1650 = vadd.f32 %v1577, %v1649
        %v1651 = vpop.f32.mrb[0].mxu0
        %1652 = vdwg.mxu0
        %v1653 = vld [vmem:[#allocation20] sm:$0x1]
        %v1655 = vlaneseq
        %v1656 = vshrl.u32 %v1655, 7
        %v1657 = vsub.s32 0, %v1656
        %v1658 = vrot.slane %v1653, %v1657
        %v1660 = vadd.f32 %v1650, %v1658
        %v1661 = vsub.f32 0.0, %v1660
        %v1662 = vmul.f32 %v1661, 1.442695
        %v1663 = vpow.pop %v1662
        %v1664 = vadd.f32 %v1663, 1.0
        %v1665 = vrcp.pop %v1664
        %v1666 = vmul.f32 1.0, %v1665
        %v1667 = vld [vmem:[#allocation22] sm:$0xff]
        %v1668 = vld [vmem:[#allocation22 + $0x8] sm:$0xff]
        %v1669 = vld [vmem:[#allocation22 + $0x10] sm:$0xff]
        %v1670 = vld [vmem:[#allocation22 + $0x18] sm:$0xff]
        %v1671 = vld [vmem:[#allocation23] sm:$0xff]
        %v1672 = vld [vmem:[#allocation23 + $0x8] sm:$0xff]
        %v1673 = vld [vmem:[#allocation23 + $0x10] sm:$0xff]
        %v1674 = vld [vmem:[#allocation23 + $0x18] sm:$0xff]
        %1675 = vmatprep.subr.mxu0 0.0
        %1676 = vmatpush1.msra.mxu0 %v1671
        %1677 = vmatprep.subr.mxu0 0.0
        %1678 = vmatpush1.msra.mxu0 %v1672
        %1679 = vmatprep.subr.mxu0 0.0
        %1680 = vmatpush1.msra.mxu0 %v1673
        %1681 = vmatprep.subr.mxu0 0.0
        %1682 = vmatpush1.msra.mxu0 %v1674
        %1683 = vmatprep.subr.mxu0 0.0
        %1684 = vmatpush1.msra.mxu0 0.0
        %1685 = vmatprep.subr.mxu0 0.0
        %1686 = vmatpush1.msra.mxu0 0.0
        %1687 = vmatprep.subr.mxu0 0.0
        %1688 = vmatpush1.msra.mxu0 0.0
        %1689 = vmatprep.subr.mxu0 0.0
        %1690 = vmatpush1.msra.mxu0 0.0
        %1691 = vmatprep.subr.mxu0 0.0
        %1692 = vmatpush1.msra.mxu0 0.0
        %1693 = vmatprep.subr.mxu0 0.0
        %1694 = vmatpush1.msra.mxu0 0.0
        %1695 = vmatprep.subr.mxu0 0.0
        %1696 = vmatpush1.msra.mxu0 0.0
        %1697 = vmatprep.subr.mxu0 0.0
        %1698 = vmatpush1.msra.mxu0 0.0
        %1699 = vmatprep.subr.mxu0 0.0
        %1700 = vmatpush1.msra.mxu0 0.0
        %1701 = vmatprep.subr.mxu0 0.0
        %1702 = vmatpush1.msra.mxu0 0.0
        %1703 = vmatprep.subr.mxu0 0.0
        %1704 = vmatpush1.msra.mxu0 0.0
        %1705 = vmatprep.subr.mxu0 0.0
        %1706 = vmatpush1.msra.mxu0 0.0
        %1707 = vmatprep.subr.mxu0 0.0
        %1708 = vmatpush1.msra.mxu0 0.0
        %1709 = vmatprep.subr.mxu0 0.0
        %1710 = vmatpush1.msra.mxu0 0.0
        %1711 = vmatprep.subr.mxu0 0.0
        %1712 = vmatpush1.msra.mxu0 0.0
        %1713 = vmatprep.subr.mxu0 0.0
        %1714 = vmatpush1.msra.mxu0 0.0
        %1715 = vmatprep.subr.mxu0 0.0
        %1716 = vmatpush1.msra.mxu0 0.0
        %1717 = vmatprep.subr.mxu0 0.0
        %1718 = vmatpush1.msra.mxu0 0.0
        %1719 = vmatprep.subr.mxu0 0.0
        %1720 = vmatpush1.msra.mxu0 0.0
        %1721 = vmatprep.subr.mxu0 0.0
        %1722 = vmatpush1.msra.mxu0 0.0
        %1723 = vmatprep.subr.mxu0 0.0
        %1724 = vmatpush1.msra.mxu0 0.0
        %1725 = vmatprep.subr.mxu0 0.0
        %1726 = vmatpush1.msra.mxu0 0.0
        %1727 = vmatprep.subr.mxu0 0.0
        %1728 = vmatpush1.msra.mxu0 0.0
        %1729 = vmatprep.subr.mxu0 0.0
        %1730 = vmatpush1.msra.mxu0 0.0
        %1731 = vmatprep.subr.mxu0 0.0
        %1732 = vmatpush1.msra.mxu0 0.0
        %1733 = vmatprep.subr.mxu0 0.0
        %1734 = vmatpush1.msra.mxu0 0.0
        %1735 = vmatprep.subr.mxu0 0.0
        %1736 = vmatpush1.msra.mxu0 0.0
        %1737 = vmatprep.subr.mxu0 0.0
        %1738 = vmatpush1.msra.mxu0 0.0
        %1739 = vmatprep.mubr.f32.mxu0 0.0
        %1740 = vmatmul.mubr.f32.gmra.mrb[0].mxu0 %v1508
        %v1741 = vpop.f32.mrb[0].mxu0
        %v1742 = vadd.f32 0.0, %v1741
        %v1743 = vpop.f32.mrb[0].mxu0
        %1744 = vdwg.mxu0
        %1745 = vmatprep.subr.mxu0 0.0
        %1746 = vmatpush1.msra.mxu0 %v1667
        %1747 = vmatprep.subr.mxu0 0.0
        %1748 = vmatpush1.msra.mxu0 %v1668
        %1749 = vmatprep.subr.mxu0 0.0
        %1750 = vmatpush1.msra.mxu0 %v1669
        %1751 = vmatprep.subr.mxu0 0.0
        %1752 = vmatpush1.msra.mxu0 %v1670
        %1753 = vmatprep.subr.mxu0 0.0
        %1754 = vmatpush1.msra.mxu0 0.0
        %1755 = vmatprep.subr.mxu0 0.0
        %1756 = vmatpush1.msra.mxu0 0.0
        %1757 = vmatprep.subr.mxu0 0.0
        %1758 = vmatpush1.msra.mxu0 0.0
        %1759 = vmatprep.subr.mxu0 0.0
        %1760 = vmatpush1.msra.mxu0 0.0
        %1761 = vmatprep.subr.mxu0 0.0
        %1762 = vmatpush1.msra.mxu0 0.0
        %1763 = vmatprep.subr.mxu0 0.0
        %1764 = vmatpush1.msra.mxu0 0.0
        %1765 = vmatprep.subr.mxu0 0.0
        %1766 = vmatpush1.msra.mxu0 0.0
        %1767 = vmatprep.subr.mxu0 0.0
        %1768 = vmatpush1.msra.mxu0 0.0
        %1769 = vmatprep.subr.mxu0 0.0
        %1770 = vmatpush1.msra.mxu0 0.0
        %1771 = vmatprep.subr.mxu0 0.0
        %1772 = vmatpush1.msra.mxu0 0.0
        %1773 = vmatprep.subr.mxu0 0.0
        %1774 = vmatpush1.msra.mxu0 0.0
        %1775 = vmatprep.subr.mxu0 0.0
        %1776 = vmatpush1.msra.mxu0 0.0
        %1777 = vmatprep.subr.mxu0 0.0
        %1778 = vmatpush1.msra.mxu0 0.0
        %1779 = vmatprep.subr.mxu0 0.0
        %1780 = vmatpush1.msra.mxu0 0.0
        %1781 = vmatprep.subr.mxu0 0.0
        %1782 = vmatpush1.msra.mxu0 0.0
        %1783 = vmatprep.subr.mxu0 0.0
        %1784 = vmatpush1.msra.mxu0 0.0
        %1785 = vmatprep.subr.mxu0 0.0
        %1786 = vmatpush1.msra.mxu0 0.0
        %1787 = vmatprep.subr.mxu0 0.0
        %1788 = vmatpush1.msra.mxu0 0.0
        %1789 = vmatprep.subr.mxu0 0.0
        %1790 = vmatpush1.msra.mxu0 0.0
        %1791 = vmatprep.subr.mxu0 0.0
        %1792 = vmatpush1.msra.mxu0 0.0
        %1793 = vmatprep.subr.mxu0 0.0
        %1794 = vmatpush1.msra.mxu0 0.0
        %1795 = vmatprep.subr.mxu0 0.0
        %1796 = vmatpush1.msra.mxu0 0.0
        %1797 = vmatprep.subr.mxu0 0.0
        %1798 = vmatpush1.msra.mxu0 0.0
        %1799 = vmatprep.subr.mxu0 0.0
        %1800 = vmatpush1.msra.mxu0 0.0
        %1801 = vmatprep.subr.mxu0 0.0
        %1802 = vmatpush1.msra.mxu0 0.0
        %1803 = vmatprep.subr.mxu0 0.0
        %1804 = vmatpush1.msra.mxu0 0.0
        %1805 = vmatprep.subr.mxu0 0.0
        %1806 = vmatpush1.msra.mxu0 0.0
        %1807 = vmatprep.subr.mxu0 0.0
        %1808 = vmatpush1.msra.mxu0 0.0
        %1809 = vmatprep.mubr.f32.mxu0 0.0
        %1810 = vmatmul.mubr.f32.gmra.mrb[0].mxu0 %v1581
        %v1811 = vpop.f32.mrb[0].mxu0
        %v1812 = vadd.f32 %v1742, %v1811
        %v1813 = vpop.f32.mrb[0].mxu0
        %1814 = vdwg.mxu0
        %v1815 = vld [vmem:[#allocation25] sm:$0x1]
        %v1817 = vlaneseq
        %v1818 = vshrl.u32 %v1817, 7
        %v1819 = vsub.s32 0, %v1818
        %v1820 = vrot.slane %v1815, %v1819
        %v1822 = vadd.f32 %v1812, %v1820
        %v1823 = vsub.f32 0.0, %v1822
        %v1824 = vmul.f32 %v1823, 1.442695
        %v1825 = vpow.pop %v1824
        %v1826 = vadd.f32 %v1825, 1.0
        %v1827 = vrcp.pop %v1826
        %v1828 = vmul.f32 1.0, %v1827
        %v1829 = vld [vmem:[#allocation26] sm:$0xff]
        %v1830 = vld [vmem:[#allocation26 + $0x8] sm:$0xff]
        %v1831 = vld [vmem:[#allocation26 + $0x10] sm:$0xff]
        %v1832 = vld [vmem:[#allocation26 + $0x18] sm:$0xff]
        %v1833 = vmul.f32 %v1666, %v1498
        %v1834 = vld [vmem:[#allocation28] sm:$0xff]
        %v1835 = vld [vmem:[#allocation28 + $0x8] sm:$0xff]
        %v1836 = vld [vmem:[#allocation28 + $0x10] sm:$0xff]
        %v1837 = vld [vmem:[#allocation28 + $0x18] sm:$0xff]
        %v1839 = vsel %vm1010, %v1833, 0
        %1841 = vmatprep.subr.mxu0 0.0
        %1842 = vmatpush1.msra.mxu0 %v1834
        %1843 = vmatprep.subr.mxu0 0.0
        %1844 = vmatpush1.msra.mxu0 %v1835
        %1845 = vmatprep.subr.mxu0 0.0
        %1846 = vmatpush1.msra.mxu0 %v1836
        %1847 = vmatprep.subr.mxu0 0.0
        %1848 = vmatpush1.msra.mxu0 %v1837
        %1849 = vmatprep.subr.mxu0 0.0
        %1850 = vmatpush1.msra.mxu0 0.0
        %1851 = vmatprep.subr.mxu0 0.0
        %1852 = vmatpush1.msra.mxu0 0.0
        %1853 = vmatprep.subr.mxu0 0.0
        %1854 = vmatpush1.msra.mxu0 0.0
        %1855 = vmatprep.subr.mxu0 0.0
        %1856 = vmatpush1.msra.mxu0 0.0
        %1857 = vmatprep.subr.mxu0 0.0
        %1858 = vmatpush1.msra.mxu0 0.0
        %1859 = vmatprep.subr.mxu0 0.0
        %1860 = vmatpush1.msra.mxu0 0.0
        %1861 = vmatprep.subr.mxu0 0.0
        %1862 = vmatpush1.msra.mxu0 0.0
        %1863 = vmatprep.subr.mxu0 0.0
        %1864 = vmatpush1.msra.mxu0 0.0
        %1865 = vmatprep.subr.mxu0 0.0
        %1866 = vmatpush1.msra.mxu0 0.0
        %1867 = vmatprep.subr.mxu0 0.0
        %1868 = vmatpush1.msra.mxu0 0.0
        %1869 = vmatprep.subr.mxu0 0.0
        %1870 = vmatpush1.msra.mxu0 0.0
        %1871 = vmatprep.subr.mxu0 0.0
        %1872 = vmatpush1.msra.mxu0 0.0
        %1873 = vmatprep.subr.mxu0 0.0
        %1874 = vmatpush1.msra.mxu0 0.0
        %1875 = vmatprep.subr.mxu0 0.0
        %1876 = vmatpush1.msra.mxu0 0.0
        %1877 = vmatprep.subr.mxu0 0.0
        %1878 = vmatpush1.msra.mxu0 0.0
        %1879 = vmatprep.subr.mxu0 0.0
        %1880 = vmatpush1.msra.mxu0 0.0
        %1881 = vmatprep.subr.mxu0 0.0
        %1882 = vmatpush1.msra.mxu0 0.0
        %1883 = vmatprep.subr.mxu0 0.0
        %1884 = vmatpush1.msra.mxu0 0.0
        %1885 = vmatprep.subr.mxu0 0.0
        %1886 = vmatpush1.msra.mxu0 0.0
        %1887 = vmatprep.subr.mxu0 0.0
        %1888 = vmatpush1.msra.mxu0 0.0
        %1889 = vmatprep.subr.mxu0 0.0
        %1890 = vmatpush1.msra.mxu0 0.0
        %1891 = vmatprep.subr.mxu0 0.0
        %1892 = vmatpush1.msra.mxu0 0.0
        %1893 = vmatprep.subr.mxu0 0.0
        %1894 = vmatpush1.msra.mxu0 0.0
        %1895 = vmatprep.subr.mxu0 0.0
        %1896 = vmatpush1.msra.mxu0 0.0
        %1897 = vmatprep.subr.mxu0 0.0
        %1898 = vmatpush1.msra.mxu0 0.0
        %1899 = vmatprep.subr.mxu0 0.0
        %1900 = vmatpush1.msra.mxu0 0.0
        %1901 = vmatprep.subr.mxu0 0.0
        %1902 = vmatpush1.msra.mxu0 0.0
        %1903 = vmatprep.subr.mxu0 0.0
        %1904 = vmatpush1.msra.mxu0 0.0
        %1905 = vmatprep.mubr.f32.mxu0 0.0
        %1906 = vmatmul.mubr.f32.gmra.mrb[0].mxu0 %v1839
        %v1907 = vpop.f32.mrb[0].mxu0
        %v1908 = vadd.f32 0.0, %v1907
        %v1909 = vpop.f32.mrb[0].mxu0
        %1910 = vdwg.mxu0
        %1911 = vmatprep.subr.mxu0 0.0
        %1912 = vmatpush1.msra.mxu0 %v1829
        %1913 = vmatprep.subr.mxu0 0.0
        %1914 = vmatpush1.msra.mxu0 %v1830
        %1915 = vmatprep.subr.mxu0 0.0
        %1916 = vmatpush1.msra.mxu0 %v1831
        %1917 = vmatprep.subr.mxu0 0.0
        %1918 = vmatpush1.msra.mxu0 %v1832
        %1919 = vmatprep.subr.mxu0 0.0
        %1920 = vmatpush1.msra.mxu0 0.0
        %1921 = vmatprep.subr.mxu0 0.0
        %1922 = vmatpush1.msra.mxu0 0.0
        %1923 = vmatprep.subr.mxu0 0.0
        %1924 = vmatpush1.msra.mxu0 0.0
        %1925 = vmatprep.subr.mxu0 0.0
        %1926 = vmatpush1.msra.mxu0 0.0
        %1927 = vmatprep.subr.mxu0 0.0
        %1928 = vmatpush1.msra.mxu0 0.0
        %1929 = vmatprep.subr.mxu0 0.0
        %1930 = vmatpush1.msra.mxu0 0.0
        %1931 = vmatprep.subr.mxu0 0.0
        %1932 = vmatpush1.msra.mxu0 0.0
        %1933 = vmatprep.subr.mxu0 0.0
        %1934 = vmatpush1.msra.mxu0 0.0
        %1935 = vmatprep.subr.mxu0 0.0
        %1936 = vmatpush1.msra.mxu0 0.0
        %1937 = vmatprep.subr.mxu0 0.0
        %1938 = vmatpush1.msra.mxu0 0.0
        %1939 = vmatprep.subr.mxu0 0.0
        %1940 = vmatpush1.msra.mxu0 0.0
        %1941 = vmatprep.subr.mxu0 0.0
        %1942 = vmatpush1.msra.mxu0 0.0
        %1943 = vmatprep.subr.mxu0 0.0
        %1944 = vmatpush1.msra.mxu0 0.0
        %1945 = vmatprep.subr.mxu0 0.0
        %1946 = vmatpush1.msra.mxu0 0.0
        %1947 = vmatprep.subr.mxu0 0.0
        %1948 = vmatpush1.msra.mxu0 0.0
        %1949 = vmatprep.subr.mxu0 0.0
        %1950 = vmatpush1.msra.mxu0 0.0
        %1951 = vmatprep.subr.mxu0 0.0
        %1952 = vmatpush1.msra.mxu0 0.0
        %1953 = vmatprep.subr.mxu0 0.0
        %1954 = vmatpush1.msra.mxu0 0.0
        %1955 = vmatprep.subr.mxu0 0.0
        %1956 = vmatpush1.msra.mxu0 0.0
        %1957 = vmatprep.subr.mxu0 0.0
        %1958 = vmatpush1.msra.mxu0 0.0
        %1959 = vmatprep.subr.mxu0 0.0
        %1960 = vmatpush1.msra.mxu0 0.0
        %1961 = vmatprep.subr.mxu0 0.0
        %1962 = vmatpush1.msra.mxu0 0.0
        %1963 = vmatprep.subr.mxu0 0.0
        %1964 = vmatpush1.msra.mxu0 0.0
        %1965 = vmatprep.subr.mxu0 0.0
        %1966 = vmatpush1.msra.mxu0 0.0
        %1967 = vmatprep.subr.mxu0 0.0
        %1968 = vmatpush1.msra.mxu0 0.0
        %1969 = vmatprep.subr.mxu0 0.0
        %1970 = vmatpush1.msra.mxu0 0.0
        %1971 = vmatprep.subr.mxu0 0.0
        %1972 = vmatpush1.msra.mxu0 0.0
        %1973 = vmatprep.subr.mxu0 0.0
        %1974 = vmatpush1.msra.mxu0 0.0
        %1975 = vmatprep.mubr.f32.mxu0 0.0
        %1976 = vmatmul.mubr.f32.gmra.mrb[0].mxu0 %v1581
        %v1977 = vpop.f32.mrb[0].mxu0
        %v1978 = vadd.f32 %v1908, %v1977
        %v1979 = vpop.f32.mrb[0].mxu0
        %1980 = vdwg.mxu0
        %v1981 = vld [vmem:[#allocation29] sm:$0x1]
        %v1983 = vlaneseq
        %v1984 = vshrl.u32 %v1983, 7
        %v1985 = vsub.s32 0, %v1984
        %v1986 = vrot.slane %v1981, %v1985
        %v1988 = vadd.f32 %v1978, %v1986
        %v1989 = vtanh.pop %v1988
        %v1990 = vmul.f32 %v1828, %v1498
        %v1991 = vsub.f32 1.0, %v1828
        %v1992 = vmul.f32 %v1991, %v1989
        %v1993 = vadd.f32 %v1990, %v1992
        %1994 = vst.msk [vmem:[%s1497] sm:$0x3] %vm1495, %v1993
        %p1995 = scmp.eq.s32.totalorder %s47, 7
        // Predicated region
        $region197: #{seq2seq_forward.2} parent=111 // pred_check
          %p1996 = pneg %p1995
        $region198: #{seq2seq_forward.2} parent=111 // pred_check_branch
          %1998 = sbr.rel (%p1996) target = $region200
        $region199: #{seq2seq_forward.2} parent=111 // pred_region
          %v1999 = vld [vmem:[#allocation2] sm:$0x3]
          %v2000 = vld [vmem:[%s19] sm:$0xff]
          %v2001 = vld [vmem:[%s19 + $0x8] sm:$0xff]
          %v2002 = vld [vmem:[%s19 + $0x10] sm:$0xff]
          %v2003 = vld [vmem:[%s19 + $0x18] sm:$0xff]
          %v2004 = vld [vmem:[%s20] sm:$0x1]
          %v2006 = vlaneseq
          %v2007 = vshrl.u32 %v2006, 7
          %v2008 = vsub.s32 0, %v2007
          %v2009 = vrot.slane %v2004, %v2008
          %v2012 = vsel %vm1010, %v1999, 0
          %2014 = vmatprep.subr.mxu0 0.0
          %2015 = vmatpush1.msra.mxu0 %v2000
          %2016 = vmatprep.subr.mxu0 0.0
          %2017 = vmatpush1.msra.mxu0 %v2001
          %2018 = vmatprep.subr.mxu0 0.0
          %2019 = vmatpush1.msra.mxu0 %v2002
          %2020 = vmatprep.subr.mxu0 0.0
          %2021 = vmatpush1.msra.mxu0 %v2003
          %2022 = vmatprep.subr.mxu0 0.0
          %2023 = vmatpush1.msra.mxu0 0.0
          %2024 = vmatprep.subr.mxu0 0.0
          %2025 = vmatpush1.msra.mxu0 0.0
          %2026 = vmatprep.subr.mxu0 0.0
          %2027 = vmatpush1.msra.mxu0 0.0
          %2028 = vmatprep.subr.mxu0 0.0
          %2029 = vmatpush1.msra.mxu0 0.0
          %2030 = vmatprep.subr.mxu0 0.0
          %2031 = vmatpush1.msra.mxu0 0.0
          %2032 = vmatprep.subr.mxu0 0.0
          %2033 = vmatpush1.msra.mxu0 0.0
          %2034 = vmatprep.subr.mxu0 0.0
          %2035 = vmatpush1.msra.mxu0 0.0
          %2036 = vmatprep.subr.mxu0 0.0
          %2037 = vmatpush1.msra.mxu0 0.0
          %2038 = vmatprep.subr.mxu0 0.0
          %2039 = vmatpush1.msra.mxu0 0.0
          %2040 = vmatprep.subr.mxu0 0.0
          %2041 = vmatpush1.msra.mxu0 0.0
          %2042 = vmatprep.subr.mxu0 0.0
          %2043 = vmatpush1.msra.mxu0 0.0
          %2044 = vmatprep.subr.mxu0 0.0
          %2045 = vmatpush1.msra.mxu0 0.0
          %2046 = vmatprep.subr.mxu0 0.0
          %2047 = vmatpush1.msra.mxu0 0.0
          %2048 = vmatprep.subr.mxu0 0.0
          %2049 = vmatpush1.msra.mxu0 0.0
          %2050 = vmatprep.subr.mxu0 0.0
          %2051 = vmatpush1.msra.mxu0 0.0
          %2052 = vmatprep.subr.mxu0 0.0
          %2053 = vmatpush1.msra.mxu0 0.0
          %2054 = vmatprep.subr.mxu0 0.0
          %2055 = vmatpush1.msra.mxu0 0.0
          %2056 = vmatprep.subr.mxu0 0.0
          %2057 = vmatpush1.msra.mxu0 0.0
          %2058 = vmatprep.subr.mxu0 0.0
          %2059 = vmatpush1.msra.mxu0 0.0
          %2060 = vmatprep.subr.mxu0 0.0
          %2061 = vmatpush1.msra.mxu0 0.0
          %2062 = vmatprep.subr.mxu0 0.0
          %2063 = vmatpush1.msra.mxu0 0.0
          %2064 = vmatprep.subr.mxu0 0.0
          %2065 = vmatpush1.msra.mxu0 0.0
          %2066 = vmatprep.subr.mxu0 0.0
          %2067 = vmatpush1.msra.mxu0 0.0
          %2068 = vmatprep.subr.mxu0 0.0
          %2069 = vmatpush1.msra.mxu0 0.0
          %2070 = vmatprep.subr.mxu0 0.0
          %2071 = vmatpush1.msra.mxu0 0.0
          %2072 = vmatprep.subr.mxu0 0.0
          %2073 = vmatpush1.msra.mxu0 0.0
          %2074 = vmatprep.subr.mxu0 0.0
          %2075 = vmatpush1.msra.mxu0 0.0
          %2076 = vmatprep.subr.mxu0 0.0
          %2077 = vmatpush1.msra.mxu0 0.0
          %2078 = vmatprep.mubr.f32.mxu0 0.0
          %2079 = vmatmul.mubr.f32.gmra.mrb[0].mxu0 %v2012
          %v2080 = vpop.f32.mrb[0].mxu0
          %v2081 = vadd.f32 %v2009, %v2080
          %v2082 = vpop.f32.mrb[0].mxu0
          %2083 = vdwg.mxu0
          %v2084 = vtanh.pop %v2081
          %2085 = vst.msk [vmem:[%s23] sm:$0x3] %vm1495, %v2084
          %v2086 = vld [vmem:[#allocation31] sm:$0xff]
          %v2087 = vld [vmem:[#allocation31 + $0x8] sm:$0xff]
          %v2088 = vld [vmem:[#allocation31 + $0x10] sm:$0xff]
          %v2089 = vld [vmem:[#allocation31 + $0x18] sm:$0xff]
          %v2090 = vld [vmem:[#allocation32] sm:$0x1]
          %v2092 = vlaneseq
          %v2093 = vshrl.u32 %v2092, 7
          %v2094 = vsub.s32 0, %v2093
          %v2095 = vrot.slane %v2090, %v2094
          %v2098 = vsel %vm1010, %v2084, 0
          %2100 = vmatprep.subr.mxu0 0.0
          %2101 = vmatpush1.msra.mxu0 %v2086
          %2102 = vmatprep.subr.mxu0 0.0
          %2103 = vmatpush1.msra.mxu0 %v2087
          %2104 = vmatprep.subr.mxu0 0.0
          %2105 = vmatpush1.msra.mxu0 %v2088
          %2106 = vmatprep.subr.mxu0 0.0
          %2107 = vmatpush1.msra.mxu0 %v2089
          %2108 = vmatprep.subr.mxu0 0.0
          %2109 = vmatpush1.msra.mxu0 0.0
          %2110 = vmatprep.subr.mxu0 0.0
          %2111 = vmatpush1.msra.mxu0 0.0
          %2112 = vmatprep.subr.mxu0 0.0
          %2113 = vmatpush1.msra.mxu0 0.0
          %2114 = vmatprep.subr.mxu0 0.0
          %2115 = vmatpush1.msra.mxu0 0.0
          %2116 = vmatprep.subr.mxu0 0.0
          %2117 = vmatpush1.msra.mxu0 0.0
          %2118 = vmatprep.subr.mxu0 0.0
          %2119 = vmatpush1.msra.mxu0 0.0
          %2120 = vmatprep.subr.mxu0 0.0
          %2121 = vmatpush1.msra.mxu0 0.0
          %2122 = vmatprep.subr.mxu0 0.0
          %2123 = vmatpush1.msra.mxu0 0.0
          %2124 = vmatprep.subr.mxu0 0.0
          %2125 = vmatpush1.msra.mxu0 0.0
          %2126 = vmatprep.subr.mxu0 0.0
          %2127 = vmatpush1.msra.mxu0 0.0
          %2128 = vmatprep.subr.mxu0 0.0
          %2129 = vmatpush1.msra.mxu0 0.0
          %2130 = vmatprep.subr.mxu0 0.0
          %2131 = vmatpush1.msra.mxu0 0.0
          %2132 = vmatprep.subr.mxu0 0.0
          %2133 = vmatpush1.msra.mxu0 0.0
          %2134 = vmatprep.subr.mxu0 0.0
          %2135 = vmatpush1.msra.mxu0 0.0
          %2136 = vmatprep.subr.mxu0 0.0
          %2137 = vmatpush1.msra.mxu0 0.0
          %2138 = vmatprep.subr.mxu0 0.0
          %2139 = vmatpush1.msra.mxu0 0.0
          %2140 = vmatprep.subr.mxu0 0.0
          %2141 = vmatpush1.msra.mxu0 0.0
          %2142 = vmatprep.subr.mxu0 0.0
          %2143 = vmatpush1.msra.mxu0 0.0
          %2144 = vmatprep.subr.mxu0 0.0
          %2145 = vmatpush1.msra.mxu0 0.0
          %2146 = vmatprep.subr.mxu0 0.0
          %2147 = vmatpush1.msra.mxu0 0.0
          %2148 = vmatprep.subr.mxu0 0.0
          %2149 = vmatpush1.msra.mxu0 0.0
          %2150 = vmatprep.subr.mxu0 0.0
          %2151 = vmatpush1.msra.mxu0 0.0
          %2152 = vmatprep.subr.mxu0 0.0
          %2153 = vmatpush1.msra.mxu0 0.0
          %2154 = vmatprep.subr.mxu0 0.0
          %2155 = vmatpush1.msra.mxu0 0.0
          %2156 = vmatprep.subr.mxu0 0.0
          %2157 = vmatpush1.msra.mxu0 0.0
          %2158 = vmatprep.subr.mxu0 0.0
          %2159 = vmatpush1.msra.mxu0 0.0
          %2160 = vmatprep.subr.mxu0 0.0
          %2161 = vmatpush1.msra.mxu0 0.0
          %2162 = vmatprep.subr.mxu0 0.0
          %2163 = vmatpush1.msra.mxu0 0.0
          %2164 = vmatprep.mubr.f32.mxu0 0.0
          %2165 = vmatmul.mubr.f32.gmra.mrb[0].mxu0 %v2098
          %v2166 = vpop.f32.mrb[0].mxu0
          %v2167 = vadd.f32 %v2095, %v2166
          %v2168 = vpop.f32.mrb[0].mxu0
          %2169 = vdwg.mxu0
          %v2170 = vtanh.pop %v2167
          %2171 = vst.msk [vmem:[%s24] sm:$0x3] %vm1495, %v2170
          %v2172 = vld [vmem:[%s1497] sm:$0x3]
          %v2173 = vld [vmem:[%s19] sm:$0xff]
          %v2174 = vld [vmem:[%s19 + $0x8] sm:$0xff]
          %v2175 = vld [vmem:[%s19 + $0x10] sm:$0xff]
          %v2176 = vld [vmem:[%s19 + $0x18] sm:$0xff]
          %v2177 = vld [vmem:[%s20] sm:$0x1]
          %v2179 = vlaneseq
          %v2180 = vshrl.u32 %v2179, 7
          %v2181 = vsub.s32 0, %v2180
          %v2182 = vrot.slane %v2177, %v2181
          %v2185 = vsel %vm1010, %v2172, 0
          %2187 = vmatprep.subr.mxu0 0.0
          %2188 = vmatpush1.msra.mxu0 %v2173
          %2189 = vmatprep.subr.mxu0 0.0
          %2190 = vmatpush1.msra.mxu0 %v2174
          %2191 = vmatprep.subr.mxu0 0.0
          %2192 = vmatpush1.msra.mxu0 %v2175
          %2193 = vmatprep.subr.mxu0 0.0
          %2194 = vmatpush1.msra.mxu0 %v2176
          %2195 = vmatprep.subr.mxu0 0.0
          %2196 = vmatpush1.msra.mxu0 0.0
          %2197 = vmatprep.subr.mxu0 0.0
          %2198 = vmatpush1.msra.mxu0 0.0
          %2199 = vmatprep.subr.mxu0 0.0
          %2200 = vmatpush1.msra.mxu0 0.0
          %2201 = vmatprep.subr.mxu0 0.0
          %2202 = vmatpush1.msra.mxu0 0.0
          %2203 = vmatprep.subr.mxu0 0.0
          %2204 = vmatpush1.msra.mxu0 0.0
          %2205 = vmatprep.subr.mxu0 0.0
          %2206 = vmatpush1.msra.mxu0 0.0
          %2207 = vmatprep.subr.mxu0 0.0
          %2208 = vmatpush1.msra.mxu0 0.0
          %2209 = vmatprep.subr.mxu0 0.0
          %2210 = vmatpush1.msra.mxu0 0.0
          %2211 = vmatprep.subr.mxu0 0.0
          %2212 = vmatpush1.msra.mxu0 0.0
          %2213 = vmatprep.subr.mxu0 0.0
          %2214 = vmatpush1.msra.mxu0 0.0
          %2215 = vmatprep.subr.mxu0 0.0
          %2216 = vmatpush1.msra.mxu0 0.0
          %2217 = vmatprep.subr.mxu0 0.0
          %2218 = vmatpush1.msra.mxu0 0.0
          %2219 = vmatprep.subr.mxu0 0.0
          %2220 = vmatpush1.msra.mxu0 0.0
          %2221 = vmatprep.subr.mxu0 0.0
          %2222 = vmatpush1.msra.mxu0 0.0
          %2223 = vmatprep.subr.mxu0 0.0
          %2224 = vmatpush1.msra.mxu0 0.0
          %2225 = vmatprep.subr.mxu0 0.0
          %2226 = vmatpush1.msra.mxu0 0.0
          %2227 = vmatprep.subr.mxu0 0.0
          %2228 = vmatpush1.msra.mxu0 0.0
          %2229 = vmatprep.subr.mxu0 0.0
          %2230 = vmatpush1.msra.mxu0 0.0
          %2231 = vmatprep.subr.mxu0 0.0
          %2232 = vmatpush1.msra.mxu0 0.0
          %2233 = vmatprep.subr.mxu0 0.0
          %2234 = vmatpush1.msra.mxu0 0.0
          %2235 = vmatprep.subr.mxu0 0.0
          %2236 = vmatpush1.msra.mxu0 0.0
          %2237 = vmatprep.subr.mxu0 0.0
          %2238 = vmatpush1.msra.mxu0 0.0
          %2239 = vmatprep.subr.mxu0 0.0
          %2240 = vmatpush1.msra.mxu0 0.0
          %2241 = vmatprep.subr.mxu0 0.0
          %2242 = vmatpush1.msra.mxu0 0.0
          %2243 = vmatprep.subr.mxu0 0.0
          %2244 = vmatpush1.msra.mxu0 0.0
          %2245 = vmatprep.subr.mxu0 0.0
          %2246 = vmatpush1.msra.mxu0 0.0
          %2247 = vmatprep.subr.mxu0 0.0
          %2248 = vmatpush1.msra.mxu0 0.0
          %2249 = vmatprep.subr.mxu0 0.0
          %2250 = vmatpush1.msra.mxu0 0.0
          %2251 = vmatprep.mubr.f32.mxu0 0.0
          %2252 = vmatmul.mubr.f32.gmra.mrb[0].mxu0 %v2185
          %v2253 = vpop.f32.mrb[0].mxu0
          %v2254 = vadd.f32 %v2182, %v2253
          %v2255 = vpop.f32.mrb[0].mxu0
          %2256 = vdwg.mxu0
          %v2257 = vtanh.pop %v2254
          %s2258 = scalar_lea.vmem %s23, 2
          %2259 = vst.msk [vmem:[%s2258] sm:$0x3] %vm1495, %v2257
          %v2260 = vld [vmem:[#allocation31] sm:$0xff]
          %v2261 = vld [vmem:[#allocation31 + $0x8] sm:$0xff]
          %v2262 = vld [vmem:[#allocation31 + $0x10] sm:$0xff]
          %v2263 = vld [vmem:[#allocation31 + $0x18] sm:$0xff]
          %v2264 = vld [vmem:[#allocation32] sm:$0x1]
          %v2266 = vlaneseq
          %v2267 = vshrl.u32 %v2266, 7
          %v2268 = vsub.s32 0, %v2267
          %v2269 = vrot.slane %v2264, %v2268
          %v2272 = vsel %vm1010, %v2257, 0
          %2274 = vmatprep.subr.mxu0 0.0
          %2275 = vmatpush1.msra.mxu0 %v2260
          %2276 = vmatprep.subr.mxu0 0.0
          %2277 = vmatpush1.msra.mxu0 %v2261
          %2278 = vmatprep.subr.mxu0 0.0
          %2279 = vmatpush1.msra.mxu0 %v2262
          %2280 = vmatprep.subr.mxu0 0.0
          %2281 = vmatpush1.msra.mxu0 %v2263
          %2282 = vmatprep.subr.mxu0 0.0
          %2283 = vmatpush1.msra.mxu0 0.0
          %2284 = vmatprep.subr.mxu0 0.0
          %2285 = vmatpush1.msra.mxu0 0.0
          %2286 = vmatprep.subr.mxu0 0.0
          %2287 = vmatpush1.msra.mxu0 0.0
          %2288 = vmatprep.subr.mxu0 0.0
          %2289 = vmatpush1.msra.mxu0 0.0
          %2290 = vmatprep.subr.mxu0 0.0
          %2291 = vmatpush1.msra.mxu0 0.0
          %2292 = vmatprep.subr.mxu0 0.0
          %2293 = vmatpush1.msra.mxu0 0.0
          %2294 = vmatprep.subr.mxu0 0.0
          %2295 = vmatpush1.msra.mxu0 0.0
          %2296 = vmatprep.subr.mxu0 0.0
          %2297 = vmatpush1.msra.mxu0 0.0
          %2298 = vmatprep.subr.mxu0 0.0
          %2299 = vmatpush1.msra.mxu0 0.0
          %2300 = vmatprep.subr.mxu0 0.0
          %2301 = vmatpush1.msra.mxu0 0.0
          %2302 = vmatprep.subr.mxu0 0.0
          %2303 = vmatpush1.msra.mxu0 0.0
          %2304 = vmatprep.subr.mxu0 0.0
          %2305 = vmatpush1.msra.mxu0 0.0
          %2306 = vmatprep.subr.mxu0 0.0
          %2307 = vmatpush1.msra.mxu0 0.0
          %2308 = vmatprep.subr.mxu0 0.0
          %2309 = vmatpush1.msra.mxu0 0.0
          %2310 = vmatprep.subr.mxu0 0.0
          %2311 = vmatpush1.msra.mxu0 0.0
          %2312 = vmatprep.subr.mxu0 0.0
          %2313 = vmatpush1.msra.mxu0 0.0
          %2314 = vmatprep.subr.mxu0 0.0
          %2315 = vmatpush1.msra.mxu0 0.0
          %2316 = vmatprep.subr.mxu0 0.0
          %2317 = vmatpush1.msra.mxu0 0.0
          %2318 = vmatprep.subr.mxu0 0.0
          %2319 = vmatpush1.msra.mxu0 0.0
          %2320 = vmatprep.subr.mxu0 0.0
          %2321 = vmatpush1.msra.mxu0 0.0
          %2322 = vmatprep.subr.mxu0 0.0
          %2323 = vmatpush1.msra.mxu0 0.0
          %2324 = vmatprep.subr.mxu0 0.0
          %2325 = vmatpush1.msra.mxu0 0.0
          %2326 = vmatprep.subr.mxu0 0.0
          %2327 = vmatpush1.msra.mxu0 0.0
          %2328 = vmatprep.subr.mxu0 0.0
          %2329 = vmatpush1.msra.mxu0 0.0
          %2330 = vmatprep.subr.mxu0 0.0
          %2331 = vmatpush1.msra.mxu0 0.0
          %2332 = vmatprep.subr.mxu0 0.0
          %2333 = vmatpush1.msra.mxu0 0.0
          %2334 = vmatprep.subr.mxu0 0.0
          %2335 = vmatpush1.msra.mxu0 0.0
          %2336 = vmatprep.subr.mxu0 0.0
          %2337 = vmatpush1.msra.mxu0 0.0
          %2338 = vmatprep.mubr.f32.mxu0 0.0
          %2339 = vmatmul.mubr.f32.gmra.mrb[0].mxu0 %v2272
          %v2340 = vpop.f32.mrb[0].mxu0
          %v2341 = vadd.f32 %v2269, %v2340
          %v2342 = vpop.f32.mrb[0].mxu0
          %2343 = vdwg.mxu0
          %v2344 = vtanh.pop %v2341
          %s2345 = scalar_lea.vmem %s24, 2
          %2346 = vst.msk [vmem:[%s2345] sm:$0x3] %vm1495, %v2344
        $region200: #{seq2seq_forward.2} parent=111 // pred_fallthru
          _
        // Predicated region
        $region201: #{seq2seq_forward.2} parent=111 // pred_check
          %p2347 = pneg %p548
        $region202: #{seq2seq_forward.2} parent=111 // pred_check_branch
          %2349 = sbr.rel (%p2347) target = $region204
        $region203: #{seq2seq_forward.2} parent=111 // pred_region
          _
        $region204: #{seq2seq_forward.2} parent=111 // pred_fallthru
          _
        // Predicated region
        $region205: #{seq2seq_forward.2} parent=111 // pred_check
          %p2350 = pneg %p569
        $region206: #{seq2seq_forward.2} parent=111 // pred_check_branch
          %2352 = sbr.rel (%p2350) target = $region208
        $region207: #{seq2seq_forward.2} parent=111 // pred_region
          _
        $region208: #{seq2seq_forward.2} parent=111 // pred_fallthru
          _
        // Predicated region
        $region209: #{seq2seq_forward.2} parent=111 // pred_check
          %p2353 = pneg %p548
        $region210: #{seq2seq_forward.2} parent=111 // pred_check_branch
          %2355 = sbr.rel (%p2353) target = $region212
        $region211: #{seq2seq_forward.2} parent=111 // pred_region
          _
        $region212: #{seq2seq_forward.2} parent=111 // pred_fallthru
          _
        // Predicated region
        $region213: #{seq2seq_forward.2} parent=111 // pred_check
          %p2356 = pneg %p569
        $region214: #{seq2seq_forward.2} parent=111 // pred_check_branch
          %2358 = sbr.rel (%p2356) target = $region216
        $region215: #{seq2seq_forward.2} parent=111 // pred_region
          _
        $region216: #{seq2seq_forward.2} parent=111 // pred_fallthru
          _
      $region112: #{seq2seq_forward.2} parent=5 // pred_fallthru
        _
      %p2359 = scmp.le.s32.totalorder 2, %s42
      // Predicated region
      $region217: #{seq2seq_forward.2} parent=5 // pred_check
        %p2360 = pneg %p2359
      $region218: #{seq2seq_forward.2} parent=5 // pred_check_branch
        %2362 = sbr.rel (%p2360) target = $region220
      $region219: #{seq2seq_forward.2} parent=5 // pred_region
        %s2363 = ssub.s32 %s42, 2
      $region220: #{seq2seq_forward.2} parent=5 // pred_fallthru
        _
    $region6: #{seq2seq_forward.2} parent=1 // loop_footer
      %s46 = sadd.s32 1, %s42
    $region7: #{seq2seq_forward.2} parent=1 // loop_footer_branch
      %41 = sbr.rel target = $region3
    $region8: #{seq2seq_forward.2} parent=1 // loop_exit
      _
    %2364 = vsyncpa [#allocation4], 1
    %s2365 = scalar_lea.sflag [#allocation4], 1
    %2366 = vsyncpa %s2365, 1
    %2367 = vsyncpa [#allocation6], 1
    %2368 = vsyncpa [#allocation9], 1
    %2369 = vsyncpa [#allocation12], 1
    %2370 = vsyncpa [#allocation15], 1
    %2371 = vsyncpa [#allocation18], 1
    %2372 = vsyncpa [#allocation21], 1
    %2373 = vsyncpa [#allocation24], 1
    %2374 = vsyncpa [#allocation27], 1
    %2375 = vsyncpa [#allocation30], 1
    %2376 = vsyncpa [#allocation33], 1

// kernel: seq2seq_forward.3
$region0: #{seq2seq_forward.3}
  #allocation0 [shape = 'u32[]', space=smem, size = 0x4, offset = 0x4, fixed_abs, tag = 'smem constant byte address 0x4 - core index']
  #allocation1 [shape = 'u32[144,128]{1,0:T(1,128)}', space=vmem, size = 0x12000, scoped, tag = 'internal scratch']
  #allocation2 [shape = 'f32[2,2,32]{2,1,0:T(2,128)}', space=vmem, size = 0x800, scoped, tag = 'scratch operand']
  #allocation3 [shape = 'f32[2,16]{1,0:T(2,128)}', space=vmem, size = 0x400, scoped, tag = 'scratch operand']
  #allocation4 [shape = 'f32[2,2,32]{2,1,0:T(2,128)}', space=vmem, size = 0x800, scoped, tag = 'scratch operand']
  #allocation5 [shape = 'f32[2,2,32]{2,1,0:T(2,128)}', space=vmem, size = 0x800, scoped, tag = 'scratch operand']
  #allocation6 [shape = 'f32[2,512]{1,0:T(2,128)}', space=vmem, size = 0x1000, scoped, tag = 'scratch operand']
  #allocation7 [shape = 'f32[2,512]{1,0:T(2,128)}', space=vmem, size = 0x1000, scoped, tag = 'scratch operand']
  %s0 = inlined_call_operand.smem [shape: u32[39], index: -1, kind: input, shape index: {}]
  %s1 = sld [smem:[%s0]]
  %s2 = scalar_lea.smem %s0, 1
  %s3 = sld [smem:[%s2]]
  %s4 = scalar_lea.smem %s0, 2
  %s5 = sld [smem:[%s4]]
  %s6 = scalar_lea.smem %s0, 3
  %s7 = sld [smem:[%s6]]
  %s8 = scalar_lea.smem %s0, 4
  %s9 = sld [smem:[%s8]]
  %s10 = scalar_lea.smem %s0, 5
  %s11 = sld [smem:[%s10]]
  %s12 = scalar_lea.smem %s0, 6
  %s13 = sld [smem:[%s12]]
  %s14 = scalar_lea.smem %s0, 7
  %s15 = sld [smem:[%s14]]
  %s16 = scalar_lea.smem %s0, 8
  %s17 = sld [smem:[%s16]]
  %s18 = scalar_lea.smem %s0, 9
  %s19 = sld [smem:[%s18]]
  %s20 = scalar_lea.smem %s0, 10
  %s21 = sld [smem:[%s20]]
  %s22 = scalar_lea.smem %s0, 11
  %s23 = sld [smem:[%s22]]
  %s24 = scalar_lea.smem %s0, 12
  %s25 = sld [smem:[%s24]]
  %s26 = scalar_lea.smem %s0, 13
  %s27 = sld [smem:[%s26]]
  %s28 = scalar_lea.smem %s0, 14
  %s29 = sld [smem:[%s28]]
  %s30 = scalar_lea.smem %s0, 15
  %s31 = sld [smem:[%s30]]
  %s32 = scalar_lea.smem %s0, 16
  %s33 = sld [smem:[%s32]]
  %s34 = scalar_lea.smem %s0, 17
  %s35 = sld [smem:[%s34]]
  %s36 = scalar_lea.smem %s0, 18
  %s37 = sld [smem:[%s36]]
  %s38 = scalar_lea.smem %s0, 19
  %s39 = sld [smem:[%s38]]
  %s40 = scalar_lea.smem %s0, 20
  %s41 = sld [smem:[%s40]]
  %s42 = scalar_lea.smem %s0, 21
  %s43 = sld [smem:[%s42]]
  %s44 = scalar_lea.smem %s0, 22
  %s45 = sld [smem:[%s44]]
  %s46 = scalar_lea.smem %s0, 23
  %s47 = sld [smem:[%s46]]
  %s48 = scalar_lea.smem %s0, 24
  %s49 = sld [smem:[%s48]]
  %s50 = scalar_lea.smem %s0, 25
  %s51 = sld [smem:[%s50]]
  %s52 = scalar_lea.smem %s0, 26
  %s53 = sld [smem:[%s52]]
  %s54 = scalar_lea.smem %s0, 27
  %s55 = sld [smem:[%s54]]
  %s56 = scalar_lea.smem %s0, 28
  %s57 = sld [smem:[%s56]]
  %s58 = scalar_lea.smem %s0, 29
  %s59 = sld [smem:[%s58]]
  %s60 = scalar_lea.smem %s0, 30
  %s61 = sld [smem:[%s60]]
  %s62 = scalar_lea.smem %s0, 31
  %s63 = sld [smem:[%s62]]
  %s64 = scalar_lea.smem %s0, 32
  %s65 = sld [smem:[%s64]]
  %s66 = scalar_lea.smem %s0, 33
  %s67 = sld [smem:[%s66]]
  %s68 = scalar_lea.smem %s0, 34
  %s69 = sld [smem:[%s68]]
  %s70 = scalar_lea.smem %s0, 35
  %s71 = sld [smem:[%s70]]
  %s72 = scalar_lea.smem %s0, 36
  %s73 = sld [smem:[%s72]]
  %s74 = scalar_lea.smem %s0, 37
  %s75 = sld [smem:[%s74]]
  %s76 = scalar_lea.smem %s0, 38
  %s77 = sld [smem:[%s76]]
  %s78 = sld [smem:[#allocation0]]
  $region293: #{seq2seq_forward.3} parent=0
    _
  %s80 = ssub.s32 1, %s78
  %s81 = scalar_select 0, %s80, %s78
  $region1: #{seq2seq_forward.3} parent=0
    #allocation8 [shape = 'u8[8192]{0}', space=vmem, size = 0x2000, scoped, tag = 'input window, operand 4, single buffered']
    #allocation9 [shape = 's32[2]{0}', space=sflag, size = 0x8, scoped, tag = 'scoped memory for seq2seq_forward.3']
    #allocation10 [shape = 'u8[16384]{0}', space=vmem, size = 0x4000, scoped, tag = 'input window, operand 5, single buffered']
    #allocation11 [shape = 's32[1]{0}', space=sflag, size = 0x4, scoped, tag = 'scoped memory for seq2seq_forward.3']
    #allocation12 [shape = 'u8[16384]{0}', space=vmem, size = 0x4000, scoped, tag = 'input window, operand 6, single buffered']
    #allocation13 [shape = 'u8[512]{0}', space=vmem, size = 0x400, scoped, tag = 'input window, operand 7, single buffered']
    #allocation14 [shape = 's32[1]{0}', space=sflag, size = 0x4, scoped, tag = 'scoped memory for seq2seq_forward.3']
    #allocation15 [shape = 'u8[8192]{0}', space=vmem, size = 0x2000, scoped, tag = 'input window, operand 8, single buffered']
    #allocation16 [shape = 'u8[16384]{0}', space=vmem, size = 0x4000, scoped, tag = 'input window, operand 9, single buffered']
    #allocation17 [shape = 's32[1]{0}', space=sflag, size = 0x4, scoped, tag = 'scoped memory for seq2seq_forward.3']
    #allocation18 [shape = 'u8[16384]{0}', space=vmem, size = 0x4000, scoped, tag = 'input window, operand 10, single buffered']
    #allocation19 [shape = 'u8[512]{0}', space=vmem, size = 0x400, scoped, tag = 'input window, operand 11, single buffered']
    #allocation20 [shape = 's32[1]{0}', space=sflag, size = 0x4, scoped, tag = 'scoped memory for seq2seq_forward.3']
    #allocation21 [shape = 'u8[8192]{0}', space=vmem, size = 0x2000, scoped, tag = 'input window, operand 12, single buffered']
    #allocation22 [shape = 'u8[16384]{0}', space=vmem, size = 0x4000, scoped, tag = 'input window, operand 13, single buffered']
    #allocation23 [shape = 's32[1]{0}', space=sflag, size = 0x4, scoped, tag = 'scoped memory for seq2seq_forward.3']
    #allocation24 [shape = 'u8[16384]{0}', space=vmem, size = 0x4000, scoped, tag = 'input window, operand 14, single buffered']
    #allocation25 [shape = 'u8[512]{0}', space=vmem, size = 0x400, scoped, tag = 'input window, operand 15, single buffered']
    #allocation26 [shape = 's32[1]{0}', space=sflag, size = 0x4, scoped, tag = 'scoped memory for seq2seq_forward.3']
    #allocation27 [shape = 'u8[16384]{0}', space=vmem, size = 0x4000, scoped, tag = 'input window, operand 16, single buffered']
    #allocation28 [shape = 'u8[16384]{0}', space=vmem, size = 0x4000, scoped, tag = 'input window, operand 17, single buffered']
    #allocation29 [shape = 's32[1]{0}', space=sflag, size = 0x4, scoped, tag = 'scoped memory for seq2seq_forward.3']
    #allocation30 [shape = 'u8[16384]{0}', space=vmem, size = 0x4000, scoped, tag = 'input window, operand 18, single buffered']
    #allocation31 [shape = 'u8[512]{0}', space=vmem, size = 0x400, scoped, tag = 'input window, operand 19, single buffered']
    #allocation32 [shape = 's32[1]{0}', space=sflag, size = 0x4, scoped, tag = 'scoped memory for seq2seq_forward.3']
    #allocation33 [shape = 'u8[16384]{0}', space=vmem, size = 0x4000, scoped, tag = 'input window, operand 20, single buffered']
    #allocation34 [shape = 'u8[16384]{0}', space=vmem, size = 0x4000, scoped, tag = 'input window, operand 21, single buffered']
    #allocation35 [shape = 's32[1]{0}', space=sflag, size = 0x4, scoped, tag = 'scoped memory for seq2seq_forward.3']
    #allocation36 [shape = 'u8[16384]{0}', space=vmem, size = 0x4000, scoped, tag = 'input window, operand 22, single buffered']
    #allocation37 [shape = 'u8[512]{0}', space=vmem, size = 0x400, scoped, tag = 'input window, operand 23, single buffered']
    #allocation38 [shape = 's32[1]{0}', space=sflag, size = 0x4, scoped, tag = 'scoped memory for seq2seq_forward.3']
    #allocation39 [shape = 'u8[16384]{0}', space=vmem, size = 0x4000, scoped, tag = 'input window, operand 24, single buffered']
    #allocation40 [shape = 'u8[16384]{0}', space=vmem, size = 0x4000, scoped, tag = 'input window, operand 25, single buffered']
    #allocation41 [shape = 's32[1]{0}', space=sflag, size = 0x4, scoped, tag = 'scoped memory for seq2seq_forward.3']
    #allocation42 [shape = 'u8[16384]{0}', space=vmem, size = 0x4000, scoped, tag = 'input window, operand 26, single buffered']
    #allocation43 [shape = 'u8[512]{0}', space=vmem, size = 0x400, scoped, tag = 'input window, operand 27, single buffered']
    #allocation44 [shape = 's32[1]{0}', space=sflag, size = 0x4, scoped, tag = 'scoped memory for seq2seq_forward.3']
    #allocation45 [shape = 'u8[32768]{0}', space=vmem, size = 0x8000, scoped, tag = 'input window, operand 33, single buffered']
    #allocation46 [shape = 'u8[2048]{0}', space=vmem, size = 0x800, scoped, tag = 'input window, operand 35, single buffered']
    #allocation47 [shape = 's32[1]{0}', space=sflag, size = 0x4, scoped, tag = 'scoped memory for seq2seq_forward.3']
    %82 = vsyncpa [#allocation9], 0
    %83 = vsyncpa [#allocation11], 0
    %84 = vsyncpa [#allocation14], 0
    %85 = vsyncpa [#allocation17], 0
    %86 = vsyncpa [#allocation20], 0
    %87 = vsyncpa [#allocation23], 0
    %88 = vsyncpa [#allocation26], 0
    %89 = vsyncpa [#allocation29], 0
    %90 = vsyncpa [#allocation32], 0
    %91 = vsyncpa [#allocation35], 0
    %92 = vsyncpa [#allocation38], 0
    %93 = vsyncpa [#allocation41], 0
    %94 = vsyncpa [#allocation44], 0
    %95 = vsyncpa [#allocation47], 0
    loop: start=0, step=1, limit=9
    $region2: #{seq2seq_forward.3} parent=1 // loop_pre_header
      _
    $region3: #{seq2seq_forward.3} parent=1 // loop_header
      %s97 = sphi 0, %s101
      %p98 = scmp.ge.s32.totalorder %s97, 9
      %s105 = sphi 0, %s105
      %s107 = sphi 0, %s105
      %s108 = sphi 0, %s107
      %s122 = sphi 0, %s108
      %s126 = sphi 0, %s126
      %s128 = sphi 0, %s126
      %s129 = sphi 0, %s128
      %s143 = sphi 0, %s129
      %s147 = sphi 0, %s147
      %s149 = sphi 0, %s147
      %s150 = sphi 0, %s149
      %s164 = sphi 0, %s150
      %s168 = sphi 0, %s168
      %s170 = sphi 0, %s168
      %s171 = sphi 0, %s170
      %s185 = sphi 0, %s171
      %s189 = sphi 0, %s189
      %s191 = sphi 0, %s189
      %s192 = sphi 0, %s191
      %s206 = sphi 0, %s192
      %s210 = sphi 0, %s210
      %s212 = sphi 0, %s210
      %s213 = sphi 0, %s212
      %s227 = sphi 0, %s213
      %s231 = sphi 0, %s231
      %s233 = sphi 0, %s231
      %s234 = sphi 0, %s233
      %s248 = sphi 0, %s234
      %s252 = sphi 0, %s252
      %s254 = sphi 0, %s252
      %s255 = sphi 0, %s254
      %s269 = sphi 0, %s255
      %s273 = sphi 0, %s273
      %s275 = sphi 0, %s273
      %s276 = sphi 0, %s275
      %s290 = sphi 0, %s276
      %s294 = sphi 0, %s294
      %s296 = sphi 0, %s294
      %s297 = sphi 0, %s296
      %s311 = sphi 0, %s297
      %s315 = sphi 0, %s315
      %s317 = sphi 0, %s315
      %s318 = sphi 0, %s317
      %s332 = sphi 0, %s318
      %s336 = sphi 0, %s336
      %s338 = sphi 0, %s336
      %s339 = sphi 0, %s338
      %s353 = sphi 0, %s339
      %s357 = sphi 0, %s357
      %s359 = sphi 0, %s357
      %s360 = sphi 0, %s359
      %s374 = sphi 0, %s360
      %s378 = sphi 0, %s378
      %s380 = sphi 0, %s378
      %s381 = sphi 0, %s380
      %s395 = sphi 0, %s381
      %s399 = sphi 0, %s399
      %s401 = sphi 0, %s399
      %s402 = sphi 0, %s401
      %s416 = sphi 0, %s402
      %s420 = sphi 0, %s420
      %s422 = sphi 0, %s420
      %s423 = sphi 0, %s422
      %s437 = sphi 0, %s423
      %s441 = sphi 0, %s441
      %s443 = sphi 0, %s441
      %s444 = sphi 0, %s443
      %s458 = sphi 0, %s444
      %s462 = sphi 0, %s462
      %s464 = sphi 0, %s462
      %s465 = sphi 0, %s464
      %s479 = sphi 0, %s465
      %s483 = sphi 0, %s483
      %s485 = sphi 0, %s483
      %s486 = sphi 0, %s485
      %s500 = sphi 0, %s486
      %s504 = sphi 0, %s504
      %s506 = sphi 0, %s504
      %s507 = sphi 0, %s506
      %s521 = sphi 0, %s507
      %s525 = sphi 0, %s525
      %s527 = sphi 0, %s525
      %s528 = sphi 0, %s527
      %s542 = sphi 0, %s528
      %s546 = sphi 0, %s546
      %s548 = sphi 0, %s546
      %s549 = sphi 0, %s548
      %s563 = sphi 0, %s549
      %s567 = sphi 0, %s567
      %s569 = sphi 0, %s567
      %s570 = sphi 0, %s569
      %s584 = sphi 0, %s570
      %s588 = sphi 0, %s588
      %s590 = sphi 0, %s588
      %s591 = sphi 0, %s590
      %s605 = sphi 0, %s591
      %s609 = sphi 0, %s609
      %s611 = sphi 0, %s609
      %s612 = sphi 0, %s611
      %s626 = sphi 0, %s612
      %s630 = sphi 0, %s630
      %s632 = sphi 0, %s630
      %s633 = sphi 0, %s632
      %s647 = sphi 0, %s633
      %s651 = sphi 0, %s651
      %s653 = sphi 0, %s651
      %s654 = sphi 0, %s653
      %s668 = sphi 0, %s654
      %s672 = sphi 0, %s672
      %s674 = sphi 0, %s672
      %s675 = sphi 0, %s674
      %s689 = sphi 0, %s675
      %s693 = sphi 0, %s693
      %s695 = sphi 0, %s693
      %s696 = sphi 0, %s695
      %s710 = sphi 0, %s696
      %s714 = sphi 0, %s714
      %s716 = sphi 0, %s714
      %s717 = sphi 0, %s716
      %s731 = sphi 0, %s717
      %s735 = sphi 0, %s735
      %s737 = sphi 0, %s735
      %s738 = sphi 0, %s737
      %s752 = sphi 0, %s738
      %s756 = sphi 0, %s756
      %s758 = sphi 0, %s756
      %s759 = sphi 0, %s758
      %s773 = sphi 0, %s759
      %s777 = sphi 0, %s777
      %s779 = sphi 0, %s777
      %s780 = sphi 0, %s779
      %s794 = sphi 0, %s780
      %s798 = sphi 0, %s798
      %s800 = sphi 0, %s798
      %s801 = sphi 0, %s800
      %s815 = sphi 0, %s801
      %s819 = sphi 0, %s819
      %s821 = sphi 0, %s819
      %s822 = sphi 0, %s821
      %s836 = sphi 0, %s822
      %s840 = sphi 0, %s840
      %s842 = sphi 0, %s840
      %s843 = sphi 0, %s842
      %s857 = sphi 0, %s843
      %s861 = sphi 0, %s861
      %s863 = sphi 0, %s861
      %s864 = sphi 0, %s863
      %s878 = sphi 0, %s864
      %s882 = sphi 0, %s882
      %s884 = sphi 0, %s882
      %s885 = sphi 0, %s884
      %s899 = sphi 0, %s885
      %s905 = sphi 0, %s907
      %s908 = sphi 0, %s905
      %s909 = sphi 0, %s908
      %s925 = sphi 0, %s909
    $region4: #{seq2seq_forward.3} parent=1 // loop_header_branch
      %100 = sbr.rel (%p98) target = $region8
    $region5: #{seq2seq_forward.3} parent=1 // loop_body
      %s102 = ssub.s32 %s97, 1
      %s103 = ssub.s32 %s97, 2
      %s104 = sadd.s32 %s97, 1
      %s106 = sadd.s32 %s105, 1
      %p109 = scmp.eq.s32.totalorder %s97, 6
      %p110 = scmp.ne.s32.totalorder %s105, %s107
      %p111 = scmp.eq.s32.totalorder %s97, 0
      %p112 = por %p110, %p111
      %p113 = scmp.ne.s32.totalorder %s105, %s107
      %p114 = scmp.eq.s32.totalorder %s102, 6
      %p115 = por %p113, %p114
      %p116 = scmp.ne.s32.totalorder %s107, %s108
      %p117 = scmp.eq.s32.totalorder %s102, 0
      %p118 = por %p116, %p117
      %p119 = scmp.ne.s32.totalorder %s107, %s108
      %p120 = scmp.eq.s32.totalorder %s103, 6
      %p121 = por %p119, %p120
      %p123 = scmp.ne.s32.totalorder %s108, %s122
      %p124 = scmp.eq.s32.totalorder %s103, 0
      %p125 = por %p123, %p124
      %s127 = sadd.s32 %s126, 1
      %p130 = scmp.eq.s32.totalorder %s97, 6
      %p131 = scmp.ne.s32.totalorder %s126, %s128
      %p132 = scmp.eq.s32.totalorder %s97, 0
      %p133 = por %p131, %p132
      %p134 = scmp.ne.s32.totalorder %s126, %s128
      %p135 = scmp.eq.s32.totalorder %s102, 6
      %p136 = por %p134, %p135
      %p137 = scmp.ne.s32.totalorder %s128, %s129
      %p138 = scmp.eq.s32.totalorder %s102, 0
      %p139 = por %p137, %p138
      %p140 = scmp.ne.s32.totalorder %s128, %s129
      %p141 = scmp.eq.s32.totalorder %s103, 6
      %p142 = por %p140, %p141
      %p144 = scmp.ne.s32.totalorder %s129, %s143
      %p145 = scmp.eq.s32.totalorder %s103, 0
      %p146 = por %p144, %p145
      %s148 = sadd.s32 %s147, 1
      %p151 = scmp.eq.s32.totalorder %s97, 6
      %p152 = scmp.ne.s32.totalorder %s147, %s149
      %p153 = scmp.eq.s32.totalorder %s97, 0
      %p154 = por %p152, %p153
      %p155 = scmp.ne.s32.totalorder %s147, %s149
      %p156 = scmp.eq.s32.totalorder %s102, 6
      %p157 = por %p155, %p156
      %p158 = scmp.ne.s32.totalorder %s149, %s150
      %p159 = scmp.eq.s32.totalorder %s102, 0
      %p160 = por %p158, %p159
      %p161 = scmp.ne.s32.totalorder %s149, %s150
      %p162 = scmp.eq.s32.totalorder %s103, 6
      %p163 = por %p161, %p162
      %p165 = scmp.ne.s32.totalorder %s150, %s164
      %p166 = scmp.eq.s32.totalorder %s103, 0
      %p167 = por %p165, %p166
      %s169 = sadd.s32 %s168, 1
      %p172 = scmp.eq.s32.totalorder %s97, 6
      %p173 = scmp.ne.s32.totalorder %s168, %s170
      %p174 = scmp.eq.s32.totalorder %s97, 0
      %p175 = por %p173, %p174
      %p176 = scmp.ne.s32.totalorder %s168, %s170
      %p177 = scmp.eq.s32.totalorder %s102, 6
      %p178 = por %p176, %p177
      %p179 = scmp.ne.s32.totalorder %s170, %s171
      %p180 = scmp.eq.s32.totalorder %s102, 0
      %p181 = por %p179, %p180
      %p182 = scmp.ne.s32.totalorder %s170, %s171
      %p183 = scmp.eq.s32.totalorder %s103, 6
      %p184 = por %p182, %p183
      %p186 = scmp.ne.s32.totalorder %s171, %s185
      %p187 = scmp.eq.s32.totalorder %s103, 0
      %p188 = por %p186, %p187
      %s190 = sadd.s32 %s189, 1
      %p193 = scmp.eq.s32.totalorder %s97, 6
      %p194 = scmp.ne.s32.totalorder %s189, %s191
      %p195 = scmp.eq.s32.totalorder %s97, 0
      %p196 = por %p194, %p195
      %p197 = scmp.ne.s32.totalorder %s189, %s191
      %p198 = scmp.eq.s32.totalorder %s102, 6
      %p199 = por %p197, %p198
      %p200 = scmp.ne.s32.totalorder %s191, %s192
      %p201 = scmp.eq.s32.totalorder %s102, 0
      %p202 = por %p200, %p201
      %p203 = scmp.ne.s32.totalorder %s191, %s192
      %p204 = scmp.eq.s32.totalorder %s103, 6
      %p205 = por %p203, %p204
      %p207 = scmp.ne.s32.totalorder %s192, %s206
      %p208 = scmp.eq.s32.totalorder %s103, 0
      %p209 = por %p207, %p208
      %s211 = sadd.s32 %s210, 1
      %p214 = scmp.eq.s32.totalorder %s97, 6
      %p215 = scmp.ne.s32.totalorder %s210, %s212
      %p216 = scmp.eq.s32.totalorder %s97, 0
      %p217 = por %p215, %p216
      %p218 = scmp.ne.s32.totalorder %s210, %s212
      %p219 = scmp.eq.s32.totalorder %s102, 6
      %p220 = por %p218, %p219
      %p221 = scmp.ne.s32.totalorder %s212, %s213
      %p222 = scmp.eq.s32.totalorder %s102, 0
      %p223 = por %p221, %p222
      %p224 = scmp.ne.s32.totalorder %s212, %s213
      %p225 = scmp.eq.s32.totalorder %s103, 6
      %p226 = por %p224, %p225
      %p228 = scmp.ne.s32.totalorder %s213, %s227
      %p229 = scmp.eq.s32.totalorder %s103, 0
      %p230 = por %p228, %p229
      %s232 = sadd.s32 %s231, 1
      %p235 = scmp.eq.s32.totalorder %s97, 6
      %p236 = scmp.ne.s32.totalorder %s231, %s233
      %p237 = scmp.eq.s32.totalorder %s97, 0
      %p238 = por %p236, %p237
      %p239 = scmp.ne.s32.totalorder %s231, %s233
      %p240 = scmp.eq.s32.totalorder %s102, 6
      %p241 = por %p239, %p240
      %p242 = scmp.ne.s32.totalorder %s233, %s234
      %p243 = scmp.eq.s32.totalorder %s102, 0
      %p244 = por %p242, %p243
      %p245 = scmp.ne.s32.totalorder %s233, %s234
      %p246 = scmp.eq.s32.totalorder %s103, 6
      %p247 = por %p245, %p246
      %p249 = scmp.ne.s32.totalorder %s234, %s248
      %p250 = scmp.eq.s32.totalorder %s103, 0
      %p251 = por %p249, %p250
      %s253 = sadd.s32 %s252, 1
      %p256 = scmp.eq.s32.totalorder %s97, 6
      %p257 = scmp.ne.s32.totalorder %s252, %s254
      %p258 = scmp.eq.s32.totalorder %s97, 0
      %p259 = por %p257, %p258
      %p260 = scmp.ne.s32.totalorder %s252, %s254
      %p261 = scmp.eq.s32.totalorder %s102, 6
      %p262 = por %p260, %p261
      %p263 = scmp.ne.s32.totalorder %s254, %s255
      %p264 = scmp.eq.s32.totalorder %s102, 0
      %p265 = por %p263, %p264
      %p266 = scmp.ne.s32.totalorder %s254, %s255
      %p267 = scmp.eq.s32.totalorder %s103, 6
      %p268 = por %p266, %p267
      %p270 = scmp.ne.s32.totalorder %s255, %s269
      %p271 = scmp.eq.s32.totalorder %s103, 0
      %p272 = por %p270, %p271
      %s274 = sadd.s32 %s273, 1
      %p277 = scmp.eq.s32.totalorder %s97, 6
      %p278 = scmp.ne.s32.totalorder %s273, %s275
      %p279 = scmp.eq.s32.totalorder %s97, 0
      %p280 = por %p278, %p279
      %p281 = scmp.ne.s32.totalorder %s273, %s275
      %p282 = scmp.eq.s32.totalorder %s102, 6
      %p283 = por %p281, %p282
      %p284 = scmp.ne.s32.totalorder %s275, %s276
      %p285 = scmp.eq.s32.totalorder %s102, 0
      %p286 = por %p284, %p285
      %p287 = scmp.ne.s32.totalorder %s275, %s276
      %p288 = scmp.eq.s32.totalorder %s103, 6
      %p289 = por %p287, %p288
      %p291 = scmp.ne.s32.totalorder %s276, %s290
      %p292 = scmp.eq.s32.totalorder %s103, 0
      %p293 = por %p291, %p292
      %s295 = sadd.s32 %s294, 1
      %p298 = scmp.eq.s32.totalorder %s97, 6
      %p299 = scmp.ne.s32.totalorder %s294, %s296
      %p300 = scmp.eq.s32.totalorder %s97, 0
      %p301 = por %p299, %p300
      %p302 = scmp.ne.s32.totalorder %s294, %s296
      %p303 = scmp.eq.s32.totalorder %s102, 6
      %p304 = por %p302, %p303
      %p305 = scmp.ne.s32.totalorder %s296, %s297
      %p306 = scmp.eq.s32.totalorder %s102, 0
      %p307 = por %p305, %p306
      %p308 = scmp.ne.s32.totalorder %s296, %s297
      %p309 = scmp.eq.s32.totalorder %s103, 6
      %p310 = por %p308, %p309
      %p312 = scmp.ne.s32.totalorder %s297, %s311
      %p313 = scmp.eq.s32.totalorder %s103, 0
      %p314 = por %p312, %p313
      %s316 = sadd.s32 %s315, 1
      %p319 = scmp.eq.s32.totalorder %s97, 6
      %p320 = scmp.ne.s32.totalorder %s315, %s317
      %p321 = scmp.eq.s32.totalorder %s97, 0
      %p322 = por %p320, %p321
      %p323 = scmp.ne.s32.totalorder %s315, %s317
      %p324 = scmp.eq.s32.totalorder %s102, 6
      %p325 = por %p323, %p324
      %p326 = scmp.ne.s32.totalorder %s317, %s318
      %p327 = scmp.eq.s32.totalorder %s102, 0
      %p328 = por %p326, %p327
      %p329 = scmp.ne.s32.totalorder %s317, %s318
      %p330 = scmp.eq.s32.totalorder %s103, 6
      %p331 = por %p329, %p330
      %p333 = scmp.ne.s32.totalorder %s318, %s332
      %p334 = scmp.eq.s32.totalorder %s103, 0
      %p335 = por %p333, %p334
      %s337 = sadd.s32 %s336, 1
      %p340 = scmp.eq.s32.totalorder %s97, 6
      %p341 = scmp.ne.s32.totalorder %s336, %s338
      %p342 = scmp.eq.s32.totalorder %s97, 0
      %p343 = por %p341, %p342
      %p344 = scmp.ne.s32.totalorder %s336, %s338
      %p345 = scmp.eq.s32.totalorder %s102, 6
      %p346 = por %p344, %p345
      %p347 = scmp.ne.s32.totalorder %s338, %s339
      %p348 = scmp.eq.s32.totalorder %s102, 0
      %p349 = por %p347, %p348
      %p350 = scmp.ne.s32.totalorder %s338, %s339
      %p351 = scmp.eq.s32.totalorder %s103, 6
      %p352 = por %p350, %p351
      %p354 = scmp.ne.s32.totalorder %s339, %s353
      %p355 = scmp.eq.s32.totalorder %s103, 0
      %p356 = por %p354, %p355
      %s358 = sadd.s32 %s357, 1
      %p361 = scmp.eq.s32.totalorder %s97, 6
      %p362 = scmp.ne.s32.totalorder %s357, %s359
      %p363 = scmp.eq.s32.totalorder %s97, 0
      %p364 = por %p362, %p363
      %p365 = scmp.ne.s32.totalorder %s357, %s359
      %p366 = scmp.eq.s32.totalorder %s102, 6
      %p367 = por %p365, %p366
      %p368 = scmp.ne.s32.totalorder %s359, %s360
      %p369 = scmp.eq.s32.totalorder %s102, 0
      %p370 = por %p368, %p369
      %p371 = scmp.ne.s32.totalorder %s359, %s360
      %p372 = scmp.eq.s32.totalorder %s103, 6
      %p373 = por %p371, %p372
      %p375 = scmp.ne.s32.totalorder %s360, %s374
      %p376 = scmp.eq.s32.totalorder %s103, 0
      %p377 = por %p375, %p376
      %s379 = sadd.s32 %s378, 1
      %p382 = scmp.eq.s32.totalorder %s97, 6
      %p383 = scmp.ne.s32.totalorder %s378, %s380
      %p384 = scmp.eq.s32.totalorder %s97, 0
      %p385 = por %p383, %p384
      %p386 = scmp.ne.s32.totalorder %s378, %s380
      %p387 = scmp.eq.s32.totalorder %s102, 6
      %p388 = por %p386, %p387
      %p389 = scmp.ne.s32.totalorder %s380, %s381
      %p390 = scmp.eq.s32.totalorder %s102, 0
      %p391 = por %p389, %p390
      %p392 = scmp.ne.s32.totalorder %s380, %s381
      %p393 = scmp.eq.s32.totalorder %s103, 6
      %p394 = por %p392, %p393
      %p396 = scmp.ne.s32.totalorder %s381, %s395
      %p397 = scmp.eq.s32.totalorder %s103, 0
      %p398 = por %p396, %p397
      %s400 = sadd.s32 %s399, 1
      %p403 = scmp.eq.s32.totalorder %s97, 6
      %p404 = scmp.ne.s32.totalorder %s399, %s401
      %p405 = scmp.eq.s32.totalorder %s97, 0
      %p406 = por %p404, %p405
      %p407 = scmp.ne.s32.totalorder %s399, %s401
      %p408 = scmp.eq.s32.totalorder %s102, 6
      %p409 = por %p407, %p408
      %p410 = scmp.ne.s32.totalorder %s401, %s402
      %p411 = scmp.eq.s32.totalorder %s102, 0
      %p412 = por %p410, %p411
      %p413 = scmp.ne.s32.totalorder %s401, %s402
      %p414 = scmp.eq.s32.totalorder %s103, 6
      %p415 = por %p413, %p414
      %p417 = scmp.ne.s32.totalorder %s402, %s416
      %p418 = scmp.eq.s32.totalorder %s103, 0
      %p419 = por %p417, %p418
      %s421 = sadd.s32 %s420, 1
      %p424 = scmp.eq.s32.totalorder %s97, 6
      %p425 = scmp.ne.s32.totalorder %s420, %s422
      %p426 = scmp.eq.s32.totalorder %s97, 0
      %p427 = por %p425, %p426
      %p428 = scmp.ne.s32.totalorder %s420, %s422
      %p429 = scmp.eq.s32.totalorder %s102, 6
      %p430 = por %p428, %p429
      %p431 = scmp.ne.s32.totalorder %s422, %s423
      %p432 = scmp.eq.s32.totalorder %s102, 0
      %p433 = por %p431, %p432
      %p434 = scmp.ne.s32.totalorder %s422, %s423
      %p435 = scmp.eq.s32.totalorder %s103, 6
      %p436 = por %p434, %p435
      %p438 = scmp.ne.s32.totalorder %s423, %s437
      %p439 = scmp.eq.s32.totalorder %s103, 0
      %p440 = por %p438, %p439
      %s442 = sadd.s32 %s441, 1
      %p445 = scmp.eq.s32.totalorder %s97, 6
      %p446 = scmp.ne.s32.totalorder %s441, %s443
      %p447 = scmp.eq.s32.totalorder %s97, 0
      %p448 = por %p446, %p447
      %p449 = scmp.ne.s32.totalorder %s441, %s443
      %p450 = scmp.eq.s32.totalorder %s102, 6
      %p451 = por %p449, %p450
      %p452 = scmp.ne.s32.totalorder %s443, %s444
      %p453 = scmp.eq.s32.totalorder %s102, 0
      %p454 = por %p452, %p453
      %p455 = scmp.ne.s32.totalorder %s443, %s444
      %p456 = scmp.eq.s32.totalorder %s103, 6
      %p457 = por %p455, %p456
      %p459 = scmp.ne.s32.totalorder %s444, %s458
      %p460 = scmp.eq.s32.totalorder %s103, 0
      %p461 = por %p459, %p460
      %s463 = sadd.s32 %s462, 1
      %p466 = scmp.eq.s32.totalorder %s97, 6
      %p467 = scmp.ne.s32.totalorder %s462, %s464
      %p468 = scmp.eq.s32.totalorder %s97, 0
      %p469 = por %p467, %p468
      %p470 = scmp.ne.s32.totalorder %s462, %s464
      %p471 = scmp.eq.s32.totalorder %s102, 6
      %p472 = por %p470, %p471
      %p473 = scmp.ne.s32.totalorder %s464, %s465
      %p474 = scmp.eq.s32.totalorder %s102, 0
      %p475 = por %p473, %p474
      %p476 = scmp.ne.s32.totalorder %s464, %s465
      %p477 = scmp.eq.s32.totalorder %s103, 6
      %p478 = por %p476, %p477
      %p480 = scmp.ne.s32.totalorder %s465, %s479
      %p481 = scmp.eq.s32.totalorder %s103, 0
      %p482 = por %p480, %p481
      %s484 = sadd.s32 %s483, 1
      %p487 = scmp.eq.s32.totalorder %s97, 6
      %p488 = scmp.ne.s32.totalorder %s483, %s485
      %p489 = scmp.eq.s32.totalorder %s97, 0
      %p490 = por %p488, %p489
      %p491 = scmp.ne.s32.totalorder %s483, %s485
      %p492 = scmp.eq.s32.totalorder %s102, 6
      %p493 = por %p491, %p492
      %p494 = scmp.ne.s32.totalorder %s485, %s486
      %p495 = scmp.eq.s32.totalorder %s102, 0
      %p496 = por %p494, %p495
      %p497 = scmp.ne.s32.totalorder %s485, %s486
      %p498 = scmp.eq.s32.totalorder %s103, 6
      %p499 = por %p497, %p498
      %p501 = scmp.ne.s32.totalorder %s486, %s500
      %p502 = scmp.eq.s32.totalorder %s103, 0
      %p503 = por %p501, %p502
      %s505 = sadd.s32 %s504, 1
      %p508 = scmp.eq.s32.totalorder %s97, 6
      %p509 = scmp.ne.s32.totalorder %s504, %s506
      %p510 = scmp.eq.s32.totalorder %s97, 0
      %p511 = por %p509, %p510
      %p512 = scmp.ne.s32.totalorder %s504, %s506
      %p513 = scmp.eq.s32.totalorder %s102, 6
      %p514 = por %p512, %p513
      %p515 = scmp.ne.s32.totalorder %s506, %s507
      %p516 = scmp.eq.s32.totalorder %s102, 0
      %p517 = por %p515, %p516
      %p518 = scmp.ne.s32.totalorder %s506, %s507
      %p519 = scmp.eq.s32.totalorder %s103, 6
      %p520 = por %p518, %p519
      %p522 = scmp.ne.s32.totalorder %s507, %s521
      %p523 = scmp.eq.s32.totalorder %s103, 0
      %p524 = por %p522, %p523
      %s526 = sadd.s32 %s525, 1
      %p529 = scmp.eq.s32.totalorder %s97, 6
      %p530 = scmp.ne.s32.totalorder %s525, %s527
      %p531 = scmp.eq.s32.totalorder %s97, 0
      %p532 = por %p530, %p531
      %p533 = scmp.ne.s32.totalorder %s525, %s527
      %p534 = scmp.eq.s32.totalorder %s102, 6
      %p535 = por %p533, %p534
      %p536 = scmp.ne.s32.totalorder %s527, %s528
      %p537 = scmp.eq.s32.totalorder %s102, 0
      %p538 = por %p536, %p537
      %p539 = scmp.ne.s32.totalorder %s527, %s528
      %p540 = scmp.eq.s32.totalorder %s103, 6
      %p541 = por %p539, %p540
      %p543 = scmp.ne.s32.totalorder %s528, %s542
      %p544 = scmp.eq.s32.totalorder %s103, 0
      %p545 = por %p543, %p544
      %s547 = sadd.s32 %s546, 1
      %p550 = scmp.eq.s32.totalorder %s97, 6
      %p551 = scmp.ne.s32.totalorder %s546, %s548
      %p552 = scmp.eq.s32.totalorder %s97, 0
      %p553 = por %p551, %p552
      %p554 = scmp.ne.s32.totalorder %s546, %s548
      %p555 = scmp.eq.s32.totalorder %s102, 6
      %p556 = por %p554, %p555
      %p557 = scmp.ne.s32.totalorder %s548, %s549
      %p558 = scmp.eq.s32.totalorder %s102, 0
      %p559 = por %p557, %p558
      %p560 = scmp.ne.s32.totalorder %s548, %s549
      %p561 = scmp.eq.s32.totalorder %s103, 6
      %p562 = por %p560, %p561
      %p564 = scmp.ne.s32.totalorder %s549, %s563
      %p565 = scmp.eq.s32.totalorder %s103, 0
      %p566 = por %p564, %p565
      %s568 = sadd.s32 %s567, 1
      %p571 = scmp.eq.s32.totalorder %s97, 6
      %p572 = scmp.ne.s32.totalorder %s567, %s569
      %p573 = scmp.eq.s32.totalorder %s97, 0
      %p574 = por %p572, %p573
      %p575 = scmp.ne.s32.totalorder %s567, %s569
      %p576 = scmp.eq.s32.totalorder %s102, 6
      %p577 = por %p575, %p576
      %p578 = scmp.ne.s32.totalorder %s569, %s570
      %p579 = scmp.eq.s32.totalorder %s102, 0
      %p580 = por %p578, %p579
      %p581 = scmp.ne.s32.totalorder %s569, %s570
      %p582 = scmp.eq.s32.totalorder %s103, 6
      %p583 = por %p581, %p582
      %p585 = scmp.ne.s32.totalorder %s570, %s584
      %p586 = scmp.eq.s32.totalorder %s103, 0
      %p587 = por %p585, %p586
      %s589 = sadd.s32 %s588, 1
      %p592 = scmp.eq.s32.totalorder %s97, 6
      %p593 = scmp.ne.s32.totalorder %s588, %s590
      %p594 = scmp.eq.s32.totalorder %s97, 0
      %p595 = por %p593, %p594
      %p596 = scmp.ne.s32.totalorder %s588, %s590
      %p597 = scmp.eq.s32.totalorder %s102, 6
      %p598 = por %p596, %p597
      %p599 = scmp.ne.s32.totalorder %s590, %s591
      %p600 = scmp.eq.s32.totalorder %s102, 0
      %p601 = por %p599, %p600
      %p602 = scmp.ne.s32.totalorder %s590, %s591
      %p603 = scmp.eq.s32.totalorder %s103, 6
      %p604 = por %p602, %p603
      %p606 = scmp.ne.s32.totalorder %s591, %s605
      %p607 = scmp.eq.s32.totalorder %s103, 0
      %p608 = por %p606, %p607
      %s610 = sadd.s32 %s609, 1
      %p613 = scmp.eq.s32.totalorder %s97, 6
      %p614 = scmp.ne.s32.totalorder %s609, %s611
      %p615 = scmp.eq.s32.totalorder %s97, 0
      %p616 = por %p614, %p615
      %p617 = scmp.ne.s32.totalorder %s609, %s611
      %p618 = scmp.eq.s32.totalorder %s102, 6
      %p619 = por %p617, %p618
      %p620 = scmp.ne.s32.totalorder %s611, %s612
      %p621 = scmp.eq.s32.totalorder %s102, 0
      %p622 = por %p620, %p621
      %p623 = scmp.ne.s32.totalorder %s611, %s612
      %p624 = scmp.eq.s32.totalorder %s103, 6
      %p625 = por %p623, %p624
      %p627 = scmp.ne.s32.totalorder %s612, %s626
      %p628 = scmp.eq.s32.totalorder %s103, 0
      %p629 = por %p627, %p628
      %s631 = sadd.s32 %s630, 1
      %p634 = scmp.eq.s32.totalorder %s97, 6
      %p635 = scmp.ne.s32.totalorder %s630, %s632
      %p636 = scmp.eq.s32.totalorder %s97, 0
      %p637 = por %p635, %p636
      %p638 = scmp.ne.s32.totalorder %s630, %s632
      %p639 = scmp.eq.s32.totalorder %s102, 6
      %p640 = por %p638, %p639
      %p641 = scmp.ne.s32.totalorder %s632, %s633
      %p642 = scmp.eq.s32.totalorder %s102, 0
      %p643 = por %p641, %p642
      %p644 = scmp.ne.s32.totalorder %s632, %s633
      %p645 = scmp.eq.s32.totalorder %s103, 6
      %p646 = por %p644, %p645
      %p648 = scmp.ne.s32.totalorder %s633, %s647
      %p649 = scmp.eq.s32.totalorder %s103, 0
      %p650 = por %p648, %p649
      %s652 = sadd.s32 %s651, 1
      %p655 = scmp.eq.s32.totalorder %s97, 6
      %p656 = scmp.ne.s32.totalorder %s651, %s653
      %p657 = scmp.eq.s32.totalorder %s97, 0
      %p658 = por %p656, %p657
      %p659 = scmp.ne.s32.totalorder %s651, %s653
      %p660 = scmp.eq.s32.totalorder %s102, 6
      %p661 = por %p659, %p660
      %p662 = scmp.ne.s32.totalorder %s653, %s654
      %p663 = scmp.eq.s32.totalorder %s102, 0
      %p664 = por %p662, %p663
      %p665 = scmp.ne.s32.totalorder %s653, %s654
      %p666 = scmp.eq.s32.totalorder %s103, 6
      %p667 = por %p665, %p666
      %p669 = scmp.ne.s32.totalorder %s654, %s668
      %p670 = scmp.eq.s32.totalorder %s103, 0
      %p671 = por %p669, %p670
      %s673 = sadd.s32 %s672, 1
      %p676 = scmp.eq.s32.totalorder %s97, 6
      %p677 = scmp.ne.s32.totalorder %s672, %s674
      %p678 = scmp.eq.s32.totalorder %s97, 0
      %p679 = por %p677, %p678
      %p680 = scmp.ne.s32.totalorder %s672, %s674
      %p681 = scmp.eq.s32.totalorder %s102, 6
      %p682 = por %p680, %p681
      %p683 = scmp.ne.s32.totalorder %s674, %s675
      %p684 = scmp.eq.s32.totalorder %s102, 0
      %p685 = por %p683, %p684
      %p686 = scmp.ne.s32.totalorder %s674, %s675
      %p687 = scmp.eq.s32.totalorder %s103, 6
      %p688 = por %p686, %p687
      %p690 = scmp.ne.s32.totalorder %s675, %s689
      %p691 = scmp.eq.s32.totalorder %s103, 0
      %p692 = por %p690, %p691
      %s694 = sadd.s32 %s693, 1
      %p697 = scmp.eq.s32.totalorder %s97, 6
      %p698 = scmp.ne.s32.totalorder %s693, %s695
      %p699 = scmp.eq.s32.totalorder %s97, 0
      %p700 = por %p698, %p699
      %p701 = scmp.ne.s32.totalorder %s693, %s695
      %p702 = scmp.eq.s32.totalorder %s102, 6
      %p703 = por %p701, %p702
      %p704 = scmp.ne.s32.totalorder %s695, %s696
      %p705 = scmp.eq.s32.totalorder %s102, 0
      %p706 = por %p704, %p705
      %p707 = scmp.ne.s32.totalorder %s695, %s696
      %p708 = scmp.eq.s32.totalorder %s103, 6
      %p709 = por %p707, %p708
      %p711 = scmp.ne.s32.totalorder %s696, %s710
      %p712 = scmp.eq.s32.totalorder %s103, 0
      %p713 = por %p711, %p712
      %s715 = sadd.s32 %s714, 1
      %p718 = scmp.eq.s32.totalorder %s97, 6
      %p719 = scmp.ne.s32.totalorder %s714, %s716
      %p720 = scmp.eq.s32.totalorder %s97, 0
      %p721 = por %p719, %p720
      %p722 = scmp.ne.s32.totalorder %s714, %s716
      %p723 = scmp.eq.s32.totalorder %s102, 6
      %p724 = por %p722, %p723
      %p725 = scmp.ne.s32.totalorder %s716, %s717
      %p726 = scmp.eq.s32.totalorder %s102, 0
      %p727 = por %p725, %p726
      %p728 = scmp.ne.s32.totalorder %s716, %s717
      %p729 = scmp.eq.s32.totalorder %s103, 6
      %p730 = por %p728, %p729
      %p732 = scmp.ne.s32.totalorder %s717, %s731
      %p733 = scmp.eq.s32.totalorder %s103, 0
      %p734 = por %p732, %p733
      %s736 = sadd.s32 %s735, 1
      %p739 = scmp.eq.s32.totalorder %s97, 6
      %p740 = scmp.ne.s32.totalorder %s735, %s737
      %p741 = scmp.eq.s32.totalorder %s97, 0
      %p742 = por %p740, %p741
      %p743 = scmp.ne.s32.totalorder %s735, %s737
      %p744 = scmp.eq.s32.totalorder %s102, 6
      %p745 = por %p743, %p744
      %p746 = scmp.ne.s32.totalorder %s737, %s738
      %p747 = scmp.eq.s32.totalorder %s102, 0
      %p748 = por %p746, %p747
      %p749 = scmp.ne.s32.totalorder %s737, %s738
      %p750 = scmp.eq.s32.totalorder %s103, 6
      %p751 = por %p749, %p750
      %p753 = scmp.ne.s32.totalorder %s738, %s752
      %p754 = scmp.eq.s32.totalorder %s103, 0
      %p755 = por %p753, %p754
      %s757 = sadd.s32 %s756, 1
      %p760 = scmp.eq.s32.totalorder %s97, 6
      %p761 = scmp.ne.s32.totalorder %s756, %s758
      %p762 = scmp.eq.s32.totalorder %s97, 0
      %p763 = por %p761, %p762
      %p764 = scmp.ne.s32.totalorder %s756, %s758
      %p765 = scmp.eq.s32.totalorder %s102, 6
      %p766 = por %p764, %p765
      %p767 = scmp.ne.s32.totalorder %s758, %s759
      %p768 = scmp.eq.s32.totalorder %s102, 0
      %p769 = por %p767, %p768
      %p770 = scmp.ne.s32.totalorder %s758, %s759
      %p771 = scmp.eq.s32.totalorder %s103, 6
      %p772 = por %p770, %p771
      %p774 = scmp.ne.s32.totalorder %s759, %s773
      %p775 = scmp.eq.s32.totalorder %s103, 0
      %p776 = por %p774, %p775
      %s778 = sadd.s32 %s777, 1
      %p781 = scmp.eq.s32.totalorder %s97, 6
      %p782 = scmp.ne.s32.totalorder %s777, %s779
      %p783 = scmp.eq.s32.totalorder %s97, 0
      %p784 = por %p782, %p783
      %p785 = scmp.ne.s32.totalorder %s777, %s779
      %p786 = scmp.eq.s32.totalorder %s102, 6
      %p787 = por %p785, %p786
      %p788 = scmp.ne.s32.totalorder %s779, %s780
      %p789 = scmp.eq.s32.totalorder %s102, 0
      %p790 = por %p788, %p789
      %p791 = scmp.ne.s32.totalorder %s779, %s780
      %p792 = scmp.eq.s32.totalorder %s103, 6
      %p793 = por %p791, %p792
      %p795 = scmp.ne.s32.totalorder %s780, %s794
      %p796 = scmp.eq.s32.totalorder %s103, 0
      %p797 = por %p795, %p796
      %s799 = sadd.s32 %s798, 1
      %p802 = scmp.eq.s32.totalorder %s97, 6
      %p803 = scmp.ne.s32.totalorder %s798, %s800
      %p804 = scmp.eq.s32.totalorder %s97, 0
      %p805 = por %p803, %p804
      %p806 = scmp.ne.s32.totalorder %s798, %s800
      %p807 = scmp.eq.s32.totalorder %s102, 6
      %p808 = por %p806, %p807
      %p809 = scmp.ne.s32.totalorder %s800, %s801
      %p810 = scmp.eq.s32.totalorder %s102, 0
      %p811 = por %p809, %p810
      %p812 = scmp.ne.s32.totalorder %s800, %s801
      %p813 = scmp.eq.s32.totalorder %s103, 6
      %p814 = por %p812, %p813
      %p816 = scmp.ne.s32.totalorder %s801, %s815
      %p817 = scmp.eq.s32.totalorder %s103, 0
      %p818 = por %p816, %p817
      %s820 = sadd.s32 %s819, 1
      %p823 = scmp.eq.s32.totalorder %s97, 6
      %p824 = scmp.ne.s32.totalorder %s819, %s821
      %p825 = scmp.eq.s32.totalorder %s97, 0
      %p826 = por %p824, %p825
      %p827 = scmp.ne.s32.totalorder %s819, %s821
      %p828 = scmp.eq.s32.totalorder %s102, 6
      %p829 = por %p827, %p828
      %p830 = scmp.ne.s32.totalorder %s821, %s822
      %p831 = scmp.eq.s32.totalorder %s102, 0
      %p832 = por %p830, %p831
      %p833 = scmp.ne.s32.totalorder %s821, %s822
      %p834 = scmp.eq.s32.totalorder %s103, 6
      %p835 = por %p833, %p834
      %p837 = scmp.ne.s32.totalorder %s822, %s836
      %p838 = scmp.eq.s32.totalorder %s103, 0
      %p839 = por %p837, %p838
      %s841 = sadd.s32 %s840, 1
      %p844 = scmp.eq.s32.totalorder %s97, 6
      %p845 = scmp.ne.s32.totalorder %s840, %s842
      %p846 = scmp.eq.s32.totalorder %s97, 0
      %p847 = por %p845, %p846
      %p848 = scmp.ne.s32.totalorder %s840, %s842
      %p849 = scmp.eq.s32.totalorder %s102, 6
      %p850 = por %p848, %p849
      %p851 = scmp.ne.s32.totalorder %s842, %s843
      %p852 = scmp.eq.s32.totalorder %s102, 0
      %p853 = por %p851, %p852
      %p854 = scmp.ne.s32.totalorder %s842, %s843
      %p855 = scmp.eq.s32.totalorder %s103, 6
      %p856 = por %p854, %p855
      %p858 = scmp.ne.s32.totalorder %s843, %s857
      %p859 = scmp.eq.s32.totalorder %s103, 0
      %p860 = por %p858, %p859
      %s862 = sadd.s32 %s861, 1
      %p865 = scmp.eq.s32.totalorder %s97, 6
      %p866 = scmp.ne.s32.totalorder %s861, %s863
      %p867 = scmp.eq.s32.totalorder %s97, 0
      %p868 = por %p866, %p867
      %p869 = scmp.ne.s32.totalorder %s861, %s863
      %p870 = scmp.eq.s32.totalorder %s102, 6
      %p871 = por %p869, %p870
      %p872 = scmp.ne.s32.totalorder %s863, %s864
      %p873 = scmp.eq.s32.totalorder %s102, 0
      %p874 = por %p872, %p873
      %p875 = scmp.ne.s32.totalorder %s863, %s864
      %p876 = scmp.eq.s32.totalorder %s103, 6
      %p877 = por %p875, %p876
      %p879 = scmp.ne.s32.totalorder %s864, %s878
      %p880 = scmp.eq.s32.totalorder %s103, 0
      %p881 = por %p879, %p880
      %s883 = sadd.s32 %s882, 1
      %p886 = scmp.eq.s32.totalorder %s97, 6
      %p887 = scmp.ne.s32.totalorder %s882, %s884
      %p888 = scmp.eq.s32.totalorder %s97, 0
      %p889 = por %p887, %p888
      %p890 = scmp.ne.s32.totalorder %s882, %s884
      %p891 = scmp.eq.s32.totalorder %s102, 6
      %p892 = por %p890, %p891
      %p893 = scmp.ne.s32.totalorder %s884, %s885
      %p894 = scmp.eq.s32.totalorder %s102, 0
      %p895 = por %p893, %p894
      %p896 = scmp.ne.s32.totalorder %s884, %s885
      %p897 = scmp.eq.s32.totalorder %s103, 6
      %p898 = por %p896, %p897
      %p900 = scmp.ne.s32.totalorder %s885, %s899
      %p901 = scmp.eq.s32.totalorder %s103, 0
      %p902 = por %p900, %p901
      %s903 = ssub.s32 %s97, %s104
      %p904 = scmp.eq.s32.totalorder %s903, 0
      %s906 = sadd.s32 %s905, 1
      %s907 = scalar_select %p904, %s905, %s906
      %p910 = pneg %p904
      %p911 = scmp.eq.s32.totalorder %s97, 6
      %p912 = por %p910, %p911
      %p913 = scmp.ne.s32.totalorder %s905, %s908
      %p914 = scmp.eq.s32.totalorder %s97, 0
      %p915 = por %p913, %p914
      %p916 = scmp.ne.s32.totalorder %s905, %s908
      %p917 = scmp.eq.s32.totalorder %s102, 6
      %p918 = por %p916, %p917
      %p919 = scmp.ne.s32.totalorder %s908, %s909
      %p920 = scmp.eq.s32.totalorder %s102, 0
      %p921 = por %p919, %p920
      %p922 = scmp.ne.s32.totalorder %s908, %s909
      %p923 = scmp.eq.s32.totalorder %s103, 6
      %p924 = por %p922, %p923
      %p926 = scmp.ne.s32.totalorder %s909, %s925
      %p927 = scmp.eq.s32.totalorder %s103, 0
      %p928 = por %p926, %p927
      %p929 = scmp.le.s32.totalorder 1, %s97
      %p930 = scmp.lt.s32.totalorder %s97, 8
      %p931 = pnand %p929, %p930
      %p932 = pneg %p931
      // Predicated region
      $region9: #{seq2seq_forward.3} parent=5 // pred_check
        _
      $region10: #{seq2seq_forward.3} parent=5 // pred_check_branch
        %934 = sbr.rel (%p931) target = $region12
      $region11: #{seq2seq_forward.3} parent=5 // pred_region
        %s935 = ssub.s32 %s97, 1
        // Predicated region
        $region13: #{seq2seq_forward.3} parent=11 // pred_check
          %p936 = pneg %p118
        $region14: #{seq2seq_forward.3} parent=11 // pred_check_branch
          %938 = sbr.rel (%p936) target = $region16
        $region15: #{seq2seq_forward.3} parent=11 // pred_region
          _
        $region16: #{seq2seq_forward.3} parent=11 // pred_fallthru
          _
        // Predicated region
        $region17: #{seq2seq_forward.3} parent=11 // pred_check
          %p939 = pneg %p139
        $region18: #{seq2seq_forward.3} parent=11 // pred_check_branch
          %941 = sbr.rel (%p939) target = $region20
        $region19: #{seq2seq_forward.3} parent=11 // pred_region
          _
        $region20: #{seq2seq_forward.3} parent=11 // pred_fallthru
          _
        // Predicated region
        $region21: #{seq2seq_forward.3} parent=11 // pred_check
          %p942 = pneg %p160
        $region22: #{seq2seq_forward.3} parent=11 // pred_check_branch
          %944 = sbr.rel (%p942) target = $region24
        $region23: #{seq2seq_forward.3} parent=11 // pred_region
          _
        $region24: #{seq2seq_forward.3} parent=11 // pred_fallthru
          _
        // Predicated region
        $region25: #{seq2seq_forward.3} parent=11 // pred_check
          %p945 = pneg %p181
        $region26: #{seq2seq_forward.3} parent=11 // pred_check_branch
          %947 = sbr.rel (%p945) target = $region28
        $region27: #{seq2seq_forward.3} parent=11 // pred_region
          _
        $region28: #{seq2seq_forward.3} parent=11 // pred_fallthru
          _
        // Predicated region
        $region29: #{seq2seq_forward.3} parent=11 // pred_check
          %p948 = pneg %p202
        $region30: #{seq2seq_forward.3} parent=11 // pred_check_branch
          %950 = sbr.rel (%p948) target = $region32
        $region31: #{seq2seq_forward.3} parent=11 // pred_region
          %s952 = ssub.s32 256, 256
          %953 = vsyncadd [#allocation9], %s952
          %s954 = sshll.u32 [#allocation8], 4
          %s955 = int_to_ptr.vmem [resolvable:$true] %s954
          %960 = dma.hbm_to_vmem [thread:$0]  %s9, 256, %s955, [#allocation9], 128, 128, 8
        $region32: #{seq2seq_forward.3} parent=11 // pred_fallthru
          _
        // Predicated region
        $region33: #{seq2seq_forward.3} parent=11 // pred_check
          %p961 = pneg %p223
        $region34: #{seq2seq_forward.3} parent=11 // pred_check_branch
          %963 = sbr.rel (%p961) target = $region36
        $region35: #{seq2seq_forward.3} parent=11 // pred_region
          %s965 = ssub.s32 512, 512
          %966 = vsyncadd [#allocation11], %s965
          %s967 = sshll.u32 [#allocation10], 4
          %s968 = int_to_ptr.vmem [resolvable:$true] %s967
          %973 = dma.hbm_to_vmem [thread:$0]  %s11, 512, %s968, [#allocation11], 128, 128, 8
        $region36: #{seq2seq_forward.3} parent=11 // pred_fallthru
          _
        // Predicated region
        $region37: #{seq2seq_forward.3} parent=11 // pred_check
          %p974 = pneg %p244
        $region38: #{seq2seq_forward.3} parent=11 // pred_check_branch
          %976 = sbr.rel (%p974) target = $region40
        $region39: #{seq2seq_forward.3} parent=11 // pred_region
          %s978 = ssub.s32 512, 512
          %979 = vsyncadd [#allocation11], %s978
          %s980 = sshll.u32 [#allocation12], 4
          %s981 = int_to_ptr.vmem [resolvable:$true] %s980
          %986 = dma.hbm_to_vmem [thread:$0]  %s13, 512, %s981, [#allocation11], 128, 128, 8
        $region40: #{seq2seq_forward.3} parent=11 // pred_fallthru
          _
        // Predicated region
        $region41: #{seq2seq_forward.3} parent=11 // pred_check
          %p987 = pneg %p265
        $region42: #{seq2seq_forward.3} parent=11 // pred_check_branch
          %989 = sbr.rel (%p987) target = $region44
        $region43: #{seq2seq_forward.3} parent=11 // pred_region
          %s991 = ssub.s32 16, 16
          %992 = vsyncadd [#allocation14], %s991
          %s994 = sshll.u32 [#allocation13], 4
          %s995 = int_to_ptr.vmem [resolvable:$true] %s994
          %997 = dma.hbm_to_vmem [thread:$0]  %s15, 16, %s995, [#allocation14]
        $region44: #{seq2seq_forward.3} parent=11 // pred_fallthru
          _
        // Predicated region
        $region45: #{seq2seq_forward.3} parent=11 // pred_check
          %p998 = pneg %p286
        $region46: #{seq2seq_forward.3} parent=11 // pred_check_branch
          %1000 = sbr.rel (%p998) target = $region48
        $region47: #{seq2seq_forward.3} parent=11 // pred_region
          %s1002 = ssub.s32 256, 256
          %1003 = vsyncadd [#allocation14], %s1002
          %s1004 = sshll.u32 [#allocation15], 4
          %s1005 = int_to_ptr.vmem [resolvable:$true] %s1004
          %1010 = dma.hbm_to_vmem [thread:$0]  %s17, 256, %s1005, [#allocation14], 128, 128, 8
        $region48: #{seq2seq_forward.3} parent=11 // pred_fallthru
          _
        // Predicated region
        $region49: #{seq2seq_forward.3} parent=11 // pred_check
          %p1011 = pneg %p307
        $region50: #{seq2seq_forward.3} parent=11 // pred_check_branch
          %1013 = sbr.rel (%p1011) target = $region52
        $region51: #{seq2seq_forward.3} parent=11 // pred_region
          %s1015 = ssub.s32 512, 512
          %1016 = vsyncadd [#allocation17], %s1015
          %s1017 = sshll.u32 [#allocation16], 4
          %s1018 = int_to_ptr.vmem [resolvable:$true] %s1017
          %1023 = dma.hbm_to_vmem [thread:$0]  %s19, 512, %s1018, [#allocation17], 128, 128, 8
        $region52: #{seq2seq_forward.3} parent=11 // pred_fallthru
          _
        // Predicated region
        $region53: #{seq2seq_forward.3} parent=11 // pred_check
          %p1024 = pneg %p328
        $region54: #{seq2seq_forward.3} parent=11 // pred_check_branch
          %1026 = sbr.rel (%p1024) target = $region56
        $region55: #{seq2seq_forward.3} parent=11 // pred_region
          %s1028 = ssub.s32 512, 512
          %1029 = vsyncadd [#allocation17], %s1028
          %s1030 = sshll.u32 [#allocation18], 4
          %s1031 = int_to_ptr.vmem [resolvable:$true] %s1030
          %1036 = dma.hbm_to_vmem [thread:$0]  %s21, 512, %s1031, [#allocation17], 128, 128, 8
        $region56: #{seq2seq_forward.3} parent=11 // pred_fallthru
          _
        // Predicated region
        $region57: #{seq2seq_forward.3} parent=11 // pred_check
          %p1037 = pneg %p349
        $region58: #{seq2seq_forward.3} parent=11 // pred_check_branch
          %1039 = sbr.rel (%p1037) target = $region60
        $region59: #{seq2seq_forward.3} parent=11 // pred_region
          %s1041 = ssub.s32 16, 16
          %1042 = vsyncadd [#allocation20], %s1041
          %s1044 = sshll.u32 [#allocation19], 4
          %s1045 = int_to_ptr.vmem [resolvable:$true] %s1044
          %1047 = dma.hbm_to_vmem [thread:$0]  %s23, 16, %s1045, [#allocation20]
        $region60: #{seq2seq_forward.3} parent=11 // pred_fallthru
          _
        // Predicated region
        $region61: #{seq2seq_forward.3} parent=11 // pred_check
          %p1048 = pneg %p370
        $region62: #{seq2seq_forward.3} parent=11 // pred_check_branch
          %1050 = sbr.rel (%p1048) target = $region64
        $region63: #{seq2seq_forward.3} parent=11 // pred_region
          %s1052 = ssub.s32 256, 256
          %1053 = vsyncadd [#allocation20], %s1052
          %s1054 = sshll.u32 [#allocation21], 4
          %s1055 = int_to_ptr.vmem [resolvable:$true] %s1054
          %1060 = dma.hbm_to_vmem [thread:$0]  %s25, 256, %s1055, [#allocation20], 128, 128, 8
        $region64: #{seq2seq_forward.3} parent=11 // pred_fallthru
          _
        // Predicated region
        $region65: #{seq2seq_forward.3} parent=11 // pred_check
          %p1061 = pneg %p391
        $region66: #{seq2seq_forward.3} parent=11 // pred_check_branch
          %1063 = sbr.rel (%p1061) target = $region68
        $region67: #{seq2seq_forward.3} parent=11 // pred_region
          %s1065 = ssub.s32 512, 512
          %1066 = vsyncadd [#allocation23], %s1065
          %s1067 = sshll.u32 [#allocation22], 4
          %s1068 = int_to_ptr.vmem [resolvable:$true] %s1067
          %1073 = dma.hbm_to_vmem [thread:$0]  %s27, 512, %s1068, [#allocation23], 128, 128, 8
        $region68: #{seq2seq_forward.3} parent=11 // pred_fallthru
          _
        // Predicated region
        $region69: #{seq2seq_forward.3} parent=11 // pred_check
          %p1074 = pneg %p412
        $region70: #{seq2seq_forward.3} parent=11 // pred_check_branch
          %1076 = sbr.rel (%p1074) target = $region72
        $region71: #{seq2seq_forward.3} parent=11 // pred_region
          %s1078 = ssub.s32 512, 512
          %1079 = vsyncadd [#allocation23], %s1078
          %s1080 = sshll.u32 [#allocation24], 4
          %s1081 = int_to_ptr.vmem [resolvable:$true] %s1080
          %1086 = dma.hbm_to_vmem [thread:$0]  %s29, 512, %s1081, [#allocation23], 128, 128, 8
        $region72: #{seq2seq_forward.3} parent=11 // pred_fallthru
          _
        // Predicated region
        $region73: #{seq2seq_forward.3} parent=11 // pred_check
          %p1087 = pneg %p433
        $region74: #{seq2seq_forward.3} parent=11 // pred_check_branch
          %1089 = sbr.rel (%p1087) target = $region76
        $region75: #{seq2seq_forward.3} parent=11 // pred_region
          %s1091 = ssub.s32 16, 16
          %1092 = vsyncadd [#allocation26], %s1091
          %s1094 = sshll.u32 [#allocation25], 4
          %s1095 = int_to_ptr.vmem [resolvable:$true] %s1094
          %1097 = dma.hbm_to_vmem [thread:$0]  %s31, 16, %s1095, [#allocation26]
        $region76: #{seq2seq_forward.3} parent=11 // pred_fallthru
          _
        // Predicated region
        $region77: #{seq2seq_forward.3} parent=11 // pred_check
          %p1098 = pneg %p454
        $region78: #{seq2seq_forward.3} parent=11 // pred_check_branch
          %1100 = sbr.rel (%p1098) target = $region80
        $region79: #{seq2seq_forward.3} parent=11 // pred_region
          %s1102 = ssub.s32 512, 512
          %1103 = vsyncadd [#allocation26], %s1102
          %s1104 = sshll.u32 [#allocation27], 4
          %s1105 = int_to_ptr.vmem [resolvable:$true] %s1104
          %1110 = dma.hbm_to_vmem [thread:$0]  %s33, 512, %s1105, [#allocation26], 128, 128, 8
        $region80: #{seq2seq_forward.3} parent=11 // pred_fallthru
          _
        // Predicated region
        $region81: #{seq2seq_forward.3} parent=11 // pred_check
          %p1111 = pneg %p475
        $region82: #{seq2seq_forward.3} parent=11 // pred_check_branch
          %1113 = sbr.rel (%p1111) target = $region84
        $region83: #{seq2seq_forward.3} parent=11 // pred_region
          %s1115 = ssub.s32 512, 512
          %1116 = vsyncadd [#allocation29], %s1115
          %s1117 = sshll.u32 [#allocation28], 4
          %s1118 = int_to_ptr.vmem [resolvable:$true] %s1117
          %1123 = dma.hbm_to_vmem [thread:$0]  %s35, 512, %s1118, [#allocation29], 128, 128, 8
        $region84: #{seq2seq_forward.3} parent=11 // pred_fallthru
          _
        // Predicated region
        $region85: #{seq2seq_forward.3} parent=11 // pred_check
          %p1124 = pneg %p496
        $region86: #{seq2seq_forward.3} parent=11 // pred_check_branch
          %1126 = sbr.rel (%p1124) target = $region88
        $region87: #{seq2seq_forward.3} parent=11 // pred_region
          %s1128 = ssub.s32 512, 512
          %1129 = vsyncadd [#allocation29], %s1128
          %s1130 = sshll.u32 [#allocation30], 4
          %s1131 = int_to_ptr.vmem [resolvable:$true] %s1130
          %1136 = dma.hbm_to_vmem [thread:$0]  %s37, 512, %s1131, [#allocation29], 128, 128, 8
        $region88: #{seq2seq_forward.3} parent=11 // pred_fallthru
          _
        // Predicated region
        $region89: #{seq2seq_forward.3} parent=11 // pred_check
          %p1137 = pneg %p517
        $region90: #{seq2seq_forward.3} parent=11 // pred_check_branch
          %1139 = sbr.rel (%p1137) target = $region92
        $region91: #{seq2seq_forward.3} parent=11 // pred_region
          %s1141 = ssub.s32 16, 16
          %1142 = vsyncadd [#allocation32], %s1141
          %s1144 = sshll.u32 [#allocation31], 4
          %s1145 = int_to_ptr.vmem [resolvable:$true] %s1144
          %1147 = dma.hbm_to_vmem [thread:$0]  %s39, 16, %s1145, [#allocation32]
        $region92: #{seq2seq_forward.3} parent=11 // pred_fallthru
          _
        // Predicated region
        $region93: #{seq2seq_forward.3} parent=11 // pred_check
          %p1148 = pneg %p538
        $region94: #{seq2seq_forward.3} parent=11 // pred_check_branch
          %1150 = sbr.rel (%p1148) target = $region96
        $region95: #{seq2seq_forward.3} parent=11 // pred_region
          %s1152 = ssub.s32 512, 512
          %1153 = vsyncadd [#allocation32], %s1152
          %s1154 = sshll.u32 [#allocation33], 4
          %s1155 = int_to_ptr.vmem [resolvable:$true] %s1154
          %1160 = dma.hbm_to_vmem [thread:$0]  %s41, 512, %s1155, [#allocation32], 128, 128, 8
        $region96: #{seq2seq_forward.3} parent=11 // pred_fallthru
          _
        // Predicated region
        $region97: #{seq2seq_forward.3} parent=11 // pred_check
          %p1161 = pneg %p559
        $region98: #{seq2seq_forward.3} parent=11 // pred_check_branch
          %1163 = sbr.rel (%p1161) target = $region100
        $region99: #{seq2seq_forward.3} parent=11 // pred_region
          %s1165 = ssub.s32 512, 512
          %1166 = vsyncadd [#allocation35], %s1165
          %s1167 = sshll.u32 [#allocation34], 4
          %s1168 = int_to_ptr.vmem [resolvable:$true] %s1167
          %1173 = dma.hbm_to_vmem [thread:$0]  %s43, 512, %s1168, [#allocation35], 128, 128, 8
        $region100: #{seq2seq_forward.3} parent=11 // pred_fallthru
          _
        // Predicated region
        $region101: #{seq2seq_forward.3} parent=11 // pred_check
          %p1174 = pneg %p580
        $region102: #{seq2seq_forward.3} parent=11 // pred_check_branch
          %1176 = sbr.rel (%p1174) target = $region104
        $region103: #{seq2seq_forward.3} parent=11 // pred_region
          %s1178 = ssub.s32 512, 512
          %1179 = vsyncadd [#allocation35], %s1178
          %s1180 = sshll.u32 [#allocation36], 4
          %s1181 = int_to_ptr.vmem [resolvable:$true] %s1180
          %1186 = dma.hbm_to_vmem [thread:$0]  %s45, 512, %s1181, [#allocation35], 128, 128, 8
        $region104: #{seq2seq_forward.3} parent=11 // pred_fallthru
          _
        // Predicated region
        $region105: #{seq2seq_forward.3} parent=11 // pred_check
          %p1187 = pneg %p601
        $region106: #{seq2seq_forward.3} parent=11 // pred_check_branch
          %1189 = sbr.rel (%p1187) target = $region108
        $region107: #{seq2seq_forward.3} parent=11 // pred_region
          %s1191 = ssub.s32 16, 16
          %1192 = vsyncadd [#allocation38], %s1191
          %s1194 = sshll.u32 [#allocation37], 4
          %s1195 = int_to_ptr.vmem [resolvable:$true] %s1194
          %1197 = dma.hbm_to_vmem [thread:$0]  %s47, 16, %s1195, [#allocation38]
        $region108: #{seq2seq_forward.3} parent=11 // pred_fallthru
          _
        // Predicated region
        $region109: #{seq2seq_forward.3} parent=11 // pred_check
          %p1198 = pneg %p622
        $region110: #{seq2seq_forward.3} parent=11 // pred_check_branch
          %1200 = sbr.rel (%p1198) target = $region112
        $region111: #{seq2seq_forward.3} parent=11 // pred_region
          %s1202 = ssub.s32 512, 512
          %1203 = vsyncadd [#allocation38], %s1202
          %s1204 = sshll.u32 [#allocation39], 4
          %s1205 = int_to_ptr.vmem [resolvable:$true] %s1204
          %1210 = dma.hbm_to_vmem [thread:$0]  %s49, 512, %s1205, [#allocation38], 128, 128, 8
        $region112: #{seq2seq_forward.3} parent=11 // pred_fallthru
          _
        // Predicated region
        $region113: #{seq2seq_forward.3} parent=11 // pred_check
          %p1211 = pneg %p643
        $region114: #{seq2seq_forward.3} parent=11 // pred_check_branch
          %1213 = sbr.rel (%p1211) target = $region116
        $region115: #{seq2seq_forward.3} parent=11 // pred_region
          %s1215 = ssub.s32 512, 512
          %1216 = vsyncadd [#allocation41], %s1215
          %s1217 = sshll.u32 [#allocation40], 4
          %s1218 = int_to_ptr.vmem [resolvable:$true] %s1217
          %1223 = dma.hbm_to_vmem [thread:$0]  %s51, 512, %s1218, [#allocation41], 128, 128, 8
        $region116: #{seq2seq_forward.3} parent=11 // pred_fallthru
          _
        // Predicated region
        $region117: #{seq2seq_forward.3} parent=11 // pred_check
          %p1224 = pneg %p664
        $region118: #{seq2seq_forward.3} parent=11 // pred_check_branch
          %1226 = sbr.rel (%p1224) target = $region120
        $region119: #{seq2seq_forward.3} parent=11 // pred_region
          %s1228 = ssub.s32 512, 512
          %1229 = vsyncadd [#allocation41], %s1228
          %s1230 = sshll.u32 [#allocation42], 4
          %s1231 = int_to_ptr.vmem [resolvable:$true] %s1230
          %1236 = dma.hbm_to_vmem [thread:$0]  %s53, 512, %s1231, [#allocation41], 128, 128, 8
        $region120: #{seq2seq_forward.3} parent=11 // pred_fallthru
          _
        // Predicated region
        $region121: #{seq2seq_forward.3} parent=11 // pred_check
          %p1237 = pneg %p685
        $region122: #{seq2seq_forward.3} parent=11 // pred_check_branch
          %1239 = sbr.rel (%p1237) target = $region124
        $region123: #{seq2seq_forward.3} parent=11 // pred_region
          %s1241 = ssub.s32 16, 16
          %1242 = vsyncadd [#allocation44], %s1241
          %s1244 = sshll.u32 [#allocation43], 4
          %s1245 = int_to_ptr.vmem [resolvable:$true] %s1244
          %1247 = dma.hbm_to_vmem [thread:$0]  %s55, 16, %s1245, [#allocation44]
        $region124: #{seq2seq_forward.3} parent=11 // pred_fallthru
          _
        // Predicated region
        $region125: #{seq2seq_forward.3} parent=11 // pred_check
          %p1248 = pneg %p706
        $region126: #{seq2seq_forward.3} parent=11 // pred_check_branch
          %1250 = sbr.rel (%p1248) target = $region128
        $region127: #{seq2seq_forward.3} parent=11 // pred_region
          _
        $region128: #{seq2seq_forward.3} parent=11 // pred_fallthru
          _
        // Predicated region
        $region129: #{seq2seq_forward.3} parent=11 // pred_check
          %p1251 = pneg %p727
        $region130: #{seq2seq_forward.3} parent=11 // pred_check_branch
          %1253 = sbr.rel (%p1251) target = $region132
        $region131: #{seq2seq_forward.3} parent=11 // pred_region
          _
        $region132: #{seq2seq_forward.3} parent=11 // pred_fallthru
          _
        // Predicated region
        $region133: #{seq2seq_forward.3} parent=11 // pred_check
          %p1254 = pneg %p748
        $region134: #{seq2seq_forward.3} parent=11 // pred_check_branch
          %1256 = sbr.rel (%p1254) target = $region136
        $region135: #{seq2seq_forward.3} parent=11 // pred_region
          _
        $region136: #{seq2seq_forward.3} parent=11 // pred_fallthru
          _
        // Predicated region
        $region137: #{seq2seq_forward.3} parent=11 // pred_check
          %p1257 = pneg %p769
        $region138: #{seq2seq_forward.3} parent=11 // pred_check_branch
          %1259 = sbr.rel (%p1257) target = $region140
        $region139: #{seq2seq_forward.3} parent=11 // pred_region
          _
        $region140: #{seq2seq_forward.3} parent=11 // pred_fallthru
          _
        // Predicated region
        $region141: #{seq2seq_forward.3} parent=11 // pred_check
          %p1260 = pneg %p790
        $region142: #{seq2seq_forward.3} parent=11 // pred_check_branch
          %1262 = sbr.rel (%p1260) target = $region144
        $region143: #{seq2seq_forward.3} parent=11 // pred_region
          _
        $region144: #{seq2seq_forward.3} parent=11 // pred_fallthru
          _
        // Predicated region
        $region145: #{seq2seq_forward.3} parent=11 // pred_check
          %p1263 = pneg %p811
        $region146: #{seq2seq_forward.3} parent=11 // pred_check_branch
          %1265 = sbr.rel (%p1263) target = $region148
        $region147: #{seq2seq_forward.3} parent=11 // pred_region
          %s1267 = ssub.s32 1024, 1024
          %1268 = vsyncadd [#allocation44], %s1267
          %s1269 = sshll.u32 [#allocation45], 4
          %s1270 = int_to_ptr.vmem [resolvable:$true] %s1269
          %1275 = dma.hbm_to_vmem [thread:$0]  %s67, 1024, %s1270, [#allocation44], 512, 512, 32
        $region148: #{seq2seq_forward.3} parent=11 // pred_fallthru
          _
        // Predicated region
        $region149: #{seq2seq_forward.3} parent=11 // pred_check
          %p1276 = pneg %p832
        $region150: #{seq2seq_forward.3} parent=11 // pred_check_branch
          %1278 = sbr.rel (%p1276) target = $region152
        $region151: #{seq2seq_forward.3} parent=11 // pred_region
          _
        $region152: #{seq2seq_forward.3} parent=11 // pred_fallthru
          _
        // Predicated region
        $region153: #{seq2seq_forward.3} parent=11 // pred_check
          %p1279 = pneg %p853
        $region154: #{seq2seq_forward.3} parent=11 // pred_check_branch
          %1281 = sbr.rel (%p1279) target = $region156
        $region155: #{seq2seq_forward.3} parent=11 // pred_region
          %s1283 = ssub.s32 64, 64
          %1284 = vsyncadd [#allocation47], %s1283
          %s1286 = sshll.u32 [#allocation46], 4
          %s1287 = int_to_ptr.vmem [resolvable:$true] %s1286
          %1289 = dma.hbm_to_vmem [thread:$0]  %s71, 64, %s1287, [#allocation47]
        $region156: #{seq2seq_forward.3} parent=11 // pred_fallthru
          _
        // Predicated region
        $region157: #{seq2seq_forward.3} parent=11 // pred_check
          %p1290 = pneg %p874
        $region158: #{seq2seq_forward.3} parent=11 // pred_check_branch
          %1292 = sbr.rel (%p1290) target = $region160
        $region159: #{seq2seq_forward.3} parent=11 // pred_region
          _
        $region160: #{seq2seq_forward.3} parent=11 // pred_fallthru
          _
        // Predicated region
        $region161: #{seq2seq_forward.3} parent=11 // pred_check
          %p1293 = pneg %p895
        $region162: #{seq2seq_forward.3} parent=11 // pred_check_branch
          %1295 = sbr.rel (%p1293) target = $region164
        $region163: #{seq2seq_forward.3} parent=11 // pred_region
          _
        $region164: #{seq2seq_forward.3} parent=11 // pred_fallthru
          _
      $region12: #{seq2seq_forward.3} parent=5 // pred_fallthru
        _
      %p1296 = scmp.lt.s32.totalorder %s97, 7
      // Predicated region
      $region165: #{seq2seq_forward.3} parent=5 // pred_check
        %p1297 = pneg %p1296
      $region166: #{seq2seq_forward.3} parent=5 // pred_check_branch
        %1299 = sbr.rel (%p1297) target = $region168
      $region167: #{seq2seq_forward.3} parent=5 // pred_region
        _
      $region168: #{seq2seq_forward.3} parent=5 // pred_fallthru
        _
      %p1300 = scmp.le.s32.totalorder 1, %s97
      %p1301 = scmp.lt.s32.totalorder %s97, 8
      %p1302 = pnand %p1300, %p1301
      %p1303 = pneg %p1302
      // Predicated region
      $region169: #{seq2seq_forward.3} parent=5 // pred_check
        _
      $region170: #{seq2seq_forward.3} parent=5 // pred_check_branch
        %1305 = sbr.rel (%p1302) target = $region172
      $region171: #{seq2seq_forward.3} parent=5 // pred_region
        %s1306 = ssub.s32 %s97, 1
        // Predicated region
        $region173: #{seq2seq_forward.3} parent=171 // pred_check
          %p1307 = pneg %p202
        $region174: #{seq2seq_forward.3} parent=171 // pred_check_branch
          %1309 = sbr.rel (%p1307) target = $region176
        $region175: #{seq2seq_forward.3} parent=171 // pred_region
          %1310 = dma.done [#allocation9], 256
        $region176: #{seq2seq_forward.3} parent=171 // pred_fallthru
          _
        // Predicated region
        $region177: #{seq2seq_forward.3} parent=171 // pred_check
          %p1311 = pneg %p223
        $region178: #{seq2seq_forward.3} parent=171 // pred_check_branch
          %1313 = sbr.rel (%p1311) target = $region180
        $region179: #{seq2seq_forward.3} parent=171 // pred_region
          %1314 = dma.done [#allocation11], 512
        $region180: #{seq2seq_forward.3} parent=171 // pred_fallthru
          _
        // Predicated region
        $region181: #{seq2seq_forward.3} parent=171 // pred_check
          %p1315 = pneg %p244
        $region182: #{seq2seq_forward.3} parent=171 // pred_check_branch
          %1317 = sbr.rel (%p1315) target = $region184
        $region183: #{seq2seq_forward.3} parent=171 // pred_region
          %1318 = dma.done [#allocation11], 512
        $region184: #{seq2seq_forward.3} parent=171 // pred_fallthru
          _
        // Predicated region
        $region185: #{seq2seq_forward.3} parent=171 // pred_check
          %p1319 = pneg %p265
        $region186: #{seq2seq_forward.3} parent=171 // pred_check_branch
          %1321 = sbr.rel (%p1319) target = $region188
        $region187: #{seq2seq_forward.3} parent=171 // pred_region
          %1322 = dma.done [#allocation14], 16
        $region188: #{seq2seq_forward.3} parent=171 // pred_fallthru
          _
        // Predicated region
        $region189: #{seq2seq_forward.3} parent=171 // pred_check
          %p1323 = pneg %p286
        $region190: #{seq2seq_forward.3} parent=171 // pred_check_branch
          %1325 = sbr.rel (%p1323) target = $region192
        $region191: #{seq2seq_forward.3} parent=171 // pred_region
          %1326 = dma.done [#allocation14], 256
        $region192: #{seq2seq_forward.3} parent=171 // pred_fallthru
          _
        // Predicated region
        $region193: #{seq2seq_forward.3} parent=171 // pred_check
          %p1327 = pneg %p307
        $region194: #{seq2seq_forward.3} parent=171 // pred_check_branch
          %1329 = sbr.rel (%p1327) target = $region196
        $region195: #{seq2seq_forward.3} parent=171 // pred_region
          %1330 = dma.done [#allocation17], 512
        $region196: #{seq2seq_forward.3} parent=171 // pred_fallthru
          _
        // Predicated region
        $region197: #{seq2seq_forward.3} parent=171 // pred_check
          %p1331 = pneg %p328
        $region198: #{seq2seq_forward.3} parent=171 // pred_check_branch
          %1333 = sbr.rel (%p1331) target = $region200
        $region199: #{seq2seq_forward.3} parent=171 // pred_region
          %1334 = dma.done [#allocation17], 512
        $region200: #{seq2seq_forward.3} parent=171 // pred_fallthru
          _
        // Predicated region
        $region201: #{seq2seq_forward.3} parent=171 // pred_check
          %p1335 = pneg %p349
        $region202: #{seq2seq_forward.3} parent=171 // pred_check_branch
          %1337 = sbr.rel (%p1335) target = $region204
        $region203: #{seq2seq_forward.3} parent=171 // pred_region
          %1338 = dma.done [#allocation20], 16
        $region204: #{seq2seq_forward.3} parent=171 // pred_fallthru
          _
        // Predicated region
        $region205: #{seq2seq_forward.3} parent=171 // pred_check
          %p1339 = pneg %p370
        $region206: #{seq2seq_forward.3} parent=171 // pred_check_branch
          %1341 = sbr.rel (%p1339) target = $region208
        $region207: #{seq2seq_forward.3} parent=171 // pred_region
          %1342 = dma.done [#allocation20], 256
        $region208: #{seq2seq_forward.3} parent=171 // pred_fallthru
          _
        // Predicated region
        $region209: #{seq2seq_forward.3} parent=171 // pred_check
          %p1343 = pneg %p391
        $region210: #{seq2seq_forward.3} parent=171 // pred_check_branch
          %1345 = sbr.rel (%p1343) target = $region212
        $region211: #{seq2seq_forward.3} parent=171 // pred_region
          %1346 = dma.done [#allocation23], 512
        $region212: #{seq2seq_forward.3} parent=171 // pred_fallthru
          _
        // Predicated region
        $region213: #{seq2seq_forward.3} parent=171 // pred_check
          %p1347 = pneg %p412
        $region214: #{seq2seq_forward.3} parent=171 // pred_check_branch
          %1349 = sbr.rel (%p1347) target = $region216
        $region215: #{seq2seq_forward.3} parent=171 // pred_region
          %1350 = dma.done [#allocation23], 512
        $region216: #{seq2seq_forward.3} parent=171 // pred_fallthru
          _
        // Predicated region
        $region217: #{seq2seq_forward.3} parent=171 // pred_check
          %p1351 = pneg %p433
        $region218: #{seq2seq_forward.3} parent=171 // pred_check_branch
          %1353 = sbr.rel (%p1351) target = $region220
        $region219: #{seq2seq_forward.3} parent=171 // pred_region
          %1354 = dma.done [#allocation26], 16
        $region220: #{seq2seq_forward.3} parent=171 // pred_fallthru
          _
        // Predicated region
        $region221: #{seq2seq_forward.3} parent=171 // pred_check
          %p1355 = pneg %p454
        $region222: #{seq2seq_forward.3} parent=171 // pred_check_branch
          %1357 = sbr.rel (%p1355) target = $region224
        $region223: #{seq2seq_forward.3} parent=171 // pred_region
          %1358 = dma.done [#allocation26], 512
        $region224: #{seq2seq_forward.3} parent=171 // pred_fallthru
          _
        // Predicated region
        $region225: #{seq2seq_forward.3} parent=171 // pred_check
          %p1359 = pneg %p475
        $region226: #{seq2seq_forward.3} parent=171 // pred_check_branch
          %1361 = sbr.rel (%p1359) target = $region228
        $region227: #{seq2seq_forward.3} parent=171 // pred_region
          %1362 = dma.done [#allocation29], 512
        $region228: #{seq2seq_forward.3} parent=171 // pred_fallthru
          _
        // Predicated region
        $region229: #{seq2seq_forward.3} parent=171 // pred_check
          %p1363 = pneg %p496
        $region230: #{seq2seq_forward.3} parent=171 // pred_check_branch
          %1365 = sbr.rel (%p1363) target = $region232
        $region231: #{seq2seq_forward.3} parent=171 // pred_region
          %1366 = dma.done [#allocation29], 512
        $region232: #{seq2seq_forward.3} parent=171 // pred_fallthru
          _
        // Predicated region
        $region233: #{seq2seq_forward.3} parent=171 // pred_check
          %p1367 = pneg %p517
        $region234: #{seq2seq_forward.3} parent=171 // pred_check_branch
          %1369 = sbr.rel (%p1367) target = $region236
        $region235: #{seq2seq_forward.3} parent=171 // pred_region
          %1370 = dma.done [#allocation32], 16
        $region236: #{seq2seq_forward.3} parent=171 // pred_fallthru
          _
        // Predicated region
        $region237: #{seq2seq_forward.3} parent=171 // pred_check
          %p1371 = pneg %p538
        $region238: #{seq2seq_forward.3} parent=171 // pred_check_branch
          %1373 = sbr.rel (%p1371) target = $region240
        $region239: #{seq2seq_forward.3} parent=171 // pred_region
          %1374 = dma.done [#allocation32], 512
        $region240: #{seq2seq_forward.3} parent=171 // pred_fallthru
          _
        // Predicated region
        $region241: #{seq2seq_forward.3} parent=171 // pred_check
          %p1375 = pneg %p559
        $region242: #{seq2seq_forward.3} parent=171 // pred_check_branch
          %1377 = sbr.rel (%p1375) target = $region244
        $region243: #{seq2seq_forward.3} parent=171 // pred_region
          %1378 = dma.done [#allocation35], 512
        $region244: #{seq2seq_forward.3} parent=171 // pred_fallthru
          _
        // Predicated region
        $region245: #{seq2seq_forward.3} parent=171 // pred_check
          %p1379 = pneg %p580
        $region246: #{seq2seq_forward.3} parent=171 // pred_check_branch
          %1381 = sbr.rel (%p1379) target = $region248
        $region247: #{seq2seq_forward.3} parent=171 // pred_region
          %1382 = dma.done [#allocation35], 512
        $region248: #{seq2seq_forward.3} parent=171 // pred_fallthru
          _
        // Predicated region
        $region249: #{seq2seq_forward.3} parent=171 // pred_check
          %p1383 = pneg %p601
        $region250: #{seq2seq_forward.3} parent=171 // pred_check_branch
          %1385 = sbr.rel (%p1383) target = $region252
        $region251: #{seq2seq_forward.3} parent=171 // pred_region
          %1386 = dma.done [#allocation38], 16
        $region252: #{seq2seq_forward.3} parent=171 // pred_fallthru
          _
        // Predicated region
        $region253: #{seq2seq_forward.3} parent=171 // pred_check
          %p1387 = pneg %p622
        $region254: #{seq2seq_forward.3} parent=171 // pred_check_branch
          %1389 = sbr.rel (%p1387) target = $region256
        $region255: #{seq2seq_forward.3} parent=171 // pred_region
          %1390 = dma.done [#allocation38], 512
        $region256: #{seq2seq_forward.3} parent=171 // pred_fallthru
          _
        // Predicated region
        $region257: #{seq2seq_forward.3} parent=171 // pred_check
          %p1391 = pneg %p643
        $region258: #{seq2seq_forward.3} parent=171 // pred_check_branch
          %1393 = sbr.rel (%p1391) target = $region260
        $region259: #{seq2seq_forward.3} parent=171 // pred_region
          %1394 = dma.done [#allocation41], 512
        $region260: #{seq2seq_forward.3} parent=171 // pred_fallthru
          _
        // Predicated region
        $region261: #{seq2seq_forward.3} parent=171 // pred_check
          %p1395 = pneg %p664
        $region262: #{seq2seq_forward.3} parent=171 // pred_check_branch
          %1397 = sbr.rel (%p1395) target = $region264
        $region263: #{seq2seq_forward.3} parent=171 // pred_region
          %1398 = dma.done [#allocation41], 512
        $region264: #{seq2seq_forward.3} parent=171 // pred_fallthru
          _
        // Predicated region
        $region265: #{seq2seq_forward.3} parent=171 // pred_check
          %p1399 = pneg %p685
        $region266: #{seq2seq_forward.3} parent=171 // pred_check_branch
          %1401 = sbr.rel (%p1399) target = $region268
        $region267: #{seq2seq_forward.3} parent=171 // pred_region
          %1402 = dma.done [#allocation44], 16
        $region268: #{seq2seq_forward.3} parent=171 // pred_fallthru
          _
        // Predicated region
        $region269: #{seq2seq_forward.3} parent=171 // pred_check
          %p1403 = pneg %p811
        $region270: #{seq2seq_forward.3} parent=171 // pred_check_branch
          %1405 = sbr.rel (%p1403) target = $region272
        $region271: #{seq2seq_forward.3} parent=171 // pred_region
          %1406 = dma.done [#allocation44], 1024
        $region272: #{seq2seq_forward.3} parent=171 // pred_fallthru
          _
        // Predicated region
        $region273: #{seq2seq_forward.3} parent=171 // pred_check
          %p1407 = pneg %p853
        $region274: #{seq2seq_forward.3} parent=171 // pred_check_branch
          %1409 = sbr.rel (%p1407) target = $region276
        $region275: #{seq2seq_forward.3} parent=171 // pred_region
          %1410 = dma.done [#allocation47], 64
        $region276: #{seq2seq_forward.3} parent=171 // pred_fallthru
          _
        %p1411 = pneg %p118
        %p1412 = pneg %p115
        %p1413 = pneg %p139
        %p1414 = pneg %p136
        %p1415 = pneg %p160
        %p1416 = pneg %p157
        %p1417 = pneg %p181
        %p1418 = pneg %p178
        %p1419 = pneg %p202
        %p1420 = pneg %p199
        %p1421 = pneg %p223
        %p1422 = pneg %p220
        %p1423 = pneg %p244
        %p1424 = pneg %p241
        %p1425 = pneg %p265
        %p1426 = pneg %p262
        %p1427 = pneg %p286
        %p1428 = pneg %p283
        %p1429 = pneg %p307
        %p1430 = pneg %p304
        %p1431 = pneg %p328
        %p1432 = pneg %p325
        %p1433 = pneg %p349
        %p1434 = pneg %p346
        %p1435 = pneg %p370
        %p1436 = pneg %p367
        %p1437 = pneg %p391
        %p1438 = pneg %p388
        %p1439 = pneg %p412
        %p1440 = pneg %p409
        %p1441 = pneg %p433
        %p1442 = pneg %p430
        %p1443 = pneg %p454
        %p1444 = pneg %p451
        %p1445 = pneg %p475
        %p1446 = pneg %p472
        %p1447 = pneg %p496
        %p1448 = pneg %p493
        %p1449 = pneg %p517
        %p1450 = pneg %p514
        %p1451 = pneg %p538
        %p1452 = pneg %p535
        %p1453 = pneg %p559
        %p1454 = pneg %p556
        %p1455 = pneg %p580
        %p1456 = pneg %p577
        %p1457 = pneg %p601
        %p1458 = pneg %p598
        %p1459 = pneg %p622
        %p1460 = pneg %p619
        %p1461 = pneg %p643
        %p1462 = pneg %p640
        %p1463 = pneg %p664
        %p1464 = pneg %p661
        %p1465 = pneg %p685
        %p1466 = pneg %p682
        %p1467 = pneg %p706
        %p1468 = pneg %p703
        %p1469 = pneg %p727
        %p1470 = pneg %p724
        %p1471 = pneg %p748
        %p1472 = pneg %p745
        %p1473 = pneg %p769
        %p1474 = pneg %p766
        %p1475 = pneg %p790
        %p1476 = pneg %p787
        %p1477 = pneg %p811
        %p1478 = pneg %p808
        %p1479 = pneg %p832
        %p1480 = pneg %p829
        %p1481 = pneg %p853
        %p1482 = pneg %p850
        %p1483 = pneg %p874
        %p1484 = pneg %p871
        %p1485 = pneg %p895
        %p1486 = pneg %p892
        %p1487 = pneg %p921
        %p1488 = pneg %p918
        %p1489 = scmp.lt.s32.totalorder %s102, 6
        %s1490 = scalar_select %p1489, %s102, 6
        %s1491 = smul.addr %s1490, 2
        %s1492 = scalar_lea.vmem %s77, %s1491
        %p1493 = scmp.lt.s32.totalorder %s102, 6
        %s1494 = scalar_select %p1493, %s102, 6
        %s1495 = smul.addr %s1494, 2
        %s1496 = scalar_lea.vmem %s77, %s1495
        %p1497 = scmp.eq.s32.totalorder %s102, 0
        // Predicated region
        $region277: #{seq2seq_forward.3} parent=171 // pred_check
          %p1498 = pneg %p1497
        $region278: #{seq2seq_forward.3} parent=171 // pred_check_branch
          %1500 = sbr.rel (%p1498) target = $region280
        $region279: #{seq2seq_forward.3} parent=171 // pred_region
          %v1501 = vld [vmem:[%s1] sm:$0x3]
          %v1502 = vld [vmem:[%s1 + $0x2] sm:$0x3]
          %vm1503 = vcmask 254976
          %1504 = vst.msk [vmem:[#allocation2] sm:$0x3] %vm1503, %v1501
          %1505 = vst.msk [vmem:[#allocation2 + $0x2] sm:$0x3] %vm1503, %v1502
          %v1506 = vld [vmem:[%s5] sm:$0x3]
          %vm1507 = vcmask 123904
          %1508 = vst.msk [vmem:[#allocation3] sm:$0x3] %vm1507, %v1506
          %v1509 = vld [vmem:[%s3] sm:$0x3]
          %v1510 = vld [vmem:[#allocation12] sm:$0xff]
          %v1511 = vld [vmem:[#allocation12 + $0x8] sm:$0xff]
          %v1512 = vld [vmem:[#allocation12 + $0x10] sm:$0xff]
          %v1513 = vld [vmem:[#allocation12 + $0x18] sm:$0xff]
          %v1514 = vld [vmem:[#allocation13] sm:$0x1]
          %v1516 = vlaneseq
          %v1517 = vshrl.u32 %v1516, 7
          %v1518 = vsub.s32 0, %v1517
          %v1519 = vrot.slane %v1514, %v1518
          %vm1521 = vcmask 261120
          %v1523 = vsel %vm1521, %v1509, 0
          %1525 = vmatprep.subr.mxu0 0.0
          %1526 = vmatpush1.msra.mxu0 %v1510
          %1527 = vmatprep.subr.mxu0 0.0
          %1528 = vmatpush1.msra.mxu0 %v1511
          %1529 = vmatprep.subr.mxu0 0.0
          %1530 = vmatpush1.msra.mxu0 %v1512
          %1531 = vmatprep.subr.mxu0 0.0
          %1532 = vmatpush1.msra.mxu0 %v1513
          %1533 = vmatprep.subr.mxu0 0.0
          %1534 = vmatpush1.msra.mxu0 0.0
          %1535 = vmatprep.subr.mxu0 0.0
          %1536 = vmatpush1.msra.mxu0 0.0
          %1537 = vmatprep.subr.mxu0 0.0
          %1538 = vmatpush1.msra.mxu0 0.0
          %1539 = vmatprep.subr.mxu0 0.0
          %1540 = vmatpush1.msra.mxu0 0.0
          %1541 = vmatprep.subr.mxu0 0.0
          %1542 = vmatpush1.msra.mxu0 0.0
          %1543 = vmatprep.subr.mxu0 0.0
          %1544 = vmatpush1.msra.mxu0 0.0
          %1545 = vmatprep.subr.mxu0 0.0
          %1546 = vmatpush1.msra.mxu0 0.0
          %1547 = vmatprep.subr.mxu0 0.0
          %1548 = vmatpush1.msra.mxu0 0.0
          %1549 = vmatprep.subr.mxu0 0.0
          %1550 = vmatpush1.msra.mxu0 0.0
          %1551 = vmatprep.subr.mxu0 0.0
          %1552 = vmatpush1.msra.mxu0 0.0
          %1553 = vmatprep.subr.mxu0 0.0
          %1554 = vmatpush1.msra.mxu0 0.0
          %1555 = vmatprep.subr.mxu0 0.0
          %1556 = vmatpush1.msra.mxu0 0.0
          %1557 = vmatprep.subr.mxu0 0.0
          %1558 = vmatpush1.msra.mxu0 0.0
          %1559 = vmatprep.subr.mxu0 0.0
          %1560 = vmatpush1.msra.mxu0 0.0
          %1561 = vmatprep.subr.mxu0 0.0
          %1562 = vmatpush1.msra.mxu0 0.0
          %1563 = vmatprep.subr.mxu0 0.0
          %1564 = vmatpush1.msra.mxu0 0.0
          %1565 = vmatprep.subr.mxu0 0.0
          %1566 = vmatpush1.msra.mxu0 0.0
          %1567 = vmatprep.subr.mxu0 0.0
          %1568 = vmatpush1.msra.mxu0 0.0
          %1569 = vmatprep.subr.mxu0 0.0
          %1570 = vmatpush1.msra.mxu0 0.0
          %1571 = vmatprep.subr.mxu0 0.0
          %1572 = vmatpush1.msra.mxu0 0.0
          %1573 = vmatprep.subr.mxu0 0.0
          %1574 = vmatpush1.msra.mxu0 0.0
          %1575 = vmatprep.subr.mxu0 0.0
          %1576 = vmatpush1.msra.mxu0 0.0
          %1577 = vmatprep.subr.mxu0 0.0
          %1578 = vmatpush1.msra.mxu0 0.0
          %1579 = vmatprep.subr.mxu0 0.0
          %1580 = vmatpush1.msra.mxu0 0.0
          %1581 = vmatprep.subr.mxu0 0.0
          %1582 = vmatpush1.msra.mxu0 0.0
          %1583 = vmatprep.subr.mxu0 0.0
          %1584 = vmatpush1.msra.mxu0 0.0
          %1585 = vmatprep.subr.mxu0 0.0
          %1586 = vmatpush1.msra.mxu0 0.0
          %1587 = vmatprep.subr.mxu0 0.0
          %1588 = vmatpush1.msra.mxu0 0.0
          %1589 = vmatprep.mubr.f32.mxu0 0.0
          %1590 = vmatmul.mubr.f32.gmra.mrb[0].mxu0 %v1523
          %v1591 = vpop.f32.mrb[0].mxu0
          %v1592 = vadd.f32 %v1519, %v1591
          %v1593 = vpop.f32.mrb[0].mxu0
          %1594 = vdwg.mxu0
          %1595 = vst.msk [vmem:[#allocation4] sm:$0x3] %vm1503, %v1592
          %v1596 = vld [vmem:[#allocation18] sm:$0xff]
          %v1597 = vld [vmem:[#allocation18 + $0x8] sm:$0xff]
          %v1598 = vld [vmem:[#allocation18 + $0x10] sm:$0xff]
          %v1599 = vld [vmem:[#allocation18 + $0x18] sm:$0xff]
          %v1600 = vld [vmem:[#allocation19] sm:$0x1]
          %v1602 = vlaneseq
          %v1603 = vshrl.u32 %v1602, 7
          %v1604 = vsub.s32 0, %v1603
          %v1605 = vrot.slane %v1600, %v1604
          %1607 = vmatprep.subr.mxu0 0.0
          %1608 = vmatpush1.msra.mxu0 %v1596
          %1609 = vmatprep.subr.mxu0 0.0
          %1610 = vmatpush1.msra.mxu0 %v1597
          %1611 = vmatprep.subr.mxu0 0.0
          %1612 = vmatpush1.msra.mxu0 %v1598
          %1613 = vmatprep.subr.mxu0 0.0
          %1614 = vmatpush1.msra.mxu0 %v1599
          %1615 = vmatprep.subr.mxu0 0.0
          %1616 = vmatpush1.msra.mxu0 0.0
          %1617 = vmatprep.subr.mxu0 0.0
          %1618 = vmatpush1.msra.mxu0 0.0
          %1619 = vmatprep.subr.mxu0 0.0
          %1620 = vmatpush1.msra.mxu0 0.0
          %1621 = vmatprep.subr.mxu0 0.0
          %1622 = vmatpush1.msra.mxu0 0.0
          %1623 = vmatprep.subr.mxu0 0.0
          %1624 = vmatpush1.msra.mxu0 0.0
          %1625 = vmatprep.subr.mxu0 0.0
          %1626 = vmatpush1.msra.mxu0 0.0
          %1627 = vmatprep.subr.mxu0 0.0
          %1628 = vmatpush1.msra.mxu0 0.0
          %1629 = vmatprep.subr.mxu0 0.0
          %1630 = vmatpush1.msra.mxu0 0.0
          %1631 = vmatprep.subr.mxu0 0.0
          %1632 = vmatpush1.msra.mxu0 0.0
          %1633 = vmatprep.subr.mxu0 0.0
          %1634 = vmatpush1.msra.mxu0 0.0
          %1635 = vmatprep.subr.mxu0 0.0
          %1636 = vmatpush1.msra.mxu0 0.0
          %1637 = vmatprep.subr.mxu0 0.0
          %1638 = vmatpush1.msra.mxu0 0.0
          %1639 = vmatprep.subr.mxu0 0.0
          %1640 = vmatpush1.msra.mxu0 0.0
          %1641 = vmatprep.subr.mxu0 0.0
          %1642 = vmatpush1.msra.mxu0 0.0
          %1643 = vmatprep.subr.mxu0 0.0
          %1644 = vmatpush1.msra.mxu0 0.0
          %1645 = vmatprep.subr.mxu0 0.0
          %1646 = vmatpush1.msra.mxu0 0.0
          %1647 = vmatprep.subr.mxu0 0.0
          %1648 = vmatpush1.msra.mxu0 0.0
          %1649 = vmatprep.subr.mxu0 0.0
          %1650 = vmatpush1.msra.mxu0 0.0
          %1651 = vmatprep.subr.mxu0 0.0
          %1652 = vmatpush1.msra.mxu0 0.0
          %1653 = vmatprep.subr.mxu0 0.0
          %1654 = vmatpush1.msra.mxu0 0.0
          %1655 = vmatprep.subr.mxu0 0.0
          %1656 = vmatpush1.msra.mxu0 0.0
          %1657 = vmatprep.subr.mxu0 0.0
          %1658 = vmatpush1.msra.mxu0 0.0
          %1659 = vmatprep.subr.mxu0 0.0
          %1660 = vmatpush1.msra.mxu0 0.0
          %1661 = vmatprep.subr.mxu0 0.0
          %1662 = vmatpush1.msra.mxu0 0.0
          %1663 = vmatprep.subr.mxu0 0.0
          %1664 = vmatpush1.msra.mxu0 0.0
          %1665 = vmatprep.subr.mxu0 0.0
          %1666 = vmatpush1.msra.mxu0 0.0
          %1667 = vmatprep.subr.mxu0 0.0
          %1668 = vmatpush1.msra.mxu0 0.0
          %1669 = vmatprep.subr.mxu0 0.0
          %1670 = vmatpush1.msra.mxu0 0.0
          %1671 = vmatprep.mubr.f32.mxu0 0.0
          %1672 = vmatmul.mubr.f32.gmra.mrb[0].mxu0 %v1523
          %v1673 = vpop.f32.mrb[0].mxu0
          %v1674 = vadd.f32 %v1605, %v1673
          %v1675 = vpop.f32.mrb[0].mxu0
          %1676 = vdwg.mxu0
          %1677 = vst.msk [vmem:[#allocation5] sm:$0x3] %vm1503, %v1674
          %s1678 = scalar_lea.vmem %s3, 2
          %v1679 = vld [vmem:[%s1678] sm:$0x3]
          %v1680 = vld [vmem:[#allocation30] sm:$0xff]
          %v1681 = vld [vmem:[#allocation30 + $0x8] sm:$0xff]
          %v1682 = vld [vmem:[#allocation30 + $0x10] sm:$0xff]
          %v1683 = vld [vmem:[#allocation30 + $0x18] sm:$0xff]
          %v1684 = vld [vmem:[#allocation31] sm:$0x1]
          %v1686 = vlaneseq
          %v1687 = vshrl.u32 %v1686, 7
          %v1688 = vsub.s32 0, %v1687
          %v1689 = vrot.slane %v1684, %v1688
          %v1692 = vsel %vm1521, %v1679, 0
          %1694 = vmatprep.subr.mxu0 0.0
          %1695 = vmatpush1.msra.mxu0 %v1680
          %1696 = vmatprep.subr.mxu0 0.0
          %1697 = vmatpush1.msra.mxu0 %v1681
          %1698 = vmatprep.subr.mxu0 0.0
          %1699 = vmatpush1.msra.mxu0 %v1682
          %1700 = vmatprep.subr.mxu0 0.0
          %1701 = vmatpush1.msra.mxu0 %v1683
          %1702 = vmatprep.subr.mxu0 0.0
          %1703 = vmatpush1.msra.mxu0 0.0
          %1704 = vmatprep.subr.mxu0 0.0
          %1705 = vmatpush1.msra.mxu0 0.0
          %1706 = vmatprep.subr.mxu0 0.0
          %1707 = vmatpush1.msra.mxu0 0.0
          %1708 = vmatprep.subr.mxu0 0.0
          %1709 = vmatpush1.msra.mxu0 0.0
          %1710 = vmatprep.subr.mxu0 0.0
          %1711 = vmatpush1.msra.mxu0 0.0
          %1712 = vmatprep.subr.mxu0 0.0
          %1713 = vmatpush1.msra.mxu0 0.0
          %1714 = vmatprep.subr.mxu0 0.0
          %1715 = vmatpush1.msra.mxu0 0.0
          %1716 = vmatprep.subr.mxu0 0.0
          %1717 = vmatpush1.msra.mxu0 0.0
          %1718 = vmatprep.subr.mxu0 0.0
          %1719 = vmatpush1.msra.mxu0 0.0
          %1720 = vmatprep.subr.mxu0 0.0
          %1721 = vmatpush1.msra.mxu0 0.0
          %1722 = vmatprep.subr.mxu0 0.0
          %1723 = vmatpush1.msra.mxu0 0.0
          %1724 = vmatprep.subr.mxu0 0.0
          %1725 = vmatpush1.msra.mxu0 0.0
          %1726 = vmatprep.subr.mxu0 0.0
          %1727 = vmatpush1.msra.mxu0 0.0
          %1728 = vmatprep.subr.mxu0 0.0
          %1729 = vmatpush1.msra.mxu0 0.0
          %1730 = vmatprep.subr.mxu0 0.0
          %1731 = vmatpush1.msra.mxu0 0.0
          %1732 = vmatprep.subr.mxu0 0.0
          %1733 = vmatpush1.msra.mxu0 0.0
          %1734 = vmatprep.subr.mxu0 0.0
          %1735 = vmatpush1.msra.mxu0 0.0
          %1736 = vmatprep.subr.mxu0 0.0
          %1737 = vmatpush1.msra.mxu0 0.0
          %1738 = vmatprep.subr.mxu0 0.0
          %1739 = vmatpush1.msra.mxu0 0.0
          %1740 = vmatprep.subr.mxu0 0.0
          %1741 = vmatpush1.msra.mxu0 0.0
          %1742 = vmatprep.subr.mxu0 0.0
          %1743 = vmatpush1.msra.mxu0 0.0
          %1744 = vmatprep.subr.mxu0 0.0
          %1745 = vmatpush1.msra.mxu0 0.0
          %1746 = vmatprep.subr.mxu0 0.0
          %1747 = vmatpush1.msra.mxu0 0.0
          %1748 = vmatprep.subr.mxu0 0.0
          %1749 = vmatpush1.msra.mxu0 0.0
          %1750 = vmatprep.subr.mxu0 0.0
          %1751 = vmatpush1.msra.mxu0 0.0
          %1752 = vmatprep.subr.mxu0 0.0
          %1753 = vmatpush1.msra.mxu0 0.0
          %1754 = vmatprep.subr.mxu0 0.0
          %1755 = vmatpush1.msra.mxu0 0.0
          %1756 = vmatprep.subr.mxu0 0.0
          %1757 = vmatpush1.msra.mxu0 0.0
          %1758 = vmatprep.mubr.f32.mxu0 0.0
          %1759 = vmatmul.mubr.f32.gmra.mrb[0].mxu0 %v1692
          %v1760 = vpop.f32.mrb[0].mxu0
          %v1761 = vadd.f32 %v1689, %v1760
          %v1762 = vpop.f32.mrb[0].mxu0
          %1763 = vdwg.mxu0
          %s1764 = scalar_lea.vmem [#allocation4], 2
          %1765 = vst.msk [vmem:[%s1764] sm:$0x3] %vm1503, %v1761
          %v1766 = vld [vmem:[#allocation36] sm:$0xff]
          %v1767 = vld [vmem:[#allocation36 + $0x8] sm:$0xff]
          %v1768 = vld [vmem:[#allocation36 + $0x10] sm:$0xff]
          %v1769 = vld [vmem:[#allocation36 + $0x18] sm:$0xff]
          %v1770 = vld [vmem:[#allocation37] sm:$0x1]
          %v1772 = vlaneseq
          %v1773 = vshrl.u32 %v1772, 7
          %v1774 = vsub.s32 0, %v1773
          %v1775 = vrot.slane %v1770, %v1774
          %1777 = vmatprep.subr.mxu0 0.0
          %1778 = vmatpush1.msra.mxu0 %v1766
          %1779 = vmatprep.subr.mxu0 0.0
          %1780 = vmatpush1.msra.mxu0 %v1767
          %1781 = vmatprep.subr.mxu0 0.0
          %1782 = vmatpush1.msra.mxu0 %v1768
          %1783 = vmatprep.subr.mxu0 0.0
          %1784 = vmatpush1.msra.mxu0 %v1769
          %1785 = vmatprep.subr.mxu0 0.0
          %1786 = vmatpush1.msra.mxu0 0.0
          %1787 = vmatprep.subr.mxu0 0.0
          %1788 = vmatpush1.msra.mxu0 0.0
          %1789 = vmatprep.subr.mxu0 0.0
          %1790 = vmatpush1.msra.mxu0 0.0
          %1791 = vmatprep.subr.mxu0 0.0
          %1792 = vmatpush1.msra.mxu0 0.0
          %1793 = vmatprep.subr.mxu0 0.0
          %1794 = vmatpush1.msra.mxu0 0.0
          %1795 = vmatprep.subr.mxu0 0.0
          %1796 = vmatpush1.msra.mxu0 0.0
          %1797 = vmatprep.subr.mxu0 0.0
          %1798 = vmatpush1.msra.mxu0 0.0
          %1799 = vmatprep.subr.mxu0 0.0
          %1800 = vmatpush1.msra.mxu0 0.0
          %1801 = vmatprep.subr.mxu0 0.0
          %1802 = vmatpush1.msra.mxu0 0.0
          %1803 = vmatprep.subr.mxu0 0.0
          %1804 = vmatpush1.msra.mxu0 0.0
          %1805 = vmatprep.subr.mxu0 0.0
          %1806 = vmatpush1.msra.mxu0 0.0
          %1807 = vmatprep.subr.mxu0 0.0
          %1808 = vmatpush1.msra.mxu0 0.0
          %1809 = vmatprep.subr.mxu0 0.0
          %1810 = vmatpush1.msra.mxu0 0.0
          %1811 = vmatprep.subr.mxu0 0.0
          %1812 = vmatpush1.msra.mxu0 0.0
          %1813 = vmatprep.subr.mxu0 0.0
          %1814 = vmatpush1.msra.mxu0 0.0
          %1815 = vmatprep.subr.mxu0 0.0
          %1816 = vmatpush1.msra.mxu0 0.0
          %1817 = vmatprep.subr.mxu0 0.0
          %1818 = vmatpush1.msra.mxu0 0.0
          %1819 = vmatprep.subr.mxu0 0.0
          %1820 = vmatpush1.msra.mxu0 0.0
          %1821 = vmatprep.subr.mxu0 0.0
          %1822 = vmatpush1.msra.mxu0 0.0
          %1823 = vmatprep.subr.mxu0 0.0
          %1824 = vmatpush1.msra.mxu0 0.0
          %1825 = vmatprep.subr.mxu0 0.0
          %1826 = vmatpush1.msra.mxu0 0.0
          %1827 = vmatprep.subr.mxu0 0.0
          %1828 = vmatpush1.msra.mxu0 0.0
          %1829 = vmatprep.subr.mxu0 0.0
          %1830 = vmatpush1.msra.mxu0 0.0
          %1831 = vmatprep.subr.mxu0 0.0
          %1832 = vmatpush1.msra.mxu0 0.0
          %1833 = vmatprep.subr.mxu0 0.0
          %1834 = vmatpush1.msra.mxu0 0.0
          %1835 = vmatprep.subr.mxu0 0.0
          %1836 = vmatpush1.msra.mxu0 0.0
          %1837 = vmatprep.subr.mxu0 0.0
          %1838 = vmatpush1.msra.mxu0 0.0
          %1839 = vmatprep.subr.mxu0 0.0
          %1840 = vmatpush1.msra.mxu0 0.0
          %1841 = vmatprep.mubr.f32.mxu0 0.0
          %1842 = vmatmul.mubr.f32.gmra.mrb[0].mxu0 %v1692
          %v1843 = vpop.f32.mrb[0].mxu0
          %v1844 = vadd.f32 %v1775, %v1843
          %v1845 = vpop.f32.mrb[0].mxu0
          %1846 = vdwg.mxu0
          %s1847 = scalar_lea.vmem [#allocation5], 2
          %1848 = vst.msk [vmem:[%s1847] sm:$0x3] %vm1503, %v1844
          %v1849 = vld [vmem:[%s1678] sm:$0x3]
          %v1850 = vld [vmem:[%s61] sm:$0xff]
          %v1851 = vld [vmem:[%s61 + $0x8] sm:$0xff]
          %v1852 = vld [vmem:[%s61 + $0x10] sm:$0xff]
          %v1853 = vld [vmem:[%s61 + $0x18] sm:$0xff]
          %v1854 = vld [vmem:[%s61 + $0x20] sm:$0xff]
          %v1855 = vld [vmem:[%s61 + $0x28] sm:$0xff]
          %v1856 = vld [vmem:[%s61 + $0x30] sm:$0xff]
          %v1857 = vld [vmem:[%s61 + $0x38] sm:$0xff]
          %v1858 = vld [vmem:[%s61 + $0x40] sm:$0xff]
          %v1859 = vld [vmem:[%s61 + $0x48] sm:$0xff]
          %v1860 = vld [vmem:[%s61 + $0x50] sm:$0xff]
          %v1861 = vld [vmem:[%s61 + $0x58] sm:$0xff]
          %v1862 = vld [vmem:[%s61 + $0x60] sm:$0xff]
          %v1863 = vld [vmem:[%s61 + $0x68] sm:$0xff]
          %v1864 = vld [vmem:[%s61 + $0x70] sm:$0xff]
          %v1865 = vld [vmem:[%s61 + $0x78] sm:$0xff]
          %v1866 = vld [vmem:[%s63] sm:$0xf]
          %v1868 = vlaneseq
          %v1869 = vshrl.u32 %v1868, 7
          %v1870 = vsub.s32 0, %v1869
          %v1871 = vrot.slane %v1866, %v1870
          %v1872 = vlaneseq
          %v1873 = vshrl.u32 %v1872, 7
          %v1874 = vsub.s32 1, %v1873
          %v1875 = vrot.slane %v1866, %v1874
          %v1876 = vlaneseq
          %v1877 = vshrl.u32 %v1876, 7
          %v1878 = vsub.s32 2, %v1877
          %v1879 = vrot.slane %v1866, %v1878
          %v1880 = vlaneseq
          %v1881 = vshrl.u32 %v1880, 7
          %v1882 = vsub.s32 3, %v1881
          %v1883 = vrot.slane %v1866, %v1882
          %v1889 = vsel %vm1521, %v1849, 0
          %1891 = vmatprep.subr.mxu0 %v1851
          %1892 = vmatpush1.msra.mxu0 %v1850
          %1893 = vmatprep.subr.mxu0 %v1855
          %1894 = vmatpush1.msra.mxu0 %v1854
          %1895 = vmatprep.subr.mxu0 %v1859
          %1896 = vmatpush1.msra.mxu0 %v1858
          %1897 = vmatprep.subr.mxu0 %v1863
          %1898 = vmatpush1.msra.mxu0 %v1862
          %1899 = vmatprep.subr.mxu0 0.0
          %1900 = vmatpush1.msra.mxu0 0.0
          %1901 = vmatprep.subr.mxu0 0.0
          %1902 = vmatpush1.msra.mxu0 0.0
          %1903 = vmatprep.subr.mxu0 0.0
          %1904 = vmatpush1.msra.mxu0 0.0
          %1905 = vmatprep.subr.mxu0 0.0
          %1906 = vmatpush1.msra.mxu0 0.0
          %1907 = vmatprep.subr.mxu0 0.0
          %1908 = vmatpush1.msra.mxu0 0.0
          %1909 = vmatprep.subr.mxu0 0.0
          %1910 = vmatpush1.msra.mxu0 0.0
          %1911 = vmatprep.subr.mxu0 0.0
          %1912 = vmatpush1.msra.mxu0 0.0
          %1913 = vmatprep.subr.mxu0 0.0
          %1914 = vmatpush1.msra.mxu0 0.0
          %1915 = vmatprep.subr.mxu0 0.0
          %1916 = vmatpush1.msra.mxu0 0.0
          %1917 = vmatprep.subr.mxu0 0.0
          %1918 = vmatpush1.msra.mxu0 0.0
          %1919 = vmatprep.subr.mxu0 0.0
          %1920 = vmatpush1.msra.mxu0 0.0
          %1921 = vmatprep.subr.mxu0 0.0
          %1922 = vmatpush1.msra.mxu0 0.0
          %1923 = vmatprep.subr.mxu0 0.0
          %1924 = vmatpush1.msra.mxu0 0.0
          %1925 = vmatprep.subr.mxu0 0.0
          %1926 = vmatpush1.msra.mxu0 0.0
          %1927 = vmatprep.subr.mxu0 0.0
          %1928 = vmatpush1.msra.mxu0 0.0
          %1929 = vmatprep.subr.mxu0 0.0
          %1930 = vmatpush1.msra.mxu0 0.0
          %1931 = vmatprep.subr.mxu0 0.0
          %1932 = vmatpush1.msra.mxu0 0.0
          %1933 = vmatprep.subr.mxu0 0.0
          %1934 = vmatpush1.msra.mxu0 0.0
          %1935 = vmatprep.subr.mxu0 0.0
          %1936 = vmatpush1.msra.mxu0 0.0
          %1937 = vmatprep.subr.mxu0 0.0
          %1938 = vmatpush1.msra.mxu0 0.0
          %1939 = vmatprep.subr.mxu0 0.0
          %1940 = vmatpush1.msra.mxu0 0.0
          %1941 = vmatprep.subr.mxu0 0.0
          %1942 = vmatpush1.msra.mxu0 0.0
          %1943 = vmatprep.subr.mxu0 0.0
          %1944 = vmatpush1.msra.mxu0 0.0
          %1945 = vmatprep.subr.mxu0 0.0
          %1946 = vmatpush1.msra.mxu0 0.0
          %1947 = vmatprep.subr.mxu0 0.0
          %1948 = vmatpush1.msra.mxu0 0.0
          %1949 = vmatprep.subr.mxu0 0.0
          %1950 = vmatpush1.msra.mxu0 0.0
          %1951 = vmatprep.subr.mxu0 0.0
          %1952 = vmatpush1.msra.mxu0 0.0
          %1953 = vmatprep.subr.mxu0 0.0
          %1954 = vmatpush1.msra.mxu0 0.0
          %1955 = vmatprep.mubr.f32.mxu0 0.0
          %1956 = vmatmul.mubr.f32.gmra.mrb[0].mxu0 %v1889
          %v1957 = vpop.f32.mrb[0].mxu0
          %v1958 = vadd.f32 %v1871, %v1957
          %v1959 = vpop.f32.mrb[0].mxu0
          %v1960 = vadd.f32 %v1875, %v1959
          %1961 = vdwg.mxu0
          %1962 = vmatprep.subr.mxu0 %v1853
          %1963 = vmatpush1.msra.mxu0 %v1852
          %1964 = vmatprep.subr.mxu0 %v1857
          %1965 = vmatpush1.msra.mxu0 %v1856
          %1966 = vmatprep.subr.mxu0 %v1861
          %1967 = vmatpush1.msra.mxu0 %v1860
          %1968 = vmatprep.subr.mxu0 %v1865
          %1969 = vmatpush1.msra.mxu0 %v1864
          %1970 = vmatprep.subr.mxu0 0.0
          %1971 = vmatpush1.msra.mxu0 0.0
          %1972 = vmatprep.subr.mxu0 0.0
          %1973 = vmatpush1.msra.mxu0 0.0
          %1974 = vmatprep.subr.mxu0 0.0
          %1975 = vmatpush1.msra.mxu0 0.0
          %1976 = vmatprep.subr.mxu0 0.0
          %1977 = vmatpush1.msra.mxu0 0.0
          %1978 = vmatprep.subr.mxu0 0.0
          %1979 = vmatpush1.msra.mxu0 0.0
          %1980 = vmatprep.subr.mxu0 0.0
          %1981 = vmatpush1.msra.mxu0 0.0
          %1982 = vmatprep.subr.mxu0 0.0
          %1983 = vmatpush1.msra.mxu0 0.0
          %1984 = vmatprep.subr.mxu0 0.0
          %1985 = vmatpush1.msra.mxu0 0.0
          %1986 = vmatprep.subr.mxu0 0.0
          %1987 = vmatpush1.msra.mxu0 0.0
          %1988 = vmatprep.subr.mxu0 0.0
          %1989 = vmatpush1.msra.mxu0 0.0
          %1990 = vmatprep.subr.mxu0 0.0
          %1991 = vmatpush1.msra.mxu0 0.0
          %1992 = vmatprep.subr.mxu0 0.0
          %1993 = vmatpush1.msra.mxu0 0.0
          %1994 = vmatprep.subr.mxu0 0.0
          %1995 = vmatpush1.msra.mxu0 0.0
          %1996 = vmatprep.subr.mxu0 0.0
          %1997 = vmatpush1.msra.mxu0 0.0
          %1998 = vmatprep.subr.mxu0 0.0
          %1999 = vmatpush1.msra.mxu0 0.0
          %2000 = vmatprep.subr.mxu0 0.0
          %2001 = vmatpush1.msra.mxu0 0.0
          %2002 = vmatprep.subr.mxu0 0.0
          %2003 = vmatpush1.msra.mxu0 0.0
          %2004 = vmatprep.subr.mxu0 0.0
          %2005 = vmatpush1.msra.mxu0 0.0
          %2006 = vmatprep.subr.mxu0 0.0
          %2007 = vmatpush1.msra.mxu0 0.0
          %2008 = vmatprep.subr.mxu0 0.0
          %2009 = vmatpush1.msra.mxu0 0.0
          %2010 = vmatprep.subr.mxu0 0.0
          %2011 = vmatpush1.msra.mxu0 0.0
          %2012 = vmatprep.subr.mxu0 0.0
          %2013 = vmatpush1.msra.mxu0 0.0
          %2014 = vmatprep.subr.mxu0 0.0
          %2015 = vmatpush1.msra.mxu0 0.0
          %2016 = vmatprep.subr.mxu0 0.0
          %2017 = vmatpush1.msra.mxu0 0.0
          %2018 = vmatprep.subr.mxu0 0.0
          %2019 = vmatpush1.msra.mxu0 0.0
          %2020 = vmatprep.subr.mxu0 0.0
          %2021 = vmatpush1.msra.mxu0 0.0
          %2022 = vmatprep.subr.mxu0 0.0
          %2023 = vmatpush1.msra.mxu0 0.0
          %2024 = vmatprep.subr.mxu0 0.0
          %2025 = vmatpush1.msra.mxu0 0.0
          %2026 = vmatprep.mubr.f32.mxu0 0.0
          %2027 = vmatmul.mubr.f32.gmra.mrb[0].mxu0 %v1889
          %v2028 = vpop.f32.mrb[0].mxu0
          %v2029 = vadd.f32 %v1879, %v2028
          %v2030 = vpop.f32.mrb[0].mxu0
          %v2031 = vadd.f32 %v1883, %v2030
          %2032 = vdwg.mxu0
          %v2037 = vcombine.low %v1958, %v1960
          %v2038 = vcombine.low %v2029, %v2031
          %v2040 = vunpack.c.l.s4 1983009808
          %v2041 = vunpack.c.0.s8 %v2040
          %v2042 = vlaneseq
          %v2043 = vshrl.u32 %v2042, 7
          %v2044 = vsub.s32 %v2041, %v2043
          %v2045 = vrot.slane %v2037, %v2044
          %v2047 = vunpack.c.l.s4 1983009808
          %v2048 = vunpack.c.0.s8 %v2047
          %v2049 = vlaneseq
          %v2050 = vshrl.u32 %v2049, 7
          %v2051 = vsub.s32 %v2048, %v2050
          %v2052 = vrot.slane %v2038, %v2051
          %v2053 = vcombine.low %v2045, %v2052
          %2055 = vst [vmem:[#allocation6] sm:$0xff] %v2053
          %v2056 = vld [vmem:[%s69] sm:$0xff]
          %v2057 = vld [vmem:[%s69 + $0x8] sm:$0xff]
          %v2058 = vld [vmem:[%s69 + $0x10] sm:$0xff]
          %v2059 = vld [vmem:[%s69 + $0x18] sm:$0xff]
          %v2060 = vld [vmem:[%s69 + $0x20] sm:$0xff]
          %v2061 = vld [vmem:[%s69 + $0x28] sm:$0xff]
          %v2062 = vld [vmem:[%s69 + $0x30] sm:$0xff]
          %v2063 = vld [vmem:[%s69 + $0x38] sm:$0xff]
          %v2064 = vld [vmem:[%s69 + $0x40] sm:$0xff]
          %v2065 = vld [vmem:[%s69 + $0x48] sm:$0xff]
          %v2066 = vld [vmem:[%s69 + $0x50] sm:$0xff]
          %v2067 = vld [vmem:[%s69 + $0x58] sm:$0xff]
          %v2068 = vld [vmem:[%s69 + $0x60] sm:$0xff]
          %v2069 = vld [vmem:[%s69 + $0x68] sm:$0xff]
          %v2070 = vld [vmem:[%s69 + $0x70] sm:$0xff]
          %v2071 = vld [vmem:[%s69 + $0x78] sm:$0xff]
          %v2072 = vld [vmem:[#allocation46] sm:$0xf]
          %v2074 = vlaneseq
          %v2075 = vshrl.u32 %v2074, 7
          %v2076 = vsub.s32 0, %v2075
          %v2077 = vrot.slane %v2072, %v2076
          %v2078 = vlaneseq
          %v2079 = vshrl.u32 %v2078, 7
          %v2080 = vsub.s32 1, %v2079
          %v2081 = vrot.slane %v2072, %v2080
          %v2082 = vlaneseq
          %v2083 = vshrl.u32 %v2082, 7
          %v2084 = vsub.s32 2, %v2083
          %v2085 = vrot.slane %v2072, %v2084
          %v2086 = vlaneseq
          %v2087 = vshrl.u32 %v2086, 7
          %v2088 = vsub.s32 3, %v2087
          %v2089 = vrot.slane %v2072, %v2088
          %2094 = vmatprep.subr.mxu0 %v2057
          %2095 = vmatpush1.msra.mxu0 %v2056
          %2096 = vmatprep.subr.mxu0 %v2061
          %2097 = vmatpush1.msra.mxu0 %v2060
          %2098 = vmatprep.subr.mxu0 %v2065
          %2099 = vmatpush1.msra.mxu0 %v2064
          %2100 = vmatprep.subr.mxu0 %v2069
          %2101 = vmatpush1.msra.mxu0 %v2068
          %2102 = vmatprep.subr.mxu0 0.0
          %2103 = vmatpush1.msra.mxu0 0.0
          %2104 = vmatprep.subr.mxu0 0.0
          %2105 = vmatpush1.msra.mxu0 0.0
          %2106 = vmatprep.subr.mxu0 0.0
          %2107 = vmatpush1.msra.mxu0 0.0
          %2108 = vmatprep.subr.mxu0 0.0
          %2109 = vmatpush1.msra.mxu0 0.0
          %2110 = vmatprep.subr.mxu0 0.0
          %2111 = vmatpush1.msra.mxu0 0.0
          %2112 = vmatprep.subr.mxu0 0.0
          %2113 = vmatpush1.msra.mxu0 0.0
          %2114 = vmatprep.subr.mxu0 0.0
          %2115 = vmatpush1.msra.mxu0 0.0
          %2116 = vmatprep.subr.mxu0 0.0
          %2117 = vmatpush1.msra.mxu0 0.0
          %2118 = vmatprep.subr.mxu0 0.0
          %2119 = vmatpush1.msra.mxu0 0.0
          %2120 = vmatprep.subr.mxu0 0.0
          %2121 = vmatpush1.msra.mxu0 0.0
          %2122 = vmatprep.subr.mxu0 0.0
          %2123 = vmatpush1.msra.mxu0 0.0
          %2124 = vmatprep.subr.mxu0 0.0
          %2125 = vmatpush1.msra.mxu0 0.0
          %2126 = vmatprep.subr.mxu0 0.0
          %2127 = vmatpush1.msra.mxu0 0.0
          %2128 = vmatprep.subr.mxu0 0.0
          %2129 = vmatpush1.msra.mxu0 0.0
          %2130 = vmatprep.subr.mxu0 0.0
          %2131 = vmatpush1.msra.mxu0 0.0
          %2132 = vmatprep.subr.mxu0 0.0
          %2133 = vmatpush1.msra.mxu0 0.0
          %2134 = vmatprep.subr.mxu0 0.0
          %2135 = vmatpush1.msra.mxu0 0.0
          %2136 = vmatprep.subr.mxu0 0.0
          %2137 = vmatpush1.msra.mxu0 0.0
          %2138 = vmatprep.subr.mxu0 0.0
          %2139 = vmatpush1.msra.mxu0 0.0
          %2140 = vmatprep.subr.mxu0 0.0
          %2141 = vmatpush1.msra.mxu0 0.0
          %2142 = vmatprep.subr.mxu0 0.0
          %2143 = vmatpush1.msra.mxu0 0.0
          %2144 = vmatprep.subr.mxu0 0.0
          %2145 = vmatpush1.msra.mxu0 0.0
          %2146 = vmatprep.subr.mxu0 0.0
          %2147 = vmatpush1.msra.mxu0 0.0
          %2148 = vmatprep.subr.mxu0 0.0
          %2149 = vmatpush1.msra.mxu0 0.0
          %2150 = vmatprep.subr.mxu0 0.0
          %2151 = vmatpush1.msra.mxu0 0.0
          %2152 = vmatprep.subr.mxu0 0.0
          %2153 = vmatpush1.msra.mxu0 0.0
          %2154 = vmatprep.subr.mxu0 0.0
          %2155 = vmatpush1.msra.mxu0 0.0
          %2156 = vmatprep.subr.mxu0 0.0
          %2157 = vmatpush1.msra.mxu0 0.0
          %2158 = vmatprep.mubr.f32.mxu0 0.0
          %2159 = vmatmul.mubr.f32.gmra.mrb[0].mxu0 %v1889
          %v2160 = vpop.f32.mrb[0].mxu0
          %v2161 = vadd.f32 %v2077, %v2160
          %v2162 = vpop.f32.mrb[0].mxu0
          %v2163 = vadd.f32 %v2081, %v2162
          %2164 = vdwg.mxu0
          %2165 = vmatprep.subr.mxu0 %v2059
          %2166 = vmatpush1.msra.mxu0 %v2058
          %2167 = vmatprep.subr.mxu0 %v2063
          %2168 = vmatpush1.msra.mxu0 %v2062
          %2169 = vmatprep.subr.mxu0 %v2067
          %2170 = vmatpush1.msra.mxu0 %v2066
          %2171 = vmatprep.subr.mxu0 %v2071
          %2172 = vmatpush1.msra.mxu0 %v2070
          %2173 = vmatprep.subr.mxu0 0.0
          %2174 = vmatpush1.msra.mxu0 0.0
          %2175 = vmatprep.subr.mxu0 0.0
          %2176 = vmatpush1.msra.mxu0 0.0
          %2177 = vmatprep.subr.mxu0 0.0
          %2178 = vmatpush1.msra.mxu0 0.0
          %2179 = vmatprep.subr.mxu0 0.0
          %2180 = vmatpush1.msra.mxu0 0.0
          %2181 = vmatprep.subr.mxu0 0.0
          %2182 = vmatpush1.msra.mxu0 0.0
          %2183 = vmatprep.subr.mxu0 0.0
          %2184 = vmatpush1.msra.mxu0 0.0
          %2185 = vmatprep.subr.mxu0 0.0
          %2186 = vmatpush1.msra.mxu0 0.0
          %2187 = vmatprep.subr.mxu0 0.0
          %2188 = vmatpush1.msra.mxu0 0.0
          %2189 = vmatprep.subr.mxu0 0.0
          %2190 = vmatpush1.msra.mxu0 0.0
          %2191 = vmatprep.subr.mxu0 0.0
          %2192 = vmatpush1.msra.mxu0 0.0
          %2193 = vmatprep.subr.mxu0 0.0
          %2194 = vmatpush1.msra.mxu0 0.0
          %2195 = vmatprep.subr.mxu0 0.0
          %2196 = vmatpush1.msra.mxu0 0.0
          %2197 = vmatprep.subr.mxu0 0.0
          %2198 = vmatpush1.msra.mxu0 0.0
          %2199 = vmatprep.subr.mxu0 0.0
          %2200 = vmatpush1.msra.mxu0 0.0
          %2201 = vmatprep.subr.mxu0 0.0
          %2202 = vmatpush1.msra.mxu0 0.0
          %2203 = vmatprep.subr.mxu0 0.0
          %2204 = vmatpush1.msra.mxu0 0.0
          %2205 = vmatprep.subr.mxu0 0.0
          %2206 = vmatpush1.msra.mxu0 0.0
          %2207 = vmatprep.subr.mxu0 0.0
          %2208 = vmatpush1.msra.mxu0 0.0
          %2209 = vmatprep.subr.mxu0 0.0
          %2210 = vmatpush1.msra.mxu0 0.0
          %2211 = vmatprep.subr.mxu0 0.0
          %2212 = vmatpush1.msra.mxu0 0.0
          %2213 = vmatprep.subr.mxu0 0.0
          %2214 = vmatpush1.msra.mxu0 0.0
          %2215 = vmatprep.subr.mxu0 0.0
          %2216 = vmatpush1.msra.mxu0 0.0
          %2217 = vmatprep.subr.mxu0 0.0
          %2218 = vmatpush1.msra.mxu0 0.0
          %2219 = vmatprep.subr.mxu0 0.0
          %2220 = vmatpush1.msra.mxu0 0.0
          %2221 = vmatprep.subr.mxu0 0.0
          %2222 = vmatpush1.msra.mxu0 0.0
          %2223 = vmatprep.subr.mxu0 0.0
          %2224 = vmatpush1.msra.mxu0 0.0
          %2225 = vmatprep.subr.mxu0 0.0
          %2226 = vmatpush1.msra.mxu0 0.0
          %2227 = vmatprep.subr.mxu0 0.0
          %2228 = vmatpush1.msra.mxu0 0.0
          %2229 = vmatprep.mubr.f32.mxu0 0.0
          %2230 = vmatmul.mubr.f32.gmra.mrb[0].mxu0 %v1889
          %v2231 = vpop.f32.mrb[0].mxu0
          %v2232 = vadd.f32 %v2085, %v2231
          %v2233 = vpop.f32.mrb[0].mxu0
          %v2234 = vadd.f32 %v2089, %v2233
          %2235 = vdwg.mxu0
          %v2240 = vcombine.low %v2161, %v2163
          %v2241 = vcombine.low %v2232, %v2234
          %v2243 = vunpack.c.l.s4 1983009808
          %v2244 = vunpack.c.0.s8 %v2243
          %v2245 = vlaneseq
          %v2246 = vshrl.u32 %v2245, 7
          %v2247 = vsub.s32 %v2244, %v2246
          %v2248 = vrot.slane %v2240, %v2247
          %v2250 = vunpack.c.l.s4 1983009808
          %v2251 = vunpack.c.0.s8 %v2250
          %v2252 = vlaneseq
          %v2253 = vshrl.u32 %v2252, 7
          %v2254 = vsub.s32 %v2251, %v2253
          %v2255 = vrot.slane %v2241, %v2254
          %v2256 = vcombine.low %v2248, %v2255
          %2258 = vst [vmem:[#allocation7] sm:$0xff] %v2256
        $region280: #{seq2seq_forward.3} parent=171 // pred_fallthru
          _
        %v2259 = vld [vmem:[#allocation3] sm:$0x3]
        %v2260 = vld [vmem:[#allocation2] sm:$0x3]
        %v2261 = vld [vmem:[%s3] sm:$0x3]
        %v2262 = vld [vmem:[#allocation8] sm:$0xff]
        %v2263 = vld [vmem:[#allocation8 + $0x8] sm:$0xff]
        %v2264 = vld [vmem:[#allocation10] sm:$0xff]
        %v2265 = vld [vmem:[#allocation10 + $0x8] sm:$0xff]
        %v2266 = vld [vmem:[#allocation10 + $0x10] sm:$0xff]
        %v2267 = vld [vmem:[#allocation10 + $0x18] sm:$0xff]
        %vm2268 = vcmask 261120
        %v2270 = vsel %vm2268, %v2260, 0
        %2272 = vmatprep.subr.mxu0 0.0
        %2273 = vmatpush1.msra.mxu0 %v2264
        %2274 = vmatprep.subr.mxu0 0.0
        %2275 = vmatpush1.msra.mxu0 %v2265
        %2276 = vmatprep.subr.mxu0 0.0
        %2277 = vmatpush1.msra.mxu0 %v2266
        %2278 = vmatprep.subr.mxu0 0.0
        %2279 = vmatpush1.msra.mxu0 %v2267
        %2280 = vmatprep.subr.mxu0 0.0
        %2281 = vmatpush1.msra.mxu0 0.0
        %2282 = vmatprep.subr.mxu0 0.0
        %2283 = vmatpush1.msra.mxu0 0.0
        %2284 = vmatprep.subr.mxu0 0.0
        %2285 = vmatpush1.msra.mxu0 0.0
        %2286 = vmatprep.subr.mxu0 0.0
        %2287 = vmatpush1.msra.mxu0 0.0
        %2288 = vmatprep.subr.mxu0 0.0
        %2289 = vmatpush1.msra.mxu0 0.0
        %2290 = vmatprep.subr.mxu0 0.0
        %2291 = vmatpush1.msra.mxu0 0.0
        %2292 = vmatprep.subr.mxu0 0.0
        %2293 = vmatpush1.msra.mxu0 0.0
        %2294 = vmatprep.subr.mxu0 0.0
        %2295 = vmatpush1.msra.mxu0 0.0
        %2296 = vmatprep.subr.mxu0 0.0
        %2297 = vmatpush1.msra.mxu0 0.0
        %2298 = vmatprep.subr.mxu0 0.0
        %2299 = vmatpush1.msra.mxu0 0.0
        %2300 = vmatprep.subr.mxu0 0.0
        %2301 = vmatpush1.msra.mxu0 0.0
        %2302 = vmatprep.subr.mxu0 0.0
        %2303 = vmatpush1.msra.mxu0 0.0
        %2304 = vmatprep.subr.mxu0 0.0
        %2305 = vmatpush1.msra.mxu0 0.0
        %2306 = vmatprep.subr.mxu0 0.0
        %2307 = vmatpush1.msra.mxu0 0.0
        %2308 = vmatprep.subr.mxu0 0.0
        %2309 = vmatpush1.msra.mxu0 0.0
        %2310 = vmatprep.subr.mxu0 0.0
        %2311 = vmatpush1.msra.mxu0 0.0
        %2312 = vmatprep.subr.mxu0 0.0
        %2313 = vmatpush1.msra.mxu0 0.0
        %2314 = vmatprep.subr.mxu0 0.0
        %2315 = vmatpush1.msra.mxu0 0.0
        %2316 = vmatprep.subr.mxu0 0.0
        %2317 = vmatpush1.msra.mxu0 0.0
        %2318 = vmatprep.subr.mxu0 0.0
        %2319 = vmatpush1.msra.mxu0 0.0
        %2320 = vmatprep.subr.mxu0 0.0
        %2321 = vmatpush1.msra.mxu0 0.0
        %2322 = vmatprep.subr.mxu0 0.0
        %2323 = vmatpush1.msra.mxu0 0.0
        %2324 = vmatprep.subr.mxu0 0.0
        %2325 = vmatpush1.msra.mxu0 0.0
        %2326 = vmatprep.subr.mxu0 0.0
        %2327 = vmatpush1.msra.mxu0 0.0
        %2328 = vmatprep.subr.mxu0 0.0
        %2329 = vmatpush1.msra.mxu0 0.0
        %2330 = vmatprep.subr.mxu0 0.0
        %2331 = vmatpush1.msra.mxu0 0.0
        %2332 = vmatprep.subr.mxu0 0.0
        %2333 = vmatpush1.msra.mxu0 0.0
        %2334 = vmatprep.subr.mxu0 0.0
        %2335 = vmatpush1.msra.mxu0 0.0
        %2336 = vmatprep.mubr.f32.mxu0 0.0
        %2337 = vmatmul.mubr.f32.gmra.mrb[0].mxu0 %v2270
        %v2338 = vpop.f32.mrb[0].mxu0
        %v2339 = vadd.f32 0.0, %v2338
        %v2340 = vpop.f32.mrb[0].mxu0
        %2341 = vdwg.mxu0
        %vm2342 = vcmask 130048
        %v2344 = vsel %vm2342, %v2259, 0
        %2346 = vmatprep.subr.mxu0 0.0
        %2347 = vmatpush1.msra.mxu0 %v2262
        %2348 = vmatprep.subr.mxu0 0.0
        %2349 = vmatpush1.msra.mxu0 %v2263
        %2350 = vmatprep.subr.mxu0 0.0
        %2351 = vmatpush1.msra.mxu0 0.0
        %2352 = vmatprep.subr.mxu0 0.0
        %2353 = vmatpush1.msra.mxu0 0.0
        %2354 = vmatprep.subr.mxu0 0.0
        %2355 = vmatpush1.msra.mxu0 0.0
        %2356 = vmatprep.subr.mxu0 0.0
        %2357 = vmatpush1.msra.mxu0 0.0
        %2358 = vmatprep.subr.mxu0 0.0
        %2359 = vmatpush1.msra.mxu0 0.0
        %2360 = vmatprep.subr.mxu0 0.0
        %2361 = vmatpush1.msra.mxu0 0.0
        %2362 = vmatprep.subr.mxu0 0.0
        %2363 = vmatpush1.msra.mxu0 0.0
        %2364 = vmatprep.subr.mxu0 0.0
        %2365 = vmatpush1.msra.mxu0 0.0
        %2366 = vmatprep.subr.mxu0 0.0
        %2367 = vmatpush1.msra.mxu0 0.0
        %2368 = vmatprep.subr.mxu0 0.0
        %2369 = vmatpush1.msra.mxu0 0.0
        %2370 = vmatprep.subr.mxu0 0.0
        %2371 = vmatpush1.msra.mxu0 0.0
        %2372 = vmatprep.subr.mxu0 0.0
        %2373 = vmatpush1.msra.mxu0 0.0
        %2374 = vmatprep.subr.mxu0 0.0
        %2375 = vmatpush1.msra.mxu0 0.0
        %2376 = vmatprep.subr.mxu0 0.0
        %2377 = vmatpush1.msra.mxu0 0.0
        %2378 = vmatprep.subr.mxu0 0.0
        %2379 = vmatpush1.msra.mxu0 0.0
        %2380 = vmatprep.subr.mxu0 0.0
        %2381 = vmatpush1.msra.mxu0 0.0
        %2382 = vmatprep.subr.mxu0 0.0
        %2383 = vmatpush1.msra.mxu0 0.0
        %2384 = vmatprep.subr.mxu0 0.0
        %2385 = vmatpush1.msra.mxu0 0.0
        %2386 = vmatprep.subr.mxu0 0.0
        %2387 = vmatpush1.msra.mxu0 0.0
        %2388 = vmatprep.subr.mxu0 0.0
        %2389 = vmatpush1.msra.mxu0 0.0
        %2390 = vmatprep.subr.mxu0 0.0
        %2391 = vmatpush1.msra.mxu0 0.0
        %2392 = vmatprep.subr.mxu0 0.0
        %2393 = vmatpush1.msra.mxu0 0.0
        %2394 = vmatprep.subr.mxu0 0.0
        %2395 = vmatpush1.msra.mxu0 0.0
        %2396 = vmatprep.subr.mxu0 0.0
        %2397 = vmatpush1.msra.mxu0 0.0
        %2398 = vmatprep.subr.mxu0 0.0
        %2399 = vmatpush1.msra.mxu0 0.0
        %2400 = vmatprep.subr.mxu0 0.0
        %2401 = vmatpush1.msra.mxu0 0.0
        %2402 = vmatprep.subr.mxu0 0.0
        %2403 = vmatpush1.msra.mxu0 0.0
        %2404 = vmatprep.subr.mxu0 0.0
        %2405 = vmatpush1.msra.mxu0 0.0
        %2406 = vmatprep.subr.mxu0 0.0
        %2407 = vmatpush1.msra.mxu0 0.0
        %2408 = vmatprep.subr.mxu0 0.0
        %2409 = vmatpush1.msra.mxu0 0.0
        %2410 = vmatprep.mubr.f32.mxu0 0.0
        %2411 = vmatmul.mubr.f32.gmra.mrb[0].mxu0 %v2344
        %v2412 = vpop.f32.mrb[0].mxu0
        %v2413 = vadd.f32 %v2339, %v2412
        %v2414 = vpop.f32.mrb[0].mxu0
        %2415 = vdwg.mxu0
        %v2416 = vld [vmem:[#allocation4] sm:$0x3]
        %v2417 = vadd.f32 %v2413, %v2416
        %v2418 = vsub.f32 0.0, %v2417
        %v2419 = vmul.f32 %v2418, 1.442695
        %v2420 = vpow.pop %v2419
        %v2421 = vadd.f32 %v2420, 1.0
        %v2422 = vrcp.pop %v2421
        %v2423 = vmul.f32 1.0, %v2422
        %v2424 = vld [vmem:[#allocation15] sm:$0xff]
        %v2425 = vld [vmem:[#allocation15 + $0x8] sm:$0xff]
        %v2426 = vld [vmem:[#allocation16] sm:$0xff]
        %v2427 = vld [vmem:[#allocation16 + $0x8] sm:$0xff]
        %v2428 = vld [vmem:[#allocation16 + $0x10] sm:$0xff]
        %v2429 = vld [vmem:[#allocation16 + $0x18] sm:$0xff]
        %2430 = vmatprep.subr.mxu0 0.0
        %2431 = vmatpush1.msra.mxu0 %v2426
        %2432 = vmatprep.subr.mxu0 0.0
        %2433 = vmatpush1.msra.mxu0 %v2427
        %2434 = vmatprep.subr.mxu0 0.0
        %2435 = vmatpush1.msra.mxu0 %v2428
        %2436 = vmatprep.subr.mxu0 0.0
        %2437 = vmatpush1.msra.mxu0 %v2429
        %2438 = vmatprep.subr.mxu0 0.0
        %2439 = vmatpush1.msra.mxu0 0.0
        %2440 = vmatprep.subr.mxu0 0.0
        %2441 = vmatpush1.msra.mxu0 0.0
        %2442 = vmatprep.subr.mxu0 0.0
        %2443 = vmatpush1.msra.mxu0 0.0
        %2444 = vmatprep.subr.mxu0 0.0
        %2445 = vmatpush1.msra.mxu0 0.0
        %2446 = vmatprep.subr.mxu0 0.0
        %2447 = vmatpush1.msra.mxu0 0.0
        %2448 = vmatprep.subr.mxu0 0.0
        %2449 = vmatpush1.msra.mxu0 0.0
        %2450 = vmatprep.subr.mxu0 0.0
        %2451 = vmatpush1.msra.mxu0 0.0
        %2452 = vmatprep.subr.mxu0 0.0
        %2453 = vmatpush1.msra.mxu0 0.0
        %2454 = vmatprep.subr.mxu0 0.0
        %2455 = vmatpush1.msra.mxu0 0.0
        %2456 = vmatprep.subr.mxu0 0.0
        %2457 = vmatpush1.msra.mxu0 0.0
        %2458 = vmatprep.subr.mxu0 0.0
        %2459 = vmatpush1.msra.mxu0 0.0
        %2460 = vmatprep.subr.mxu0 0.0
        %2461 = vmatpush1.msra.mxu0 0.0
        %2462 = vmatprep.subr.mxu0 0.0
        %2463 = vmatpush1.msra.mxu0 0.0
        %2464 = vmatprep.subr.mxu0 0.0
        %2465 = vmatpush1.msra.mxu0 0.0
        %2466 = vmatprep.subr.mxu0 0.0
        %2467 = vmatpush1.msra.mxu0 0.0
        %2468 = vmatprep.subr.mxu0 0.0
        %2469 = vmatpush1.msra.mxu0 0.0
        %2470 = vmatprep.subr.mxu0 0.0
        %2471 = vmatpush1.msra.mxu0 0.0
        %2472 = vmatprep.subr.mxu0 0.0
        %2473 = vmatpush1.msra.mxu0 0.0
        %2474 = vmatprep.subr.mxu0 0.0
        %2475 = vmatpush1.msra.mxu0 0.0
        %2476 = vmatprep.subr.mxu0 0.0
        %2477 = vmatpush1.msra.mxu0 0.0
        %2478 = vmatprep.subr.mxu0 0.0
        %2479 = vmatpush1.msra.mxu0 0.0
        %2480 = vmatprep.subr.mxu0 0.0
        %2481 = vmatpush1.msra.mxu0 0.0
        %2482 = vmatprep.subr.mxu0 0.0
        %2483 = vmatpush1.msra.mxu0 0.0
        %2484 = vmatprep.subr.mxu0 0.0
        %2485 = vmatpush1.msra.mxu0 0.0
        %2486 = vmatprep.subr.mxu0 0.0
        %2487 = vmatpush1.msra.mxu0 0.0
        %2488 = vmatprep.subr.mxu0 0.0
        %2489 = vmatpush1.msra.mxu0 0.0
        %2490 = vmatprep.subr.mxu0 0.0
        %2491 = vmatpush1.msra.mxu0 0.0
        %2492 = vmatprep.subr.mxu0 0.0
        %2493 = vmatpush1.msra.mxu0 0.0
        %2494 = vmatprep.mubr.f32.mxu0 0.0
        %2495 = vmatmul.mubr.f32.gmra.mrb[0].mxu0 %v2270
        %v2496 = vpop.f32.mrb[0].mxu0
        %v2497 = vadd.f32 0.0, %v2496
        %v2498 = vpop.f32.mrb[0].mxu0
        %2499 = vdwg.mxu0
        %2500 = vmatprep.subr.mxu0 0.0
        %2501 = vmatpush1.msra.mxu0 %v2424
        %2502 = vmatprep.subr.mxu0 0.0
        %2503 = vmatpush1.msra.mxu0 %v2425
        %2504 = vmatprep.subr.mxu0 0.0
        %2505 = vmatpush1.msra.mxu0 0.0
        %2506 = vmatprep.subr.mxu0 0.0
        %2507 = vmatpush1.msra.mxu0 0.0
        %2508 = vmatprep.subr.mxu0 0.0
        %2509 = vmatpush1.msra.mxu0 0.0
        %2510 = vmatprep.subr.mxu0 0.0
        %2511 = vmatpush1.msra.mxu0 0.0
        %2512 = vmatprep.subr.mxu0 0.0
        %2513 = vmatpush1.msra.mxu0 0.0
        %2514 = vmatprep.subr.mxu0 0.0
        %2515 = vmatpush1.msra.mxu0 0.0
        %2516 = vmatprep.subr.mxu0 0.0
        %2517 = vmatpush1.msra.mxu0 0.0
        %2518 = vmatprep.subr.mxu0 0.0
        %2519 = vmatpush1.msra.mxu0 0.0
        %2520 = vmatprep.subr.mxu0 0.0
        %2521 = vmatpush1.msra.mxu0 0.0
        %2522 = vmatprep.subr.mxu0 0.0
        %2523 = vmatpush1.msra.mxu0 0.0
        %2524 = vmatprep.subr.mxu0 0.0
        %2525 = vmatpush1.msra.mxu0 0.0
        %2526 = vmatprep.subr.mxu0 0.0
        %2527 = vmatpush1.msra.mxu0 0.0
        %2528 = vmatprep.subr.mxu0 0.0
        %2529 = vmatpush1.msra.mxu0 0.0
        %2530 = vmatprep.subr.mxu0 0.0
        %2531 = vmatpush1.msra.mxu0 0.0
        %2532 = vmatprep.subr.mxu0 0.0
        %2533 = vmatpush1.msra.mxu0 0.0
        %2534 = vmatprep.subr.mxu0 0.0
        %2535 = vmatpush1.msra.mxu0 0.0
        %2536 = vmatprep.subr.mxu0 0.0
        %2537 = vmatpush1.msra.mxu0 0.0
        %2538 = vmatprep.subr.mxu0 0.0
        %2539 = vmatpush1.msra.mxu0 0.0
        %2540 = vmatprep.subr.mxu0 0.0
        %2541 = vmatpush1.msra.mxu0 0.0
        %2542 = vmatprep.subr.mxu0 0.0
        %2543 = vmatpush1.msra.mxu0 0.0
        %2544 = vmatprep.subr.mxu0 0.0
        %2545 = vmatpush1.msra.mxu0 0.0
        %2546 = vmatprep.subr.mxu0 0.0
        %2547 = vmatpush1.msra.mxu0 0.0
        %2548 = vmatprep.subr.mxu0 0.0
        %2549 = vmatpush1.msra.mxu0 0.0
        %2550 = vmatprep.subr.mxu0 0.0
        %2551 = vmatpush1.msra.mxu0 0.0
        %2552 = vmatprep.subr.mxu0 0.0
        %2553 = vmatpush1.msra.mxu0 0.0
        %2554 = vmatprep.subr.mxu0 0.0
        %2555 = vmatpush1.msra.mxu0 0.0
        %2556 = vmatprep.subr.mxu0 0.0
        %2557 = vmatpush1.msra.mxu0 0.0
        %2558 = vmatprep.subr.mxu0 0.0
        %2559 = vmatpush1.msra.mxu0 0.0
        %2560 = vmatprep.subr.mxu0 0.0
        %2561 = vmatpush1.msra.mxu0 0.0
        %2562 = vmatprep.subr.mxu0 0.0
        %2563 = vmatpush1.msra.mxu0 0.0
        %2564 = vmatprep.mubr.f32.mxu0 0.0
        %2565 = vmatmul.mubr.f32.gmra.mrb[0].mxu0 %v2344
        %v2566 = vpop.f32.mrb[0].mxu0
        %v2567 = vadd.f32 %v2497, %v2566
        %v2568 = vpop.f32.mrb[0].mxu0
        %2569 = vdwg.mxu0
        %v2570 = vld [vmem:[#allocation5] sm:$0x3]
        %v2571 = vadd.f32 %v2567, %v2570
        %v2572 = vsub.f32 0.0, %v2571
        %v2573 = vmul.f32 %v2572, 1.442695
        %v2574 = vpow.pop %v2573
        %v2575 = vadd.f32 %v2574, 1.0
        %v2576 = vrcp.pop %v2575
        %v2577 = vmul.f32 1.0, %v2576
        %v2578 = vld [vmem:[#allocation21] sm:$0xff]
        %v2579 = vld [vmem:[#allocation21 + $0x8] sm:$0xff]
        %v2580 = vmul.f32 %v2423, %v2260
        %v2581 = vld [vmem:[#allocation22] sm:$0xff]
        %v2582 = vld [vmem:[#allocation22 + $0x8] sm:$0xff]
        %v2583 = vld [vmem:[#allocation22 + $0x10] sm:$0xff]
        %v2584 = vld [vmem:[#allocation22 + $0x18] sm:$0xff]
        %v2586 = vsel %vm2268, %v2580, 0
        %2588 = vmatprep.subr.mxu0 0.0
        %2589 = vmatpush1.msra.mxu0 %v2581
        %2590 = vmatprep.subr.mxu0 0.0
        %2591 = vmatpush1.msra.mxu0 %v2582
        %2592 = vmatprep.subr.mxu0 0.0
        %2593 = vmatpush1.msra.mxu0 %v2583
        %2594 = vmatprep.subr.mxu0 0.0
        %2595 = vmatpush1.msra.mxu0 %v2584
        %2596 = vmatprep.subr.mxu0 0.0
        %2597 = vmatpush1.msra.mxu0 0.0
        %2598 = vmatprep.subr.mxu0 0.0
        %2599 = vmatpush1.msra.mxu0 0.0
        %2600 = vmatprep.subr.mxu0 0.0
        %2601 = vmatpush1.msra.mxu0 0.0
        %2602 = vmatprep.subr.mxu0 0.0
        %2603 = vmatpush1.msra.mxu0 0.0
        %2604 = vmatprep.subr.mxu0 0.0
        %2605 = vmatpush1.msra.mxu0 0.0
        %2606 = vmatprep.subr.mxu0 0.0
        %2607 = vmatpush1.msra.mxu0 0.0
        %2608 = vmatprep.subr.mxu0 0.0
        %2609 = vmatpush1.msra.mxu0 0.0
        %2610 = vmatprep.subr.mxu0 0.0
        %2611 = vmatpush1.msra.mxu0 0.0
        %2612 = vmatprep.subr.mxu0 0.0
        %2613 = vmatpush1.msra.mxu0 0.0
        %2614 = vmatprep.subr.mxu0 0.0
        %2615 = vmatpush1.msra.mxu0 0.0
        %2616 = vmatprep.subr.mxu0 0.0
        %2617 = vmatpush1.msra.mxu0 0.0
        %2618 = vmatprep.subr.mxu0 0.0
        %2619 = vmatpush1.msra.mxu0 0.0
        %2620 = vmatprep.subr.mxu0 0.0
        %2621 = vmatpush1.msra.mxu0 0.0
        %2622 = vmatprep.subr.mxu0 0.0
        %2623 = vmatpush1.msra.mxu0 0.0
        %2624 = vmatprep.subr.mxu0 0.0
        %2625 = vmatpush1.msra.mxu0 0.0
        %2626 = vmatprep.subr.mxu0 0.0
        %2627 = vmatpush1.msra.mxu0 0.0
        %2628 = vmatprep.subr.mxu0 0.0
        %2629 = vmatpush1.msra.mxu0 0.0
        %2630 = vmatprep.subr.mxu0 0.0
        %2631 = vmatpush1.msra.mxu0 0.0
        %2632 = vmatprep.subr.mxu0 0.0
        %2633 = vmatpush1.msra.mxu0 0.0
        %2634 = vmatprep.subr.mxu0 0.0
        %2635 = vmatpush1.msra.mxu0 0.0
        %2636 = vmatprep.subr.mxu0 0.0
        %2637 = vmatpush1.msra.mxu0 0.0
        %2638 = vmatprep.subr.mxu0 0.0
        %2639 = vmatpush1.msra.mxu0 0.0
        %2640 = vmatprep.subr.mxu0 0.0
        %2641 = vmatpush1.msra.mxu0 0.0
        %2642 = vmatprep.subr.mxu0 0.0
        %2643 = vmatpush1.msra.mxu0 0.0
        %2644 = vmatprep.subr.mxu0 0.0
        %2645 = vmatpush1.msra.mxu0 0.0
        %2646 = vmatprep.subr.mxu0 0.0
        %2647 = vmatpush1.msra.mxu0 0.0
        %2648 = vmatprep.subr.mxu0 0.0
        %2649 = vmatpush1.msra.mxu0 0.0
        %2650 = vmatprep.subr.mxu0 0.0
        %2651 = vmatpush1.msra.mxu0 0.0
        %2652 = vmatprep.mubr.f32.mxu0 0.0
        %2653 = vmatmul.mubr.f32.gmra.mrb[0].mxu0 %v2586
        %v2654 = vpop.f32.mrb[0].mxu0
        %v2655 = vadd.f32 0.0, %v2654
        %v2656 = vpop.f32.mrb[0].mxu0
        %2657 = vdwg.mxu0
        %2658 = vmatprep.subr.mxu0 0.0
        %2659 = vmatpush1.msra.mxu0 %v2578
        %2660 = vmatprep.subr.mxu0 0.0
        %2661 = vmatpush1.msra.mxu0 %v2579
        %2662 = vmatprep.subr.mxu0 0.0
        %2663 = vmatpush1.msra.mxu0 0.0
        %2664 = vmatprep.subr.mxu0 0.0
        %2665 = vmatpush1.msra.mxu0 0.0
        %2666 = vmatprep.subr.mxu0 0.0
        %2667 = vmatpush1.msra.mxu0 0.0
        %2668 = vmatprep.subr.mxu0 0.0
        %2669 = vmatpush1.msra.mxu0 0.0
        %2670 = vmatprep.subr.mxu0 0.0
        %2671 = vmatpush1.msra.mxu0 0.0
        %2672 = vmatprep.subr.mxu0 0.0
        %2673 = vmatpush1.msra.mxu0 0.0
        %2674 = vmatprep.subr.mxu0 0.0
        %2675 = vmatpush1.msra.mxu0 0.0
        %2676 = vmatprep.subr.mxu0 0.0
        %2677 = vmatpush1.msra.mxu0 0.0
        %2678 = vmatprep.subr.mxu0 0.0
        %2679 = vmatpush1.msra.mxu0 0.0
        %2680 = vmatprep.subr.mxu0 0.0
        %2681 = vmatpush1.msra.mxu0 0.0
        %2682 = vmatprep.subr.mxu0 0.0
        %2683 = vmatpush1.msra.mxu0 0.0
        %2684 = vmatprep.subr.mxu0 0.0
        %2685 = vmatpush1.msra.mxu0 0.0
        %2686 = vmatprep.subr.mxu0 0.0
        %2687 = vmatpush1.msra.mxu0 0.0
        %2688 = vmatprep.subr.mxu0 0.0
        %2689 = vmatpush1.msra.mxu0 0.0
        %2690 = vmatprep.subr.mxu0 0.0
        %2691 = vmatpush1.msra.mxu0 0.0
        %2692 = vmatprep.subr.mxu0 0.0
        %2693 = vmatpush1.msra.mxu0 0.0
        %2694 = vmatprep.subr.mxu0 0.0
        %2695 = vmatpush1.msra.mxu0 0.0
        %2696 = vmatprep.subr.mxu0 0.0
        %2697 = vmatpush1.msra.mxu0 0.0
        %2698 = vmatprep.subr.mxu0 0.0
        %2699 = vmatpush1.msra.mxu0 0.0
        %2700 = vmatprep.subr.mxu0 0.0
        %2701 = vmatpush1.msra.mxu0 0.0
        %2702 = vmatprep.subr.mxu0 0.0
        %2703 = vmatpush1.msra.mxu0 0.0
        %2704 = vmatprep.subr.mxu0 0.0
        %2705 = vmatpush1.msra.mxu0 0.0
        %2706 = vmatprep.subr.mxu0 0.0
        %2707 = vmatpush1.msra.mxu0 0.0
        %2708 = vmatprep.subr.mxu0 0.0
        %2709 = vmatpush1.msra.mxu0 0.0
        %2710 = vmatprep.subr.mxu0 0.0
        %2711 = vmatpush1.msra.mxu0 0.0
        %2712 = vmatprep.subr.mxu0 0.0
        %2713 = vmatpush1.msra.mxu0 0.0
        %2714 = vmatprep.subr.mxu0 0.0
        %2715 = vmatpush1.msra.mxu0 0.0
        %2716 = vmatprep.subr.mxu0 0.0
        %2717 = vmatpush1.msra.mxu0 0.0
        %2718 = vmatprep.subr.mxu0 0.0
        %2719 = vmatpush1.msra.mxu0 0.0
        %2720 = vmatprep.subr.mxu0 0.0
        %2721 = vmatpush1.msra.mxu0 0.0
        %2722 = vmatprep.mubr.f32.mxu0 0.0
        %2723 = vmatmul.mubr.f32.gmra.mrb[0].mxu0 %v2344
        %v2724 = vpop.f32.mrb[0].mxu0
        %v2725 = vadd.f32 %v2655, %v2724
        %v2726 = vpop.f32.mrb[0].mxu0
        %2727 = vdwg.mxu0
        %v2728 = vmul.f32 %v2423, %v2261
        %v2729 = vld [vmem:[#allocation24] sm:$0xff]
        %v2730 = vld [vmem:[#allocation24 + $0x8] sm:$0xff]
        %v2731 = vld [vmem:[#allocation24 + $0x10] sm:$0xff]
        %v2732 = vld [vmem:[#allocation24 + $0x18] sm:$0xff]
        %v2734 = vsel %vm2268, %v2728, 0
        %2736 = vmatprep.subr.mxu0 0.0
        %2737 = vmatpush1.msra.mxu0 %v2729
        %2738 = vmatprep.subr.mxu0 0.0
        %2739 = vmatpush1.msra.mxu0 %v2730
        %2740 = vmatprep.subr.mxu0 0.0
        %2741 = vmatpush1.msra.mxu0 %v2731
        %2742 = vmatprep.subr.mxu0 0.0
        %2743 = vmatpush1.msra.mxu0 %v2732
        %2744 = vmatprep.subr.mxu0 0.0
        %2745 = vmatpush1.msra.mxu0 0.0
        %2746 = vmatprep.subr.mxu0 0.0
        %2747 = vmatpush1.msra.mxu0 0.0
        %2748 = vmatprep.subr.mxu0 0.0
        %2749 = vmatpush1.msra.mxu0 0.0
        %2750 = vmatprep.subr.mxu0 0.0
        %2751 = vmatpush1.msra.mxu0 0.0
        %2752 = vmatprep.subr.mxu0 0.0
        %2753 = vmatpush1.msra.mxu0 0.0
        %2754 = vmatprep.subr.mxu0 0.0
        %2755 = vmatpush1.msra.mxu0 0.0
        %2756 = vmatprep.subr.mxu0 0.0
        %2757 = vmatpush1.msra.mxu0 0.0
        %2758 = vmatprep.subr.mxu0 0.0
        %2759 = vmatpush1.msra.mxu0 0.0
        %2760 = vmatprep.subr.mxu0 0.0
        %2761 = vmatpush1.msra.mxu0 0.0
        %2762 = vmatprep.subr.mxu0 0.0
        %2763 = vmatpush1.msra.mxu0 0.0
        %2764 = vmatprep.subr.mxu0 0.0
        %2765 = vmatpush1.msra.mxu0 0.0
        %2766 = vmatprep.subr.mxu0 0.0
        %2767 = vmatpush1.msra.mxu0 0.0
        %2768 = vmatprep.subr.mxu0 0.0
        %2769 = vmatpush1.msra.mxu0 0.0
        %2770 = vmatprep.subr.mxu0 0.0
        %2771 = vmatpush1.msra.mxu0 0.0
        %2772 = vmatprep.subr.mxu0 0.0
        %2773 = vmatpush1.msra.mxu0 0.0
        %2774 = vmatprep.subr.mxu0 0.0
        %2775 = vmatpush1.msra.mxu0 0.0
        %2776 = vmatprep.subr.mxu0 0.0
        %2777 = vmatpush1.msra.mxu0 0.0
        %2778 = vmatprep.subr.mxu0 0.0
        %2779 = vmatpush1.msra.mxu0 0.0
        %2780 = vmatprep.subr.mxu0 0.0
        %2781 = vmatpush1.msra.mxu0 0.0
        %2782 = vmatprep.subr.mxu0 0.0
        %2783 = vmatpush1.msra.mxu0 0.0
        %2784 = vmatprep.subr.mxu0 0.0
        %2785 = vmatpush1.msra.mxu0 0.0
        %2786 = vmatprep.subr.mxu0 0.0
        %2787 = vmatpush1.msra.mxu0 0.0
        %2788 = vmatprep.subr.mxu0 0.0
        %2789 = vmatpush1.msra.mxu0 0.0
        %2790 = vmatprep.subr.mxu0 0.0
        %2791 = vmatpush1.msra.mxu0 0.0
        %2792 = vmatprep.subr.mxu0 0.0
        %2793 = vmatpush1.msra.mxu0 0.0
        %2794 = vmatprep.subr.mxu0 0.0
        %2795 = vmatpush1.msra.mxu0 0.0
        %2796 = vmatprep.subr.mxu0 0.0
        %2797 = vmatpush1.msra.mxu0 0.0
        %2798 = vmatprep.subr.mxu0 0.0
        %2799 = vmatpush1.msra.mxu0 0.0
        %2800 = vmatprep.mubr.f32.mxu0 0.0
        %2801 = vmatmul.mubr.f32.gmra.mrb[0].mxu0 %v2734
        %v2802 = vpop.f32.mrb[0].mxu0
        %v2803 = vadd.f32 0.0, %v2802
        %v2804 = vpop.f32.mrb[0].mxu0
        %2805 = vdwg.mxu0
        %v2806 = vadd.f32 %v2725, %v2803
        %v2807 = vld [vmem:[#allocation25] sm:$0x1]
        %v2809 = vlaneseq
        %v2810 = vshrl.u32 %v2809, 7
        %v2811 = vsub.s32 0, %v2810
        %v2812 = vrot.slane %v2807, %v2811
        %v2814 = vadd.f32 %v2806, %v2812
        %v2815 = vtanh.pop %v2814
        %v2816 = vmul.f32 %v2577, %v2260
        %v2817 = vsub.f32 1.0, %v2577
        %v2818 = vmul.f32 %v2817, %v2815
        %v2819 = vadd.f32 %v2816, %v2818
        %vm2820 = vcmask 254976
        %2821 = vst.msk [vmem:[#allocation2] sm:$0x3] %vm2820, %v2819
        %s2822 = scalar_lea.vmem [#allocation2], 2
        %v2823 = vld [vmem:[%s2822] sm:$0x3]
        %s2824 = scalar_lea.vmem %s3, 2
        %v2825 = vld [vmem:[%s2824] sm:$0x3]
        %v2826 = vld [vmem:[#allocation27] sm:$0xff]
        %v2827 = vld [vmem:[#allocation27 + $0x8] sm:$0xff]
        %v2828 = vld [vmem:[#allocation27 + $0x10] sm:$0xff]
        %v2829 = vld [vmem:[#allocation27 + $0x18] sm:$0xff]
        %v2830 = vld [vmem:[#allocation28] sm:$0xff]
        %v2831 = vld [vmem:[#allocation28 + $0x8] sm:$0xff]
        %v2832 = vld [vmem:[#allocation28 + $0x10] sm:$0xff]
        %v2833 = vld [vmem:[#allocation28 + $0x18] sm:$0xff]
        %v2835 = vsel %vm2268, %v2823, 0
        %2837 = vmatprep.subr.mxu0 0.0
        %2838 = vmatpush1.msra.mxu0 %v2830
        %2839 = vmatprep.subr.mxu0 0.0
        %2840 = vmatpush1.msra.mxu0 %v2831
        %2841 = vmatprep.subr.mxu0 0.0
        %2842 = vmatpush1.msra.mxu0 %v2832
        %2843 = vmatprep.subr.mxu0 0.0
        %2844 = vmatpush1.msra.mxu0 %v2833
        %2845 = vmatprep.subr.mxu0 0.0
        %2846 = vmatpush1.msra.mxu0 0.0
        %2847 = vmatprep.subr.mxu0 0.0
        %2848 = vmatpush1.msra.mxu0 0.0
        %2849 = vmatprep.subr.mxu0 0.0
        %2850 = vmatpush1.msra.mxu0 0.0
        %2851 = vmatprep.subr.mxu0 0.0
        %2852 = vmatpush1.msra.mxu0 0.0
        %2853 = vmatprep.subr.mxu0 0.0
        %2854 = vmatpush1.msra.mxu0 0.0
        %2855 = vmatprep.subr.mxu0 0.0
        %2856 = vmatpush1.msra.mxu0 0.0
        %2857 = vmatprep.subr.mxu0 0.0
        %2858 = vmatpush1.msra.mxu0 0.0
        %2859 = vmatprep.subr.mxu0 0.0
        %2860 = vmatpush1.msra.mxu0 0.0
        %2861 = vmatprep.subr.mxu0 0.0
        %2862 = vmatpush1.msra.mxu0 0.0
        %2863 = vmatprep.subr.mxu0 0.0
        %2864 = vmatpush1.msra.mxu0 0.0
        %2865 = vmatprep.subr.mxu0 0.0
        %2866 = vmatpush1.msra.mxu0 0.0
        %2867 = vmatprep.subr.mxu0 0.0
        %2868 = vmatpush1.msra.mxu0 0.0
        %2869 = vmatprep.subr.mxu0 0.0
        %2870 = vmatpush1.msra.mxu0 0.0
        %2871 = vmatprep.subr.mxu0 0.0
        %2872 = vmatpush1.msra.mxu0 0.0
        %2873 = vmatprep.subr.mxu0 0.0
        %2874 = vmatpush1.msra.mxu0 0.0
        %2875 = vmatprep.subr.mxu0 0.0
        %2876 = vmatpush1.msra.mxu0 0.0
        %2877 = vmatprep.subr.mxu0 0.0
        %2878 = vmatpush1.msra.mxu0 0.0
        %2879 = vmatprep.subr.mxu0 0.0
        %2880 = vmatpush1.msra.mxu0 0.0
        %2881 = vmatprep.subr.mxu0 0.0
        %2882 = vmatpush1.msra.mxu0 0.0
        %2883 = vmatprep.subr.mxu0 0.0
        %2884 = vmatpush1.msra.mxu0 0.0
        %2885 = vmatprep.subr.mxu0 0.0
        %2886 = vmatpush1.msra.mxu0 0.0
        %2887 = vmatprep.subr.mxu0 0.0
        %2888 = vmatpush1.msra.mxu0 0.0
        %2889 = vmatprep.subr.mxu0 0.0
        %2890 = vmatpush1.msra.mxu0 0.0
        %2891 = vmatprep.subr.mxu0 0.0
        %2892 = vmatpush1.msra.mxu0 0.0
        %2893 = vmatprep.subr.mxu0 0.0
        %2894 = vmatpush1.msra.mxu0 0.0
        %2895 = vmatprep.subr.mxu0 0.0
        %2896 = vmatpush1.msra.mxu0 0.0
        %2897 = vmatprep.subr.mxu0 0.0
        %2898 = vmatpush1.msra.mxu0 0.0
        %2899 = vmatprep.subr.mxu0 0.0
        %2900 = vmatpush1.msra.mxu0 0.0
        %2901 = vmatprep.mubr.f32.mxu0 0.0
        %2902 = vmatmul.mubr.f32.gmra.mrb[0].mxu0 %v2835
        %v2903 = vpop.f32.mrb[0].mxu0
        %v2904 = vadd.f32 0.0, %v2903
        %v2905 = vpop.f32.mrb[0].mxu0
        %2906 = vdwg.mxu0
        %v2908 = vsel %vm2268, %v2819, 0
        %2910 = vmatprep.subr.mxu0 0.0
        %2911 = vmatpush1.msra.mxu0 %v2826
        %2912 = vmatprep.subr.mxu0 0.0
        %2913 = vmatpush1.msra.mxu0 %v2827
        %2914 = vmatprep.subr.mxu0 0.0
        %2915 = vmatpush1.msra.mxu0 %v2828
        %2916 = vmatprep.subr.mxu0 0.0
        %2917 = vmatpush1.msra.mxu0 %v2829
        %2918 = vmatprep.subr.mxu0 0.0
        %2919 = vmatpush1.msra.mxu0 0.0
        %2920 = vmatprep.subr.mxu0 0.0
        %2921 = vmatpush1.msra.mxu0 0.0
        %2922 = vmatprep.subr.mxu0 0.0
        %2923 = vmatpush1.msra.mxu0 0.0
        %2924 = vmatprep.subr.mxu0 0.0
        %2925 = vmatpush1.msra.mxu0 0.0
        %2926 = vmatprep.subr.mxu0 0.0
        %2927 = vmatpush1.msra.mxu0 0.0
        %2928 = vmatprep.subr.mxu0 0.0
        %2929 = vmatpush1.msra.mxu0 0.0
        %2930 = vmatprep.subr.mxu0 0.0
        %2931 = vmatpush1.msra.mxu0 0.0
        %2932 = vmatprep.subr.mxu0 0.0
        %2933 = vmatpush1.msra.mxu0 0.0
        %2934 = vmatprep.subr.mxu0 0.0
        %2935 = vmatpush1.msra.mxu0 0.0
        %2936 = vmatprep.subr.mxu0 0.0
        %2937 = vmatpush1.msra.mxu0 0.0
        %2938 = vmatprep.subr.mxu0 0.0
        %2939 = vmatpush1.msra.mxu0 0.0
        %2940 = vmatprep.subr.mxu0 0.0
        %2941 = vmatpush1.msra.mxu0 0.0
        %2942 = vmatprep.subr.mxu0 0.0
        %2943 = vmatpush1.msra.mxu0 0.0
        %2944 = vmatprep.subr.mxu0 0.0
        %2945 = vmatpush1.msra.mxu0 0.0
        %2946 = vmatprep.subr.mxu0 0.0
        %2947 = vmatpush1.msra.mxu0 0.0
        %2948 = vmatprep.subr.mxu0 0.0
        %2949 = vmatpush1.msra.mxu0 0.0
        %2950 = vmatprep.subr.mxu0 0.0
        %2951 = vmatpush1.msra.mxu0 0.0
        %2952 = vmatprep.subr.mxu0 0.0
        %2953 = vmatpush1.msra.mxu0 0.0
        %2954 = vmatprep.subr.mxu0 0.0
        %2955 = vmatpush1.msra.mxu0 0.0
        %2956 = vmatprep.subr.mxu0 0.0
        %2957 = vmatpush1.msra.mxu0 0.0
        %2958 = vmatprep.subr.mxu0 0.0
        %2959 = vmatpush1.msra.mxu0 0.0
        %2960 = vmatprep.subr.mxu0 0.0
        %2961 = vmatpush1.msra.mxu0 0.0
        %2962 = vmatprep.subr.mxu0 0.0
        %2963 = vmatpush1.msra.mxu0 0.0
        %2964 = vmatprep.subr.mxu0 0.0
        %2965 = vmatpush1.msra.mxu0 0.0
        %2966 = vmatprep.subr.mxu0 0.0
        %2967 = vmatpush1.msra.mxu0 0.0
        %2968 = vmatprep.subr.mxu0 0.0
        %2969 = vmatpush1.msra.mxu0 0.0
        %2970 = vmatprep.subr.mxu0 0.0
        %2971 = vmatpush1.msra.mxu0 0.0
        %2972 = vmatprep.subr.mxu0 0.0
        %2973 = vmatpush1.msra.mxu0 0.0
        %2974 = vmatprep.mubr.f32.mxu0 0.0
        %2975 = vmatmul.mubr.f32.gmra.mrb[0].mxu0 %v2908
        %v2976 = vpop.f32.mrb[0].mxu0
        %v2977 = vadd.f32 %v2904, %v2976
        %v2978 = vpop.f32.mrb[0].mxu0
        %2979 = vdwg.mxu0
        %s2980 = scalar_lea.vmem [#allocation4], 2
        %v2981 = vld [vmem:[%s2980] sm:$0x3]
        %v2982 = vadd.f32 %v2977, %v2981
        %v2983 = vsub.f32 0.0, %v2982
        %v2984 = vmul.f32 %v2983, 1.442695
        %v2985 = vpow.pop %v2984
        %v2986 = vadd.f32 %v2985, 1.0
        %v2987 = vrcp.pop %v2986
        %v2988 = vmul.f32 1.0, %v2987
        %v2989 = vld [vmem:[#allocation33] sm:$0xff]
        %v2990 = vld [vmem:[#allocation33 + $0x8] sm:$0xff]
        %v2991 = vld [vmem:[#allocation33 + $0x10] sm:$0xff]
        %v2992 = vld [vmem:[#allocation33 + $0x18] sm:$0xff]
        %v2993 = vld [vmem:[#allocation34] sm:$0xff]
        %v2994 = vld [vmem:[#allocation34 + $0x8] sm:$0xff]
        %v2995 = vld [vmem:[#allocation34 + $0x10] sm:$0xff]
        %v2996 = vld [vmem:[#allocation34 + $0x18] sm:$0xff]
        %2997 = vmatprep.subr.mxu0 0.0
        %2998 = vmatpush1.msra.mxu0 %v2993
        %2999 = vmatprep.subr.mxu0 0.0
        %3000 = vmatpush1.msra.mxu0 %v2994
        %3001 = vmatprep.subr.mxu0 0.0
        %3002 = vmatpush1.msra.mxu0 %v2995
        %3003 = vmatprep.subr.mxu0 0.0
        %3004 = vmatpush1.msra.mxu0 %v2996
        %3005 = vmatprep.subr.mxu0 0.0
        %3006 = vmatpush1.msra.mxu0 0.0
        %3007 = vmatprep.subr.mxu0 0.0
        %3008 = vmatpush1.msra.mxu0 0.0
        %3009 = vmatprep.subr.mxu0 0.0
        %3010 = vmatpush1.msra.mxu0 0.0
        %3011 = vmatprep.subr.mxu0 0.0
        %3012 = vmatpush1.msra.mxu0 0.0
        %3013 = vmatprep.subr.mxu0 0.0
        %3014 = vmatpush1.msra.mxu0 0.0
        %3015 = vmatprep.subr.mxu0 0.0
        %3016 = vmatpush1.msra.mxu0 0.0
        %3017 = vmatprep.subr.mxu0 0.0
        %3018 = vmatpush1.msra.mxu0 0.0
        %3019 = vmatprep.subr.mxu0 0.0
        %3020 = vmatpush1.msra.mxu0 0.0
        %3021 = vmatprep.subr.mxu0 0.0
        %3022 = vmatpush1.msra.mxu0 0.0
        %3023 = vmatprep.subr.mxu0 0.0
        %3024 = vmatpush1.msra.mxu0 0.0
        %3025 = vmatprep.subr.mxu0 0.0
        %3026 = vmatpush1.msra.mxu0 0.0
        %3027 = vmatprep.subr.mxu0 0.0
        %3028 = vmatpush1.msra.mxu0 0.0
        %3029 = vmatprep.subr.mxu0 0.0
        %3030 = vmatpush1.msra.mxu0 0.0
        %3031 = vmatprep.subr.mxu0 0.0
        %3032 = vmatpush1.msra.mxu0 0.0
        %3033 = vmatprep.subr.mxu0 0.0
        %3034 = vmatpush1.msra.mxu0 0.0
        %3035 = vmatprep.subr.mxu0 0.0
        %3036 = vmatpush1.msra.mxu0 0.0
        %3037 = vmatprep.subr.mxu0 0.0
        %3038 = vmatpush1.msra.mxu0 0.0
        %3039 = vmatprep.subr.mxu0 0.0
        %3040 = vmatpush1.msra.mxu0 0.0
        %3041 = vmatprep.subr.mxu0 0.0
        %3042 = vmatpush1.msra.mxu0 0.0
        %3043 = vmatprep.subr.mxu0 0.0
        %3044 = vmatpush1.msra.mxu0 0.0
        %3045 = vmatprep.subr.mxu0 0.0
        %3046 = vmatpush1.msra.mxu0 0.0
        %3047 = vmatprep.subr.mxu0 0.0
        %3048 = vmatpush1.msra.mxu0 0.0
        %3049 = vmatprep.subr.mxu0 0.0
        %3050 = vmatpush1.msra.mxu0 0.0
        %3051 = vmatprep.subr.mxu0 0.0
        %3052 = vmatpush1.msra.mxu0 0.0
        %3053 = vmatprep.subr.mxu0 0.0
        %3054 = vmatpush1.msra.mxu0 0.0
        %3055 = vmatprep.subr.mxu0 0.0
        %3056 = vmatpush1.msra.mxu0 0.0
        %3057 = vmatprep.subr.mxu0 0.0
        %3058 = vmatpush1.msra.mxu0 0.0
        %3059 = vmatprep.subr.mxu0 0.0
        %3060 = vmatpush1.msra.mxu0 0.0
        %3061 = vmatprep.mubr.f32.mxu0 0.0
        %3062 = vmatmul.mubr.f32.gmra.mrb[0].mxu0 %v2835
        %v3063 = vpop.f32.mrb[0].mxu0
        %v3064 = vadd.f32 0.0, %v3063
        %v3065 = vpop.f32.mrb[0].mxu0
        %3066 = vdwg.mxu0
        %3067 = vmatprep.subr.mxu0 0.0
        %3068 = vmatpush1.msra.mxu0 %v2989
        %3069 = vmatprep.subr.mxu0 0.0
        %3070 = vmatpush1.msra.mxu0 %v2990
        %3071 = vmatprep.subr.mxu0 0.0
        %3072 = vmatpush1.msra.mxu0 %v2991
        %3073 = vmatprep.subr.mxu0 0.0
        %3074 = vmatpush1.msra.mxu0 %v2992
        %3075 = vmatprep.subr.mxu0 0.0
        %3076 = vmatpush1.msra.mxu0 0.0
        %3077 = vmatprep.subr.mxu0 0.0
        %3078 = vmatpush1.msra.mxu0 0.0
        %3079 = vmatprep.subr.mxu0 0.0
        %3080 = vmatpush1.msra.mxu0 0.0
        %3081 = vmatprep.subr.mxu0 0.0
        %3082 = vmatpush1.msra.mxu0 0.0
        %3083 = vmatprep.subr.mxu0 0.0
        %3084 = vmatpush1.msra.mxu0 0.0
        %3085 = vmatprep.subr.mxu0 0.0
        %3086 = vmatpush1.msra.mxu0 0.0
        %3087 = vmatprep.subr.mxu0 0.0
        %3088 = vmatpush1.msra.mxu0 0.0
        %3089 = vmatprep.subr.mxu0 0.0
        %3090 = vmatpush1.msra.mxu0 0.0
        %3091 = vmatprep.subr.mxu0 0.0
        %3092 = vmatpush1.msra.mxu0 0.0
        %3093 = vmatprep.subr.mxu0 0.0
        %3094 = vmatpush1.msra.mxu0 0.0
        %3095 = vmatprep.subr.mxu0 0.0
        %3096 = vmatpush1.msra.mxu0 0.0
        %3097 = vmatprep.subr.mxu0 0.0
        %3098 = vmatpush1.msra.mxu0 0.0
        %3099 = vmatprep.subr.mxu0 0.0
        %3100 = vmatpush1.msra.mxu0 0.0
        %3101 = vmatprep.subr.mxu0 0.0
        %3102 = vmatpush1.msra.mxu0 0.0
        %3103 = vmatprep.subr.mxu0 0.0
        %3104 = vmatpush1.msra.mxu0 0.0
        %3105 = vmatprep.subr.mxu0 0.0
        %3106 = vmatpush1.msra.mxu0 0.0
        %3107 = vmatprep.subr.mxu0 0.0
        %3108 = vmatpush1.msra.mxu0 0.0
        %3109 = vmatprep.subr.mxu0 0.0
        %3110 = vmatpush1.msra.mxu0 0.0
        %3111 = vmatprep.subr.mxu0 0.0
        %3112 = vmatpush1.msra.mxu0 0.0
        %3113 = vmatprep.subr.mxu0 0.0
        %3114 = vmatpush1.msra.mxu0 0.0
        %3115 = vmatprep.subr.mxu0 0.0
        %3116 = vmatpush1.msra.mxu0 0.0
        %3117 = vmatprep.subr.mxu0 0.0
        %3118 = vmatpush1.msra.mxu0 0.0
        %3119 = vmatprep.subr.mxu0 0.0
        %3120 = vmatpush1.msra.mxu0 0.0
        %3121 = vmatprep.subr.mxu0 0.0
        %3122 = vmatpush1.msra.mxu0 0.0
        %3123 = vmatprep.subr.mxu0 0.0
        %3124 = vmatpush1.msra.mxu0 0.0
        %3125 = vmatprep.subr.mxu0 0.0
        %3126 = vmatpush1.msra.mxu0 0.0
        %3127 = vmatprep.subr.mxu0 0.0
        %3128 = vmatpush1.msra.mxu0 0.0
        %3129 = vmatprep.subr.mxu0 0.0
        %3130 = vmatpush1.msra.mxu0 0.0
        %3131 = vmatprep.mubr.f32.mxu0 0.0
        %3132 = vmatmul.mubr.f32.gmra.mrb[0].mxu0 %v2908
        %v3133 = vpop.f32.mrb[0].mxu0
        %v3134 = vadd.f32 %v3064, %v3133
        %v3135 = vpop.f32.mrb[0].mxu0
        %3136 = vdwg.mxu0
        %s3137 = scalar_lea.vmem [#allocation5], 2
        %v3138 = vld [vmem:[%s3137] sm:$0x3]
        %v3139 = vadd.f32 %v3134, %v3138
        %v3140 = vsub.f32 0.0, %v3139
        %v3141 = vmul.f32 %v3140, 1.442695
        %v3142 = vpow.pop %v3141
        %v3143 = vadd.f32 %v3142, 1.0
        %v3144 = vrcp.pop %v3143
        %v3145 = vmul.f32 1.0, %v3144
        %v3146 = vld [vmem:[#allocation39] sm:$0xff]
        %v3147 = vld [vmem:[#allocation39 + $0x8] sm:$0xff]
        %v3148 = vld [vmem:[#allocation39 + $0x10] sm:$0xff]
        %v3149 = vld [vmem:[#allocation39 + $0x18] sm:$0xff]
        %v3150 = vmul.f32 %v2988, %v2823
        %v3151 = vld [vmem:[#allocation40] sm:$0xff]
        %v3152 = vld [vmem:[#allocation40 + $0x8] sm:$0xff]
        %v3153 = vld [vmem:[#allocation40 + $0x10] sm:$0xff]
        %v3154 = vld [vmem:[#allocation40 + $0x18] sm:$0xff]
        %v3156 = vsel %vm2268, %v3150, 0
        %3158 = vmatprep.subr.mxu0 0.0
        %3159 = vmatpush1.msra.mxu0 %v3151
        %3160 = vmatprep.subr.mxu0 0.0
        %3161 = vmatpush1.msra.mxu0 %v3152
        %3162 = vmatprep.subr.mxu0 0.0
        %3163 = vmatpush1.msra.mxu0 %v3153
        %3164 = vmatprep.subr.mxu0 0.0
        %3165 = vmatpush1.msra.mxu0 %v3154
        %3166 = vmatprep.subr.mxu0 0.0
        %3167 = vmatpush1.msra.mxu0 0.0
        %3168 = vmatprep.subr.mxu0 0.0
        %3169 = vmatpush1.msra.mxu0 0.0
        %3170 = vmatprep.subr.mxu0 0.0
        %3171 = vmatpush1.msra.mxu0 0.0
        %3172 = vmatprep.subr.mxu0 0.0
        %3173 = vmatpush1.msra.mxu0 0.0
        %3174 = vmatprep.subr.mxu0 0.0
        %3175 = vmatpush1.msra.mxu0 0.0
        %3176 = vmatprep.subr.mxu0 0.0
        %3177 = vmatpush1.msra.mxu0 0.0
        %3178 = vmatprep.subr.mxu0 0.0
        %3179 = vmatpush1.msra.mxu0 0.0
        %3180 = vmatprep.subr.mxu0 0.0
        %3181 = vmatpush1.msra.mxu0 0.0
        %3182 = vmatprep.subr.mxu0 0.0
        %3183 = vmatpush1.msra.mxu0 0.0
        %3184 = vmatprep.subr.mxu0 0.0
        %3185 = vmatpush1.msra.mxu0 0.0
        %3186 = vmatprep.subr.mxu0 0.0
        %3187 = vmatpush1.msra.mxu0 0.0
        %3188 = vmatprep.subr.mxu0 0.0
        %3189 = vmatpush1.msra.mxu0 0.0
        %3190 = vmatprep.subr.mxu0 0.0
        %3191 = vmatpush1.msra.mxu0 0.0
        %3192 = vmatprep.subr.mxu0 0.0
        %3193 = vmatpush1.msra.mxu0 0.0
        %3194 = vmatprep.subr.mxu0 0.0
        %3195 = vmatpush1.msra.mxu0 0.0
        %3196 = vmatprep.subr.mxu0 0.0
        %3197 = vmatpush1.msra.mxu0 0.0
        %3198 = vmatprep.subr.mxu0 0.0
        %3199 = vmatpush1.msra.mxu0 0.0
        %3200 = vmatprep.subr.mxu0 0.0
        %3201 = vmatpush1.msra.mxu0 0.0
        %3202 = vmatprep.subr.mxu0 0.0
        %3203 = vmatpush1.msra.mxu0 0.0
        %3204 = vmatprep.subr.mxu0 0.0
        %3205 = vmatpush1.msra.mxu0 0.0
        %3206 = vmatprep.subr.mxu0 0.0
        %3207 = vmatpush1.msra.mxu0 0.0
        %3208 = vmatprep.subr.mxu0 0.0
        %3209 = vmatpush1.msra.mxu0 0.0
        %3210 = vmatprep.subr.mxu0 0.0
        %3211 = vmatpush1.msra.mxu0 0.0
        %3212 = vmatprep.subr.mxu0 0.0
        %3213 = vmatpush1.msra.mxu0 0.0
        %3214 = vmatprep.subr.mxu0 0.0
        %3215 = vmatpush1.msra.mxu0 0.0
        %3216 = vmatprep.subr.mxu0 0.0
        %3217 = vmatpush1.msra.mxu0 0.0
        %3218 = vmatprep.subr.mxu0 0.0
        %3219 = vmatpush1.msra.mxu0 0.0
        %3220 = vmatprep.subr.mxu0 0.0
        %3221 = vmatpush1.msra.mxu0 0.0
        %3222 = vmatprep.mubr.f32.mxu0 0.0
        %3223 = vmatmul.mubr.f32.gmra.mrb[0].mxu0 %v3156
        %v3224 = vpop.f32.mrb[0].mxu0
        %v3225 = vadd.f32 0.0, %v3224
        %v3226 = vpop.f32.mrb[0].mxu0
        %3227 = vdwg.mxu0
        %3228 = vmatprep.subr.mxu0 0.0
        %3229 = vmatpush1.msra.mxu0 %v3146
        %3230 = vmatprep.subr.mxu0 0.0
        %3231 = vmatpush1.msra.mxu0 %v3147
        %3232 = vmatprep.subr.mxu0 0.0
        %3233 = vmatpush1.msra.mxu0 %v3148
        %3234 = vmatprep.subr.mxu0 0.0
        %3235 = vmatpush1.msra.mxu0 %v3149
        %3236 = vmatprep.subr.mxu0 0.0
        %3237 = vmatpush1.msra.mxu0 0.0
        %3238 = vmatprep.subr.mxu0 0.0
        %3239 = vmatpush1.msra.mxu0 0.0
        %3240 = vmatprep.subr.mxu0 0.0
        %3241 = vmatpush1.msra.mxu0 0.0
        %3242 = vmatprep.subr.mxu0 0.0
        %3243 = vmatpush1.msra.mxu0 0.0
        %3244 = vmatprep.subr.mxu0 0.0
        %3245 = vmatpush1.msra.mxu0 0.0
        %3246 = vmatprep.subr.mxu0 0.0
        %3247 = vmatpush1.msra.mxu0 0.0
        %3248 = vmatprep.subr.mxu0 0.0
        %3249 = vmatpush1.msra.mxu0 0.0
        %3250 = vmatprep.subr.mxu0 0.0
        %3251 = vmatpush1.msra.mxu0 0.0
        %3252 = vmatprep.subr.mxu0 0.0
        %3253 = vmatpush1.msra.mxu0 0.0
        %3254 = vmatprep.subr.mxu0 0.0
        %3255 = vmatpush1.msra.mxu0 0.0
        %3256 = vmatprep.subr.mxu0 0.0
        %3257 = vmatpush1.msra.mxu0 0.0
        %3258 = vmatprep.subr.mxu0 0.0
        %3259 = vmatpush1.msra.mxu0 0.0
        %3260 = vmatprep.subr.mxu0 0.0
        %3261 = vmatpush1.msra.mxu0 0.0
        %3262 = vmatprep.subr.mxu0 0.0
        %3263 = vmatpush1.msra.mxu0 0.0
        %3264 = vmatprep.subr.mxu0 0.0
        %3265 = vmatpush1.msra.mxu0 0.0
        %3266 = vmatprep.subr.mxu0 0.0
        %3267 = vmatpush1.msra.mxu0 0.0
        %3268 = vmatprep.subr.mxu0 0.0
        %3269 = vmatpush1.msra.mxu0 0.0
        %3270 = vmatprep.subr.mxu0 0.0
        %3271 = vmatpush1.msra.mxu0 0.0
        %3272 = vmatprep.subr.mxu0 0.0
        %3273 = vmatpush1.msra.mxu0 0.0
        %3274 = vmatprep.subr.mxu0 0.0
        %3275 = vmatpush1.msra.mxu0 0.0
        %3276 = vmatprep.subr.mxu0 0.0
        %3277 = vmatpush1.msra.mxu0 0.0
        %3278 = vmatprep.subr.mxu0 0.0
        %3279 = vmatpush1.msra.mxu0 0.0
        %3280 = vmatprep.subr.mxu0 0.0
        %3281 = vmatpush1.msra.mxu0 0.0
        %3282 = vmatprep.subr.mxu0 0.0
        %3283 = vmatpush1.msra.mxu0 0.0
        %3284 = vmatprep.subr.mxu0 0.0
        %3285 = vmatpush1.msra.mxu0 0.0
        %3286 = vmatprep.subr.mxu0 0.0
        %3287 = vmatpush1.msra.mxu0 0.0
        %3288 = vmatprep.subr.mxu0 0.0
        %3289 = vmatpush1.msra.mxu0 0.0
        %3290 = vmatprep.subr.mxu0 0.0
        %3291 = vmatpush1.msra.mxu0 0.0
        %3292 = vmatprep.mubr.f32.mxu0 0.0
        %3293 = vmatmul.mubr.f32.gmra.mrb[0].mxu0 %v2908
        %v3294 = vpop.f32.mrb[0].mxu0
        %v3295 = vadd.f32 %v3225, %v3294
        %v3296 = vpop.f32.mrb[0].mxu0
        %3297 = vdwg.mxu0
        %v3298 = vmul.f32 %v2988, %v2825
        %v3299 = vld [vmem:[#allocation42] sm:$0xff]
        %v3300 = vld [vmem:[#allocation42 + $0x8] sm:$0xff]
        %v3301 = vld [vmem:[#allocation42 + $0x10] sm:$0xff]
        %v3302 = vld [vmem:[#allocation42 + $0x18] sm:$0xff]
        %v3304 = vsel %vm2268, %v3298, 0
        %3306 = vmatprep.subr.mxu0 0.0
        %3307 = vmatpush1.msra.mxu0 %v3299
        %3308 = vmatprep.subr.mxu0 0.0
        %3309 = vmatpush1.msra.mxu0 %v3300
        %3310 = vmatprep.subr.mxu0 0.0
        %3311 = vmatpush1.msra.mxu0 %v3301
        %3312 = vmatprep.subr.mxu0 0.0
        %3313 = vmatpush1.msra.mxu0 %v3302
        %3314 = vmatprep.subr.mxu0 0.0
        %3315 = vmatpush1.msra.mxu0 0.0
        %3316 = vmatprep.subr.mxu0 0.0
        %3317 = vmatpush1.msra.mxu0 0.0
        %3318 = vmatprep.subr.mxu0 0.0
        %3319 = vmatpush1.msra.mxu0 0.0
        %3320 = vmatprep.subr.mxu0 0.0
        %3321 = vmatpush1.msra.mxu0 0.0
        %3322 = vmatprep.subr.mxu0 0.0
        %3323 = vmatpush1.msra.mxu0 0.0
        %3324 = vmatprep.subr.mxu0 0.0
        %3325 = vmatpush1.msra.mxu0 0.0
        %3326 = vmatprep.subr.mxu0 0.0
        %3327 = vmatpush1.msra.mxu0 0.0
        %3328 = vmatprep.subr.mxu0 0.0
        %3329 = vmatpush1.msra.mxu0 0.0
        %3330 = vmatprep.subr.mxu0 0.0
        %3331 = vmatpush1.msra.mxu0 0.0
        %3332 = vmatprep.subr.mxu0 0.0
        %3333 = vmatpush1.msra.mxu0 0.0
        %3334 = vmatprep.subr.mxu0 0.0
        %3335 = vmatpush1.msra.mxu0 0.0
        %3336 = vmatprep.subr.mxu0 0.0
        %3337 = vmatpush1.msra.mxu0 0.0
        %3338 = vmatprep.subr.mxu0 0.0
        %3339 = vmatpush1.msra.mxu0 0.0
        %3340 = vmatprep.subr.mxu0 0.0
        %3341 = vmatpush1.msra.mxu0 0.0
        %3342 = vmatprep.subr.mxu0 0.0
        %3343 = vmatpush1.msra.mxu0 0.0
        %3344 = vmatprep.subr.mxu0 0.0
        %3345 = vmatpush1.msra.mxu0 0.0
        %3346 = vmatprep.subr.mxu0 0.0
        %3347 = vmatpush1.msra.mxu0 0.0
        %3348 = vmatprep.subr.mxu0 0.0
        %3349 = vmatpush1.msra.mxu0 0.0
        %3350 = vmatprep.subr.mxu0 0.0
        %3351 = vmatpush1.msra.mxu0 0.0
        %3352 = vmatprep.subr.mxu0 0.0
        %3353 = vmatpush1.msra.mxu0 0.0
        %3354 = vmatprep.subr.mxu0 0.0
        %3355 = vmatpush1.msra.mxu0 0.0
        %3356 = vmatprep.subr.mxu0 0.0
        %3357 = vmatpush1.msra.mxu0 0.0
        %3358 = vmatprep.subr.mxu0 0.0
        %3359 = vmatpush1.msra.mxu0 0.0
        %3360 = vmatprep.subr.mxu0 0.0
        %3361 = vmatpush1.msra.mxu0 0.0
        %3362 = vmatprep.subr.mxu0 0.0
        %3363 = vmatpush1.msra.mxu0 0.0
        %3364 = vmatprep.subr.mxu0 0.0
        %3365 = vmatpush1.msra.mxu0 0.0
        %3366 = vmatprep.subr.mxu0 0.0
        %3367 = vmatpush1.msra.mxu0 0.0
        %3368 = vmatprep.subr.mxu0 0.0
        %3369 = vmatpush1.msra.mxu0 0.0
        %3370 = vmatprep.mubr.f32.mxu0 0.0
        %3371 = vmatmul.mubr.f32.gmra.mrb[0].mxu0 %v3304
        %v3372 = vpop.f32.mrb[0].mxu0
        %v3373 = vadd.f32 0.0, %v3372
        %v3374 = vpop.f32.mrb[0].mxu0
        %3375 = vdwg.mxu0
        %v3376 = vadd.f32 %v3295, %v3373
        %v3377 = vld [vmem:[#allocation43] sm:$0x1]
        %v3379 = vlaneseq
        %v3380 = vshrl.u32 %v3379, 7
        %v3381 = vsub.s32 0, %v3380
        %v3382 = vrot.slane %v3377, %v3381
        %v3384 = vadd.f32 %v3376, %v3382
        %v3385 = vtanh.pop %v3384
        %v3386 = vmul.f32 %v3145, %v2823
        %v3387 = vsub.f32 1.0, %v3145
        %v3388 = vmul.f32 %v3387, %v3385
        %v3389 = vadd.f32 %v3386, %v3388
        %3390 = vst.msk [vmem:[%s2822] sm:$0x3] %vm2820, %v3389
        %v3391 = vld [vmem:[%s57] sm:$0xff]
        %v3392 = vld [vmem:[%s57 + $0x8] sm:$0xff]
        %v3393 = vld [vmem:[%s57 + $0x10] sm:$0xff]
        %v3394 = vld [vmem:[%s57 + $0x18] sm:$0xff]
        %v3395 = vld [vmem:[%s57 + $0x20] sm:$0xff]
        %v3396 = vld [vmem:[%s57 + $0x28] sm:$0xff]
        %v3397 = vld [vmem:[%s57 + $0x30] sm:$0xff]
        %v3398 = vld [vmem:[%s57 + $0x38] sm:$0xff]
        %v3399 = vld [vmem:[%s57 + $0x40] sm:$0xff]
        %v3400 = vld [vmem:[%s57 + $0x48] sm:$0xff]
        %v3401 = vld [vmem:[%s57 + $0x50] sm:$0xff]
        %v3402 = vld [vmem:[%s57 + $0x58] sm:$0xff]
        %v3403 = vld [vmem:[%s57 + $0x60] sm:$0xff]
        %v3404 = vld [vmem:[%s57 + $0x68] sm:$0xff]
        %v3405 = vld [vmem:[%s57 + $0x70] sm:$0xff]
        %v3406 = vld [vmem:[%s57 + $0x78] sm:$0xff]
        %v3407 = vld [vmem:[%s59] sm:$0xff]
        %v3408 = vld [vmem:[%s59 + $0x8] sm:$0xff]
        %v3409 = vld [vmem:[%s59 + $0x10] sm:$0xff]
        %v3410 = vld [vmem:[%s59 + $0x18] sm:$0xff]
        %v3411 = vld [vmem:[%s59 + $0x20] sm:$0xff]
        %v3412 = vld [vmem:[%s59 + $0x28] sm:$0xff]
        %v3413 = vld [vmem:[%s59 + $0x30] sm:$0xff]
        %v3414 = vld [vmem:[%s59 + $0x38] sm:$0xff]
        %3415 = vmatprep.subr.mxu0 %v3408
        %3416 = vmatpush1.msra.mxu0 %v3407
        %3417 = vmatprep.subr.mxu0 %v3412
        %3418 = vmatpush1.msra.mxu0 %v3411
        %3419 = vmatprep.subr.mxu0 0.0
        %3420 = vmatpush1.msra.mxu0 0.0
        %3421 = vmatprep.subr.mxu0 0.0
        %3422 = vmatpush1.msra.mxu0 0.0
        %3423 = vmatprep.subr.mxu0 0.0
        %3424 = vmatpush1.msra.mxu0 0.0
        %3425 = vmatprep.subr.mxu0 0.0
        %3426 = vmatpush1.msra.mxu0 0.0
        %3427 = vmatprep.subr.mxu0 0.0
        %3428 = vmatpush1.msra.mxu0 0.0
        %3429 = vmatprep.subr.mxu0 0.0
        %3430 = vmatpush1.msra.mxu0 0.0
        %3431 = vmatprep.subr.mxu0 0.0
        %3432 = vmatpush1.msra.mxu0 0.0
        %3433 = vmatprep.subr.mxu0 0.0
        %3434 = vmatpush1.msra.mxu0 0.0
        %3435 = vmatprep.subr.mxu0 0.0
        %3436 = vmatpush1.msra.mxu0 0.0
        %3437 = vmatprep.subr.mxu0 0.0
        %3438 = vmatpush1.msra.mxu0 0.0
        %3439 = vmatprep.subr.mxu0 0.0
        %3440 = vmatpush1.msra.mxu0 0.0
        %3441 = vmatprep.subr.mxu0 0.0
        %3442 = vmatpush1.msra.mxu0 0.0
        %3443 = vmatprep.subr.mxu0 0.0
        %3444 = vmatpush1.msra.mxu0 0.0
        %3445 = vmatprep.subr.mxu0 0.0
        %3446 = vmatpush1.msra.mxu0 0.0
        %3447 = vmatprep.subr.mxu0 0.0
        %3448 = vmatpush1.msra.mxu0 0.0
        %3449 = vmatprep.subr.mxu0 0.0
        %3450 = vmatpush1.msra.mxu0 0.0
        %3451 = vmatprep.subr.mxu0 0.0
        %3452 = vmatpush1.msra.mxu0 0.0
        %3453 = vmatprep.subr.mxu0 0.0
        %3454 = vmatpush1.msra.mxu0 0.0
        %3455 = vmatprep.subr.mxu0 0.0
        %3456 = vmatpush1.msra.mxu0 0.0
        %3457 = vmatprep.subr.mxu0 0.0
        %3458 = vmatpush1.msra.mxu0 0.0
        %3459 = vmatprep.subr.mxu0 0.0
        %3460 = vmatpush1.msra.mxu0 0.0
        %3461 = vmatprep.subr.mxu0 0.0
        %3462 = vmatpush1.msra.mxu0 0.0
        %3463 = vmatprep.subr.mxu0 0.0
        %3464 = vmatpush1.msra.mxu0 0.0
        %3465 = vmatprep.subr.mxu0 0.0
        %3466 = vmatpush1.msra.mxu0 0.0
        %3467 = vmatprep.subr.mxu0 0.0
        %3468 = vmatpush1.msra.mxu0 0.0
        %3469 = vmatprep.subr.mxu0 0.0
        %3470 = vmatpush1.msra.mxu0 0.0
        %3471 = vmatprep.subr.mxu0 0.0
        %3472 = vmatpush1.msra.mxu0 0.0
        %3473 = vmatprep.subr.mxu0 0.0
        %3474 = vmatpush1.msra.mxu0 0.0
        %3475 = vmatprep.subr.mxu0 0.0
        %3476 = vmatpush1.msra.mxu0 0.0
        %3477 = vmatprep.subr.mxu0 0.0
        %3478 = vmatpush1.msra.mxu0 0.0
        %3479 = vmatprep.mubr.f32.mxu0 0.0
        %3480 = vmatmul.mubr.f32.gmra.mrb[0].mxu0 %v2344
        %v3481 = vpop.f32.mrb[0].mxu0
        %v3482 = vadd.f32 0.0, %v3481
        %v3483 = vpop.f32.mrb[0].mxu0
        %v3484 = vadd.f32 0.0, %v3483
        %3485 = vdwg.mxu0
        %3486 = vmatprep.subr.mxu0 %v3410
        %3487 = vmatpush1.msra.mxu0 %v3409
        %3488 = vmatprep.subr.mxu0 %v3414
        %3489 = vmatpush1.msra.mxu0 %v3413
        %3490 = vmatprep.subr.mxu0 0.0
        %3491 = vmatpush1.msra.mxu0 0.0
        %3492 = vmatprep.subr.mxu0 0.0
        %3493 = vmatpush1.msra.mxu0 0.0
        %3494 = vmatprep.subr.mxu0 0.0
        %3495 = vmatpush1.msra.mxu0 0.0
        %3496 = vmatprep.subr.mxu0 0.0
        %3497 = vmatpush1.msra.mxu0 0.0
        %3498 = vmatprep.subr.mxu0 0.0
        %3499 = vmatpush1.msra.mxu0 0.0
        %3500 = vmatprep.subr.mxu0 0.0
        %3501 = vmatpush1.msra.mxu0 0.0
        %3502 = vmatprep.subr.mxu0 0.0
        %3503 = vmatpush1.msra.mxu0 0.0
        %3504 = vmatprep.subr.mxu0 0.0
        %3505 = vmatpush1.msra.mxu0 0.0
        %3506 = vmatprep.subr.mxu0 0.0
        %3507 = vmatpush1.msra.mxu0 0.0
        %3508 = vmatprep.subr.mxu0 0.0
        %3509 = vmatpush1.msra.mxu0 0.0
        %3510 = vmatprep.subr.mxu0 0.0
        %3511 = vmatpush1.msra.mxu0 0.0
        %3512 = vmatprep.subr.mxu0 0.0
        %3513 = vmatpush1.msra.mxu0 0.0
        %3514 = vmatprep.subr.mxu0 0.0
        %3515 = vmatpush1.msra.mxu0 0.0
        %3516 = vmatprep.subr.mxu0 0.0
        %3517 = vmatpush1.msra.mxu0 0.0
        %3518 = vmatprep.subr.mxu0 0.0
        %3519 = vmatpush1.msra.mxu0 0.0
        %3520 = vmatprep.subr.mxu0 0.0
        %3521 = vmatpush1.msra.mxu0 0.0
        %3522 = vmatprep.subr.mxu0 0.0
        %3523 = vmatpush1.msra.mxu0 0.0
        %3524 = vmatprep.subr.mxu0 0.0
        %3525 = vmatpush1.msra.mxu0 0.0
        %3526 = vmatprep.subr.mxu0 0.0
        %3527 = vmatpush1.msra.mxu0 0.0
        %3528 = vmatprep.subr.mxu0 0.0
        %3529 = vmatpush1.msra.mxu0 0.0
        %3530 = vmatprep.subr.mxu0 0.0
        %3531 = vmatpush1.msra.mxu0 0.0
        %3532 = vmatprep.subr.mxu0 0.0
        %3533 = vmatpush1.msra.mxu0 0.0
        %3534 = vmatprep.subr.mxu0 0.0
        %3535 = vmatpush1.msra.mxu0 0.0
        %3536 = vmatprep.subr.mxu0 0.0
        %3537 = vmatpush1.msra.mxu0 0.0
        %3538 = vmatprep.subr.mxu0 0.0
        %3539 = vmatpush1.msra.mxu0 0.0
        %3540 = vmatprep.subr.mxu0 0.0
        %3541 = vmatpush1.msra.mxu0 0.0
        %3542 = vmatprep.subr.mxu0 0.0
        %3543 = vmatpush1.msra.mxu0 0.0
        %3544 = vmatprep.subr.mxu0 0.0
        %3545 = vmatpush1.msra.mxu0 0.0
        %3546 = vmatprep.subr.mxu0 0.0
        %3547 = vmatpush1.msra.mxu0 0.0
        %3548 = vmatprep.subr.mxu0 0.0
        %3549 = vmatpush1.msra.mxu0 0.0
        %3550 = vmatprep.mubr.f32.mxu0 0.0
        %3551 = vmatmul.mubr.f32.gmra.mrb[0].mxu0 %v2344
        %v3552 = vpop.f32.mrb[0].mxu0
        %v3553 = vadd.f32 0.0, %v3552
        %v3554 = vpop.f32.mrb[0].mxu0
        %v3555 = vadd.f32 0.0, %v3554
        %3556 = vdwg.mxu0
        %v3558 = vsel %vm2268, %v3389, 0
        %3560 = vmatprep.subr.mxu0 %v3392
        %3561 = vmatpush1.msra.mxu0 %v3391
        %3562 = vmatprep.subr.mxu0 %v3396
        %3563 = vmatpush1.msra.mxu0 %v3395
        %3564 = vmatprep.subr.mxu0 %v3400
        %3565 = vmatpush1.msra.mxu0 %v3399
        %3566 = vmatprep.subr.mxu0 %v3404
        %3567 = vmatpush1.msra.mxu0 %v3403
        %3568 = vmatprep.subr.mxu0 0.0
        %3569 = vmatpush1.msra.mxu0 0.0
        %3570 = vmatprep.subr.mxu0 0.0
        %3571 = vmatpush1.msra.mxu0 0.0
        %3572 = vmatprep.subr.mxu0 0.0
        %3573 = vmatpush1.msra.mxu0 0.0
        %3574 = vmatprep.subr.mxu0 0.0
        %3575 = vmatpush1.msra.mxu0 0.0
        %3576 = vmatprep.subr.mxu0 0.0
        %3577 = vmatpush1.msra.mxu0 0.0
        %3578 = vmatprep.subr.mxu0 0.0
        %3579 = vmatpush1.msra.mxu0 0.0
        %3580 = vmatprep.subr.mxu0 0.0
        %3581 = vmatpush1.msra.mxu0 0.0
        %3582 = vmatprep.subr.mxu0 0.0
        %3583 = vmatpush1.msra.mxu0 0.0
        %3584 = vmatprep.subr.mxu0 0.0
        %3585 = vmatpush1.msra.mxu0 0.0
        %3586 = vmatprep.subr.mxu0 0.0
        %3587 = vmatpush1.msra.mxu0 0.0
        %3588 = vmatprep.subr.mxu0 0.0
        %3589 = vmatpush1.msra.mxu0 0.0
        %3590 = vmatprep.subr.mxu0 0.0
        %3591 = vmatpush1.msra.mxu0 0.0
        %3592 = vmatprep.subr.mxu0 0.0
        %3593 = vmatpush1.msra.mxu0 0.0
        %3594 = vmatprep.subr.mxu0 0.0
        %3595 = vmatpush1.msra.mxu0 0.0
        %3596 = vmatprep.subr.mxu0 0.0
        %3597 = vmatpush1.msra.mxu0 0.0
        %3598 = vmatprep.subr.mxu0 0.0
        %3599 = vmatpush1.msra.mxu0 0.0
        %3600 = vmatprep.subr.mxu0 0.0
        %3601 = vmatpush1.msra.mxu0 0.0
        %3602 = vmatprep.subr.mxu0 0.0
        %3603 = vmatpush1.msra.mxu0 0.0
        %3604 = vmatprep.subr.mxu0 0.0
        %3605 = vmatpush1.msra.mxu0 0.0
        %3606 = vmatprep.subr.mxu0 0.0
        %3607 = vmatpush1.msra.mxu0 0.0
        %3608 = vmatprep.subr.mxu0 0.0
        %3609 = vmatpush1.msra.mxu0 0.0
        %3610 = vmatprep.subr.mxu0 0.0
        %3611 = vmatpush1.msra.mxu0 0.0
        %3612 = vmatprep.subr.mxu0 0.0
        %3613 = vmatpush1.msra.mxu0 0.0
        %3614 = vmatprep.subr.mxu0 0.0
        %3615 = vmatpush1.msra.mxu0 0.0
        %3616 = vmatprep.subr.mxu0 0.0
        %3617 = vmatpush1.msra.mxu0 0.0
        %3618 = vmatprep.subr.mxu0 0.0
        %3619 = vmatpush1.msra.mxu0 0.0
        %3620 = vmatprep.subr.mxu0 0.0
        %3621 = vmatpush1.msra.mxu0 0.0
        %3622 = vmatprep.subr.mxu0 0.0
        %3623 = vmatpush1.msra.mxu0 0.0
        %3624 = vmatprep.mubr.f32.mxu0 0.0
        %3625 = vmatmul.mubr.f32.gmra.mrb[0].mxu0 %v3558
        %v3626 = vpop.f32.mrb[0].mxu0
        %v3627 = vadd.f32 %v3482, %v3626
        %v3628 = vpop.f32.mrb[0].mxu0
        %v3629 = vadd.f32 %v3484, %v3628
        %3630 = vdwg.mxu0
        %3631 = vmatprep.subr.mxu0 %v3394
        %3632 = vmatpush1.msra.mxu0 %v3393
        %3633 = vmatprep.subr.mxu0 %v3398
        %3634 = vmatpush1.msra.mxu0 %v3397
        %3635 = vmatprep.subr.mxu0 %v3402
        %3636 = vmatpush1.msra.mxu0 %v3401
        %3637 = vmatprep.subr.mxu0 %v3406
        %3638 = vmatpush1.msra.mxu0 %v3405
        %3639 = vmatprep.subr.mxu0 0.0
        %3640 = vmatpush1.msra.mxu0 0.0
        %3641 = vmatprep.subr.mxu0 0.0
        %3642 = vmatpush1.msra.mxu0 0.0
        %3643 = vmatprep.subr.mxu0 0.0
        %3644 = vmatpush1.msra.mxu0 0.0
        %3645 = vmatprep.subr.mxu0 0.0
        %3646 = vmatpush1.msra.mxu0 0.0
        %3647 = vmatprep.subr.mxu0 0.0
        %3648 = vmatpush1.msra.mxu0 0.0
        %3649 = vmatprep.subr.mxu0 0.0
        %3650 = vmatpush1.msra.mxu0 0.0
        %3651 = vmatprep.subr.mxu0 0.0
        %3652 = vmatpush1.msra.mxu0 0.0
        %3653 = vmatprep.subr.mxu0 0.0
        %3654 = vmatpush1.msra.mxu0 0.0
        %3655 = vmatprep.subr.mxu0 0.0
        %3656 = vmatpush1.msra.mxu0 0.0
        %3657 = vmatprep.subr.mxu0 0.0
        %3658 = vmatpush1.msra.mxu0 0.0
        %3659 = vmatprep.subr.mxu0 0.0
        %3660 = vmatpush1.msra.mxu0 0.0
        %3661 = vmatprep.subr.mxu0 0.0
        %3662 = vmatpush1.msra.mxu0 0.0
        %3663 = vmatprep.subr.mxu0 0.0
        %3664 = vmatpush1.msra.mxu0 0.0
        %3665 = vmatprep.subr.mxu0 0.0
        %3666 = vmatpush1.msra.mxu0 0.0
        %3667 = vmatprep.subr.mxu0 0.0
        %3668 = vmatpush1.msra.mxu0 0.0
        %3669 = vmatprep.subr.mxu0 0.0
        %3670 = vmatpush1.msra.mxu0 0.0
        %3671 = vmatprep.subr.mxu0 0.0
        %3672 = vmatpush1.msra.mxu0 0.0
        %3673 = vmatprep.subr.mxu0 0.0
        %3674 = vmatpush1.msra.mxu0 0.0
        %3675 = vmatprep.subr.mxu0 0.0
        %3676 = vmatpush1.msra.mxu0 0.0
        %3677 = vmatprep.subr.mxu0 0.0
        %3678 = vmatpush1.msra.mxu0 0.0
        %3679 = vmatprep.subr.mxu0 0.0
        %3680 = vmatpush1.msra.mxu0 0.0
        %3681 = vmatprep.subr.mxu0 0.0
        %3682 = vmatpush1.msra.mxu0 0.0
        %3683 = vmatprep.subr.mxu0 0.0
        %3684 = vmatpush1.msra.mxu0 0.0
        %3685 = vmatprep.subr.mxu0 0.0
        %3686 = vmatpush1.msra.mxu0 0.0
        %3687 = vmatprep.subr.mxu0 0.0
        %3688 = vmatpush1.msra.mxu0 0.0
        %3689 = vmatprep.subr.mxu0 0.0
        %3690 = vmatpush1.msra.mxu0 0.0
        %3691 = vmatprep.subr.mxu0 0.0
        %3692 = vmatpush1.msra.mxu0 0.0
        %3693 = vmatprep.subr.mxu0 0.0
        %3694 = vmatpush1.msra.mxu0 0.0
        %3695 = vmatprep.mubr.f32.mxu0 0.0
        %3696 = vmatmul.mubr.f32.gmra.mrb[0].mxu0 %v3558
        %v3697 = vpop.f32.mrb[0].mxu0
        %v3698 = vadd.f32 %v3553, %v3697
        %v3699 = vpop.f32.mrb[0].mxu0
        %v3700 = vadd.f32 %v3555, %v3699
        %3701 = vdwg.mxu0
        %v3702 = vld [vmem:[#allocation6] sm:$0xff]
        %v3704 = vcombine.high %v3702, %v3702
        %v3706 = vunpack.c.l.s4 1983009808
        %v3707 = vunpack.c.0.s8 %v3706
        %v3708 = vlaneseq
        %v3709 = vshrl.u32 %v3708, 7
        %v3710 = vsub.s32 %v3707, %v3709
        %v3711 = vrot.slane %v3702, %v3710
        %v3713 = vunpack.c.l.s4 1983009808
        %v3714 = vunpack.c.0.s8 %v3713
        %v3715 = vlaneseq
        %v3716 = vshrl.u32 %v3715, 7
        %v3717 = vsub.s32 %v3714, %v3716
        %v3718 = vrot.slane %v3704, %v3717
        %v3719 = vcombine.high %v3711, %v3711
        %v3720 = vcombine.high %v3718, %v3718
        %v3725 = vadd.f32 %v3627, %v3711
        %v3726 = vadd.f32 %v3629, %v3719
        %v3727 = vadd.f32 %v3698, %v3718
        %v3728 = vadd.f32 %v3700, %v3720
        %v3729 = vld [vmem:[%s65] sm:$0xff]
        %v3730 = vld [vmem:[%s65 + $0x8] sm:$0xff]
        %v3731 = vld [vmem:[%s65 + $0x10] sm:$0xff]
        %v3732 = vld [vmem:[%s65 + $0x18] sm:$0xff]
        %v3733 = vld [vmem:[%s65 + $0x20] sm:$0xff]
        %v3734 = vld [vmem:[%s65 + $0x28] sm:$0xff]
        %v3735 = vld [vmem:[%s65 + $0x30] sm:$0xff]
        %v3736 = vld [vmem:[%s65 + $0x38] sm:$0xff]
        %v3737 = vld [vmem:[%s65 + $0x40] sm:$0xff]
        %v3738 = vld [vmem:[%s65 + $0x48] sm:$0xff]
        %v3739 = vld [vmem:[%s65 + $0x50] sm:$0xff]
        %v3740 = vld [vmem:[%s65 + $0x58] sm:$0xff]
        %v3741 = vld [vmem:[%s65 + $0x60] sm:$0xff]
        %v3742 = vld [vmem:[%s65 + $0x68] sm:$0xff]
        %v3743 = vld [vmem:[%s65 + $0x70] sm:$0xff]
        %v3744 = vld [vmem:[%s65 + $0x78] sm:$0xff]
        %v3745 = vld [vmem:[#allocation45] sm:$0xff]
        %v3746 = vld [vmem:[#allocation45 + $0x8] sm:$0xff]
        %v3747 = vld [vmem:[#allocation45 + $0x10] sm:$0xff]
        %v3748 = vld [vmem:[#allocation45 + $0x18] sm:$0xff]
        %v3749 = vld [vmem:[#allocation45 + $0x20] sm:$0xff]
        %v3750 = vld [vmem:[#allocation45 + $0x28] sm:$0xff]
        %v3751 = vld [vmem:[#allocation45 + $0x30] sm:$0xff]
        %v3752 = vld [vmem:[#allocation45 + $0x38] sm:$0xff]
        %3753 = vmatprep.subr.mxu0 %v3746
        %3754 = vmatpush1.msra.mxu0 %v3745
        %3755 = vmatprep.subr.mxu0 %v3750
        %3756 = vmatpush1.msra.mxu0 %v3749
        %3757 = vmatprep.subr.mxu0 0.0
        %3758 = vmatpush1.msra.mxu0 0.0
        %3759 = vmatprep.subr.mxu0 0.0
        %3760 = vmatpush1.msra.mxu0 0.0
        %3761 = vmatprep.subr.mxu0 0.0
        %3762 = vmatpush1.msra.mxu0 0.0
        %3763 = vmatprep.subr.mxu0 0.0
        %3764 = vmatpush1.msra.mxu0 0.0
        %3765 = vmatprep.subr.mxu0 0.0
        %3766 = vmatpush1.msra.mxu0 0.0
        %3767 = vmatprep.subr.mxu0 0.0
        %3768 = vmatpush1.msra.mxu0 0.0
        %3769 = vmatprep.subr.mxu0 0.0
        %3770 = vmatpush1.msra.mxu0 0.0
        %3771 = vmatprep.subr.mxu0 0.0
        %3772 = vmatpush1.msra.mxu0 0.0
        %3773 = vmatprep.subr.mxu0 0.0
        %3774 = vmatpush1.msra.mxu0 0.0
        %3775 = vmatprep.subr.mxu0 0.0
        %3776 = vmatpush1.msra.mxu0 0.0
        %3777 = vmatprep.subr.mxu0 0.0
        %3778 = vmatpush1.msra.mxu0 0.0
        %3779 = vmatprep.subr.mxu0 0.0
        %3780 = vmatpush1.msra.mxu0 0.0
        %3781 = vmatprep.subr.mxu0 0.0
        %3782 = vmatpush1.msra.mxu0 0.0
        %3783 = vmatprep.subr.mxu0 0.0
        %3784 = vmatpush1.msra.mxu0 0.0
        %3785 = vmatprep.subr.mxu0 0.0
        %3786 = vmatpush1.msra.mxu0 0.0
        %3787 = vmatprep.subr.mxu0 0.0
        %3788 = vmatpush1.msra.mxu0 0.0
        %3789 = vmatprep.subr.mxu0 0.0
        %3790 = vmatpush1.msra.mxu0 0.0
        %3791 = vmatprep.subr.mxu0 0.0
        %3792 = vmatpush1.msra.mxu0 0.0
        %3793 = vmatprep.subr.mxu0 0.0
        %3794 = vmatpush1.msra.mxu0 0.0
        %3795 = vmatprep.subr.mxu0 0.0
        %3796 = vmatpush1.msra.mxu0 0.0
        %3797 = vmatprep.subr.mxu0 0.0
        %3798 = vmatpush1.msra.mxu0 0.0
        %3799 = vmatprep.subr.mxu0 0.0
        %3800 = vmatpush1.msra.mxu0 0.0
        %3801 = vmatprep.subr.mxu0 0.0
        %3802 = vmatpush1.msra.mxu0 0.0
        %3803 = vmatprep.subr.mxu0 0.0
        %3804 = vmatpush1.msra.mxu0 0.0
        %3805 = vmatprep.subr.mxu0 0.0
        %3806 = vmatpush1.msra.mxu0 0.0
        %3807 = vmatprep.subr.mxu0 0.0
        %3808 = vmatpush1.msra.mxu0 0.0
        %3809 = vmatprep.subr.mxu0 0.0
        %3810 = vmatpush1.msra.mxu0 0.0
        %3811 = vmatprep.subr.mxu0 0.0
        %3812 = vmatpush1.msra.mxu0 0.0
        %3813 = vmatprep.subr.mxu0 0.0
        %3814 = vmatpush1.msra.mxu0 0.0
        %3815 = vmatprep.subr.mxu0 0.0
        %3816 = vmatpush1.msra.mxu0 0.0
        %3817 = vmatprep.mubr.f32.mxu0 0.0
        %3818 = vmatmul.mubr.f32.gmra.mrb[0].mxu0 %v2344
        %v3819 = vpop.f32.mrb[0].mxu0
        %v3820 = vadd.f32 0.0, %v3819
        %v3821 = vpop.f32.mrb[0].mxu0
        %v3822 = vadd.f32 0.0, %v3821
        %3823 = vdwg.mxu0
        %3824 = vmatprep.subr.mxu0 %v3748
        %3825 = vmatpush1.msra.mxu0 %v3747
        %3826 = vmatprep.subr.mxu0 %v3752
        %3827 = vmatpush1.msra.mxu0 %v3751
        %3828 = vmatprep.subr.mxu0 0.0
        %3829 = vmatpush1.msra.mxu0 0.0
        %3830 = vmatprep.subr.mxu0 0.0
        %3831 = vmatpush1.msra.mxu0 0.0
        %3832 = vmatprep.subr.mxu0 0.0
        %3833 = vmatpush1.msra.mxu0 0.0
        %3834 = vmatprep.subr.mxu0 0.0
        %3835 = vmatpush1.msra.mxu0 0.0
        %3836 = vmatprep.subr.mxu0 0.0
        %3837 = vmatpush1.msra.mxu0 0.0
        %3838 = vmatprep.subr.mxu0 0.0
        %3839 = vmatpush1.msra.mxu0 0.0
        %3840 = vmatprep.subr.mxu0 0.0
        %3841 = vmatpush1.msra.mxu0 0.0
        %3842 = vmatprep.subr.mxu0 0.0
        %3843 = vmatpush1.msra.mxu0 0.0
        %3844 = vmatprep.subr.mxu0 0.0
        %3845 = vmatpush1.msra.mxu0 0.0
        %3846 = vmatprep.subr.mxu0 0.0
        %3847 = vmatpush1.msra.mxu0 0.0
        %3848 = vmatprep.subr.mxu0 0.0
        %3849 = vmatpush1.msra.mxu0 0.0
        %3850 = vmatprep.subr.mxu0 0.0
        %3851 = vmatpush1.msra.mxu0 0.0
        %3852 = vmatprep.subr.mxu0 0.0
        %3853 = vmatpush1.msra.mxu0 0.0
        %3854 = vmatprep.subr.mxu0 0.0
        %3855 = vmatpush1.msra.mxu0 0.0
        %3856 = vmatprep.subr.mxu0 0.0
        %3857 = vmatpush1.msra.mxu0 0.0
        %3858 = vmatprep.subr.mxu0 0.0
        %3859 = vmatpush1.msra.mxu0 0.0
        %3860 = vmatprep.subr.mxu0 0.0
        %3861 = vmatpush1.msra.mxu0 0.0
        %3862 = vmatprep.subr.mxu0 0.0
        %3863 = vmatpush1.msra.mxu0 0.0
        %3864 = vmatprep.subr.mxu0 0.0
        %3865 = vmatpush1.msra.mxu0 0.0
        %3866 = vmatprep.subr.mxu0 0.0
        %3867 = vmatpush1.msra.mxu0 0.0
        %3868 = vmatprep.subr.mxu0 0.0
        %3869 = vmatpush1.msra.mxu0 0.0
        %3870 = vmatprep.subr.mxu0 0.0
        %3871 = vmatpush1.msra.mxu0 0.0
        %3872 = vmatprep.subr.mxu0 0.0
        %3873 = vmatpush1.msra.mxu0 0.0
        %3874 = vmatprep.subr.mxu0 0.0
        %3875 = vmatpush1.msra.mxu0 0.0
        %3876 = vmatprep.subr.mxu0 0.0
        %3877 = vmatpush1.msra.mxu0 0.0
        %3878 = vmatprep.subr.mxu0 0.0
        %3879 = vmatpush1.msra.mxu0 0.0
        %3880 = vmatprep.subr.mxu0 0.0
        %3881 = vmatpush1.msra.mxu0 0.0
        %3882 = vmatprep.subr.mxu0 0.0
        %3883 = vmatpush1.msra.mxu0 0.0
        %3884 = vmatprep.subr.mxu0 0.0
        %3885 = vmatpush1.msra.mxu0 0.0
        %3886 = vmatprep.subr.mxu0 0.0
        %3887 = vmatpush1.msra.mxu0 0.0
        %3888 = vmatprep.mubr.f32.mxu0 0.0
        %3889 = vmatmul.mubr.f32.gmra.mrb[0].mxu0 %v2344
        %v3890 = vpop.f32.mrb[0].mxu0
        %v3891 = vadd.f32 0.0, %v3890
        %v3892 = vpop.f32.mrb[0].mxu0
        %v3893 = vadd.f32 0.0, %v3892
        %3894 = vdwg.mxu0
        %3895 = vmatprep.subr.mxu0 %v3730
        %3896 = vmatpush1.msra.mxu0 %v3729
        %3897 = vmatprep.subr.mxu0 %v3734
        %3898 = vmatpush1.msra.mxu0 %v3733
        %3899 = vmatprep.subr.mxu0 %v3738
        %3900 = vmatpush1.msra.mxu0 %v3737
        %3901 = vmatprep.subr.mxu0 %v3742
        %3902 = vmatpush1.msra.mxu0 %v3741
        %3903 = vmatprep.subr.mxu0 0.0
        %3904 = vmatpush1.msra.mxu0 0.0
        %3905 = vmatprep.subr.mxu0 0.0
        %3906 = vmatpush1.msra.mxu0 0.0
        %3907 = vmatprep.subr.mxu0 0.0
        %3908 = vmatpush1.msra.mxu0 0.0
        %3909 = vmatprep.subr.mxu0 0.0
        %3910 = vmatpush1.msra.mxu0 0.0
        %3911 = vmatprep.subr.mxu0 0.0
        %3912 = vmatpush1.msra.mxu0 0.0
        %3913 = vmatprep.subr.mxu0 0.0
        %3914 = vmatpush1.msra.mxu0 0.0
        %3915 = vmatprep.subr.mxu0 0.0
        %3916 = vmatpush1.msra.mxu0 0.0
        %3917 = vmatprep.subr.mxu0 0.0
        %3918 = vmatpush1.msra.mxu0 0.0
        %3919 = vmatprep.subr.mxu0 0.0
        %3920 = vmatpush1.msra.mxu0 0.0
        %3921 = vmatprep.subr.mxu0 0.0
        %3922 = vmatpush1.msra.mxu0 0.0
        %3923 = vmatprep.subr.mxu0 0.0
        %3924 = vmatpush1.msra.mxu0 0.0
        %3925 = vmatprep.subr.mxu0 0.0
        %3926 = vmatpush1.msra.mxu0 0.0
        %3927 = vmatprep.subr.mxu0 0.0
        %3928 = vmatpush1.msra.mxu0 0.0
        %3929 = vmatprep.subr.mxu0 0.0
        %3930 = vmatpush1.msra.mxu0 0.0
        %3931 = vmatprep.subr.mxu0 0.0
        %3932 = vmatpush1.msra.mxu0 0.0
        %3933 = vmatprep.subr.mxu0 0.0
        %3934 = vmatpush1.msra.mxu0 0.0
        %3935 = vmatprep.subr.mxu0 0.0
        %3936 = vmatpush1.msra.mxu0 0.0
        %3937 = vmatprep.subr.mxu0 0.0
        %3938 = vmatpush1.msra.mxu0 0.0
        %3939 = vmatprep.subr.mxu0 0.0
        %3940 = vmatpush1.msra.mxu0 0.0
        %3941 = vmatprep.subr.mxu0 0.0
        %3942 = vmatpush1.msra.mxu0 0.0
        %3943 = vmatprep.subr.mxu0 0.0
        %3944 = vmatpush1.msra.mxu0 0.0
        %3945 = vmatprep.subr.mxu0 0.0
        %3946 = vmatpush1.msra.mxu0 0.0
        %3947 = vmatprep.subr.mxu0 0.0
        %3948 = vmatpush1.msra.mxu0 0.0
        %3949 = vmatprep.subr.mxu0 0.0
        %3950 = vmatpush1.msra.mxu0 0.0
        %3951 = vmatprep.subr.mxu0 0.0
        %3952 = vmatpush1.msra.mxu0 0.0
        %3953 = vmatprep.subr.mxu0 0.0
        %3954 = vmatpush1.msra.mxu0 0.0
        %3955 = vmatprep.subr.mxu0 0.0
        %3956 = vmatpush1.msra.mxu0 0.0
        %3957 = vmatprep.subr.mxu0 0.0
        %3958 = vmatpush1.msra.mxu0 0.0
        %3959 = vmatprep.mubr.f32.mxu0 0.0
        %3960 = vmatmul.mubr.f32.gmra.mrb[0].mxu0 %v3558
        %v3961 = vpop.f32.mrb[0].mxu0
        %v3962 = vadd.f32 %v3820, %v3961
        %v3963 = vpop.f32.mrb[0].mxu0
        %v3964 = vadd.f32 %v3822, %v3963
        %3965 = vdwg.mxu0
        %3966 = vmatprep.subr.mxu0 %v3732
        %3967 = vmatpush1.msra.mxu0 %v3731
        %3968 = vmatprep.subr.mxu0 %v3736
        %3969 = vmatpush1.msra.mxu0 %v3735
        %3970 = vmatprep.subr.mxu0 %v3740
        %3971 = vmatpush1.msra.mxu0 %v3739
        %3972 = vmatprep.subr.mxu0 %v3744
        %3973 = vmatpush1.msra.mxu0 %v3743
        %3974 = vmatprep.subr.mxu0 0.0
        %3975 = vmatpush1.msra.mxu0 0.0
        %3976 = vmatprep.subr.mxu0 0.0
        %3977 = vmatpush1.msra.mxu0 0.0
        %3978 = vmatprep.subr.mxu0 0.0
        %3979 = vmatpush1.msra.mxu0 0.0
        %3980 = vmatprep.subr.mxu0 0.0
        %3981 = vmatpush1.msra.mxu0 0.0
        %3982 = vmatprep.subr.mxu0 0.0
        %3983 = vmatpush1.msra.mxu0 0.0
        %3984 = vmatprep.subr.mxu0 0.0
        %3985 = vmatpush1.msra.mxu0 0.0
        %3986 = vmatprep.subr.mxu0 0.0
        %3987 = vmatpush1.msra.mxu0 0.0
        %3988 = vmatprep.subr.mxu0 0.0
        %3989 = vmatpush1.msra.mxu0 0.0
        %3990 = vmatprep.subr.mxu0 0.0
        %3991 = vmatpush1.msra.mxu0 0.0
        %3992 = vmatprep.subr.mxu0 0.0
        %3993 = vmatpush1.msra.mxu0 0.0
        %3994 = vmatprep.subr.mxu0 0.0
        %3995 = vmatpush1.msra.mxu0 0.0
        %3996 = vmatprep.subr.mxu0 0.0
        %3997 = vmatpush1.msra.mxu0 0.0
        %3998 = vmatprep.subr.mxu0 0.0
        %3999 = vmatpush1.msra.mxu0 0.0
        %4000 = vmatprep.subr.mxu0 0.0
        %4001 = vmatpush1.msra.mxu0 0.0
        %4002 = vmatprep.subr.mxu0 0.0
        %4003 = vmatpush1.msra.mxu0 0.0
        %4004 = vmatprep.subr.mxu0 0.0
        %4005 = vmatpush1.msra.mxu0 0.0
        %4006 = vmatprep.subr.mxu0 0.0
        %4007 = vmatpush1.msra.mxu0 0.0
        %4008 = vmatprep.subr.mxu0 0.0
        %4009 = vmatpush1.msra.mxu0 0.0
        %4010 = vmatprep.subr.mxu0 0.0
        %4011 = vmatpush1.msra.mxu0 0.0
        %4012 = vmatprep.subr.mxu0 0.0
        %4013 = vmatpush1.msra.mxu0 0.0
        %4014 = vmatprep.subr.mxu0 0.0
        %4015 = vmatpush1.msra.mxu0 0.0
        %4016 = vmatprep.subr.mxu0 0.0
        %4017 = vmatpush1.msra.mxu0 0.0
        %4018 = vmatprep.subr.mxu0 0.0
        %4019 = vmatpush1.msra.mxu0 0.0
        %4020 = vmatprep.subr.mxu0 0.0
        %4021 = vmatpush1.msra.mxu0 0.0
        %4022 = vmatprep.subr.mxu0 0.0
        %4023 = vmatpush1.msra.mxu0 0.0
        %4024 = vmatprep.subr.mxu0 0.0
        %4025 = vmatpush1.msra.mxu0 0.0
        %4026 = vmatprep.subr.mxu0 0.0
        %4027 = vmatpush1.msra.mxu0 0.0
        %4028 = vmatprep.subr.mxu0 0.0
        %4029 = vmatpush1.msra.mxu0 0.0
        %4030 = vmatprep.mubr.f32.mxu0 0.0
        %4031 = vmatmul.mubr.f32.gmra.mrb[0].mxu0 %v3558
        %v4032 = vpop.f32.mrb[0].mxu0
        %v4033 = vadd.f32 %v3891, %v4032
        %v4034 = vpop.f32.mrb[0].mxu0
        %v4035 = vadd.f32 %v3893, %v4034
        %4036 = vdwg.mxu0
        %v4037 = vld [vmem:[#allocation7] sm:$0xff]
        %v4039 = vcombine.high %v4037, %v4037
        %v4041 = vunpack.c.l.s4 1983009808
        %v4042 = vunpack.c.0.s8 %v4041
        %v4043 = vlaneseq
        %v4044 = vshrl.u32 %v4043, 7
        %v4045 = vsub.s32 %v4042, %v4044
        %v4046 = vrot.slane %v4037, %v4045
        %v4048 = vunpack.c.l.s4 1983009808
        %v4049 = vunpack.c.0.s8 %v4048
        %v4050 = vlaneseq
        %v4051 = vshrl.u32 %v4050, 7
        %v4052 = vsub.s32 %v4049, %v4051
        %v4053 = vrot.slane %v4039, %v4052
        %v4054 = vcombine.high %v4046, %v4046
        %v4055 = vcombine.high %v4053, %v4053
        %v4060 = vadd.f32 %v3962, %v4046
        %v4061 = vadd.f32 %v3964, %v4054
        %v4062 = vadd.f32 %v4033, %v4053
        %v4063 = vadd.f32 %v4035, %v4055
        %v4064 = vmax.f32 %v3725, %v4060
        %v4065 = vmax.f32 %v3726, %v4061
        %v4066 = vmax.f32 %v3727, %v4062
        %v4067 = vmax.f32 %v3728, %v4063
        %v4068 = vld [vmem:[%s73] sm:$0xff]
        %v4069 = vld [vmem:[%s73 + $0x8] sm:$0xff]
        %v4070 = vld [vmem:[%s73 + $0x10] sm:$0xff]
        %v4071 = vld [vmem:[%s73 + $0x18] sm:$0xff]
        %v4072 = vld [vmem:[%s73 + $0x20] sm:$0xff]
        %v4073 = vld [vmem:[%s73 + $0x28] sm:$0xff]
        %v4074 = vld [vmem:[%s73 + $0x30] sm:$0xff]
        %v4075 = vld [vmem:[%s73 + $0x38] sm:$0xff]
        %v4076 = vld [vmem:[%s73 + $0x40] sm:$0xff]
        %v4077 = vld [vmem:[%s73 + $0x48] sm:$0xff]
        %v4078 = vld [vmem:[%s73 + $0x50] sm:$0xff]
        %v4079 = vld [vmem:[%s73 + $0x58] sm:$0xff]
        %v4080 = vld [vmem:[%s73 + $0x60] sm:$0xff]
        %v4081 = vld [vmem:[%s73 + $0x68] sm:$0xff]
        %v4082 = vld [vmem:[%s73 + $0x70] sm:$0xff]
        %v4083 = vld [vmem:[%s73 + $0x78] sm:$0xff]
        %v4084 = vld [vmem:[%s73 + $0x80] sm:$0xff]
        %v4085 = vld [vmem:[%s73 + $0x88] sm:$0xff]
        %v4086 = vld [vmem:[%s73 + $0x90] sm:$0xff]
        %v4087 = vld [vmem:[%s73 + $0x98] sm:$0xff]
        %v4088 = vld [vmem:[%s73 + $0xa0] sm:$0xff]
        %v4089 = vld [vmem:[%s73 + $0xa8] sm:$0xff]
        %v4090 = vld [vmem:[%s73 + $0xb0] sm:$0xff]
        %v4091 = vld [vmem:[%s73 + $0xb8] sm:$0xff]
        %v4092 = vld [vmem:[%s73 + $0xc0] sm:$0xff]
        %v4093 = vld [vmem:[%s73 + $0xc8] sm:$0xff]
        %v4094 = vld [vmem:[%s73 + $0xd0] sm:$0xff]
        %v4095 = vld [vmem:[%s73 + $0xd8] sm:$0xff]
        %v4096 = vld [vmem:[%s73 + $0xe0] sm:$0xff]
        %v4097 = vld [vmem:[%s73 + $0xe8] sm:$0xff]
        %v4098 = vld [vmem:[%s73 + $0xf0] sm:$0xff]
        %v4099 = vld [vmem:[%s73 + $0xf8] sm:$0xff]
        %v4100 = vld [vmem:[%s73 + $0x100] sm:$0xff]
        %v4101 = vld [vmem:[%s73 + $0x108] sm:$0xff]
        %v4102 = vld [vmem:[%s73 + $0x110] sm:$0xff]
        %v4103 = vld [vmem:[%s73 + $0x118] sm:$0xff]
        %v4104 = vld [vmem:[%s73 + $0x120] sm:$0xff]
        %v4105 = vld [vmem:[%s73 + $0x128] sm:$0xff]
        %v4106 = vld [vmem:[%s73 + $0x130] sm:$0xff]
        %v4107 = vld [vmem:[%s73 + $0x138] sm:$0xff]
        %v4108 = vld [vmem:[%s73 + $0x140] sm:$0xff]
        %v4109 = vld [vmem:[%s73 + $0x148] sm:$0xff]
        %v4110 = vld [vmem:[%s73 + $0x150] sm:$0xff]
        %v4111 = vld [vmem:[%s73 + $0x158] sm:$0xff]
        %v4112 = vld [vmem:[%s73 + $0x160] sm:$0xff]
        %v4113 = vld [vmem:[%s73 + $0x168] sm:$0xff]
        %v4114 = vld [vmem:[%s73 + $0x170] sm:$0xff]
        %v4115 = vld [vmem:[%s73 + $0x178] sm:$0xff]
        %v4116 = vld [vmem:[%s73 + $0x180] sm:$0xff]
        %v4117 = vld [vmem:[%s73 + $0x188] sm:$0xff]
        %v4118 = vld [vmem:[%s73 + $0x190] sm:$0xff]
        %v4119 = vld [vmem:[%s73 + $0x198] sm:$0xff]
        %v4120 = vld [vmem:[%s73 + $0x1a0] sm:$0xff]
        %v4121 = vld [vmem:[%s73 + $0x1a8] sm:$0xff]
        %v4122 = vld [vmem:[%s73 + $0x1b0] sm:$0xff]
        %v4123 = vld [vmem:[%s73 + $0x1b8] sm:$0xff]
        %v4124 = vld [vmem:[%s73 + $0x1c0] sm:$0xff]
        %v4125 = vld [vmem:[%s73 + $0x1c8] sm:$0xff]
        %v4126 = vld [vmem:[%s73 + $0x1d0] sm:$0xff]
        %v4127 = vld [vmem:[%s73 + $0x1d8] sm:$0xff]
        %v4128 = vld [vmem:[%s73 + $0x1e0] sm:$0xff]
        %v4129 = vld [vmem:[%s73 + $0x1e8] sm:$0xff]
        %v4130 = vld [vmem:[%s73 + $0x1f0] sm:$0xff]
        %v4131 = vld [vmem:[%s73 + $0x1f8] sm:$0xff]
        %v4132 = vld [vmem:[%s75] sm:$0x1]
        %v4134 = vlaneseq
        %v4135 = vshrl.u32 %v4134, 7
        %v4136 = vsub.s32 0, %v4135
        %v4137 = vrot.slane %v4132, %v4136
        %4139 = vmatprep.subr.mxu0 0.0
        %4140 = vmatpush1.msra.mxu0 %v4068
        %4141 = vmatprep.subr.mxu0 0.0
        %4142 = vmatpush1.msra.mxu0 %v4069
        %4143 = vmatprep.subr.mxu0 0.0
        %4144 = vmatpush1.msra.mxu0 %v4070
        %4145 = vmatprep.subr.mxu0 0.0
        %4146 = vmatpush1.msra.mxu0 %v4071
        %4147 = vmatprep.subr.mxu0 0.0
        %4148 = vmatpush1.msra.mxu0 %v4072
        %4149 = vmatprep.subr.mxu0 0.0
        %4150 = vmatpush1.msra.mxu0 %v4073
        %4151 = vmatprep.subr.mxu0 0.0
        %4152 = vmatpush1.msra.mxu0 %v4074
        %4153 = vmatprep.subr.mxu0 0.0
        %4154 = vmatpush1.msra.mxu0 %v4075
        %4155 = vmatprep.subr.mxu0 0.0
        %4156 = vmatpush1.msra.mxu0 %v4076
        %4157 = vmatprep.subr.mxu0 0.0
        %4158 = vmatpush1.msra.mxu0 %v4077
        %4159 = vmatprep.subr.mxu0 0.0
        %4160 = vmatpush1.msra.mxu0 %v4078
        %4161 = vmatprep.subr.mxu0 0.0
        %4162 = vmatpush1.msra.mxu0 %v4079
        %4163 = vmatprep.subr.mxu0 0.0
        %4164 = vmatpush1.msra.mxu0 %v4080
        %4165 = vmatprep.subr.mxu0 0.0
        %4166 = vmatpush1.msra.mxu0 %v4081
        %4167 = vmatprep.subr.mxu0 0.0
        %4168 = vmatpush1.msra.mxu0 %v4082
        %4169 = vmatprep.subr.mxu0 0.0
        %4170 = vmatpush1.msra.mxu0 %v4083
        %4171 = vmatprep.subr.mxu0 0.0
        %4172 = vmatpush1.msra.mxu0 %v4084
        %4173 = vmatprep.subr.mxu0 0.0
        %4174 = vmatpush1.msra.mxu0 %v4085
        %4175 = vmatprep.subr.mxu0 0.0
        %4176 = vmatpush1.msra.mxu0 %v4086
        %4177 = vmatprep.subr.mxu0 0.0
        %4178 = vmatpush1.msra.mxu0 %v4087
        %4179 = vmatprep.subr.mxu0 0.0
        %4180 = vmatpush1.msra.mxu0 %v4088
        %4181 = vmatprep.subr.mxu0 0.0
        %4182 = vmatpush1.msra.mxu0 %v4089
        %4183 = vmatprep.subr.mxu0 0.0
        %4184 = vmatpush1.msra.mxu0 %v4090
        %4185 = vmatprep.subr.mxu0 0.0
        %4186 = vmatpush1.msra.mxu0 %v4091
        %4187 = vmatprep.subr.mxu0 0.0
        %4188 = vmatpush1.msra.mxu0 %v4092
        %4189 = vmatprep.subr.mxu0 0.0
        %4190 = vmatpush1.msra.mxu0 %v4093
        %4191 = vmatprep.subr.mxu0 0.0
        %4192 = vmatpush1.msra.mxu0 %v4094
        %4193 = vmatprep.subr.mxu0 0.0
        %4194 = vmatpush1.msra.mxu0 %v4095
        %4195 = vmatprep.subr.mxu0 0.0
        %4196 = vmatpush1.msra.mxu0 %v4096
        %4197 = vmatprep.subr.mxu0 0.0
        %4198 = vmatpush1.msra.mxu0 %v4097
        %4199 = vmatprep.subr.mxu0 0.0
        %4200 = vmatpush1.msra.mxu0 %v4098
        %4201 = vmatprep.subr.mxu0 0.0
        %4202 = vmatpush1.msra.mxu0 %v4099
        %4203 = vmatprep.mubr.f32.mxu0 %v4065
        %4204 = vmatmul.mubr.f32.gmra.mrb[0].mxu0 %v4064
        %v4205 = vpop.f32.mrb[0].mxu0
        %v4206 = vadd.f32 %v4137, %v4205
        %v4207 = vpop.f32.mrb[0].mxu0
        %4208 = vdwg.mxu0
        %4209 = vmatprep.subr.mxu0 0.0
        %4210 = vmatpush1.msra.mxu0 %v4100
        %4211 = vmatprep.subr.mxu0 0.0
        %4212 = vmatpush1.msra.mxu0 %v4101
        %4213 = vmatprep.subr.mxu0 0.0
        %4214 = vmatpush1.msra.mxu0 %v4102
        %4215 = vmatprep.subr.mxu0 0.0
        %4216 = vmatpush1.msra.mxu0 %v4103
        %4217 = vmatprep.subr.mxu0 0.0
        %4218 = vmatpush1.msra.mxu0 %v4104
        %4219 = vmatprep.subr.mxu0 0.0
        %4220 = vmatpush1.msra.mxu0 %v4105
        %4221 = vmatprep.subr.mxu0 0.0
        %4222 = vmatpush1.msra.mxu0 %v4106
        %4223 = vmatprep.subr.mxu0 0.0
        %4224 = vmatpush1.msra.mxu0 %v4107
        %4225 = vmatprep.subr.mxu0 0.0
        %4226 = vmatpush1.msra.mxu0 %v4108
        %4227 = vmatprep.subr.mxu0 0.0
        %4228 = vmatpush1.msra.mxu0 %v4109
        %4229 = vmatprep.subr.mxu0 0.0
        %4230 = vmatpush1.msra.mxu0 %v4110
        %4231 = vmatprep.subr.mxu0 0.0
        %4232 = vmatpush1.msra.mxu0 %v4111
        %4233 = vmatprep.subr.mxu0 0.0
        %4234 = vmatpush1.msra.mxu0 %v4112
        %4235 = vmatprep.subr.mxu0 0.0
        %4236 = vmatpush1.msra.mxu0 %v4113
        %4237 = vmatprep.subr.mxu0 0.0
        %4238 = vmatpush1.msra.mxu0 %v4114
        %4239 = vmatprep.subr.mxu0 0.0
        %4240 = vmatpush1.msra.mxu0 %v4115
        %4241 = vmatprep.subr.mxu0 0.0
        %4242 = vmatpush1.msra.mxu0 %v4116
        %4243 = vmatprep.subr.mxu0 0.0
        %4244 = vmatpush1.msra.mxu0 %v4117
        %4245 = vmatprep.subr.mxu0 0.0
        %4246 = vmatpush1.msra.mxu0 %v4118
        %4247 = vmatprep.subr.mxu0 0.0
        %4248 = vmatpush1.msra.mxu0 %v4119
        %4249 = vmatprep.subr.mxu0 0.0
        %4250 = vmatpush1.msra.mxu0 %v4120
        %4251 = vmatprep.subr.mxu0 0.0
        %4252 = vmatpush1.msra.mxu0 %v4121
        %4253 = vmatprep.subr.mxu0 0.0
        %4254 = vmatpush1.msra.mxu0 %v4122
        %4255 = vmatprep.subr.mxu0 0.0
        %4256 = vmatpush1.msra.mxu0 %v4123
        %4257 = vmatprep.subr.mxu0 0.0
        %4258 = vmatpush1.msra.mxu0 %v4124
        %4259 = vmatprep.subr.mxu0 0.0
        %4260 = vmatpush1.msra.mxu0 %v4125
        %4261 = vmatprep.subr.mxu0 0.0
        %4262 = vmatpush1.msra.mxu0 %v4126
        %4263 = vmatprep.subr.mxu0 0.0
        %4264 = vmatpush1.msra.mxu0 %v4127
        %4265 = vmatprep.subr.mxu0 0.0
        %4266 = vmatpush1.msra.mxu0 %v4128
        %4267 = vmatprep.subr.mxu0 0.0
        %4268 = vmatpush1.msra.mxu0 %v4129
        %4269 = vmatprep.subr.mxu0 0.0
        %4270 = vmatpush1.msra.mxu0 %v4130
        %4271 = vmatprep.subr.mxu0 0.0
        %4272 = vmatpush1.msra.mxu0 %v4131
        %4273 = vmatprep.mubr.f32.mxu0 %v4067
        %4274 = vmatmul.mubr.f32.gmra.mrb[0].mxu0 %v4066
        %v4275 = vpop.f32.mrb[0].mxu0
        %v4276 = vadd.f32 %v4206, %v4275
        %v4277 = vpop.f32.mrb[0].mxu0
        %4278 = vdwg.mxu0
        %4279 = vst [vmem:[%s1496] sm:$0x3] %v4276
        %v4280 = vlaneseq
        %v4281 = vand.u32 %v4280, 127
        %v4282 = vcvt.s32.f32 %v4281
        %vm4283 = vcmp.lt.f32.partialorder %v4282, 24.0
        %v4284 = vsel %vm4283, %v4276, -1e+30
        %vm4285 = vcmask 1041408
        %v4286 = vsel %vm4285, %v4284, -inf
        %4287 = vmax.xlane.f32.xlu0 %v4286
        %v4288 = vpop.xlane.xlu0 %4287
        %vm4289 = vcmp.eq.f32.partialorder %v4284, %v4288
        %v4290 = vsel %vm4289, %v4282, 128.0
        %v4291 = vsel %vm4285, %v4290, inf
        %4292 = vmin.xlane.f32.xlu0 %v4291
        %v4293 = vpop.xlane.xlu0 %4292
        %vm4294 = vcmp.eq.f32.partialorder %v4282, %v4293
        %v4295 = vsel %vm4294, 1, 0
        %v4296 = vcvt.s32.f32 %v4295
        %v4297 = vld [vmem:[%s7] sm:$0xff]
        %v4298 = vld [vmem:[%s7 + $0x8] sm:$0xff]
        %v4299 = vld [vmem:[%s7 + $0x10] sm:$0xff]
        %v4300 = vld [vmem:[%s7 + $0x18] sm:$0xff]
        %v4301 = vld [vmem:[%s7 + $0x20] sm:$0xff]
        %v4302 = vld [vmem:[%s7 + $0x28] sm:$0xff]
        %v4303 = vld [vmem:[%s7 + $0x30] sm:$0xff]
        %v4304 = vld [vmem:[%s7 + $0x38] sm:$0xff]
        %v4305 = vld [vmem:[%s7 + $0x40] sm:$0xff]
        %v4306 = vld [vmem:[%s7 + $0x48] sm:$0xff]
        %v4307 = vld [vmem:[%s7 + $0x50] sm:$0xff]
        %v4308 = vld [vmem:[%s7 + $0x58] sm:$0xff]
        %v4309 = vld [vmem:[%s7 + $0x60] sm:$0xff]
        %v4310 = vld [vmem:[%s7 + $0x68] sm:$0xff]
        %v4311 = vld [vmem:[%s7 + $0x70] sm:$0xff]
        %v4312 = vld [vmem:[%s7 + $0x78] sm:$0xff]
        %4313 = vmatprep.subr.mxu0 0.0
        %4314 = vmatpush1.msra.mxu0 %v4297
        %4315 = vmatprep.subr.mxu0 0.0
        %4316 = vmatpush1.msra.mxu0 %v4298
        %4317 = vmatprep.subr.mxu0 0.0
        %4318 = vmatpush1.msra.mxu0 %v4299
        %4319 = vmatprep.subr.mxu0 0.0
        %4320 = vmatpush1.msra.mxu0 %v4300
        %4321 = vmatprep.subr.mxu0 0.0
        %4322 = vmatpush1.msra.mxu0 %v4301
        %4323 = vmatprep.subr.mxu0 0.0
        %4324 = vmatpush1.msra.mxu0 %v4302
        %4325 = vmatprep.subr.mxu0 0.0
        %4326 = vmatpush1.msra.mxu0 %v4303
        %4327 = vmatprep.subr.mxu0 0.0
        %4328 = vmatpush1.msra.mxu0 %v4304
        %4329 = vmatprep.subr.mxu0 0.0
        %4330 = vmatpush1.msra.mxu0 %v4305
        %4331 = vmatprep.subr.mxu0 0.0
        %4332 = vmatpush1.msra.mxu0 %v4306
        %4333 = vmatprep.subr.mxu0 0.0
        %4334 = vmatpush1.msra.mxu0 %v4307
        %4335 = vmatprep.subr.mxu0 0.0
        %4336 = vmatpush1.msra.mxu0 %v4308
        %4337 = vmatprep.subr.mxu0 0.0
        %4338 = vmatpush1.msra.mxu0 %v4309
        %4339 = vmatprep.subr.mxu0 0.0
        %4340 = vmatpush1.msra.mxu0 %v4310
        %4341 = vmatprep.subr.mxu0 0.0
        %4342 = vmatpush1.msra.mxu0 %v4311
        %4343 = vmatprep.subr.mxu0 0.0
        %4344 = vmatpush1.msra.mxu0 %v4312
        %4345 = vmatprep.subr.mxu0 0.0
        %4346 = vmatpush1.msra.mxu0 0.0
        %4347 = vmatprep.subr.mxu0 0.0
        %4348 = vmatpush1.msra.mxu0 0.0
        %4349 = vmatprep.subr.mxu0 0.0
        %4350 = vmatpush1.msra.mxu0 0.0
        %4351 = vmatprep.subr.mxu0 0.0
        %4352 = vmatpush1.msra.mxu0 0.0
        %4353 = vmatprep.subr.mxu0 0.0
        %4354 = vmatpush1.msra.mxu0 0.0
        %4355 = vmatprep.subr.mxu0 0.0
        %4356 = vmatpush1.msra.mxu0 0.0
        %4357 = vmatprep.subr.mxu0 0.0
        %4358 = vmatpush1.msra.mxu0 0.0
        %4359 = vmatprep.subr.mxu0 0.0
        %4360 = vmatpush1.msra.mxu0 0.0
        %4361 = vmatprep.subr.mxu0 0.0
        %4362 = vmatpush1.msra.mxu0 0.0
        %4363 = vmatprep.subr.mxu0 0.0
        %4364 = vmatpush1.msra.mxu0 0.0
        %4365 = vmatprep.subr.mxu0 0.0
        %4366 = vmatpush1.msra.mxu0 0.0
        %4367 = vmatprep.subr.mxu0 0.0
        %4368 = vmatpush1.msra.mxu0 0.0
        %4369 = vmatprep.subr.mxu0 0.0
        %4370 = vmatpush1.msra.mxu0 0.0
        %4371 = vmatprep.subr.mxu0 0.0
        %4372 = vmatpush1.msra.mxu0 0.0
        %4373 = vmatprep.subr.mxu0 0.0
        %4374 = vmatpush1.msra.mxu0 0.0
        %4375 = vmatprep.subr.mxu0 0.0
        %4376 = vmatpush1.msra.mxu0 0.0
        %4377 = vmatprep.mubr.f32.mxu0 0.0
        %4378 = vmatmul.mubr.f32.gmra.mrb[0].mxu0 %v4296
        %v4379 = vpop.f32.mrb[0].mxu0
        %v4380 = vadd.f32 0.0, %v4379
        %v4381 = vpop.f32.mrb[0].mxu0
        %4382 = vdwg.mxu0
        %vm4383 = vcmask 123904
        %4384 = vst.msk [vmem:[#allocation3] sm:$0x3] %vm4383, %v4380
        %p4385 = scmp.lt.s32.totalorder %s102, 6
        %s4386 = scalar_select %p4385, %s102, 6
        %s4387 = smul.addr %s4386, 2
        %s4388 = scalar_lea.vmem %s77, %s4387
        // Predicated region
        $region281: #{seq2seq_forward.3} parent=171 // pred_check
          %p4389 = pneg %p918
        $region282: #{seq2seq_forward.3} parent=171 // pred_check_branch
          %4391 = sbr.rel (%p4389) target = $region284
        $region283: #{seq2seq_forward.3} parent=171 // pred_region
          _
        $region284: #{seq2seq_forward.3} parent=171 // pred_fallthru
          _
      $region172: #{seq2seq_forward.3} parent=5 // pred_fallthru
        _
      %p4392 = scmp.le.s32.totalorder 2, %s97
      // Predicated region
      $region285: #{seq2seq_forward.3} parent=5 // pred_check
        %p4393 = pneg %p4392
      $region286: #{seq2seq_forward.3} parent=5 // pred_check_branch
        %4395 = sbr.rel (%p4393) target = $region288
      $region287: #{seq2seq_forward.3} parent=5 // pred_region
        %s4396 = ssub.s32 %s97, 2
        // Predicated region
        $region289: #{seq2seq_forward.3} parent=287 // pred_check
          %p4397 = pneg %p924
        $region290: #{seq2seq_forward.3} parent=287 // pred_check_branch
          %4399 = sbr.rel (%p4397) target = $region292
        $region291: #{seq2seq_forward.3} parent=287 // pred_region
          %p4400 = scmp.lt.s32.totalorder %s103, 6
          %s4401 = scalar_select %p4400, %s103, 6
          %s4402 = smul.addr %s4401, 2
          %s4403 = scalar_lea.vmem %s77, %s4402
        $region292: #{seq2seq_forward.3} parent=287 // pred_fallthru
          _
      $region288: #{seq2seq_forward.3} parent=5 // pred_fallthru
        _
    $region6: #{seq2seq_forward.3} parent=1 // loop_footer
      %s101 = sadd.s32 1, %s97
    $region7: #{seq2seq_forward.3} parent=1 // loop_footer_branch
      %96 = sbr.rel target = $region3
    $region8: #{seq2seq_forward.3} parent=1 // loop_exit
      _
    %4404 = vsyncpa [#allocation9], 1
    %s4405 = scalar_lea.sflag [#allocation9], 1
    %4406 = vsyncpa %s4405, 1
    %4407 = vsyncpa [#allocation11], 1
    %4408 = vsyncpa [#allocation14], 1
    %4409 = vsyncpa [#allocation17], 1
    %4410 = vsyncpa [#allocation20], 1
    %4411 = vsyncpa [#allocation23], 1
    %4412 = vsyncpa [#allocation26], 1
    %4413 = vsyncpa [#allocation29], 1
    %4414 = vsyncpa [#allocation32], 1
    %4415 = vsyncpa [#allocation35], 1
    %4416 = vsyncpa [#allocation38], 1
    %4417 = vsyncpa [#allocation41], 1
    %4418 = vsyncpa [#allocation44], 1
    %4419 = vsyncpa [#allocation47], 1

</llo_original>
